<compile_context>
chip_gen: v7x
topology: tpu7x:2x2x1
jax: 0.10.0
libtpu: 0.0.40
codegen_flags: <defaults>
</compile_context>

<pallas_src>
import jax
import jax.numpy as jnp
from jax.experimental import pallas as pl
from jax.experimental.pallas import tpu as pltpu

LANES = 128  # TPU lane width; all channel dims are padded to this.


# ----------------------------------------------------------------------------
# Kernel 1: conv1 (Cin=1 -> 32) + bias + ReLU + 2x2 maxpool, on the VPU.
# ----------------------------------------------------------------------------
def _conv1_pool_kernel(x_ref, w_ref, b_ref, o_ref):
    # x_ref: (1, 30, 4, 14, 1) with x[0, r, s, j, 0] = x_padded[r, 2*j + s]
    # w_ref: (9, 128)  tap-major conv1 weights, out-channels padded to 128
    # b_ref: (1, 128)  padded bias
    # o_ref: (1, 14, 14, 128)  pooled conv1 output (NHWC, channel-padded)
    xb = jnp.broadcast_to(x_ref[0], (30, 4, 14, LANES))      # lane-broadcast
    w_rows = [w_ref[t, :] for t in range(9)]                 # 9 x (128,)
    bias = b_ref[0]                                          # (128,)

    phase = []
    for pw in range(2):                                      # W-pool phase
        acc = jnp.zeros((28, 14, LANES), jnp.float32)
        for di in range(3):
            for dj in range(3):
                # xb[h+di, pw+dj, j, :] == x_padded[h+di, 2*j + pw + dj]
                acc = acc + xb[di:di + 28, pw + dj, :, :] * w_rows[di * 3 + dj]
        phase.append(acc)

    z = jnp.maximum(phase[0], phase[1])                      # pool over W
    z = jnp.maximum(z + bias, 0.0)                           # bias + ReLU
    z = jnp.max(z.reshape(14, 2, 14, LANES), axis=1)         # pool over H
    o_ref[0] = z


def conv1_pool(xcols, w1g, b1g):
    n = xcols.shape[0]
    return pl.pallas_call(
        _conv1_pool_kernel,
        out_shape=jax.ShapeDtypeStruct((n, 14, 14, LANES), jnp.float32),
        grid_spec=pltpu.PrefetchScalarGridSpec(
            num_scalar_prefetch=0,
            grid=(n,),
            in_specs=[
                pl.BlockSpec((1, 30, 4, 14, 1), lambda i: (i, 0, 0, 0, 0)),
                pl.BlockSpec((9, LANES), lambda i: (0, 0)),
                pl.BlockSpec((1, LANES), lambda i: (0, 0)),
            ],
            out_specs=pl.BlockSpec((1, 14, 14, LANES), lambda i: (i, 0, 0, 0)),
        ),
        compiler_params=pltpu.CompilerParams(dimension_semantics=("parallel",)),
    )(xcols, w1g, b1g)


# ----------------------------------------------------------------------------
# Kernel 2: conv2 (32 -> 64) + bias + ReLU + 2x2 maxpool, MXU GEMM with the
#           im2col built in-kernel (fused).
# ----------------------------------------------------------------------------
def _conv2_pool_kernel(x_ref, w_ref, b_ref, o_ref):
    # x_ref: (1, 4, 16, 8, 128) with x[0, v, r, j, c] = h1_padded[r, 2*j + v, c]
    # w_ref: (1152, 128)  rows = tap*128 + cin (zero for cin>=32 / cout>=64)
    # b_ref: (1, 128)
    # o_ref: (1, 7, 7, 128)
    x = x_ref[0]                                             # (4, 16, 8, 128)
    w = w_ref[...]                                           # (1152, 128)
    bias = b_ref[0]                                          # (128,)

    outs = []
    for pw in range(2):                                      # W-pool phase
        taps = []
        for di in range(3):
            for dj in range(3):
                # rows enumerate (r', j): h1_padded[r'+di, 2*j + pw + dj, :]
                taps.append(x[pw + dj, di:di + 14, :, :].reshape(14 * 8, LANES))
        a = jnp.concatenate(taps, axis=1)                    # (112, 1152)
        outs.append(jnp.dot(a, w, preferred_element_type=jnp.float32))

    z = jnp.maximum(outs[0], outs[1])                        # pool over W phase
    z = jnp.maximum(z + bias, 0.0)                           # bias + ReLU
    z = jnp.max(z.reshape(7, 2, 8, LANES), axis=1)           # pool over H -> (7,8,128)
    o_ref[0] = z[:, :7, :]                                   # drop fake column j=7


def conv2_pool(xc2, w2g, b2g):
    n = xc2.shape[0]
    return pl.pallas_call(
        _conv2_pool_kernel,
        out_shape=jax.ShapeDtypeStruct((n, 7, 7, LANES), jnp.float32),
        grid_spec=pltpu.PrefetchScalarGridSpec(
            num_scalar_prefetch=0,
            grid=(n,),
            in_specs=[
                pl.BlockSpec((1, 4, 16, 8, LANES), lambda i: (i, 0, 0, 0, 0)),
                pl.BlockSpec((9 * LANES, LANES), lambda i: (0, 0)),
                pl.BlockSpec((1, LANES), lambda i: (0, 0)),
            ],
            out_specs=pl.BlockSpec((1, 7, 7, LANES), lambda i: (i, 0, 0, 0)),
        ),
        compiler_params=pltpu.CompilerParams(dimension_semantics=("parallel",)),
    )(xc2, w2g, b2g)


# ----------------------------------------------------------------------------
# Kernel 3: fc (3136 -> 10), lane-dense (padded to 128) output GEMM.
# ----------------------------------------------------------------------------
def _fc_kernel(x_ref, w_ref, b_ref, o_ref):
    o_ref[...] = (jnp.dot(x_ref[...], w_ref[...], preferred_element_type=jnp.float32)
                  + b_ref[...])


def fc(x2d, wfg, bfg):
    m, k = x2d.shape
    return pl.pallas_call(
        _fc_kernel,
        out_shape=jax.ShapeDtypeStruct((m, LANES), jnp.float32),
        grid_spec=pltpu.PrefetchScalarGridSpec(
            num_scalar_prefetch=0,
            grid=(1,),
            in_specs=[
                pl.BlockSpec((m, k), lambda i: (0, 0)),
                pl.BlockSpec((k, LANES), lambda i: (0, 0)),
                pl.BlockSpec((1, LANES), lambda i: (0, 0)),
            ],
            out_specs=pl.BlockSpec((m, LANES), lambda i: (0, 0)),
        ),
        compiler_params=pltpu.CompilerParams(dimension_semantics=("arbitrary",)),
    )(x2d, wfg, bfg)


# ----------------------------------------------------------------------------
# One-time parameter preprocessing (hoisted out of the forward pass).
# ----------------------------------------------------------------------------
def prepare_params(params):
    w1, b1, w2, b2, wf, bf = params
    # conv1: tap-major (9, 128); w1g[di*3+dj, co] = w1[co, 0, di, dj]
    w1g = jnp.transpose(w1, (2, 3, 1, 0)).reshape(9, 32)
    w1g = jnp.pad(w1g, ((0, 0), (0, LANES - 32)))
    b1g = jnp.pad(b1, (0, LANES - 32)).reshape(1, LANES)
    # conv2: (9*128, 128); rows tap*128 + cin, cols = out channel (padded)
    w2t = jnp.transpose(w2, (2, 3, 1, 0)).reshape(9, 32, 64)     # [tap, ci, co]
    w2g = jnp.zeros((9, LANES, LANES), jnp.float32).at[:, :32, :64].set(w2t)
    w2g = w2g.reshape(9 * LANES, LANES)
    b2g = jnp.pad(b2, (0, LANES - 64)).reshape(1, LANES)
    # fc: (7*7*128, 128); matches NHWC(128)-flatten of the pooled activations
    # while reproducing torch's NCHW x.view(-1, 7*7*64) indexing (c*49 + h*7 + w).
    wft = jnp.transpose(wf.reshape(10, 64, 7, 7), (2, 3, 1, 0))  # (h, w, c, co)
    wfg = jnp.zeros((7, 7, LANES, LANES), jnp.float32).at[:, :, :64, :10].set(wft)
    wfg = wfg.reshape(7 * 7 * LANES, LANES)
    bfg = jnp.pad(bf, (0, LANES - 10)).reshape(1, LANES)
    return (w1g, b1g, w2g, b2g, wfg, bfg)


# ----------------------------------------------------------------------------
# Forward pass (matches FashionClassifier.forward).  Input: (N, 1, 28, 28).
# ----------------------------------------------------------------------------
def fashion_classifier_forward(x_nchw, prep):
    w1g, b1g, w2g, b2g, wfg, bfg = prep
    n = x_nchw.shape[0]

    # conv1 input prep (tiny XLA glue): zero-pad + stride-2 W-phase split.
    x = x_nchw.reshape(n, 28, 28)
    xp = jnp.pad(x, ((0, 0), (1, 1), (1, 1)))                             # (n,30,30)
    xcols = jnp.stack([xp[:, :, s:s + 28:2] for s in range(4)], axis=2)   # (n,30,4,14)
    xcols = xcols[..., None]                                              # (n,30,4,14,1)
    h1 = conv1_pool(xcols, w1g, b1g)                                      # (n,14,14,128)

    # conv2 input prep: zero-pad + stride-2 W-phase split.
    h1pp = jnp.pad(h1, ((0, 0), (1, 1), (1, 3), (0, 0)))                  # (n,16,18,128)
    xc2 = jnp.stack([h1pp[:, :, v:v + 16:2, :] for v in range(4)], axis=1)  # (n,4,16,8,128)
    h2 = conv2_pool(xc2, w2g, b2g)                                        # (n,7,7,128)

    # fc on the flattened, channel-padded activations (order matches wfg).
    flat = h2.reshape(n, 7 * 7 * LANES)                                   # (n,6272)
    logits = fc(flat, wfg, bfg)                                           # (n,128)
    return logits[:, :10]


# ----------------------------------------------------------------------------
# Pure-JAX reference (numerical sanity check)
# ----------------------------------------------------------------------------
def ref_forward(x_nchw, params):
    w1, b1, w2, b2, wf, bf = params
    dn = ("NCHW", "OIHW", "NCHW")
    y = jax.lax.conv_general_dilated(x_nchw, w1, (1, 1), "SAME", dimension_numbers=dn)
    y = jnp.maximum(y + b1[None, :, None, None], 0.0)
    y = jax.lax.reduce_window(y, -jnp.inf, jax.lax.max, (1, 1, 2, 2), (1, 1, 2, 2), "VALID")
    y = jax.lax.conv_general_dilated(y, w2, (1, 1), "SAME", dimension_numbers=dn)
    y = jnp.maximum(y + b2[None, :, None, None], 0.0)
    y = jax.lax.reduce_window(y, -jnp.inf, jax.lax.max, (1, 1, 2, 2), (1, 1, 2, 2), "VALID")
    y = y.reshape(y.shape[0], -1)
    return y @ wf.T + bf


# ----------------------------------------------------------------------------
# Main
# ----------------------------------------------------------------------------
if __name__ == "__main__":
    key = jax.random.PRNGKey(0)
    k_x, k1, k2, k3, k4, k5, k6 = jax.random.split(key, 7)

    # Deterministic synthetic parameters (shapes per the PyTorch module).
    w1 = 0.05 * jax.random.normal(k1, (32, 1, 3, 3), jnp.float32)      # conv1.weight
    b1 = 0.05 * jax.random.normal(k2, (32,), jnp.float32)              # conv1.bias
    w2 = 0.05 * jax.random.normal(k3, (64, 32, 3, 3), jnp.float32)     # conv2.weight
    b2 = 0.05 * jax.random.normal(k4, (64,), jnp.float32)              # conv2.bias
    wf = 0.05 * jax.random.normal(k5, (10, 7 * 7 * 64), jnp.float32)   # fc.weight
    bf = 0.05 * jax.random.normal(k6, (10,), jnp.float32)              # fc.bias
    params = (w1, b1, w2, b2, wf, bf)

    # Small batch; spatial size 28 is implied by fc = Linear(7*7*64, 10).
    x = jax.random.normal(k_x, (2, 1, 28, 28), jnp.float32)

    prep = prepare_params(params)                    # one-time weight re-layout
    out = jax.jit(fashion_classifier_forward)(x, prep)
    out = jax.block_until_ready(out)
    assert out.shape == (2, 10), out.shape

    ref = jax.block_until_ready(ref_forward(x, params))
    max_err = float(jnp.max(jnp.abs(out - ref)))
    if max_err > 2e-3:
        raise AssertionError(f"Pallas output mismatch vs reference: max abs err {max_err}")

    print("KERNEL_OK")
</pallas_src>

<mosaic_0001>
module attributes {stable_mosaic.version = 11 : i64} {
  func.func @_conv1_pool_kernel(%arg0: i32, %arg1: memref<1x30x4x14x1xf32, #tpu.memory_space<vmem>>, %arg2: memref<9x128xf32, #tpu.memory_space<vmem>>, %arg3: memref<1x128xf32, #tpu.memory_space<vmem>>, %arg4: memref<1x14x14x128xf32, #tpu.memory_space<vmem>>) attributes {dimension_semantics = [#tpu.dimension_semantics<parallel>], iteration_bounds = array<i64: 2>, scalar_prefetch = 0 : i64, scratch_operands = 0 : i64, tpu.core_type = #tpu.core_type<tc>, window_params = [{transform_indices = @transform_0, window_bounds = array<i64: 1, 30, 4, 14, 1>}, {pipeline_mode = #tpu.pipeline_mode<synchronous>, transform_indices = @transform_1, window_bounds = array<i64: 9, 128>}, {pipeline_mode = #tpu.pipeline_mode<synchronous>, transform_indices = @transform_2, window_bounds = array<i64: 1, 128>}, {transform_indices = @transform_3, window_bounds = array<i64: 1, 14, 14, 128>}]} {
    %c0 = arith.constant 0 : index
    %c0_0 = arith.constant 0 : index
    %c0_1 = arith.constant 0 : index
    %c0_2 = arith.constant 0 : index
    %c0_3 = arith.constant 0 : index
    %0 = vector.load %arg1[%c0, %c0_0, %c0_1, %c0_2, %c0_3] : memref<1x30x4x14x1xf32, #tpu.memory_space<vmem>>, vector<1x30x4x14x1xf32>
    %1 = vector.shape_cast %0 : vector<1x30x4x14x1xf32> to vector<30x4x14x1xf32>
    %2 = vector.shape_cast %1 : vector<30x4x14x1xf32> to vector<30x4x14x1xf32>
    %3 = vector.broadcast %2 : vector<30x4x14x1xf32> to vector<30x4x14x128xf32>
    %c0_4 = arith.constant 0 : index
    %c0_5 = arith.constant 0 : index
    %4 = vector.load %arg2[%c0_4, %c0_5] : memref<9x128xf32, #tpu.memory_space<vmem>>, vector<1x128xf32>
    %5 = vector.shape_cast %4 : vector<1x128xf32> to vector<128xf32>
    %c1 = arith.constant 1 : index
    %c0_6 = arith.constant 0 : index
    %6 = vector.load %arg2[%c1, %c0_6] : memref<9x128xf32, #tpu.memory_space<vmem>>, vector<1x128xf32>
    %7 = vector.shape_cast %6 : vector<1x128xf32> to vector<128xf32>
    %c2 = arith.constant 2 : index
    %c0_7 = arith.constant 0 : index
    %8 = vector.load %arg2[%c2, %c0_7] : memref<9x128xf32, #tpu.memory_space<vmem>>, vector<1x128xf32>
    %9 = vector.shape_cast %8 : vector<1x128xf32> to vector<128xf32>
    %c3 = arith.constant 3 : index
    %c0_8 = arith.constant 0 : index
    %10 = vector.load %arg2[%c3, %c0_8] : memref<9x128xf32, #tpu.memory_space<vmem>>, vector<1x128xf32>
    %11 = vector.shape_cast %10 : vector<1x128xf32> to vector<128xf32>
    %c4 = arith.constant 4 : index
    %c0_9 = arith.constant 0 : index
    %12 = vector.load %arg2[%c4, %c0_9] : memref<9x128xf32, #tpu.memory_space<vmem>>, vector<1x128xf32>
    %13 = vector.shape_cast %12 : vector<1x128xf32> to vector<128xf32>
    %c5 = arith.constant 5 : index
    %c0_10 = arith.constant 0 : index
    %14 = vector.load %arg2[%c5, %c0_10] : memref<9x128xf32, #tpu.memory_space<vmem>>, vector<1x128xf32>
    %15 = vector.shape_cast %14 : vector<1x128xf32> to vector<128xf32>
    %c6 = arith.constant 6 : index
    %c0_11 = arith.constant 0 : index
    %16 = vector.load %arg2[%c6, %c0_11] : memref<9x128xf32, #tpu.memory_space<vmem>>, vector<1x128xf32>
    %17 = vector.shape_cast %16 : vector<1x128xf32> to vector<128xf32>
    %c7 = arith.constant 7 : index
    %c0_12 = arith.constant 0 : index
    %18 = vector.load %arg2[%c7, %c0_12] : memref<9x128xf32, #tpu.memory_space<vmem>>, vector<1x128xf32>
    %19 = vector.shape_cast %18 : vector<1x128xf32> to vector<128xf32>
    %c8 = arith.constant 8 : index
    %c0_13 = arith.constant 0 : index
    %20 = vector.load %arg2[%c8, %c0_13] : memref<9x128xf32, #tpu.memory_space<vmem>>, vector<1x128xf32>
    %21 = vector.shape_cast %20 : vector<1x128xf32> to vector<128xf32>
    %c0_14 = arith.constant 0 : index
    %c0_15 = arith.constant 0 : index
    %22 = vector.load %arg3[%c0_14, %c0_15] : memref<1x128xf32, #tpu.memory_space<vmem>>, vector<1x128xf32>
    %23 = vector.shape_cast %22 : vector<1x128xf32> to vector<128xf32>
    %cst = arith.constant 0.000000e+00 : f32
    %24 = vector.broadcast %cst : f32 to vector<28x14x128xf32>
    %25 = vector.extract_strided_slice %3 {offsets = [0, 0, 0, 0], sizes = [28, 1, 14, 128], strides = [1, 1, 1, 1]} : vector<30x4x14x128xf32> to vector<28x1x14x128xf32>
    %26 = vector.shape_cast %25 : vector<28x1x14x128xf32> to vector<28x14x128xf32>
    %27 = vector.shape_cast %5 : vector<128xf32> to vector<1x1x128xf32>
    %28 = vector.broadcast %27 : vector<1x1x128xf32> to vector<28x14x128xf32>
    %29 = arith.mulf %26, %28 : vector<28x14x128xf32>
    %30 = arith.addf %24, %29 : vector<28x14x128xf32>
    %31 = vector.extract_strided_slice %3 {offsets = [0, 1, 0, 0], sizes = [28, 1, 14, 128], strides = [1, 1, 1, 1]} : vector<30x4x14x128xf32> to vector<28x1x14x128xf32>
    %32 = vector.shape_cast %31 : vector<28x1x14x128xf32> to vector<28x14x128xf32>
    %33 = vector.shape_cast %7 : vector<128xf32> to vector<1x1x128xf32>
    %34 = vector.broadcast %33 : vector<1x1x128xf32> to vector<28x14x128xf32>
    %35 = arith.mulf %32, %34 : vector<28x14x128xf32>
    %36 = arith.addf %30, %35 : vector<28x14x128xf32>
    %37 = vector.extract_strided_slice %3 {offsets = [0, 2, 0, 0], sizes = [28, 1, 14, 128], strides = [1, 1, 1, 1]} : vector<30x4x14x128xf32> to vector<28x1x14x128xf32>
    %38 = vector.shape_cast %37 : vector<28x1x14x128xf32> to vector<28x14x128xf32>
    %39 = vector.shape_cast %9 : vector<128xf32> to vector<1x1x128xf32>
    %40 = vector.broadcast %39 : vector<1x1x128xf32> to vector<28x14x128xf32>
    %41 = arith.mulf %38, %40 : vector<28x14x128xf32>
    %42 = arith.addf %36, %41 : vector<28x14x128xf32>
    %43 = vector.extract_strided_slice %3 {offsets = [1, 0, 0, 0], sizes = [28, 1, 14, 128], strides = [1, 1, 1, 1]} : vector<30x4x14x128xf32> to vector<28x1x14x128xf32>
    %44 = vector.shape_cast %43 : vector<28x1x14x128xf32> to vector<28x14x128xf32>
    %45 = vector.shape_cast %11 : vector<128xf32> to vector<1x1x128xf32>
    %46 = vector.broadcast %45 : vector<1x1x128xf32> to vector<28x14x128xf32>
    %47 = arith.mulf %44, %46 : vector<28x14x128xf32>
    %48 = arith.addf %42, %47 : vector<28x14x128xf32>
    %49 = vector.extract_strided_slice %3 {offsets = [1, 1, 0, 0], sizes = [28, 1, 14, 128], strides = [1, 1, 1, 1]} : vector<30x4x14x128xf32> to vector<28x1x14x128xf32>
    %50 = vector.shape_cast %49 : vector<28x1x14x128xf32> to vector<28x14x128xf32>
    %51 = vector.shape_cast %13 : vector<128xf32> to vector<1x1x128xf32>
    %52 = vector.broadcast %51 : vector<1x1x128xf32> to vector<28x14x128xf32>
    %53 = arith.mulf %50, %52 : vector<28x14x128xf32>
    %54 = arith.addf %48, %53 : vector<28x14x128xf32>
    %55 = vector.extract_strided_slice %3 {offsets = [1, 2, 0, 0], sizes = [28, 1, 14, 128], strides = [1, 1, 1, 1]} : vector<30x4x14x128xf32> to vector<28x1x14x128xf32>
    %56 = vector.shape_cast %55 : vector<28x1x14x128xf32> to vector<28x14x128xf32>
    %57 = vector.shape_cast %15 : vector<128xf32> to vector<1x1x128xf32>
    %58 = vector.broadcast %57 : vector<1x1x128xf32> to vector<28x14x128xf32>
    %59 = arith.mulf %56, %58 : vector<28x14x128xf32>
    %60 = arith.addf %54, %59 : vector<28x14x128xf32>
    %61 = vector.extract_strided_slice %3 {offsets = [2, 0, 0, 0], sizes = [28, 1, 14, 128], strides = [1, 1, 1, 1]} : vector<30x4x14x128xf32> to vector<28x1x14x128xf32>
    %62 = vector.shape_cast %61 : vector<28x1x14x128xf32> to vector<28x14x128xf32>
    %63 = vector.shape_cast %17 : vector<128xf32> to vector<1x1x128xf32>
    %64 = vector.broadcast %63 : vector<1x1x128xf32> to vector<28x14x128xf32>
    %65 = arith.mulf %62, %64 : vector<28x14x128xf32>
    %66 = arith.addf %60, %65 : vector<28x14x128xf32>
    %67 = vector.extract_strided_slice %3 {offsets = [2, 1, 0, 0], sizes = [28, 1, 14, 128], strides = [1, 1, 1, 1]} : vector<30x4x14x128xf32> to vector<28x1x14x128xf32>
    %68 = vector.shape_cast %67 : vector<28x1x14x128xf32> to vector<28x14x128xf32>
    %69 = vector.shape_cast %19 : vector<128xf32> to vector<1x1x128xf32>
    %70 = vector.broadcast %69 : vector<1x1x128xf32> to vector<28x14x128xf32>
    %71 = arith.mulf %68, %70 : vector<28x14x128xf32>
    %72 = arith.addf %66, %71 : vector<28x14x128xf32>
    %73 = vector.extract_strided_slice %3 {offsets = [2, 2, 0, 0], sizes = [28, 1, 14, 128], strides = [1, 1, 1, 1]} : vector<30x4x14x128xf32> to vector<28x1x14x128xf32>
    %74 = vector.shape_cast %73 : vector<28x1x14x128xf32> to vector<28x14x128xf32>
    %75 = vector.shape_cast %21 : vector<128xf32> to vector<1x1x128xf32>
    %76 = vector.broadcast %75 : vector<1x1x128xf32> to vector<28x14x128xf32>
    %77 = arith.mulf %74, %76 : vector<28x14x128xf32>
    %78 = arith.addf %72, %77 : vector<28x14x128xf32>
    %cst_16 = arith.constant 0.000000e+00 : f32
    %79 = vector.broadcast %cst_16 : f32 to vector<28x14x128xf32>
    %80 = vector.extract_strided_slice %3 {offsets = [0, 1, 0, 0], sizes = [28, 1, 14, 128], strides = [1, 1, 1, 1]} : vector<30x4x14x128xf32> to vector<28x1x14x128xf32>
    %81 = vector.shape_cast %80 : vector<28x1x14x128xf32> to vector<28x14x128xf32>
    %82 = vector.shape_cast %5 : vector<128xf32> to vector<1x1x128xf32>
    %83 = vector.broadcast %82 : vector<1x1x128xf32> to vector<28x14x128xf32>
    %84 = arith.mulf %81, %83 : vector<28x14x128xf32>
    %85 = arith.addf %79, %84 : vector<28x14x128xf32>
    %86 = vector.extract_strided_slice %3 {offsets = [0, 2, 0, 0], sizes = [28, 1, 14, 128], strides = [1, 1, 1, 1]} : vector<30x4x14x128xf32> to vector<28x1x14x128xf32>
    %87 = vector.shape_cast %86 : vector<28x1x14x128xf32> to vector<28x14x128xf32>
    %88 = vector.shape_cast %7 : vector<128xf32> to vector<1x1x128xf32>
    %89 = vector.broadcast %88 : vector<1x1x128xf32> to vector<28x14x128xf32>
    %90 = arith.mulf %87, %89 : vector<28x14x128xf32>
    %91 = arith.addf %85, %90 : vector<28x14x128xf32>
    %92 = vector.extract_strided_slice %3 {offsets = [0, 3, 0, 0], sizes = [28, 1, 14, 128], strides = [1, 1, 1, 1]} : vector<30x4x14x128xf32> to vector<28x1x14x128xf32>
    %93 = vector.shape_cast %92 : vector<28x1x14x128xf32> to vector<28x14x128xf32>
    %94 = vector.shape_cast %9 : vector<128xf32> to vector<1x1x128xf32>
    %95 = vector.broadcast %94 : vector<1x1x128xf32> to vector<28x14x128xf32>
    %96 = arith.mulf %93, %95 : vector<28x14x128xf32>
    %97 = arith.addf %91, %96 : vector<28x14x128xf32>
    %98 = vector.extract_strided_slice %3 {offsets = [1, 1, 0, 0], sizes = [28, 1, 14, 128], strides = [1, 1, 1, 1]} : vector<30x4x14x128xf32> to vector<28x1x14x128xf32>
    %99 = vector.shape_cast %98 : vector<28x1x14x128xf32> to vector<28x14x128xf32>
    %100 = vector.shape_cast %11 : vector<128xf32> to vector<1x1x128xf32>
    %101 = vector.broadcast %100 : vector<1x1x128xf32> to vector<28x14x128xf32>
    %102 = arith.mulf %99, %101 : vector<28x14x128xf32>
    %103 = arith.addf %97, %102 : vector<28x14x128xf32>
    %104 = vector.extract_strided_slice %3 {offsets = [1, 2, 0, 0], sizes = [28, 1, 14, 128], strides = [1, 1, 1, 1]} : vector<30x4x14x128xf32> to vector<28x1x14x128xf32>
    %105 = vector.shape_cast %104 : vector<28x1x14x128xf32> to vector<28x14x128xf32>
    %106 = vector.shape_cast %13 : vector<128xf32> to vector<1x1x128xf32>
    %107 = vector.broadcast %106 : vector<1x1x128xf32> to vector<28x14x128xf32>
    %108 = arith.mulf %105, %107 : vector<28x14x128xf32>
    %109 = arith.addf %103, %108 : vector<28x14x128xf32>
    %110 = vector.extract_strided_slice %3 {offsets = [1, 3, 0, 0], sizes = [28, 1, 14, 128], strides = [1, 1, 1, 1]} : vector<30x4x14x128xf32> to vector<28x1x14x128xf32>
    %111 = vector.shape_cast %110 : vector<28x1x14x128xf32> to vector<28x14x128xf32>
    %112 = vector.shape_cast %15 : vector<128xf32> to vector<1x1x128xf32>
    %113 = vector.broadcast %112 : vector<1x1x128xf32> to vector<28x14x128xf32>
    %114 = arith.mulf %111, %113 : vector<28x14x128xf32>
    %115 = arith.addf %109, %114 : vector<28x14x128xf32>
    %116 = vector.extract_strided_slice %3 {offsets = [2, 1, 0, 0], sizes = [28, 1, 14, 128], strides = [1, 1, 1, 1]} : vector<30x4x14x128xf32> to vector<28x1x14x128xf32>
    %117 = vector.shape_cast %116 : vector<28x1x14x128xf32> to vector<28x14x128xf32>
    %118 = vector.shape_cast %17 : vector<128xf32> to vector<1x1x128xf32>
    %119 = vector.broadcast %118 : vector<1x1x128xf32> to vector<28x14x128xf32>
    %120 = arith.mulf %117, %119 : vector<28x14x128xf32>
    %121 = arith.addf %115, %120 : vector<28x14x128xf32>
    %122 = vector.extract_strided_slice %3 {offsets = [2, 2, 0, 0], sizes = [28, 1, 14, 128], strides = [1, 1, 1, 1]} : vector<30x4x14x128xf32> to vector<28x1x14x128xf32>
    %123 = vector.shape_cast %122 : vector<28x1x14x128xf32> to vector<28x14x128xf32>
    %124 = vector.shape_cast %19 : vector<128xf32> to vector<1x1x128xf32>
    %125 = vector.broadcast %124 : vector<1x1x128xf32> to vector<28x14x128xf32>
    %126 = arith.mulf %123, %125 : vector<28x14x128xf32>
    %127 = arith.addf %121, %126 : vector<28x14x128xf32>
    %128 = vector.extract_strided_slice %3 {offsets = [2, 3, 0, 0], sizes = [28, 1, 14, 128], strides = [1, 1, 1, 1]} : vector<30x4x14x128xf32> to vector<28x1x14x128xf32>
    %129 = vector.shape_cast %128 : vector<28x1x14x128xf32> to vector<28x14x128xf32>
    %130 = vector.shape_cast %21 : vector<128xf32> to vector<1x1x128xf32>
    %131 = vector.broadcast %130 : vector<1x1x128xf32> to vector<28x14x128xf32>
    %132 = arith.mulf %129, %131 : vector<28x14x128xf32>
    %133 = arith.addf %127, %132 : vector<28x14x128xf32>
    %134 = arith.maximumf %78, %133 : vector<28x14x128xf32>
    %135 = vector.shape_cast %23 : vector<128xf32> to vector<1x1x128xf32>
    %136 = vector.broadcast %135 : vector<1x1x128xf32> to vector<28x14x128xf32>
    %137 = arith.addf %134, %136 : vector<28x14x128xf32>
    %cst_17 = arith.constant 0.000000e+00 : f32
    %138 = vector.broadcast %cst_17 : f32 to vector<28x14x128xf32>
    %139 = arith.maximumf %137, %138 : vector<28x14x128xf32>
    %140 = vector.shape_cast %139 : vector<28x14x128xf32> to vector<14x2x14x128xf32>
    %cst_18 = arith.constant dense<0xFF800000> : vector<14x14x128xf32>
    %141 = vector.multi_reduction <maximumf>, %140, %cst_18 [1] : vector<14x2x14x128xf32> to vector<14x14x128xf32>
    %c0_19 = arith.constant 0 : index
    %c0_20 = arith.constant 0 : index
    %c0_21 = arith.constant 0 : index
    %c0_22 = arith.constant 0 : index
    %142 = vector.load %arg4[%c0_19, %c0_20, %c0_21, %c0_22] : memref<1x14x14x128xf32, #tpu.memory_space<vmem>>, vector<1x14x14x128xf32>
    %143 = vector.shape_cast %142 : vector<1x14x14x128xf32> to vector<14x14x128xf32>
    %144 = vector.shape_cast %141 : vector<14x14x128xf32> to vector<1x14x14x128xf32>
    tpu.vector_store %arg4[%c0_19, %c0_20, %c0_21, %c0_22], %144 {strides = array<i32>} : memref<1x14x14x128xf32, #tpu.memory_space<vmem>>, vector<1x14x14x128xf32>,
    return
  }
  func.func @transform_0(%arg0: i32) -> (i32, i32, i32, i32, i32) {
    %c0_i32 = arith.constant 0 : i32
    %c0_i32_0 = arith.constant 0 : i32
    %c0_i32_1 = arith.constant 0 : i32
    %c0_i32_2 = arith.constant 0 : i32
    %c0_i32_3 = arith.constant 0 : i32
    return %arg0, %c0_i32, %c0_i32_0, %c0_i32_1, %c0_i32_2 : i32, i32, i32, i32, i32
  }
  func.func @transform_1(%arg0: i32) -> (i32, i32) {
    %c0_i32 = arith.constant 0 : i32
    %c0_i32_0 = arith.constant 0 : i32
    %c0_i32_1 = arith.constant 0 : i32
    return %c0_i32, %c0_i32_0 : i32, i32
  }
  func.func @transform_2(%arg0: i32) -> (i32, i32) {
    %c0_i32 = arith.constant 0 : i32
    %c0_i32_0 = arith.constant 0 : i32
    %c0_i32_1 = arith.constant 0 : i32
    return %c0_i32, %c0_i32_0 : i32, i32
  }
  func.func @transform_3(%arg0: i32) -> (i32, i32, i32, i32) {
    %c0_i32 = arith.constant 0 : i32
    %c0_i32_0 = arith.constant 0 : i32
    %c0_i32_1 = arith.constant 0 : i32
    %c0_i32_2 = arith.constant 0 : i32
    return %arg0, %c0_i32, %c0_i32_0, %c0_i32_1 : i32, i32, i32, i32
  }
}

module attributes {stable_mosaic.version = 11 : i64} {
  func.func @_conv2_pool_kernel(%arg0: i32, %arg1: memref<1x4x16x8x128xf32, #tpu.memory_space<vmem>>, %arg2: memref<1152x128xf32, #tpu.memory_space<vmem>>, %arg3: memref<1x128xf32, #tpu.memory_space<vmem>>, %arg4: memref<1x7x7x128xf32, #tpu.memory_space<vmem>>) attributes {dimension_semantics = [#tpu.dimension_semantics<parallel>], iteration_bounds = array<i64: 2>, scalar_prefetch = 0 : i64, scratch_operands = 0 : i64, tpu.core_type = #tpu.core_type<tc>, window_params = [{transform_indices = @transform_0, window_bounds = array<i64: 1, 4, 16, 8, 128>}, {pipeline_mode = #tpu.pipeline_mode<synchronous>, transform_indices = @transform_1, window_bounds = array<i64: 1152, 128>}, {pipeline_mode = #tpu.pipeline_mode<synchronous>, transform_indices = @transform_2, window_bounds = array<i64: 1, 128>}, {transform_indices = @transform_3, window_bounds = array<i64: 1, 7, 7, 128>}]} {
    %c0 = arith.constant 0 : index
    %c0_0 = arith.constant 0 : index
    %c0_1 = arith.constant 0 : index
    %c0_2 = arith.constant 0 : index
    %c0_3 = arith.constant 0 : index
    %0 = vector.load %arg1[%c0, %c0_0, %c0_1, %c0_2, %c0_3] : memref<1x4x16x8x128xf32, #tpu.memory_space<vmem>>, vector<1x4x16x8x128xf32>
    %1 = vector.shape_cast %0 : vector<1x4x16x8x128xf32> to vector<4x16x8x128xf32>
    %c0_4 = arith.constant 0 : index
    %c0_5 = arith.constant 0 : index
    %2 = vector.load %arg2[%c0_4, %c0_5] : memref<1152x128xf32, #tpu.memory_space<vmem>>, vector<1152x128xf32>
    %c0_6 = arith.constant 0 : index
    %c0_7 = arith.constant 0 : index
    %3 = vector.load %arg3[%c0_6, %c0_7] : memref<1x128xf32, #tpu.memory_space<vmem>>, vector<1x128xf32>
    %4 = vector.shape_cast %3 : vector<1x128xf32> to vector<128xf32>
    %5 = vector.extract_strided_slice %1 {offsets = [0, 0, 0, 0], sizes = [1, 14, 8, 128], strides = [1, 1, 1, 1]} : vector<4x16x8x128xf32> to vector<1x14x8x128xf32>
    %6 = vector.shape_cast %5 : vector<1x14x8x128xf32> to vector<14x8x128xf32>
    %7 = vector.shape_cast %6 : vector<14x8x128xf32> to vector<112x128xf32>
    %8 = vector.extract_strided_slice %1 {offsets = [1, 0, 0, 0], sizes = [1, 14, 8, 128], strides = [1, 1, 1, 1]} : vector<4x16x8x128xf32> to vector<1x14x8x128xf32>
    %9 = vector.shape_cast %8 : vector<1x14x8x128xf32> to vector<14x8x128xf32>
    %10 = vector.shape_cast %9 : vector<14x8x128xf32> to vector<112x128xf32>
    %11 = vector.extract_strided_slice %1 {offsets = [2, 0, 0, 0], sizes = [1, 14, 8, 128], strides = [1, 1, 1, 1]} : vector<4x16x8x128xf32> to vector<1x14x8x128xf32>
    %12 = vector.shape_cast %11 : vector<1x14x8x128xf32> to vector<14x8x128xf32>
    %13 = vector.shape_cast %12 : vector<14x8x128xf32> to vector<112x128xf32>
    %14 = vector.extract_strided_slice %1 {offsets = [0, 1, 0, 0], sizes = [1, 14, 8, 128], strides = [1, 1, 1, 1]} : vector<4x16x8x128xf32> to vector<1x14x8x128xf32>
    %15 = vector.shape_cast %14 : vector<1x14x8x128xf32> to vector<14x8x128xf32>
    %16 = vector.shape_cast %15 : vector<14x8x128xf32> to vector<112x128xf32>
    %17 = vector.extract_strided_slice %1 {offsets = [1, 1, 0, 0], sizes = [1, 14, 8, 128], strides = [1, 1, 1, 1]} : vector<4x16x8x128xf32> to vector<1x14x8x128xf32>
    %18 = vector.shape_cast %17 : vector<1x14x8x128xf32> to vector<14x8x128xf32>
    %19 = vector.shape_cast %18 : vector<14x8x128xf32> to vector<112x128xf32>
    %20 = vector.extract_strided_slice %1 {offsets = [2, 1, 0, 0], sizes = [1, 14, 8, 128], strides = [1, 1, 1, 1]} : vector<4x16x8x128xf32> to vector<1x14x8x128xf32>
    %21 = vector.shape_cast %20 : vector<1x14x8x128xf32> to vector<14x8x128xf32>
    %22 = vector.shape_cast %21 : vector<14x8x128xf32> to vector<112x128xf32>
    %23 = vector.extract_strided_slice %1 {offsets = [0, 2, 0, 0], sizes = [1, 14, 8, 128], strides = [1, 1, 1, 1]} : vector<4x16x8x128xf32> to vector<1x14x8x128xf32>
    %24 = vector.shape_cast %23 : vector<1x14x8x128xf32> to vector<14x8x128xf32>
    %25 = vector.shape_cast %24 : vector<14x8x128xf32> to vector<112x128xf32>
    %26 = vector.extract_strided_slice %1 {offsets = [1, 2, 0, 0], sizes = [1, 14, 8, 128], strides = [1, 1, 1, 1]} : vector<4x16x8x128xf32> to vector<1x14x8x128xf32>
    %27 = vector.shape_cast %26 : vector<1x14x8x128xf32> to vector<14x8x128xf32>
    %28 = vector.shape_cast %27 : vector<14x8x128xf32> to vector<112x128xf32>
    %29 = vector.extract_strided_slice %1 {offsets = [2, 2, 0, 0], sizes = [1, 14, 8, 128], strides = [1, 1, 1, 1]} : vector<4x16x8x128xf32> to vector<1x14x8x128xf32>
    %30 = vector.shape_cast %29 : vector<1x14x8x128xf32> to vector<14x8x128xf32>
    %31 = vector.shape_cast %30 : vector<14x8x128xf32> to vector<112x128xf32>
    %32 = tpu.concatenate %7, %10, %13, %16, %19, %22, %25, %28, %31 in 1 : vector<112x128xf32>, vector<112x128xf32>, vector<112x128xf32>, vector<112x128xf32>, vector<112x128xf32>, vector<112x128xf32>, vector<112x128xf32>, vector<112x128xf32>, vector<112x128xf32> -> vector<112x1152xf32>
    %cst = arith.constant dense<0.000000e+00> : vector<112x128xf32>
    %33 = tpu.matmul %32, %2, %cst {dimension_numbers = #tpu.dot_dimension_numbers<[1], [0], [0], [1], [0, 0, 1, 1], [], []>} : vector<112x1152xf32>, vector<1152x128xf32>, vector<112x128xf32> -> vector<112x128xf32>
    %34 = vector.extract_strided_slice %1 {offsets = [1, 0, 0, 0], sizes = [1, 14, 8, 128], strides = [1, 1, 1, 1]} : vector<4x16x8x128xf32> to vector<1x14x8x128xf32>
    %35 = vector.shape_cast %34 : vector<1x14x8x128xf32> to vector<14x8x128xf32>
    %36 = vector.shape_cast %35 : vector<14x8x128xf32> to vector<112x128xf32>
    %37 = vector.extract_strided_slice %1 {offsets = [2, 0, 0, 0], sizes = [1, 14, 8, 128], strides = [1, 1, 1, 1]} : vector<4x16x8x128xf32> to vector<1x14x8x128xf32>
    %38 = vector.shape_cast %37 : vector<1x14x8x128xf32> to vector<14x8x128xf32>
    %39 = vector.shape_cast %38 : vector<14x8x128xf32> to vector<112x128xf32>
    %40 = vector.extract_strided_slice %1 {offsets = [3, 0, 0, 0], sizes = [1, 14, 8, 128], strides = [1, 1, 1, 1]} : vector<4x16x8x128xf32> to vector<1x14x8x128xf32>
    %41 = vector.shape_cast %40 : vector<1x14x8x128xf32> to vector<14x8x128xf32>
    %42 = vector.shape_cast %41 : vector<14x8x128xf32> to vector<112x128xf32>
    %43 = vector.extract_strided_slice %1 {offsets = [1, 1, 0, 0], sizes = [1, 14, 8, 128], strides = [1, 1, 1, 1]} : vector<4x16x8x128xf32> to vector<1x14x8x128xf32>
    %44 = vector.shape_cast %43 : vector<1x14x8x128xf32> to vector<14x8x128xf32>
    %45 = vector.shape_cast %44 : vector<14x8x128xf32> to vector<112x128xf32>
    %46 = vector.extract_strided_slice %1 {offsets = [2, 1, 0, 0], sizes = [1, 14, 8, 128], strides = [1, 1, 1, 1]} : vector<4x16x8x128xf32> to vector<1x14x8x128xf32>
    %47 = vector.shape_cast %46 : vector<1x14x8x128xf32> to vector<14x8x128xf32>
    %48 = vector.shape_cast %47 : vector<14x8x128xf32> to vector<112x128xf32>
    %49 = vector.extract_strided_slice %1 {offsets = [3, 1, 0, 0], sizes = [1, 14, 8, 128], strides = [1, 1, 1, 1]} : vector<4x16x8x128xf32> to vector<1x14x8x128xf32>
    %50 = vector.shape_cast %49 : vector<1x14x8x128xf32> to vector<14x8x128xf32>
    %51 = vector.shape_cast %50 : vector<14x8x128xf32> to vector<112x128xf32>
    %52 = vector.extract_strided_slice %1 {offsets = [1, 2, 0, 0], sizes = [1, 14, 8, 128], strides = [1, 1, 1, 1]} : vector<4x16x8x128xf32> to vector<1x14x8x128xf32>
    %53 = vector.shape_cast %52 : vector<1x14x8x128xf32> to vector<14x8x128xf32>
    %54 = vector.shape_cast %53 : vector<14x8x128xf32> to vector<112x128xf32>
    %55 = vector.extract_strided_slice %1 {offsets = [2, 2, 0, 0], sizes = [1, 14, 8, 128], strides = [1, 1, 1, 1]} : vector<4x16x8x128xf32> to vector<1x14x8x128xf32>
    %56 = vector.shape_cast %55 : vector<1x14x8x128xf32> to vector<14x8x128xf32>
    %57 = vector.shape_cast %56 : vector<14x8x128xf32> to vector<112x128xf32>
    %58 = vector.extract_strided_slice %1 {offsets = [3, 2, 0, 0], sizes = [1, 14, 8, 128], strides = [1, 1, 1, 1]} : vector<4x16x8x128xf32> to vector<1x14x8x128xf32>
    %59 = vector.shape_cast %58 : vector<1x14x8x128xf32> to vector<14x8x128xf32>
    %60 = vector.shape_cast %59 : vector<14x8x128xf32> to vector<112x128xf32>
    %61 = tpu.concatenate %36, %39, %42, %45, %48, %51, %54, %57, %60 in 1 : vector<112x128xf32>, vector<112x128xf32>, vector<112x128xf32>, vector<112x128xf32>, vector<112x128xf32>, vector<112x128xf32>, vector<112x128xf32>, vector<112x128xf32>, vector<112x128xf32> -> vector<112x1152xf32>
    %cst_8 = arith.constant dense<0.000000e+00> : vector<112x128xf32>
    %62 = tpu.matmul %61, %2, %cst_8 {dimension_numbers = #tpu.dot_dimension_numbers<[1], [0], [0], [1], [0, 0, 1, 1], [], []>} : vector<112x1152xf32>, vector<1152x128xf32>, vector<112x128xf32> -> vector<112x128xf32>
    %63 = arith.maximumf %33, %62 : vector<112x128xf32>
    %64 = vector.shape_cast %4 : vector<128xf32> to vector<1x128xf32>
    %65 = vector.broadcast %64 : vector<1x128xf32> to vector<112x128xf32>
    %66 = arith.addf %63, %65 : vector<112x128xf32>
    %cst_9 = arith.constant 0.000000e+00 : f32
    %67 = vector.broadcast %cst_9 : f32 to vector<112x128xf32>
    %68 = arith.maximumf %66, %67 : vector<112x128xf32>
    %69 = vector.shape_cast %68 : vector<112x128xf32> to vector<7x2x8x128xf32>
    %cst_10 = arith.constant dense<0xFF800000> : vector<7x8x128xf32>
    %70 = vector.multi_reduction <maximumf>, %69, %cst_10 [1] : vector<7x2x8x128xf32> to vector<7x8x128xf32>
    %71 = vector.extract_strided_slice %70 {offsets = [0, 0, 0], sizes = [7, 7, 128], strides = [1, 1, 1]} : vector<7x8x128xf32> to vector<7x7x128xf32>
    %c0_11 = arith.constant 0 : index
    %c0_12 = arith.constant 0 : index
    %c0_13 = arith.constant 0 : index
    %c0_14 = arith.constant 0 : index
    %72 = vector.load %arg4[%c0_11, %c0_12, %c0_13, %c0_14] : memref<1x7x7x128xf32, #tpu.memory_space<vmem>>, vector<1x7x7x128xf32>
    %73 = vector.shape_cast %72 : vector<1x7x7x128xf32> to vector<7x7x128xf32>
    %74 = vector.shape_cast %71 : vector<7x7x128xf32> to vector<1x7x7x128xf32>
    tpu.vector_store %arg4[%c0_11, %c0_12, %c0_13, %c0_14], %74 {strides = array<i32>} : memref<1x7x7x128xf32, #tpu.memory_space<vmem>>, vector<1x7x7x128xf32>,
    return
  }
  func.func @transform_0(%arg0: i32) -> (i32, i32, i32, i32, i32) {
    %c0_i32 = arith.constant 0 : i32
    %c0_i32_0 = arith.constant 0 : i32
    %c0_i32_1 = arith.constant 0 : i32
    %c0_i32_2 = arith.constant 0 : i32
    %c0_i32_3 = arith.constant 0 : i32
    return %arg0, %c0_i32, %c0_i32_0, %c0_i32_1, %c0_i32_2 : i32, i32, i32, i32, i32
  }
  func.func @transform_1(%arg0: i32) -> (i32, i32) {
    %c0_i32 = arith.constant 0 : i32
    %c0_i32_0 = arith.constant 0 : i32
    %c0_i32_1 = arith.constant 0 : i32
    return %c0_i32, %c0_i32_0 : i32, i32
  }
  func.func @transform_2(%arg0: i32) -> (i32, i32) {
    %c0_i32 = arith.constant 0 : i32
    %c0_i32_0 = arith.constant 0 : i32
    %c0_i32_1 = arith.constant 0 : i32
    return %c0_i32, %c0_i32_0 : i32, i32
  }
  func.func @transform_3(%arg0: i32) -> (i32, i32, i32, i32) {
    %c0_i32 = arith.constant 0 : i32
    %c0_i32_0 = arith.constant 0 : i32
    %c0_i32_1 = arith.constant 0 : i32
    %c0_i32_2 = arith.constant 0 : i32
    return %arg0, %c0_i32, %c0_i32_0, %c0_i32_1 : i32, i32, i32, i32
  }
}

module attributes {stable_mosaic.version = 11 : i64} {
  func.func @_fc_kernel(%arg0: i32, %arg1: memref<2x6272xf32, #tpu.memory_space<vmem>>, %arg2: memref<6272x128xf32, #tpu.memory_space<vmem>>, %arg3: memref<1x128xf32, #tpu.memory_space<vmem>>, %arg4: memref<2x128xf32, #tpu.memory_space<vmem>>) attributes {dimension_semantics = [#tpu.dimension_semantics<arbitrary>], iteration_bounds = array<i64: 1>, scalar_prefetch = 0 : i64, scratch_operands = 0 : i64, tpu.core_type = #tpu.core_type<tc>, window_params = [{pipeline_mode = #tpu.pipeline_mode<synchronous>, transform_indices = @transform_0, window_bounds = array<i64: 2, 6272>}, {pipeline_mode = #tpu.pipeline_mode<synchronous>, transform_indices = @transform_1, window_bounds = array<i64: 6272, 128>}, {pipeline_mode = #tpu.pipeline_mode<synchronous>, transform_indices = @transform_2, window_bounds = array<i64: 1, 128>}, {pipeline_mode = #tpu.pipeline_mode<synchronous>, transform_indices = @transform_3, window_bounds = array<i64: 2, 128>}]} {
    %c0 = arith.constant 0 : index
    %c0_0 = arith.constant 0 : index
    %0 = vector.load %arg1[%c0, %c0_0] : memref<2x6272xf32, #tpu.memory_space<vmem>>, vector<2x6272xf32>
    %c0_1 = arith.constant 0 : index
    %c0_2 = arith.constant 0 : index
    %1 = vector.load %arg2[%c0_1, %c0_2] : memref<6272x128xf32, #tpu.memory_space<vmem>>, vector<6272x128xf32>
    %cst = arith.constant dense<0.000000e+00> : vector<2x128xf32>
    %2 = tpu.matmul %0, %1, %cst {dimension_numbers = #tpu.dot_dimension_numbers<[1], [0], [0], [1], [0, 0, 1, 1], [], []>} : vector<2x6272xf32>, vector<6272x128xf32>, vector<2x128xf32> -> vector<2x128xf32>
    %c0_3 = arith.constant 0 : index
    %c0_4 = arith.constant 0 : index
    %3 = vector.load %arg3[%c0_3, %c0_4] : memref<1x128xf32, #tpu.memory_space<vmem>>, vector<1x128xf32>
    %4 = vector.broadcast %3 : vector<1x128xf32> to vector<2x128xf32>
    %5 = arith.addf %2, %4 : vector<2x128xf32>
    %c0_5 = arith.constant 0 : index
    %c0_6 = arith.constant 0 : index
    %6 = vector.load %arg4[%c0_5, %c0_6] : memref<2x128xf32, #tpu.memory_space<vmem>>, vector<2x128xf32>
    tpu.vector_store %arg4[%c0_5, %c0_6], %5 {strides = array<i32>} : memref<2x128xf32, #tpu.memory_space<vmem>>, vector<2x128xf32>,
    return
  }
  func.func @transform_0(%arg0: i32) -> (i32, i32) {
    %c0_i32 = arith.constant 0 : i32
    %c0_i32_0 = arith.constant 0 : i32
    %c0_i32_1 = arith.constant 0 : i32
    return %c0_i32, %c0_i32_0 : i32, i32
  }
  func.func @transform_1(%arg0: i32) -> (i32, i32) {
    %c0_i32 = arith.constant 0 : i32
    %c0_i32_0 = arith.constant 0 : i32
    %c0_i32_1 = arith.constant 0 : i32
    return %c0_i32, %c0_i32_0 : i32, i32
  }
  func.func @transform_2(%arg0: i32) -> (i32, i32) {
    %c0_i32 = arith.constant 0 : i32
    %c0_i32_0 = arith.constant 0 : i32
    %c0_i32_1 = arith.constant 0 : i32
    return %c0_i32, %c0_i32_0 : i32, i32
  }
  func.func @transform_3(%arg0: i32) -> (i32, i32) {
    %c0_i32 = arith.constant 0 : i32
    %c0_i32_0 = arith.constant 0 : i32
    %c0_i32_1 = arith.constant 0 : i32
    return %c0_i32, %c0_i32_0 : i32, i32
  }
}

</mosaic_0001>

<llo_original>
// kernel: fashion_classifier_forward.4
$region0: #{fashion_classifier_forward.4}
  #allocation0 [shape = 'u32[]', space=smem, size = 0x4, offset = 0x4, fixed_abs, tag = 'smem constant byte address 0x4 - core index']
  #allocation1 [shape = 'u32[144,128]{1,0:T(1,128)}', space=vmem, size = 0x12000, scoped, tag = 'internal scratch']
  %s0 = inlined_call_operand.vmem [shape: f32[2,4,16,8,128], index: 0, kind: input, shape index: {}]
  %s1 = inlined_call_operand.vmem [shape: f32[1152,128], index: 1, kind: input, shape index: {}]
  %s2 = inlined_call_operand.vmem [shape: f32[1,128], index: 2, kind: input, shape index: {}]
  %s3 = inlined_call_operand.vmem [shape: f32[2,7,7,128], index: 3, kind: output, shape index: {}]
  %s4 = sld [smem:[#allocation0]]
  $region45: #{fashion_classifier_forward.4} parent=0
    _
  %s6 = ssub.s32 1, %s4
  %s7 = scalar_select 0, %s6, %s4
  loop: start=0, step=1, limit=4
  $region2: #{fashion_classifier_forward.4} parent=0 // loop_pre_header
    _
  $region3: #{fashion_classifier_forward.4} parent=0 // loop_header
    %s9 = sphi 0, %s13
    %p10 = scmp.ge.s32.totalorder %s9, 4
    %s19 = sphi 0, %s21
    %s22 = sphi 0, %s19
    %s23 = sphi 0, %s22
    %s39 = sphi 0, %s23
    %s43 = sphi 0, %s43
    %s45 = sphi 0, %s43
    %s46 = sphi 0, %s45
    %s60 = sphi 0, %s46
    %s64 = sphi 0, %s64
    %s66 = sphi 0, %s64
    %s67 = sphi 0, %s66
    %s81 = sphi 0, %s67
    %s87 = sphi 0, %s89
    %s90 = sphi 0, %s87
    %s91 = sphi 0, %s90
    %s107 = sphi 0, %s91
  $region4: #{fashion_classifier_forward.4} parent=0 // loop_header_branch
    %12 = sbr.rel (%p10) target = $region8
  $region5: #{fashion_classifier_forward.4} parent=0 // loop_body
    %s14 = ssub.s32 %s9, 1
    %s15 = ssub.s32 %s9, 2
    %s16 = sadd.s32 %s9, 1
    %s17 = ssub.s32 %s9, %s16
    %p18 = scmp.eq.s32.totalorder %s17, 0
    %s20 = sadd.s32 %s19, 1
    %s21 = scalar_select %p18, %s19, %s20
    %p24 = pneg %p18
    %p25 = scmp.eq.s32.totalorder %s9, 1
    %p26 = por %p24, %p25
    %p27 = scmp.ne.s32.totalorder %s19, %s22
    %p28 = scmp.eq.s32.totalorder %s9, 0
    %p29 = por %p27, %p28
    %p30 = scmp.ne.s32.totalorder %s19, %s22
    %p31 = scmp.eq.s32.totalorder %s14, 1
    %p32 = por %p30, %p31
    %p33 = scmp.ne.s32.totalorder %s22, %s23
    %p34 = scmp.eq.s32.totalorder %s14, 0
    %p35 = por %p33, %p34
    %p36 = scmp.ne.s32.totalorder %s22, %s23
    %p37 = scmp.eq.s32.totalorder %s15, 1
    %p38 = por %p36, %p37
    %p40 = scmp.ne.s32.totalorder %s23, %s39
    %p41 = scmp.eq.s32.totalorder %s15, 0
    %p42 = por %p40, %p41
    %s44 = sadd.s32 %s43, 1
    %p47 = scmp.eq.s32.totalorder %s9, 1
    %p48 = scmp.ne.s32.totalorder %s43, %s45
    %p49 = scmp.eq.s32.totalorder %s9, 0
    %p50 = por %p48, %p49
    %p51 = scmp.ne.s32.totalorder %s43, %s45
    %p52 = scmp.eq.s32.totalorder %s14, 1
    %p53 = por %p51, %p52
    %p54 = scmp.ne.s32.totalorder %s45, %s46
    %p55 = scmp.eq.s32.totalorder %s14, 0
    %p56 = por %p54, %p55
    %p57 = scmp.ne.s32.totalorder %s45, %s46
    %p58 = scmp.eq.s32.totalorder %s15, 1
    %p59 = por %p57, %p58
    %p61 = scmp.ne.s32.totalorder %s46, %s60
    %p62 = scmp.eq.s32.totalorder %s15, 0
    %p63 = por %p61, %p62
    %s65 = sadd.s32 %s64, 1
    %p68 = scmp.eq.s32.totalorder %s9, 1
    %p69 = scmp.ne.s32.totalorder %s64, %s66
    %p70 = scmp.eq.s32.totalorder %s9, 0
    %p71 = por %p69, %p70
    %p72 = scmp.ne.s32.totalorder %s64, %s66
    %p73 = scmp.eq.s32.totalorder %s14, 1
    %p74 = por %p72, %p73
    %p75 = scmp.ne.s32.totalorder %s66, %s67
    %p76 = scmp.eq.s32.totalorder %s14, 0
    %p77 = por %p75, %p76
    %p78 = scmp.ne.s32.totalorder %s66, %s67
    %p79 = scmp.eq.s32.totalorder %s15, 1
    %p80 = por %p78, %p79
    %p82 = scmp.ne.s32.totalorder %s67, %s81
    %p83 = scmp.eq.s32.totalorder %s15, 0
    %p84 = por %p82, %p83
    %s85 = ssub.s32 %s9, %s16
    %p86 = scmp.eq.s32.totalorder %s85, 0
    %s88 = sadd.s32 %s87, 1
    %s89 = scalar_select %p86, %s87, %s88
    %p92 = pneg %p86
    %p93 = scmp.eq.s32.totalorder %s9, 1
    %p94 = por %p92, %p93
    %p95 = scmp.ne.s32.totalorder %s87, %s90
    %p96 = scmp.eq.s32.totalorder %s9, 0
    %p97 = por %p95, %p96
    %p98 = scmp.ne.s32.totalorder %s87, %s90
    %p99 = scmp.eq.s32.totalorder %s14, 1
    %p100 = por %p98, %p99
    %p101 = scmp.ne.s32.totalorder %s90, %s91
    %p102 = scmp.eq.s32.totalorder %s14, 0
    %p103 = por %p101, %p102
    %p104 = scmp.ne.s32.totalorder %s90, %s91
    %p105 = scmp.eq.s32.totalorder %s15, 1
    %p106 = por %p104, %p105
    %p108 = scmp.ne.s32.totalorder %s91, %s107
    %p109 = scmp.eq.s32.totalorder %s15, 0
    %p110 = por %p108, %p109
    %p111 = scmp.le.s32.totalorder 1, %s9
    %p112 = scmp.lt.s32.totalorder %s9, 3
    %p113 = pnand %p111, %p112
    %p114 = pneg %p113
    // Predicated region
    $region9: #{fashion_classifier_forward.4} parent=5 // pred_check
      _
    $region10: #{fashion_classifier_forward.4} parent=5 // pred_check_branch
      %116 = sbr.rel (%p113) target = $region12
    $region11: #{fashion_classifier_forward.4} parent=5 // pred_region
      %s117 = ssub.s32 %s9, 1
      // Predicated region
      $region13: #{fashion_classifier_forward.4} parent=11 // pred_check
        %p118 = pneg %p56
      $region14: #{fashion_classifier_forward.4} parent=11 // pred_check_branch
        %120 = sbr.rel (%p118) target = $region16
      $region15: #{fashion_classifier_forward.4} parent=11 // pred_region
        _
      $region16: #{fashion_classifier_forward.4} parent=11 // pred_fallthru
        _
      // Predicated region
      $region17: #{fashion_classifier_forward.4} parent=11 // pred_check
        %p121 = pneg %p77
      $region18: #{fashion_classifier_forward.4} parent=11 // pred_check_branch
        %123 = sbr.rel (%p121) target = $region20
      $region19: #{fashion_classifier_forward.4} parent=11 // pred_region
        _
      $region20: #{fashion_classifier_forward.4} parent=11 // pred_fallthru
        _
    $region12: #{fashion_classifier_forward.4} parent=5 // pred_fallthru
      _
    %p124 = scmp.lt.s32.totalorder %s9, 2
    // Predicated region
    $region21: #{fashion_classifier_forward.4} parent=5 // pred_check
      %p125 = pneg %p124
    $region22: #{fashion_classifier_forward.4} parent=5 // pred_check_branch
      %127 = sbr.rel (%p125) target = $region24
    $region23: #{fashion_classifier_forward.4} parent=5 // pred_region
      // Predicated region
      $region25: #{fashion_classifier_forward.4} parent=23 // pred_check
        %p128 = pneg %p29
      $region26: #{fashion_classifier_forward.4} parent=23 // pred_check_branch
        %130 = sbr.rel (%p128) target = $region28
      $region27: #{fashion_classifier_forward.4} parent=23 // pred_region
        %p131 = scmp.lt.s32.totalorder %s9, 1
        %s132 = scalar_select %p131, %s9, 1
        %s133 = smul.addr %s132, 64
        %s134 = smul.addr %s133, 8
        %s135 = scalar_lea.vmem %s0, %s134
      $region28: #{fashion_classifier_forward.4} parent=23 // pred_fallthru
        _
    $region24: #{fashion_classifier_forward.4} parent=5 // pred_fallthru
      _
    %p136 = scmp.le.s32.totalorder 1, %s9
    %p137 = scmp.lt.s32.totalorder %s9, 3
    %p138 = pnand %p136, %p137
    %p139 = pneg %p138
    // Predicated region
    $region29: #{fashion_classifier_forward.4} parent=5 // pred_check
      _
    $region30: #{fashion_classifier_forward.4} parent=5 // pred_check_branch
      %141 = sbr.rel (%p138) target = $region32
    $region31: #{fashion_classifier_forward.4} parent=5 // pred_region
      %s142 = ssub.s32 %s9, 1
      %p143 = scmp.lt.s32.totalorder %s14, 1
      %s144 = scalar_select %p143, %s14, 1
      %s145 = smul.addr %s144, 64
      %s146 = smul.addr %s145, 8
      %s147 = scalar_lea.vmem %s0, %s146
      %p148 = pneg %p35
      %p149 = pneg %p32
      %p150 = pneg %p56
      %p151 = pneg %p53
      %p152 = pneg %p77
      %p153 = pneg %p74
      %p154 = pneg %p103
      %p155 = pneg %p100
      %p156 = scmp.lt.s32.totalorder %s14, 1
      %s157 = scalar_select %p156, %s14, 1
      %s158 = smul.addr %s157, 7
      %s159 = smul.addr %s158, 8
      %s160 = scalar_lea.vmem %s3, %s159
      %p161 = scmp.lt.s32.totalorder %s14, 1
      %s162 = scalar_select %p161, %s14, 1
      %s163 = smul.addr %s162, 64
      %s164 = smul.addr %s163, 8
      %s165 = scalar_lea.vmem %s0, %s164
      %p166 = scmp.lt.s32.totalorder %s14, 1
      %s167 = scalar_select %p166, %s14, 1
      %s168 = smul.addr %s167, 7
      %s169 = smul.addr %s168, 8
      %s170 = scalar_lea.vmem %s3, %s169
      %v171 = vld [vmem:[%s165] sm:$0xff]
      %v172 = vld [vmem:[%s165 + $0x8] sm:$0xff]
      %v173 = vld [vmem:[%s165 + $0x10] sm:$0xff]
      %v174 = vld [vmem:[%s165 + $0x18] sm:$0xff]
      %v175 = vld [vmem:[%s165 + $0x20] sm:$0xff]
      %v176 = vld [vmem:[%s165 + $0x28] sm:$0xff]
      %v177 = vld [vmem:[%s165 + $0x30] sm:$0xff]
      %v178 = vld [vmem:[%s165 + $0x38] sm:$0xff]
      %v179 = vld [vmem:[%s165 + $0x40] sm:$0xff]
      %v180 = vld [vmem:[%s165 + $0x48] sm:$0xff]
      %v181 = vld [vmem:[%s165 + $0x50] sm:$0xff]
      %v182 = vld [vmem:[%s165 + $0x58] sm:$0xff]
      %v183 = vld [vmem:[%s165 + $0x60] sm:$0xff]
      %v184 = vld [vmem:[%s165 + $0x68] sm:$0xff]
      %v185 = vld [vmem:[%s165 + $0x70] sm:$0xff]
      %v186 = vld [vmem:[%s165 + $0x78] sm:$0xff]
      %v187 = vld [vmem:[%s165 + $0x80] sm:$0xff]
      %v188 = vld [vmem:[%s165 + $0x88] sm:$0xff]
      %v189 = vld [vmem:[%s165 + $0x90] sm:$0xff]
      %v190 = vld [vmem:[%s165 + $0x98] sm:$0xff]
      %v191 = vld [vmem:[%s165 + $0xa0] sm:$0xff]
      %v192 = vld [vmem:[%s165 + $0xa8] sm:$0xff]
      %v193 = vld [vmem:[%s165 + $0xb0] sm:$0xff]
      %v194 = vld [vmem:[%s165 + $0xb8] sm:$0xff]
      %v195 = vld [vmem:[%s165 + $0xc0] sm:$0xff]
      %v196 = vld [vmem:[%s165 + $0xc8] sm:$0xff]
      %v197 = vld [vmem:[%s165 + $0xd0] sm:$0xff]
      %v198 = vld [vmem:[%s165 + $0xd8] sm:$0xff]
      %v199 = vld [vmem:[%s165 + $0xe0] sm:$0xff]
      %v200 = vld [vmem:[%s165 + $0xe8] sm:$0xff]
      %v201 = vld [vmem:[%s165 + $0xf0] sm:$0xff]
      %v202 = vld [vmem:[%s165 + $0xf8] sm:$0xff]
      %v203 = vld [vmem:[%s165 + $0x100] sm:$0xff]
      %v204 = vld [vmem:[%s165 + $0x108] sm:$0xff]
      %v205 = vld [vmem:[%s165 + $0x110] sm:$0xff]
      %v206 = vld [vmem:[%s165 + $0x118] sm:$0xff]
      %v207 = vld [vmem:[%s165 + $0x120] sm:$0xff]
      %v208 = vld [vmem:[%s165 + $0x128] sm:$0xff]
      %v209 = vld [vmem:[%s165 + $0x130] sm:$0xff]
      %v210 = vld [vmem:[%s165 + $0x138] sm:$0xff]
      %v211 = vld [vmem:[%s165 + $0x140] sm:$0xff]
      %v212 = vld [vmem:[%s165 + $0x148] sm:$0xff]
      %v213 = vld [vmem:[%s165 + $0x150] sm:$0xff]
      %v214 = vld [vmem:[%s165 + $0x158] sm:$0xff]
      %v215 = vld [vmem:[%s165 + $0x160] sm:$0xff]
      %v216 = vld [vmem:[%s165 + $0x168] sm:$0xff]
      %v217 = vld [vmem:[%s165 + $0x170] sm:$0xff]
      %v218 = vld [vmem:[%s165 + $0x178] sm:$0xff]
      %v219 = vld [vmem:[%s165 + $0x180] sm:$0xff]
      %v220 = vld [vmem:[%s165 + $0x188] sm:$0xff]
      %v221 = vld [vmem:[%s165 + $0x190] sm:$0xff]
      %v222 = vld [vmem:[%s165 + $0x198] sm:$0xff]
      %v223 = vld [vmem:[%s165 + $0x1a0] sm:$0xff]
      %v224 = vld [vmem:[%s165 + $0x1a8] sm:$0xff]
      %v225 = vld [vmem:[%s165 + $0x1b0] sm:$0xff]
      %v226 = vld [vmem:[%s165 + $0x1b8] sm:$0xff]
      %v227 = vld [vmem:[%s165 + $0x1c0] sm:$0xff]
      %v228 = vld [vmem:[%s165 + $0x1c8] sm:$0xff]
      %v229 = vld [vmem:[%s165 + $0x1d0] sm:$0xff]
      %v230 = vld [vmem:[%s165 + $0x1d8] sm:$0xff]
      %v231 = vld [vmem:[%s165 + $0x1e0] sm:$0xff]
      %v232 = vld [vmem:[%s165 + $0x1e8] sm:$0xff]
      %v233 = vld [vmem:[%s165 + $0x1f0] sm:$0xff]
      %v234 = vld [vmem:[%s165 + $0x1f8] sm:$0xff]
      %v235 = vld [vmem:[%s1] sm:$0xff]
      %v236 = vld [vmem:[%s1 + $0x8] sm:$0xff]
      %v237 = vld [vmem:[%s1 + $0x10] sm:$0xff]
      %v238 = vld [vmem:[%s1 + $0x18] sm:$0xff]
      %v239 = vld [vmem:[%s1 + $0x20] sm:$0xff]
      %v240 = vld [vmem:[%s1 + $0x28] sm:$0xff]
      %v241 = vld [vmem:[%s1 + $0x30] sm:$0xff]
      %v242 = vld [vmem:[%s1 + $0x38] sm:$0xff]
      %v243 = vld [vmem:[%s1 + $0x40] sm:$0xff]
      %v244 = vld [vmem:[%s1 + $0x48] sm:$0xff]
      %v245 = vld [vmem:[%s1 + $0x50] sm:$0xff]
      %v246 = vld [vmem:[%s1 + $0x58] sm:$0xff]
      %v247 = vld [vmem:[%s1 + $0x60] sm:$0xff]
      %v248 = vld [vmem:[%s1 + $0x68] sm:$0xff]
      %v249 = vld [vmem:[%s1 + $0x70] sm:$0xff]
      %v250 = vld [vmem:[%s1 + $0x78] sm:$0xff]
      %v251 = vld [vmem:[%s1 + $0x80] sm:$0xff]
      %v252 = vld [vmem:[%s1 + $0x88] sm:$0xff]
      %v253 = vld [vmem:[%s1 + $0x90] sm:$0xff]
      %v254 = vld [vmem:[%s1 + $0x98] sm:$0xff]
      %v255 = vld [vmem:[%s1 + $0xa0] sm:$0xff]
      %v256 = vld [vmem:[%s1 + $0xa8] sm:$0xff]
      %v257 = vld [vmem:[%s1 + $0xb0] sm:$0xff]
      %v258 = vld [vmem:[%s1 + $0xb8] sm:$0xff]
      %v259 = vld [vmem:[%s1 + $0xc0] sm:$0xff]
      %v260 = vld [vmem:[%s1 + $0xc8] sm:$0xff]
      %v261 = vld [vmem:[%s1 + $0xd0] sm:$0xff]
      %v262 = vld [vmem:[%s1 + $0xd8] sm:$0xff]
      %v263 = vld [vmem:[%s1 + $0xe0] sm:$0xff]
      %v264 = vld [vmem:[%s1 + $0xe8] sm:$0xff]
      %v265 = vld [vmem:[%s1 + $0xf0] sm:$0xff]
      %v266 = vld [vmem:[%s1 + $0xf8] sm:$0xff]
      %v267 = vld [vmem:[%s1 + $0x100] sm:$0xff]
      %v268 = vld [vmem:[%s1 + $0x108] sm:$0xff]
      %v269 = vld [vmem:[%s1 + $0x110] sm:$0xff]
      %v270 = vld [vmem:[%s1 + $0x118] sm:$0xff]
      %v271 = vld [vmem:[%s1 + $0x120] sm:$0xff]
      %v272 = vld [vmem:[%s1 + $0x128] sm:$0xff]
      %v273 = vld [vmem:[%s1 + $0x130] sm:$0xff]
      %v274 = vld [vmem:[%s1 + $0x138] sm:$0xff]
      %v275 = vld [vmem:[%s1 + $0x140] sm:$0xff]
      %v276 = vld [vmem:[%s1 + $0x148] sm:$0xff]
      %v277 = vld [vmem:[%s1 + $0x150] sm:$0xff]
      %v278 = vld [vmem:[%s1 + $0x158] sm:$0xff]
      %v279 = vld [vmem:[%s1 + $0x160] sm:$0xff]
      %v280 = vld [vmem:[%s1 + $0x168] sm:$0xff]
      %v281 = vld [vmem:[%s1 + $0x170] sm:$0xff]
      %v282 = vld [vmem:[%s1 + $0x178] sm:$0xff]
      %v283 = vld [vmem:[%s1 + $0x180] sm:$0xff]
      %v284 = vld [vmem:[%s1 + $0x188] sm:$0xff]
      %v285 = vld [vmem:[%s1 + $0x190] sm:$0xff]
      %v286 = vld [vmem:[%s1 + $0x198] sm:$0xff]
      %v287 = vld [vmem:[%s1 + $0x1a0] sm:$0xff]
      %v288 = vld [vmem:[%s1 + $0x1a8] sm:$0xff]
      %v289 = vld [vmem:[%s1 + $0x1b0] sm:$0xff]
      %v290 = vld [vmem:[%s1 + $0x1b8] sm:$0xff]
      %v291 = vld [vmem:[%s1 + $0x1c0] sm:$0xff]
      %v292 = vld [vmem:[%s1 + $0x1c8] sm:$0xff]
      %v293 = vld [vmem:[%s1 + $0x1d0] sm:$0xff]
      %v294 = vld [vmem:[%s1 + $0x1d8] sm:$0xff]
      %v295 = vld [vmem:[%s1 + $0x1e0] sm:$0xff]
      %v296 = vld [vmem:[%s1 + $0x1e8] sm:$0xff]
      %v297 = vld [vmem:[%s1 + $0x1f0] sm:$0xff]
      %v298 = vld [vmem:[%s1 + $0x1f8] sm:$0xff]
      %v299 = vld [vmem:[%s1 + $0x200] sm:$0xff]
      %v300 = vld [vmem:[%s1 + $0x208] sm:$0xff]
      %v301 = vld [vmem:[%s1 + $0x210] sm:$0xff]
      %v302 = vld [vmem:[%s1 + $0x218] sm:$0xff]
      %v303 = vld [vmem:[%s1 + $0x220] sm:$0xff]
      %v304 = vld [vmem:[%s1 + $0x228] sm:$0xff]
      %v305 = vld [vmem:[%s1 + $0x230] sm:$0xff]
      %v306 = vld [vmem:[%s1 + $0x238] sm:$0xff]
      %v307 = vld [vmem:[%s1 + $0x240] sm:$0xff]
      %v308 = vld [vmem:[%s1 + $0x248] sm:$0xff]
      %v309 = vld [vmem:[%s1 + $0x250] sm:$0xff]
      %v310 = vld [vmem:[%s1 + $0x258] sm:$0xff]
      %v311 = vld [vmem:[%s1 + $0x260] sm:$0xff]
      %v312 = vld [vmem:[%s1 + $0x268] sm:$0xff]
      %v313 = vld [vmem:[%s1 + $0x270] sm:$0xff]
      %v314 = vld [vmem:[%s1 + $0x278] sm:$0xff]
      %v315 = vld [vmem:[%s1 + $0x280] sm:$0xff]
      %v316 = vld [vmem:[%s1 + $0x288] sm:$0xff]
      %v317 = vld [vmem:[%s1 + $0x290] sm:$0xff]
      %v318 = vld [vmem:[%s1 + $0x298] sm:$0xff]
      %v319 = vld [vmem:[%s1 + $0x2a0] sm:$0xff]
      %v320 = vld [vmem:[%s1 + $0x2a8] sm:$0xff]
      %v321 = vld [vmem:[%s1 + $0x2b0] sm:$0xff]
      %v322 = vld [vmem:[%s1 + $0x2b8] sm:$0xff]
      %v323 = vld [vmem:[%s1 + $0x2c0] sm:$0xff]
      %v324 = vld [vmem:[%s1 + $0x2c8] sm:$0xff]
      %v325 = vld [vmem:[%s1 + $0x2d0] sm:$0xff]
      %v326 = vld [vmem:[%s1 + $0x2d8] sm:$0xff]
      %v327 = vld [vmem:[%s1 + $0x2e0] sm:$0xff]
      %v328 = vld [vmem:[%s1 + $0x2e8] sm:$0xff]
      %v329 = vld [vmem:[%s1 + $0x2f0] sm:$0xff]
      %v330 = vld [vmem:[%s1 + $0x2f8] sm:$0xff]
      %v331 = vld [vmem:[%s1 + $0x300] sm:$0xff]
      %v332 = vld [vmem:[%s1 + $0x308] sm:$0xff]
      %v333 = vld [vmem:[%s1 + $0x310] sm:$0xff]
      %v334 = vld [vmem:[%s1 + $0x318] sm:$0xff]
      %v335 = vld [vmem:[%s1 + $0x320] sm:$0xff]
      %v336 = vld [vmem:[%s1 + $0x328] sm:$0xff]
      %v337 = vld [vmem:[%s1 + $0x330] sm:$0xff]
      %v338 = vld [vmem:[%s1 + $0x338] sm:$0xff]
      %v339 = vld [vmem:[%s1 + $0x340] sm:$0xff]
      %v340 = vld [vmem:[%s1 + $0x348] sm:$0xff]
      %v341 = vld [vmem:[%s1 + $0x350] sm:$0xff]
      %v342 = vld [vmem:[%s1 + $0x358] sm:$0xff]
      %v343 = vld [vmem:[%s1 + $0x360] sm:$0xff]
      %v344 = vld [vmem:[%s1 + $0x368] sm:$0xff]
      %v345 = vld [vmem:[%s1 + $0x370] sm:$0xff]
      %v346 = vld [vmem:[%s1 + $0x378] sm:$0xff]
      %v347 = vld [vmem:[%s1 + $0x380] sm:$0xff]
      %v348 = vld [vmem:[%s1 + $0x388] sm:$0xff]
      %v349 = vld [vmem:[%s1 + $0x390] sm:$0xff]
      %v350 = vld [vmem:[%s1 + $0x398] sm:$0xff]
      %v351 = vld [vmem:[%s1 + $0x3a0] sm:$0xff]
      %v352 = vld [vmem:[%s1 + $0x3a8] sm:$0xff]
      %v353 = vld [vmem:[%s1 + $0x3b0] sm:$0xff]
      %v354 = vld [vmem:[%s1 + $0x3b8] sm:$0xff]
      %v355 = vld [vmem:[%s1 + $0x3c0] sm:$0xff]
      %v356 = vld [vmem:[%s1 + $0x3c8] sm:$0xff]
      %v357 = vld [vmem:[%s1 + $0x3d0] sm:$0xff]
      %v358 = vld [vmem:[%s1 + $0x3d8] sm:$0xff]
      %v359 = vld [vmem:[%s1 + $0x3e0] sm:$0xff]
      %v360 = vld [vmem:[%s1 + $0x3e8] sm:$0xff]
      %v361 = vld [vmem:[%s1 + $0x3f0] sm:$0xff]
      %v362 = vld [vmem:[%s1 + $0x3f8] sm:$0xff]
      %v363 = vld [vmem:[%s1 + $0x400] sm:$0xff]
      %v364 = vld [vmem:[%s1 + $0x408] sm:$0xff]
      %v365 = vld [vmem:[%s1 + $0x410] sm:$0xff]
      %v366 = vld [vmem:[%s1 + $0x418] sm:$0xff]
      %v367 = vld [vmem:[%s1 + $0x420] sm:$0xff]
      %v368 = vld [vmem:[%s1 + $0x428] sm:$0xff]
      %v369 = vld [vmem:[%s1 + $0x430] sm:$0xff]
      %v370 = vld [vmem:[%s1 + $0x438] sm:$0xff]
      %v371 = vld [vmem:[%s1 + $0x440] sm:$0xff]
      %v372 = vld [vmem:[%s1 + $0x448] sm:$0xff]
      %v373 = vld [vmem:[%s1 + $0x450] sm:$0xff]
      %v374 = vld [vmem:[%s1 + $0x458] sm:$0xff]
      %v375 = vld [vmem:[%s1 + $0x460] sm:$0xff]
      %v376 = vld [vmem:[%s1 + $0x468] sm:$0xff]
      %v377 = vld [vmem:[%s1 + $0x470] sm:$0xff]
      %v378 = vld [vmem:[%s1 + $0x478] sm:$0xff]
      %v379 = vld [vmem:[%s2] sm:$0x1]
      %380 = vmatprep.subr.mxu0 0.0
      %381 = vmatpush1.msra.mxu0 %v235
      %382 = vmatprep.subr.mxu0 0.0
      %383 = vmatpush1.msra.mxu0 %v236
      %384 = vmatprep.subr.mxu0 0.0
      %385 = vmatpush1.msra.mxu0 %v237
      %386 = vmatprep.subr.mxu0 0.0
      %387 = vmatpush1.msra.mxu0 %v238
      %388 = vmatprep.subr.mxu0 0.0
      %389 = vmatpush1.msra.mxu0 %v239
      %390 = vmatprep.subr.mxu0 0.0
      %391 = vmatpush1.msra.mxu0 %v240
      %392 = vmatprep.subr.mxu0 0.0
      %393 = vmatpush1.msra.mxu0 %v241
      %394 = vmatprep.subr.mxu0 0.0
      %395 = vmatpush1.msra.mxu0 %v242
      %396 = vmatprep.subr.mxu0 0.0
      %397 = vmatpush1.msra.mxu0 %v243
      %398 = vmatprep.subr.mxu0 0.0
      %399 = vmatpush1.msra.mxu0 %v244
      %400 = vmatprep.subr.mxu0 0.0
      %401 = vmatpush1.msra.mxu0 %v245
      %402 = vmatprep.subr.mxu0 0.0
      %403 = vmatpush1.msra.mxu0 %v246
      %404 = vmatprep.subr.mxu0 0.0
      %405 = vmatpush1.msra.mxu0 %v247
      %406 = vmatprep.subr.mxu0 0.0
      %407 = vmatpush1.msra.mxu0 %v248
      %408 = vmatprep.subr.mxu0 0.0
      %409 = vmatpush1.msra.mxu0 %v249
      %410 = vmatprep.subr.mxu0 0.0
      %411 = vmatpush1.msra.mxu0 %v250
      %412 = vmatprep.subr.mxu0 0.0
      %413 = vmatpush1.msra.mxu0 %v251
      %414 = vmatprep.subr.mxu0 0.0
      %415 = vmatpush1.msra.mxu0 %v252
      %416 = vmatprep.subr.mxu0 0.0
      %417 = vmatpush1.msra.mxu0 %v253
      %418 = vmatprep.subr.mxu0 0.0
      %419 = vmatpush1.msra.mxu0 %v254
      %420 = vmatprep.subr.mxu0 0.0
      %421 = vmatpush1.msra.mxu0 %v255
      %422 = vmatprep.subr.mxu0 0.0
      %423 = vmatpush1.msra.mxu0 %v256
      %424 = vmatprep.subr.mxu0 0.0
      %425 = vmatpush1.msra.mxu0 %v257
      %426 = vmatprep.subr.mxu0 0.0
      %427 = vmatpush1.msra.mxu0 %v258
      %428 = vmatprep.subr.mxu0 0.0
      %429 = vmatpush1.msra.mxu0 %v259
      %430 = vmatprep.subr.mxu0 0.0
      %431 = vmatpush1.msra.mxu0 %v260
      %432 = vmatprep.subr.mxu0 0.0
      %433 = vmatpush1.msra.mxu0 %v261
      %434 = vmatprep.subr.mxu0 0.0
      %435 = vmatpush1.msra.mxu0 %v262
      %436 = vmatprep.subr.mxu0 0.0
      %437 = vmatpush1.msra.mxu0 %v263
      %438 = vmatprep.subr.mxu0 0.0
      %439 = vmatpush1.msra.mxu0 %v264
      %440 = vmatprep.subr.mxu0 0.0
      %441 = vmatpush1.msra.mxu0 %v265
      %442 = vmatprep.subr.mxu0 0.0
      %443 = vmatpush1.msra.mxu0 %v266
      %444 = vmatprep.mubr.f32.mxu0 %v187
      %445 = vmatmul.mubr.f32.gmra.mrb[0].mxu0 %v171
      %v446 = vpop.f32.mrb[0].mxu0
      %v447 = vadd.f32 0.0, %v446
      %v448 = vpop.f32.mrb[0].mxu0
      %449 = vmatprep.mubr.f32.mxu0 %v188
      %450 = vmatmul.mubr.f32.gmra.mrb[0].mxu0 %v172
      %v451 = vpop.f32.mrb[0].mxu0
      %v452 = vadd.f32 0.0, %v451
      %v453 = vpop.f32.mrb[0].mxu0
      %454 = vmatprep.mubr.f32.mxu0 %v189
      %455 = vmatmul.mubr.f32.gmra.mrb[0].mxu0 %v173
      %v456 = vpop.f32.mrb[0].mxu0
      %v457 = vadd.f32 0.0, %v456
      %v458 = vpop.f32.mrb[0].mxu0
      %459 = vmatprep.mubr.f32.mxu0 %v190
      %460 = vmatmul.mubr.f32.gmra.mrb[0].mxu0 %v174
      %v461 = vpop.f32.mrb[0].mxu0
      %v462 = vadd.f32 0.0, %v461
      %v463 = vpop.f32.mrb[0].mxu0
      %464 = vmatprep.mubr.f32.mxu0 %v191
      %465 = vmatmul.mubr.f32.gmra.mrb[0].mxu0 %v175
      %v466 = vpop.f32.mrb[0].mxu0
      %v467 = vadd.f32 0.0, %v466
      %v468 = vpop.f32.mrb[0].mxu0
      %469 = vmatprep.mubr.f32.mxu0 %v192
      %470 = vmatmul.mubr.f32.gmra.mrb[0].mxu0 %v176
      %v471 = vpop.f32.mrb[0].mxu0
      %v472 = vadd.f32 0.0, %v471
      %v473 = vpop.f32.mrb[0].mxu0
      %474 = vmatprep.mubr.f32.mxu0 %v193
      %475 = vmatmul.mubr.f32.gmra.mrb[0].mxu0 %v177
      %v476 = vpop.f32.mrb[0].mxu0
      %v477 = vadd.f32 0.0, %v476
      %v478 = vpop.f32.mrb[0].mxu0
      %479 = vmatprep.mubr.f32.mxu0 %v194
      %480 = vmatmul.mubr.f32.gmra.mrb[0].mxu0 %v178
      %v481 = vpop.f32.mrb[0].mxu0
      %v482 = vadd.f32 0.0, %v481
      %v483 = vpop.f32.mrb[0].mxu0
      %484 = vmatprep.mubr.f32.mxu0 %v195
      %485 = vmatmul.mubr.f32.gmra.mrb[0].mxu0 %v179
      %v486 = vpop.f32.mrb[0].mxu0
      %v487 = vadd.f32 0.0, %v486
      %v488 = vpop.f32.mrb[0].mxu0
      %489 = vmatprep.mubr.f32.mxu0 %v196
      %490 = vmatmul.mubr.f32.gmra.mrb[0].mxu0 %v180
      %v491 = vpop.f32.mrb[0].mxu0
      %v492 = vadd.f32 0.0, %v491
      %v493 = vpop.f32.mrb[0].mxu0
      %494 = vmatprep.mubr.f32.mxu0 %v197
      %495 = vmatmul.mubr.f32.gmra.mrb[0].mxu0 %v181
      %v496 = vpop.f32.mrb[0].mxu0
      %v497 = vadd.f32 0.0, %v496
      %v498 = vpop.f32.mrb[0].mxu0
      %499 = vmatprep.mubr.f32.mxu0 %v198
      %500 = vmatmul.mubr.f32.gmra.mrb[0].mxu0 %v182
      %v501 = vpop.f32.mrb[0].mxu0
      %v502 = vadd.f32 0.0, %v501
      %v503 = vpop.f32.mrb[0].mxu0
      %504 = vmatprep.mubr.f32.mxu0 %v199
      %505 = vmatmul.mubr.f32.gmra.mrb[0].mxu0 %v183
      %v506 = vpop.f32.mrb[0].mxu0
      %v507 = vadd.f32 0.0, %v506
      %v508 = vpop.f32.mrb[0].mxu0
      %509 = vmatprep.mubr.f32.mxu0 %v200
      %510 = vmatmul.mubr.f32.gmra.mrb[0].mxu0 %v184
      %v511 = vpop.f32.mrb[0].mxu0
      %v512 = vadd.f32 0.0, %v511
      %v513 = vpop.f32.mrb[0].mxu0
      %514 = vdwg.mxu0
      %515 = vmatprep.subr.mxu0 0.0
      %516 = vmatpush1.msra.mxu0 %v267
      %517 = vmatprep.subr.mxu0 0.0
      %518 = vmatpush1.msra.mxu0 %v268
      %519 = vmatprep.subr.mxu0 0.0
      %520 = vmatpush1.msra.mxu0 %v269
      %521 = vmatprep.subr.mxu0 0.0
      %522 = vmatpush1.msra.mxu0 %v270
      %523 = vmatprep.subr.mxu0 0.0
      %524 = vmatpush1.msra.mxu0 %v271
      %525 = vmatprep.subr.mxu0 0.0
      %526 = vmatpush1.msra.mxu0 %v272
      %527 = vmatprep.subr.mxu0 0.0
      %528 = vmatpush1.msra.mxu0 %v273
      %529 = vmatprep.subr.mxu0 0.0
      %530 = vmatpush1.msra.mxu0 %v274
      %531 = vmatprep.subr.mxu0 0.0
      %532 = vmatpush1.msra.mxu0 %v275
      %533 = vmatprep.subr.mxu0 0.0
      %534 = vmatpush1.msra.mxu0 %v276
      %535 = vmatprep.subr.mxu0 0.0
      %536 = vmatpush1.msra.mxu0 %v277
      %537 = vmatprep.subr.mxu0 0.0
      %538 = vmatpush1.msra.mxu0 %v278
      %539 = vmatprep.subr.mxu0 0.0
      %540 = vmatpush1.msra.mxu0 %v279
      %541 = vmatprep.subr.mxu0 0.0
      %542 = vmatpush1.msra.mxu0 %v280
      %543 = vmatprep.subr.mxu0 0.0
      %544 = vmatpush1.msra.mxu0 %v281
      %545 = vmatprep.subr.mxu0 0.0
      %546 = vmatpush1.msra.mxu0 %v282
      %547 = vmatprep.subr.mxu0 0.0
      %548 = vmatpush1.msra.mxu0 %v283
      %549 = vmatprep.subr.mxu0 0.0
      %550 = vmatpush1.msra.mxu0 %v284
      %551 = vmatprep.subr.mxu0 0.0
      %552 = vmatpush1.msra.mxu0 %v285
      %553 = vmatprep.subr.mxu0 0.0
      %554 = vmatpush1.msra.mxu0 %v286
      %555 = vmatprep.subr.mxu0 0.0
      %556 = vmatpush1.msra.mxu0 %v287
      %557 = vmatprep.subr.mxu0 0.0
      %558 = vmatpush1.msra.mxu0 %v288
      %559 = vmatprep.subr.mxu0 0.0
      %560 = vmatpush1.msra.mxu0 %v289
      %561 = vmatprep.subr.mxu0 0.0
      %562 = vmatpush1.msra.mxu0 %v290
      %563 = vmatprep.subr.mxu0 0.0
      %564 = vmatpush1.msra.mxu0 %v291
      %565 = vmatprep.subr.mxu0 0.0
      %566 = vmatpush1.msra.mxu0 %v292
      %567 = vmatprep.subr.mxu0 0.0
      %568 = vmatpush1.msra.mxu0 %v293
      %569 = vmatprep.subr.mxu0 0.0
      %570 = vmatpush1.msra.mxu0 %v294
      %571 = vmatprep.subr.mxu0 0.0
      %572 = vmatpush1.msra.mxu0 %v295
      %573 = vmatprep.subr.mxu0 0.0
      %574 = vmatpush1.msra.mxu0 %v296
      %575 = vmatprep.subr.mxu0 0.0
      %576 = vmatpush1.msra.mxu0 %v297
      %577 = vmatprep.subr.mxu0 0.0
      %578 = vmatpush1.msra.mxu0 %v298
      %579 = vmatprep.mubr.f32.mxu0 %v172
      %580 = vmatmul.mubr.f32.gmra.mrb[0].mxu0 %v203
      %v581 = vpop.f32.mrb[0].mxu0
      %v582 = vadd.f32 %v447, %v581
      %v583 = vpop.f32.mrb[0].mxu0
      %584 = vmatprep.mubr.f32.mxu0 %v173
      %585 = vmatmul.mubr.f32.gmra.mrb[0].mxu0 %v204
      %v586 = vpop.f32.mrb[0].mxu0
      %v587 = vadd.f32 %v452, %v586
      %v588 = vpop.f32.mrb[0].mxu0
      %589 = vmatprep.mubr.f32.mxu0 %v174
      %590 = vmatmul.mubr.f32.gmra.mrb[0].mxu0 %v205
      %v591 = vpop.f32.mrb[0].mxu0
      %v592 = vadd.f32 %v457, %v591
      %v593 = vpop.f32.mrb[0].mxu0
      %594 = vmatprep.mubr.f32.mxu0 %v175
      %595 = vmatmul.mubr.f32.gmra.mrb[0].mxu0 %v206
      %v596 = vpop.f32.mrb[0].mxu0
      %v597 = vadd.f32 %v462, %v596
      %v598 = vpop.f32.mrb[0].mxu0
      %599 = vmatprep.mubr.f32.mxu0 %v176
      %600 = vmatmul.mubr.f32.gmra.mrb[0].mxu0 %v207
      %v601 = vpop.f32.mrb[0].mxu0
      %v602 = vadd.f32 %v467, %v601
      %v603 = vpop.f32.mrb[0].mxu0
      %604 = vmatprep.mubr.f32.mxu0 %v177
      %605 = vmatmul.mubr.f32.gmra.mrb[0].mxu0 %v208
      %v606 = vpop.f32.mrb[0].mxu0
      %v607 = vadd.f32 %v472, %v606
      %v608 = vpop.f32.mrb[0].mxu0
      %609 = vmatprep.mubr.f32.mxu0 %v178
      %610 = vmatmul.mubr.f32.gmra.mrb[0].mxu0 %v209
      %v611 = vpop.f32.mrb[0].mxu0
      %v612 = vadd.f32 %v477, %v611
      %v613 = vpop.f32.mrb[0].mxu0
      %614 = vmatprep.mubr.f32.mxu0 %v179
      %615 = vmatmul.mubr.f32.gmra.mrb[0].mxu0 %v210
      %v616 = vpop.f32.mrb[0].mxu0
      %v617 = vadd.f32 %v482, %v616
      %v618 = vpop.f32.mrb[0].mxu0
      %619 = vmatprep.mubr.f32.mxu0 %v180
      %620 = vmatmul.mubr.f32.gmra.mrb[0].mxu0 %v211
      %v621 = vpop.f32.mrb[0].mxu0
      %v622 = vadd.f32 %v487, %v621
      %v623 = vpop.f32.mrb[0].mxu0
      %624 = vmatprep.mubr.f32.mxu0 %v181
      %625 = vmatmul.mubr.f32.gmra.mrb[0].mxu0 %v212
      %v626 = vpop.f32.mrb[0].mxu0
      %v627 = vadd.f32 %v492, %v626
      %v628 = vpop.f32.mrb[0].mxu0
      %629 = vmatprep.mubr.f32.mxu0 %v182
      %630 = vmatmul.mubr.f32.gmra.mrb[0].mxu0 %v213
      %v631 = vpop.f32.mrb[0].mxu0
      %v632 = vadd.f32 %v497, %v631
      %v633 = vpop.f32.mrb[0].mxu0
      %634 = vmatprep.mubr.f32.mxu0 %v183
      %635 = vmatmul.mubr.f32.gmra.mrb[0].mxu0 %v214
      %v636 = vpop.f32.mrb[0].mxu0
      %v637 = vadd.f32 %v502, %v636
      %v638 = vpop.f32.mrb[0].mxu0
      %639 = vmatprep.mubr.f32.mxu0 %v184
      %640 = vmatmul.mubr.f32.gmra.mrb[0].mxu0 %v215
      %v641 = vpop.f32.mrb[0].mxu0
      %v642 = vadd.f32 %v507, %v641
      %v643 = vpop.f32.mrb[0].mxu0
      %644 = vmatprep.mubr.f32.mxu0 %v185
      %645 = vmatmul.mubr.f32.gmra.mrb[0].mxu0 %v216
      %v646 = vpop.f32.mrb[0].mxu0
      %v647 = vadd.f32 %v512, %v646
      %v648 = vpop.f32.mrb[0].mxu0
      %649 = vdwg.mxu0
      %650 = vmatprep.subr.mxu0 0.0
      %651 = vmatpush1.msra.mxu0 %v299
      %652 = vmatprep.subr.mxu0 0.0
      %653 = vmatpush1.msra.mxu0 %v300
      %654 = vmatprep.subr.mxu0 0.0
      %655 = vmatpush1.msra.mxu0 %v301
      %656 = vmatprep.subr.mxu0 0.0
      %657 = vmatpush1.msra.mxu0 %v302
      %658 = vmatprep.subr.mxu0 0.0
      %659 = vmatpush1.msra.mxu0 %v303
      %660 = vmatprep.subr.mxu0 0.0
      %661 = vmatpush1.msra.mxu0 %v304
      %662 = vmatprep.subr.mxu0 0.0
      %663 = vmatpush1.msra.mxu0 %v305
      %664 = vmatprep.subr.mxu0 0.0
      %665 = vmatpush1.msra.mxu0 %v306
      %666 = vmatprep.subr.mxu0 0.0
      %667 = vmatpush1.msra.mxu0 %v307
      %668 = vmatprep.subr.mxu0 0.0
      %669 = vmatpush1.msra.mxu0 %v308
      %670 = vmatprep.subr.mxu0 0.0
      %671 = vmatpush1.msra.mxu0 %v309
      %672 = vmatprep.subr.mxu0 0.0
      %673 = vmatpush1.msra.mxu0 %v310
      %674 = vmatprep.subr.mxu0 0.0
      %675 = vmatpush1.msra.mxu0 %v311
      %676 = vmatprep.subr.mxu0 0.0
      %677 = vmatpush1.msra.mxu0 %v312
      %678 = vmatprep.subr.mxu0 0.0
      %679 = vmatpush1.msra.mxu0 %v313
      %680 = vmatprep.subr.mxu0 0.0
      %681 = vmatpush1.msra.mxu0 %v314
      %682 = vmatprep.subr.mxu0 0.0
      %683 = vmatpush1.msra.mxu0 %v315
      %684 = vmatprep.subr.mxu0 0.0
      %685 = vmatpush1.msra.mxu0 %v316
      %686 = vmatprep.subr.mxu0 0.0
      %687 = vmatpush1.msra.mxu0 %v317
      %688 = vmatprep.subr.mxu0 0.0
      %689 = vmatpush1.msra.mxu0 %v318
      %690 = vmatprep.subr.mxu0 0.0
      %691 = vmatpush1.msra.mxu0 %v319
      %692 = vmatprep.subr.mxu0 0.0
      %693 = vmatpush1.msra.mxu0 %v320
      %694 = vmatprep.subr.mxu0 0.0
      %695 = vmatpush1.msra.mxu0 %v321
      %696 = vmatprep.subr.mxu0 0.0
      %697 = vmatpush1.msra.mxu0 %v322
      %698 = vmatprep.subr.mxu0 0.0
      %699 = vmatpush1.msra.mxu0 %v323
      %700 = vmatprep.subr.mxu0 0.0
      %701 = vmatpush1.msra.mxu0 %v324
      %702 = vmatprep.subr.mxu0 0.0
      %703 = vmatpush1.msra.mxu0 %v325
      %704 = vmatprep.subr.mxu0 0.0
      %705 = vmatpush1.msra.mxu0 %v326
      %706 = vmatprep.subr.mxu0 0.0
      %707 = vmatpush1.msra.mxu0 %v327
      %708 = vmatprep.subr.mxu0 0.0
      %709 = vmatpush1.msra.mxu0 %v328
      %710 = vmatprep.subr.mxu0 0.0
      %711 = vmatpush1.msra.mxu0 %v329
      %712 = vmatprep.subr.mxu0 0.0
      %713 = vmatpush1.msra.mxu0 %v330
      %714 = vmatprep.mubr.f32.mxu0 %v204
      %715 = vmatmul.mubr.f32.gmra.mrb[0].mxu0 %v188
      %v716 = vpop.f32.mrb[0].mxu0
      %v717 = vadd.f32 %v582, %v716
      %v718 = vpop.f32.mrb[0].mxu0
      %719 = vmatprep.mubr.f32.mxu0 %v205
      %720 = vmatmul.mubr.f32.gmra.mrb[0].mxu0 %v189
      %v721 = vpop.f32.mrb[0].mxu0
      %v722 = vadd.f32 %v587, %v721
      %v723 = vpop.f32.mrb[0].mxu0
      %724 = vmatprep.mubr.f32.mxu0 %v206
      %725 = vmatmul.mubr.f32.gmra.mrb[0].mxu0 %v190
      %v726 = vpop.f32.mrb[0].mxu0
      %v727 = vadd.f32 %v592, %v726
      %v728 = vpop.f32.mrb[0].mxu0
      %729 = vmatprep.mubr.f32.mxu0 %v207
      %730 = vmatmul.mubr.f32.gmra.mrb[0].mxu0 %v191
      %v731 = vpop.f32.mrb[0].mxu0
      %v732 = vadd.f32 %v597, %v731
      %v733 = vpop.f32.mrb[0].mxu0
      %734 = vmatprep.mubr.f32.mxu0 %v208
      %735 = vmatmul.mubr.f32.gmra.mrb[0].mxu0 %v192
      %v736 = vpop.f32.mrb[0].mxu0
      %v737 = vadd.f32 %v602, %v736
      %v738 = vpop.f32.mrb[0].mxu0
      %739 = vmatprep.mubr.f32.mxu0 %v209
      %740 = vmatmul.mubr.f32.gmra.mrb[0].mxu0 %v193
      %v741 = vpop.f32.mrb[0].mxu0
      %v742 = vadd.f32 %v607, %v741
      %v743 = vpop.f32.mrb[0].mxu0
      %744 = vmatprep.mubr.f32.mxu0 %v210
      %745 = vmatmul.mubr.f32.gmra.mrb[0].mxu0 %v194
      %v746 = vpop.f32.mrb[0].mxu0
      %v747 = vadd.f32 %v612, %v746
      %v748 = vpop.f32.mrb[0].mxu0
      %749 = vmatprep.mubr.f32.mxu0 %v211
      %750 = vmatmul.mubr.f32.gmra.mrb[0].mxu0 %v195
      %v751 = vpop.f32.mrb[0].mxu0
      %v752 = vadd.f32 %v617, %v751
      %v753 = vpop.f32.mrb[0].mxu0
      %754 = vmatprep.mubr.f32.mxu0 %v212
      %755 = vmatmul.mubr.f32.gmra.mrb[0].mxu0 %v196
      %v756 = vpop.f32.mrb[0].mxu0
      %v757 = vadd.f32 %v622, %v756
      %v758 = vpop.f32.mrb[0].mxu0
      %759 = vmatprep.mubr.f32.mxu0 %v213
      %760 = vmatmul.mubr.f32.gmra.mrb[0].mxu0 %v197
      %v761 = vpop.f32.mrb[0].mxu0
      %v762 = vadd.f32 %v627, %v761
      %v763 = vpop.f32.mrb[0].mxu0
      %764 = vmatprep.mubr.f32.mxu0 %v214
      %765 = vmatmul.mubr.f32.gmra.mrb[0].mxu0 %v198
      %v766 = vpop.f32.mrb[0].mxu0
      %v767 = vadd.f32 %v632, %v766
      %v768 = vpop.f32.mrb[0].mxu0
      %769 = vmatprep.mubr.f32.mxu0 %v215
      %770 = vmatmul.mubr.f32.gmra.mrb[0].mxu0 %v199
      %v771 = vpop.f32.mrb[0].mxu0
      %v772 = vadd.f32 %v637, %v771
      %v773 = vpop.f32.mrb[0].mxu0
      %774 = vmatprep.mubr.f32.mxu0 %v216
      %775 = vmatmul.mubr.f32.gmra.mrb[0].mxu0 %v200
      %v776 = vpop.f32.mrb[0].mxu0
      %v777 = vadd.f32 %v642, %v776
      %v778 = vpop.f32.mrb[0].mxu0
      %779 = vmatprep.mubr.f32.mxu0 %v217
      %780 = vmatmul.mubr.f32.gmra.mrb[0].mxu0 %v201
      %v781 = vpop.f32.mrb[0].mxu0
      %v782 = vadd.f32 %v647, %v781
      %v783 = vpop.f32.mrb[0].mxu0
      %784 = vdwg.mxu0
      %785 = vmatprep.subr.mxu0 0.0
      %786 = vmatpush1.msra.mxu0 %v331
      %787 = vmatprep.subr.mxu0 0.0
      %788 = vmatpush1.msra.mxu0 %v332
      %789 = vmatprep.subr.mxu0 0.0
      %790 = vmatpush1.msra.mxu0 %v333
      %791 = vmatprep.subr.mxu0 0.0
      %792 = vmatpush1.msra.mxu0 %v334
      %793 = vmatprep.subr.mxu0 0.0
      %794 = vmatpush1.msra.mxu0 %v335
      %795 = vmatprep.subr.mxu0 0.0
      %796 = vmatpush1.msra.mxu0 %v336
      %797 = vmatprep.subr.mxu0 0.0
      %798 = vmatpush1.msra.mxu0 %v337
      %799 = vmatprep.subr.mxu0 0.0
      %800 = vmatpush1.msra.mxu0 %v338
      %801 = vmatprep.subr.mxu0 0.0
      %802 = vmatpush1.msra.mxu0 %v339
      %803 = vmatprep.subr.mxu0 0.0
      %804 = vmatpush1.msra.mxu0 %v340
      %805 = vmatprep.subr.mxu0 0.0
      %806 = vmatpush1.msra.mxu0 %v341
      %807 = vmatprep.subr.mxu0 0.0
      %808 = vmatpush1.msra.mxu0 %v342
      %809 = vmatprep.subr.mxu0 0.0
      %810 = vmatpush1.msra.mxu0 %v343
      %811 = vmatprep.subr.mxu0 0.0
      %812 = vmatpush1.msra.mxu0 %v344
      %813 = vmatprep.subr.mxu0 0.0
      %814 = vmatpush1.msra.mxu0 %v345
      %815 = vmatprep.subr.mxu0 0.0
      %816 = vmatpush1.msra.mxu0 %v346
      %817 = vmatprep.subr.mxu0 0.0
      %818 = vmatpush1.msra.mxu0 %v347
      %819 = vmatprep.subr.mxu0 0.0
      %820 = vmatpush1.msra.mxu0 %v348
      %821 = vmatprep.subr.mxu0 0.0
      %822 = vmatpush1.msra.mxu0 %v349
      %823 = vmatprep.subr.mxu0 0.0
      %824 = vmatpush1.msra.mxu0 %v350
      %825 = vmatprep.subr.mxu0 0.0
      %826 = vmatpush1.msra.mxu0 %v351
      %827 = vmatprep.subr.mxu0 0.0
      %828 = vmatpush1.msra.mxu0 %v352
      %829 = vmatprep.subr.mxu0 0.0
      %830 = vmatpush1.msra.mxu0 %v353
      %831 = vmatprep.subr.mxu0 0.0
      %832 = vmatpush1.msra.mxu0 %v354
      %833 = vmatprep.subr.mxu0 0.0
      %834 = vmatpush1.msra.mxu0 %v355
      %835 = vmatprep.subr.mxu0 0.0
      %836 = vmatpush1.msra.mxu0 %v356
      %837 = vmatprep.subr.mxu0 0.0
      %838 = vmatpush1.msra.mxu0 %v357
      %839 = vmatprep.subr.mxu0 0.0
      %840 = vmatpush1.msra.mxu0 %v358
      %841 = vmatprep.subr.mxu0 0.0
      %842 = vmatpush1.msra.mxu0 %v359
      %843 = vmatprep.subr.mxu0 0.0
      %844 = vmatpush1.msra.mxu0 %v360
      %845 = vmatprep.subr.mxu0 0.0
      %846 = vmatpush1.msra.mxu0 %v361
      %847 = vmatprep.subr.mxu0 0.0
      %848 = vmatpush1.msra.mxu0 %v362
      %849 = vmatprep.mubr.f32.mxu0 %v189
      %850 = vmatmul.mubr.f32.gmra.mrb[0].mxu0 %v173
      %v851 = vpop.f32.mrb[0].mxu0
      %v852 = vadd.f32 %v717, %v851
      %v853 = vpop.f32.mrb[0].mxu0
      %854 = vmatprep.mubr.f32.mxu0 %v190
      %855 = vmatmul.mubr.f32.gmra.mrb[0].mxu0 %v174
      %v856 = vpop.f32.mrb[0].mxu0
      %v857 = vadd.f32 %v722, %v856
      %v858 = vpop.f32.mrb[0].mxu0
      %859 = vmatprep.mubr.f32.mxu0 %v191
      %860 = vmatmul.mubr.f32.gmra.mrb[0].mxu0 %v175
      %v861 = vpop.f32.mrb[0].mxu0
      %v862 = vadd.f32 %v727, %v861
      %v863 = vpop.f32.mrb[0].mxu0
      %864 = vmatprep.mubr.f32.mxu0 %v192
      %865 = vmatmul.mubr.f32.gmra.mrb[0].mxu0 %v176
      %v866 = vpop.f32.mrb[0].mxu0
      %v867 = vadd.f32 %v732, %v866
      %v868 = vpop.f32.mrb[0].mxu0
      %869 = vmatprep.mubr.f32.mxu0 %v193
      %870 = vmatmul.mubr.f32.gmra.mrb[0].mxu0 %v177
      %v871 = vpop.f32.mrb[0].mxu0
      %v872 = vadd.f32 %v737, %v871
      %v873 = vpop.f32.mrb[0].mxu0
      %874 = vmatprep.mubr.f32.mxu0 %v194
      %875 = vmatmul.mubr.f32.gmra.mrb[0].mxu0 %v178
      %v876 = vpop.f32.mrb[0].mxu0
      %v877 = vadd.f32 %v742, %v876
      %v878 = vpop.f32.mrb[0].mxu0
      %879 = vmatprep.mubr.f32.mxu0 %v195
      %880 = vmatmul.mubr.f32.gmra.mrb[0].mxu0 %v179
      %v881 = vpop.f32.mrb[0].mxu0
      %v882 = vadd.f32 %v747, %v881
      %v883 = vpop.f32.mrb[0].mxu0
      %884 = vmatprep.mubr.f32.mxu0 %v196
      %885 = vmatmul.mubr.f32.gmra.mrb[0].mxu0 %v180
      %v886 = vpop.f32.mrb[0].mxu0
      %v887 = vadd.f32 %v752, %v886
      %v888 = vpop.f32.mrb[0].mxu0
      %889 = vmatprep.mubr.f32.mxu0 %v197
      %890 = vmatmul.mubr.f32.gmra.mrb[0].mxu0 %v181
      %v891 = vpop.f32.mrb[0].mxu0
      %v892 = vadd.f32 %v757, %v891
      %v893 = vpop.f32.mrb[0].mxu0
      %894 = vmatprep.mubr.f32.mxu0 %v198
      %895 = vmatmul.mubr.f32.gmra.mrb[0].mxu0 %v182
      %v896 = vpop.f32.mrb[0].mxu0
      %v897 = vadd.f32 %v762, %v896
      %v898 = vpop.f32.mrb[0].mxu0
      %899 = vmatprep.mubr.f32.mxu0 %v199
      %900 = vmatmul.mubr.f32.gmra.mrb[0].mxu0 %v183
      %v901 = vpop.f32.mrb[0].mxu0
      %v902 = vadd.f32 %v767, %v901
      %v903 = vpop.f32.mrb[0].mxu0
      %904 = vmatprep.mubr.f32.mxu0 %v200
      %905 = vmatmul.mubr.f32.gmra.mrb[0].mxu0 %v184
      %v906 = vpop.f32.mrb[0].mxu0
      %v907 = vadd.f32 %v772, %v906
      %v908 = vpop.f32.mrb[0].mxu0
      %909 = vmatprep.mubr.f32.mxu0 %v201
      %910 = vmatmul.mubr.f32.gmra.mrb[0].mxu0 %v185
      %v911 = vpop.f32.mrb[0].mxu0
      %v912 = vadd.f32 %v777, %v911
      %v913 = vpop.f32.mrb[0].mxu0
      %914 = vmatprep.mubr.f32.mxu0 %v202
      %915 = vmatmul.mubr.f32.gmra.mrb[0].mxu0 %v186
      %v916 = vpop.f32.mrb[0].mxu0
      %v917 = vadd.f32 %v782, %v916
      %v918 = vpop.f32.mrb[0].mxu0
      %919 = vdwg.mxu0
      %920 = vmatprep.subr.mxu0 0.0
      %921 = vmatpush1.msra.mxu0 %v363
      %922 = vmatprep.subr.mxu0 0.0
      %923 = vmatpush1.msra.mxu0 %v364
      %924 = vmatprep.subr.mxu0 0.0
      %925 = vmatpush1.msra.mxu0 %v365
      %926 = vmatprep.subr.mxu0 0.0
      %927 = vmatpush1.msra.mxu0 %v366
      %928 = vmatprep.subr.mxu0 0.0
      %929 = vmatpush1.msra.mxu0 %v367
      %930 = vmatprep.subr.mxu0 0.0
      %931 = vmatpush1.msra.mxu0 %v368
      %932 = vmatprep.subr.mxu0 0.0
      %933 = vmatpush1.msra.mxu0 %v369
      %934 = vmatprep.subr.mxu0 0.0
      %935 = vmatpush1.msra.mxu0 %v370
      %936 = vmatprep.subr.mxu0 0.0
      %937 = vmatpush1.msra.mxu0 %v371
      %938 = vmatprep.subr.mxu0 0.0
      %939 = vmatpush1.msra.mxu0 %v372
      %940 = vmatprep.subr.mxu0 0.0
      %941 = vmatpush1.msra.mxu0 %v373
      %942 = vmatprep.subr.mxu0 0.0
      %943 = vmatpush1.msra.mxu0 %v374
      %944 = vmatprep.subr.mxu0 0.0
      %945 = vmatpush1.msra.mxu0 %v375
      %946 = vmatprep.subr.mxu0 0.0
      %947 = vmatpush1.msra.mxu0 %v376
      %948 = vmatprep.subr.mxu0 0.0
      %949 = vmatpush1.msra.mxu0 %v377
      %950 = vmatprep.subr.mxu0 0.0
      %951 = vmatpush1.msra.mxu0 %v378
      %952 = vmatprep.subr.mxu0 0.0
      %953 = vmatpush1.msra.mxu0 0.0
      %954 = vmatprep.subr.mxu0 0.0
      %955 = vmatpush1.msra.mxu0 0.0
      %956 = vmatprep.subr.mxu0 0.0
      %957 = vmatpush1.msra.mxu0 0.0
      %958 = vmatprep.subr.mxu0 0.0
      %959 = vmatpush1.msra.mxu0 0.0
      %960 = vmatprep.subr.mxu0 0.0
      %961 = vmatpush1.msra.mxu0 0.0
      %962 = vmatprep.subr.mxu0 0.0
      %963 = vmatpush1.msra.mxu0 0.0
      %964 = vmatprep.subr.mxu0 0.0
      %965 = vmatpush1.msra.mxu0 0.0
      %966 = vmatprep.subr.mxu0 0.0
      %967 = vmatpush1.msra.mxu0 0.0
      %968 = vmatprep.subr.mxu0 0.0
      %969 = vmatpush1.msra.mxu0 0.0
      %970 = vmatprep.subr.mxu0 0.0
      %971 = vmatpush1.msra.mxu0 0.0
      %972 = vmatprep.subr.mxu0 0.0
      %973 = vmatpush1.msra.mxu0 0.0
      %974 = vmatprep.subr.mxu0 0.0
      %975 = vmatpush1.msra.mxu0 0.0
      %976 = vmatprep.subr.mxu0 0.0
      %977 = vmatpush1.msra.mxu0 0.0
      %978 = vmatprep.subr.mxu0 0.0
      %979 = vmatpush1.msra.mxu0 0.0
      %980 = vmatprep.subr.mxu0 0.0
      %981 = vmatpush1.msra.mxu0 0.0
      %982 = vmatprep.subr.mxu0 0.0
      %983 = vmatpush1.msra.mxu0 0.0
      %984 = vmatprep.mubr.f32.mxu0 0.0
      %985 = vmatmul.mubr.f32.gmra.mrb[0].mxu0 %v205
      %v986 = vpop.f32.mrb[0].mxu0
      %v987 = vadd.f32 %v852, %v986
      %v988 = vpop.f32.mrb[0].mxu0
      %989 = vmatprep.mubr.f32.mxu0 0.0
      %990 = vmatmul.mubr.f32.gmra.mrb[0].mxu0 %v206
      %v991 = vpop.f32.mrb[0].mxu0
      %v992 = vadd.f32 %v857, %v991
      %v993 = vpop.f32.mrb[0].mxu0
      %994 = vmatprep.mubr.f32.mxu0 0.0
      %995 = vmatmul.mubr.f32.gmra.mrb[0].mxu0 %v207
      %v996 = vpop.f32.mrb[0].mxu0
      %v997 = vadd.f32 %v862, %v996
      %v998 = vpop.f32.mrb[0].mxu0
      %999 = vmatprep.mubr.f32.mxu0 0.0
      %1000 = vmatmul.mubr.f32.gmra.mrb[0].mxu0 %v208
      %v1001 = vpop.f32.mrb[0].mxu0
      %v1002 = vadd.f32 %v867, %v1001
      %v1003 = vpop.f32.mrb[0].mxu0
      %1004 = vmatprep.mubr.f32.mxu0 0.0
      %1005 = vmatmul.mubr.f32.gmra.mrb[0].mxu0 %v209
      %v1006 = vpop.f32.mrb[0].mxu0
      %v1007 = vadd.f32 %v872, %v1006
      %v1008 = vpop.f32.mrb[0].mxu0
      %1009 = vmatprep.mubr.f32.mxu0 0.0
      %1010 = vmatmul.mubr.f32.gmra.mrb[0].mxu0 %v210
      %v1011 = vpop.f32.mrb[0].mxu0
      %v1012 = vadd.f32 %v877, %v1011
      %v1013 = vpop.f32.mrb[0].mxu0
      %1014 = vmatprep.mubr.f32.mxu0 0.0
      %1015 = vmatmul.mubr.f32.gmra.mrb[0].mxu0 %v211
      %v1016 = vpop.f32.mrb[0].mxu0
      %v1017 = vadd.f32 %v882, %v1016
      %v1018 = vpop.f32.mrb[0].mxu0
      %1019 = vmatprep.mubr.f32.mxu0 0.0
      %1020 = vmatmul.mubr.f32.gmra.mrb[0].mxu0 %v212
      %v1021 = vpop.f32.mrb[0].mxu0
      %v1022 = vadd.f32 %v887, %v1021
      %v1023 = vpop.f32.mrb[0].mxu0
      %1024 = vmatprep.mubr.f32.mxu0 0.0
      %1025 = vmatmul.mubr.f32.gmra.mrb[0].mxu0 %v213
      %v1026 = vpop.f32.mrb[0].mxu0
      %v1027 = vadd.f32 %v892, %v1026
      %v1028 = vpop.f32.mrb[0].mxu0
      %1029 = vmatprep.mubr.f32.mxu0 0.0
      %1030 = vmatmul.mubr.f32.gmra.mrb[0].mxu0 %v214
      %v1031 = vpop.f32.mrb[0].mxu0
      %v1032 = vadd.f32 %v897, %v1031
      %v1033 = vpop.f32.mrb[0].mxu0
      %1034 = vmatprep.mubr.f32.mxu0 0.0
      %1035 = vmatmul.mubr.f32.gmra.mrb[0].mxu0 %v215
      %v1036 = vpop.f32.mrb[0].mxu0
      %v1037 = vadd.f32 %v902, %v1036
      %v1038 = vpop.f32.mrb[0].mxu0
      %1039 = vmatprep.mubr.f32.mxu0 0.0
      %1040 = vmatmul.mubr.f32.gmra.mrb[0].mxu0 %v216
      %v1041 = vpop.f32.mrb[0].mxu0
      %v1042 = vadd.f32 %v907, %v1041
      %v1043 = vpop.f32.mrb[0].mxu0
      %1044 = vmatprep.mubr.f32.mxu0 0.0
      %1045 = vmatmul.mubr.f32.gmra.mrb[0].mxu0 %v217
      %v1046 = vpop.f32.mrb[0].mxu0
      %v1047 = vadd.f32 %v912, %v1046
      %v1048 = vpop.f32.mrb[0].mxu0
      %1049 = vmatprep.mubr.f32.mxu0 0.0
      %1050 = vmatmul.mubr.f32.gmra.mrb[0].mxu0 %v218
      %v1051 = vpop.f32.mrb[0].mxu0
      %v1052 = vadd.f32 %v917, %v1051
      %v1053 = vpop.f32.mrb[0].mxu0
      %1054 = vdwg.mxu0
      %1055 = vmatprep.subr.mxu0 0.0
      %1056 = vmatpush1.msra.mxu0 %v235
      %1057 = vmatprep.subr.mxu0 0.0
      %1058 = vmatpush1.msra.mxu0 %v236
      %1059 = vmatprep.subr.mxu0 0.0
      %1060 = vmatpush1.msra.mxu0 %v237
      %1061 = vmatprep.subr.mxu0 0.0
      %1062 = vmatpush1.msra.mxu0 %v238
      %1063 = vmatprep.subr.mxu0 0.0
      %1064 = vmatpush1.msra.mxu0 %v239
      %1065 = vmatprep.subr.mxu0 0.0
      %1066 = vmatpush1.msra.mxu0 %v240
      %1067 = vmatprep.subr.mxu0 0.0
      %1068 = vmatpush1.msra.mxu0 %v241
      %1069 = vmatprep.subr.mxu0 0.0
      %1070 = vmatpush1.msra.mxu0 %v242
      %1071 = vmatprep.subr.mxu0 0.0
      %1072 = vmatpush1.msra.mxu0 %v243
      %1073 = vmatprep.subr.mxu0 0.0
      %1074 = vmatpush1.msra.mxu0 %v244
      %1075 = vmatprep.subr.mxu0 0.0
      %1076 = vmatpush1.msra.mxu0 %v245
      %1077 = vmatprep.subr.mxu0 0.0
      %1078 = vmatpush1.msra.mxu0 %v246
      %1079 = vmatprep.subr.mxu0 0.0
      %1080 = vmatpush1.msra.mxu0 %v247
      %1081 = vmatprep.subr.mxu0 0.0
      %1082 = vmatpush1.msra.mxu0 %v248
      %1083 = vmatprep.subr.mxu0 0.0
      %1084 = vmatpush1.msra.mxu0 %v249
      %1085 = vmatprep.subr.mxu0 0.0
      %1086 = vmatpush1.msra.mxu0 %v250
      %1087 = vmatprep.subr.mxu0 0.0
      %1088 = vmatpush1.msra.mxu0 %v251
      %1089 = vmatprep.subr.mxu0 0.0
      %1090 = vmatpush1.msra.mxu0 %v252
      %1091 = vmatprep.subr.mxu0 0.0
      %1092 = vmatpush1.msra.mxu0 %v253
      %1093 = vmatprep.subr.mxu0 0.0
      %1094 = vmatpush1.msra.mxu0 %v254
      %1095 = vmatprep.subr.mxu0 0.0
      %1096 = vmatpush1.msra.mxu0 %v255
      %1097 = vmatprep.subr.mxu0 0.0
      %1098 = vmatpush1.msra.mxu0 %v256
      %1099 = vmatprep.subr.mxu0 0.0
      %1100 = vmatpush1.msra.mxu0 %v257
      %1101 = vmatprep.subr.mxu0 0.0
      %1102 = vmatpush1.msra.mxu0 %v258
      %1103 = vmatprep.subr.mxu0 0.0
      %1104 = vmatpush1.msra.mxu0 %v259
      %1105 = vmatprep.subr.mxu0 0.0
      %1106 = vmatpush1.msra.mxu0 %v260
      %1107 = vmatprep.subr.mxu0 0.0
      %1108 = vmatpush1.msra.mxu0 %v261
      %1109 = vmatprep.subr.mxu0 0.0
      %1110 = vmatpush1.msra.mxu0 %v262
      %1111 = vmatprep.subr.mxu0 0.0
      %1112 = vmatpush1.msra.mxu0 %v263
      %1113 = vmatprep.subr.mxu0 0.0
      %1114 = vmatpush1.msra.mxu0 %v264
      %1115 = vmatprep.subr.mxu0 0.0
      %1116 = vmatpush1.msra.mxu0 %v265
      %1117 = vmatprep.subr.mxu0 0.0
      %1118 = vmatpush1.msra.mxu0 %v266
      %1119 = vmatprep.mubr.f32.mxu0 %v203
      %1120 = vmatmul.mubr.f32.gmra.mrb[0].mxu0 %v187
      %v1121 = vpop.f32.mrb[0].mxu0
      %v1122 = vadd.f32 0.0, %v1121
      %v1123 = vpop.f32.mrb[0].mxu0
      %1124 = vmatprep.mubr.f32.mxu0 %v204
      %1125 = vmatmul.mubr.f32.gmra.mrb[0].mxu0 %v188
      %v1126 = vpop.f32.mrb[0].mxu0
      %v1127 = vadd.f32 0.0, %v1126
      %v1128 = vpop.f32.mrb[0].mxu0
      %1129 = vmatprep.mubr.f32.mxu0 %v205
      %1130 = vmatmul.mubr.f32.gmra.mrb[0].mxu0 %v189
      %v1131 = vpop.f32.mrb[0].mxu0
      %v1132 = vadd.f32 0.0, %v1131
      %v1133 = vpop.f32.mrb[0].mxu0
      %1134 = vmatprep.mubr.f32.mxu0 %v206
      %1135 = vmatmul.mubr.f32.gmra.mrb[0].mxu0 %v190
      %v1136 = vpop.f32.mrb[0].mxu0
      %v1137 = vadd.f32 0.0, %v1136
      %v1138 = vpop.f32.mrb[0].mxu0
      %1139 = vmatprep.mubr.f32.mxu0 %v207
      %1140 = vmatmul.mubr.f32.gmra.mrb[0].mxu0 %v191
      %v1141 = vpop.f32.mrb[0].mxu0
      %v1142 = vadd.f32 0.0, %v1141
      %v1143 = vpop.f32.mrb[0].mxu0
      %1144 = vmatprep.mubr.f32.mxu0 %v208
      %1145 = vmatmul.mubr.f32.gmra.mrb[0].mxu0 %v192
      %v1146 = vpop.f32.mrb[0].mxu0
      %v1147 = vadd.f32 0.0, %v1146
      %v1148 = vpop.f32.mrb[0].mxu0
      %1149 = vmatprep.mubr.f32.mxu0 %v209
      %1150 = vmatmul.mubr.f32.gmra.mrb[0].mxu0 %v193
      %v1151 = vpop.f32.mrb[0].mxu0
      %v1152 = vadd.f32 0.0, %v1151
      %v1153 = vpop.f32.mrb[0].mxu0
      %1154 = vmatprep.mubr.f32.mxu0 %v210
      %1155 = vmatmul.mubr.f32.gmra.mrb[0].mxu0 %v194
      %v1156 = vpop.f32.mrb[0].mxu0
      %v1157 = vadd.f32 0.0, %v1156
      %v1158 = vpop.f32.mrb[0].mxu0
      %1159 = vmatprep.mubr.f32.mxu0 %v211
      %1160 = vmatmul.mubr.f32.gmra.mrb[0].mxu0 %v195
      %v1161 = vpop.f32.mrb[0].mxu0
      %v1162 = vadd.f32 0.0, %v1161
      %v1163 = vpop.f32.mrb[0].mxu0
      %1164 = vmatprep.mubr.f32.mxu0 %v212
      %1165 = vmatmul.mubr.f32.gmra.mrb[0].mxu0 %v196
      %v1166 = vpop.f32.mrb[0].mxu0
      %v1167 = vadd.f32 0.0, %v1166
      %v1168 = vpop.f32.mrb[0].mxu0
      %1169 = vmatprep.mubr.f32.mxu0 %v213
      %1170 = vmatmul.mubr.f32.gmra.mrb[0].mxu0 %v197
      %v1171 = vpop.f32.mrb[0].mxu0
      %v1172 = vadd.f32 0.0, %v1171
      %v1173 = vpop.f32.mrb[0].mxu0
      %1174 = vmatprep.mubr.f32.mxu0 %v214
      %1175 = vmatmul.mubr.f32.gmra.mrb[0].mxu0 %v198
      %v1176 = vpop.f32.mrb[0].mxu0
      %v1177 = vadd.f32 0.0, %v1176
      %v1178 = vpop.f32.mrb[0].mxu0
      %1179 = vmatprep.mubr.f32.mxu0 %v215
      %1180 = vmatmul.mubr.f32.gmra.mrb[0].mxu0 %v199
      %v1181 = vpop.f32.mrb[0].mxu0
      %v1182 = vadd.f32 0.0, %v1181
      %v1183 = vpop.f32.mrb[0].mxu0
      %1184 = vmatprep.mubr.f32.mxu0 %v216
      %1185 = vmatmul.mubr.f32.gmra.mrb[0].mxu0 %v200
      %v1186 = vpop.f32.mrb[0].mxu0
      %v1187 = vadd.f32 0.0, %v1186
      %v1188 = vpop.f32.mrb[0].mxu0
      %1189 = vdwg.mxu0
      %1190 = vmatprep.subr.mxu0 0.0
      %1191 = vmatpush1.msra.mxu0 %v267
      %1192 = vmatprep.subr.mxu0 0.0
      %1193 = vmatpush1.msra.mxu0 %v268
      %1194 = vmatprep.subr.mxu0 0.0
      %1195 = vmatpush1.msra.mxu0 %v269
      %1196 = vmatprep.subr.mxu0 0.0
      %1197 = vmatpush1.msra.mxu0 %v270
      %1198 = vmatprep.subr.mxu0 0.0
      %1199 = vmatpush1.msra.mxu0 %v271
      %1200 = vmatprep.subr.mxu0 0.0
      %1201 = vmatpush1.msra.mxu0 %v272
      %1202 = vmatprep.subr.mxu0 0.0
      %1203 = vmatpush1.msra.mxu0 %v273
      %1204 = vmatprep.subr.mxu0 0.0
      %1205 = vmatpush1.msra.mxu0 %v274
      %1206 = vmatprep.subr.mxu0 0.0
      %1207 = vmatpush1.msra.mxu0 %v275
      %1208 = vmatprep.subr.mxu0 0.0
      %1209 = vmatpush1.msra.mxu0 %v276
      %1210 = vmatprep.subr.mxu0 0.0
      %1211 = vmatpush1.msra.mxu0 %v277
      %1212 = vmatprep.subr.mxu0 0.0
      %1213 = vmatpush1.msra.mxu0 %v278
      %1214 = vmatprep.subr.mxu0 0.0
      %1215 = vmatpush1.msra.mxu0 %v279
      %1216 = vmatprep.subr.mxu0 0.0
      %1217 = vmatpush1.msra.mxu0 %v280
      %1218 = vmatprep.subr.mxu0 0.0
      %1219 = vmatpush1.msra.mxu0 %v281
      %1220 = vmatprep.subr.mxu0 0.0
      %1221 = vmatpush1.msra.mxu0 %v282
      %1222 = vmatprep.subr.mxu0 0.0
      %1223 = vmatpush1.msra.mxu0 %v283
      %1224 = vmatprep.subr.mxu0 0.0
      %1225 = vmatpush1.msra.mxu0 %v284
      %1226 = vmatprep.subr.mxu0 0.0
      %1227 = vmatpush1.msra.mxu0 %v285
      %1228 = vmatprep.subr.mxu0 0.0
      %1229 = vmatpush1.msra.mxu0 %v286
      %1230 = vmatprep.subr.mxu0 0.0
      %1231 = vmatpush1.msra.mxu0 %v287
      %1232 = vmatprep.subr.mxu0 0.0
      %1233 = vmatpush1.msra.mxu0 %v288
      %1234 = vmatprep.subr.mxu0 0.0
      %1235 = vmatpush1.msra.mxu0 %v289
      %1236 = vmatprep.subr.mxu0 0.0
      %1237 = vmatpush1.msra.mxu0 %v290
      %1238 = vmatprep.subr.mxu0 0.0
      %1239 = vmatpush1.msra.mxu0 %v291
      %1240 = vmatprep.subr.mxu0 0.0
      %1241 = vmatpush1.msra.mxu0 %v292
      %1242 = vmatprep.subr.mxu0 0.0
      %1243 = vmatpush1.msra.mxu0 %v293
      %1244 = vmatprep.subr.mxu0 0.0
      %1245 = vmatpush1.msra.mxu0 %v294
      %1246 = vmatprep.subr.mxu0 0.0
      %1247 = vmatpush1.msra.mxu0 %v295
      %1248 = vmatprep.subr.mxu0 0.0
      %1249 = vmatpush1.msra.mxu0 %v296
      %1250 = vmatprep.subr.mxu0 0.0
      %1251 = vmatpush1.msra.mxu0 %v297
      %1252 = vmatprep.subr.mxu0 0.0
      %1253 = vmatpush1.msra.mxu0 %v298
      %1254 = vmatprep.mubr.f32.mxu0 %v188
      %1255 = vmatmul.mubr.f32.gmra.mrb[0].mxu0 %v219
      %v1256 = vpop.f32.mrb[0].mxu0
      %v1257 = vadd.f32 %v1122, %v1256
      %v1258 = vpop.f32.mrb[0].mxu0
      %1259 = vmatprep.mubr.f32.mxu0 %v189
      %1260 = vmatmul.mubr.f32.gmra.mrb[0].mxu0 %v220
      %v1261 = vpop.f32.mrb[0].mxu0
      %v1262 = vadd.f32 %v1127, %v1261
      %v1263 = vpop.f32.mrb[0].mxu0
      %1264 = vmatprep.mubr.f32.mxu0 %v190
      %1265 = vmatmul.mubr.f32.gmra.mrb[0].mxu0 %v221
      %v1266 = vpop.f32.mrb[0].mxu0
      %v1267 = vadd.f32 %v1132, %v1266
      %v1268 = vpop.f32.mrb[0].mxu0
      %1269 = vmatprep.mubr.f32.mxu0 %v191
      %1270 = vmatmul.mubr.f32.gmra.mrb[0].mxu0 %v222
      %v1271 = vpop.f32.mrb[0].mxu0
      %v1272 = vadd.f32 %v1137, %v1271
      %v1273 = vpop.f32.mrb[0].mxu0
      %1274 = vmatprep.mubr.f32.mxu0 %v192
      %1275 = vmatmul.mubr.f32.gmra.mrb[0].mxu0 %v223
      %v1276 = vpop.f32.mrb[0].mxu0
      %v1277 = vadd.f32 %v1142, %v1276
      %v1278 = vpop.f32.mrb[0].mxu0
      %1279 = vmatprep.mubr.f32.mxu0 %v193
      %1280 = vmatmul.mubr.f32.gmra.mrb[0].mxu0 %v224
      %v1281 = vpop.f32.mrb[0].mxu0
      %v1282 = vadd.f32 %v1147, %v1281
      %v1283 = vpop.f32.mrb[0].mxu0
      %1284 = vmatprep.mubr.f32.mxu0 %v194
      %1285 = vmatmul.mubr.f32.gmra.mrb[0].mxu0 %v225
      %v1286 = vpop.f32.mrb[0].mxu0
      %v1287 = vadd.f32 %v1152, %v1286
      %v1288 = vpop.f32.mrb[0].mxu0
      %1289 = vmatprep.mubr.f32.mxu0 %v195
      %1290 = vmatmul.mubr.f32.gmra.mrb[0].mxu0 %v226
      %v1291 = vpop.f32.mrb[0].mxu0
      %v1292 = vadd.f32 %v1157, %v1291
      %v1293 = vpop.f32.mrb[0].mxu0
      %1294 = vmatprep.mubr.f32.mxu0 %v196
      %1295 = vmatmul.mubr.f32.gmra.mrb[0].mxu0 %v227
      %v1296 = vpop.f32.mrb[0].mxu0
      %v1297 = vadd.f32 %v1162, %v1296
      %v1298 = vpop.f32.mrb[0].mxu0
      %1299 = vmatprep.mubr.f32.mxu0 %v197
      %1300 = vmatmul.mubr.f32.gmra.mrb[0].mxu0 %v228
      %v1301 = vpop.f32.mrb[0].mxu0
      %v1302 = vadd.f32 %v1167, %v1301
      %v1303 = vpop.f32.mrb[0].mxu0
      %1304 = vmatprep.mubr.f32.mxu0 %v198
      %1305 = vmatmul.mubr.f32.gmra.mrb[0].mxu0 %v229
      %v1306 = vpop.f32.mrb[0].mxu0
      %v1307 = vadd.f32 %v1172, %v1306
      %v1308 = vpop.f32.mrb[0].mxu0
      %1309 = vmatprep.mubr.f32.mxu0 %v199
      %1310 = vmatmul.mubr.f32.gmra.mrb[0].mxu0 %v230
      %v1311 = vpop.f32.mrb[0].mxu0
      %v1312 = vadd.f32 %v1177, %v1311
      %v1313 = vpop.f32.mrb[0].mxu0
      %1314 = vmatprep.mubr.f32.mxu0 %v200
      %1315 = vmatmul.mubr.f32.gmra.mrb[0].mxu0 %v231
      %v1316 = vpop.f32.mrb[0].mxu0
      %v1317 = vadd.f32 %v1182, %v1316
      %v1318 = vpop.f32.mrb[0].mxu0
      %1319 = vmatprep.mubr.f32.mxu0 %v201
      %1320 = vmatmul.mubr.f32.gmra.mrb[0].mxu0 %v232
      %v1321 = vpop.f32.mrb[0].mxu0
      %v1322 = vadd.f32 %v1187, %v1321
      %v1323 = vpop.f32.mrb[0].mxu0
      %1324 = vdwg.mxu0
      %1325 = vmatprep.subr.mxu0 0.0
      %1326 = vmatpush1.msra.mxu0 %v299
      %1327 = vmatprep.subr.mxu0 0.0
      %1328 = vmatpush1.msra.mxu0 %v300
      %1329 = vmatprep.subr.mxu0 0.0
      %1330 = vmatpush1.msra.mxu0 %v301
      %1331 = vmatprep.subr.mxu0 0.0
      %1332 = vmatpush1.msra.mxu0 %v302
      %1333 = vmatprep.subr.mxu0 0.0
      %1334 = vmatpush1.msra.mxu0 %v303
      %1335 = vmatprep.subr.mxu0 0.0
      %1336 = vmatpush1.msra.mxu0 %v304
      %1337 = vmatprep.subr.mxu0 0.0
      %1338 = vmatpush1.msra.mxu0 %v305
      %1339 = vmatprep.subr.mxu0 0.0
      %1340 = vmatpush1.msra.mxu0 %v306
      %1341 = vmatprep.subr.mxu0 0.0
      %1342 = vmatpush1.msra.mxu0 %v307
      %1343 = vmatprep.subr.mxu0 0.0
      %1344 = vmatpush1.msra.mxu0 %v308
      %1345 = vmatprep.subr.mxu0 0.0
      %1346 = vmatpush1.msra.mxu0 %v309
      %1347 = vmatprep.subr.mxu0 0.0
      %1348 = vmatpush1.msra.mxu0 %v310
      %1349 = vmatprep.subr.mxu0 0.0
      %1350 = vmatpush1.msra.mxu0 %v311
      %1351 = vmatprep.subr.mxu0 0.0
      %1352 = vmatpush1.msra.mxu0 %v312
      %1353 = vmatprep.subr.mxu0 0.0
      %1354 = vmatpush1.msra.mxu0 %v313
      %1355 = vmatprep.subr.mxu0 0.0
      %1356 = vmatpush1.msra.mxu0 %v314
      %1357 = vmatprep.subr.mxu0 0.0
      %1358 = vmatpush1.msra.mxu0 %v315
      %1359 = vmatprep.subr.mxu0 0.0
      %1360 = vmatpush1.msra.mxu0 %v316
      %1361 = vmatprep.subr.mxu0 0.0
      %1362 = vmatpush1.msra.mxu0 %v317
      %1363 = vmatprep.subr.mxu0 0.0
      %1364 = vmatpush1.msra.mxu0 %v318
      %1365 = vmatprep.subr.mxu0 0.0
      %1366 = vmatpush1.msra.mxu0 %v319
      %1367 = vmatprep.subr.mxu0 0.0
      %1368 = vmatpush1.msra.mxu0 %v320
      %1369 = vmatprep.subr.mxu0 0.0
      %1370 = vmatpush1.msra.mxu0 %v321
      %1371 = vmatprep.subr.mxu0 0.0
      %1372 = vmatpush1.msra.mxu0 %v322
      %1373 = vmatprep.subr.mxu0 0.0
      %1374 = vmatpush1.msra.mxu0 %v323
      %1375 = vmatprep.subr.mxu0 0.0
      %1376 = vmatpush1.msra.mxu0 %v324
      %1377 = vmatprep.subr.mxu0 0.0
      %1378 = vmatpush1.msra.mxu0 %v325
      %1379 = vmatprep.subr.mxu0 0.0
      %1380 = vmatpush1.msra.mxu0 %v326
      %1381 = vmatprep.subr.mxu0 0.0
      %1382 = vmatpush1.msra.mxu0 %v327
      %1383 = vmatprep.subr.mxu0 0.0
      %1384 = vmatpush1.msra.mxu0 %v328
      %1385 = vmatprep.subr.mxu0 0.0
      %1386 = vmatpush1.msra.mxu0 %v329
      %1387 = vmatprep.subr.mxu0 0.0
      %1388 = vmatpush1.msra.mxu0 %v330
      %1389 = vmatprep.mubr.f32.mxu0 %v220
      %1390 = vmatmul.mubr.f32.gmra.mrb[0].mxu0 %v204
      %v1391 = vpop.f32.mrb[0].mxu0
      %v1392 = vadd.f32 %v1257, %v1391
      %v1393 = vpop.f32.mrb[0].mxu0
      %1394 = vmatprep.mubr.f32.mxu0 %v221
      %1395 = vmatmul.mubr.f32.gmra.mrb[0].mxu0 %v205
      %v1396 = vpop.f32.mrb[0].mxu0
      %v1397 = vadd.f32 %v1262, %v1396
      %v1398 = vpop.f32.mrb[0].mxu0
      %1399 = vmatprep.mubr.f32.mxu0 %v222
      %1400 = vmatmul.mubr.f32.gmra.mrb[0].mxu0 %v206
      %v1401 = vpop.f32.mrb[0].mxu0
      %v1402 = vadd.f32 %v1267, %v1401
      %v1403 = vpop.f32.mrb[0].mxu0
      %1404 = vmatprep.mubr.f32.mxu0 %v223
      %1405 = vmatmul.mubr.f32.gmra.mrb[0].mxu0 %v207
      %v1406 = vpop.f32.mrb[0].mxu0
      %v1407 = vadd.f32 %v1272, %v1406
      %v1408 = vpop.f32.mrb[0].mxu0
      %1409 = vmatprep.mubr.f32.mxu0 %v224
      %1410 = vmatmul.mubr.f32.gmra.mrb[0].mxu0 %v208
      %v1411 = vpop.f32.mrb[0].mxu0
      %v1412 = vadd.f32 %v1277, %v1411
      %v1413 = vpop.f32.mrb[0].mxu0
      %1414 = vmatprep.mubr.f32.mxu0 %v225
      %1415 = vmatmul.mubr.f32.gmra.mrb[0].mxu0 %v209
      %v1416 = vpop.f32.mrb[0].mxu0
      %v1417 = vadd.f32 %v1282, %v1416
      %v1418 = vpop.f32.mrb[0].mxu0
      %1419 = vmatprep.mubr.f32.mxu0 %v226
      %1420 = vmatmul.mubr.f32.gmra.mrb[0].mxu0 %v210
      %v1421 = vpop.f32.mrb[0].mxu0
      %v1422 = vadd.f32 %v1287, %v1421
      %v1423 = vpop.f32.mrb[0].mxu0
      %1424 = vmatprep.mubr.f32.mxu0 %v227
      %1425 = vmatmul.mubr.f32.gmra.mrb[0].mxu0 %v211
      %v1426 = vpop.f32.mrb[0].mxu0
      %v1427 = vadd.f32 %v1292, %v1426
      %v1428 = vpop.f32.mrb[0].mxu0
      %1429 = vmatprep.mubr.f32.mxu0 %v228
      %1430 = vmatmul.mubr.f32.gmra.mrb[0].mxu0 %v212
      %v1431 = vpop.f32.mrb[0].mxu0
      %v1432 = vadd.f32 %v1297, %v1431
      %v1433 = vpop.f32.mrb[0].mxu0
      %1434 = vmatprep.mubr.f32.mxu0 %v229
      %1435 = vmatmul.mubr.f32.gmra.mrb[0].mxu0 %v213
      %v1436 = vpop.f32.mrb[0].mxu0
      %v1437 = vadd.f32 %v1302, %v1436
      %v1438 = vpop.f32.mrb[0].mxu0
      %1439 = vmatprep.mubr.f32.mxu0 %v230
      %1440 = vmatmul.mubr.f32.gmra.mrb[0].mxu0 %v214
      %v1441 = vpop.f32.mrb[0].mxu0
      %v1442 = vadd.f32 %v1307, %v1441
      %v1443 = vpop.f32.mrb[0].mxu0
      %1444 = vmatprep.mubr.f32.mxu0 %v231
      %1445 = vmatmul.mubr.f32.gmra.mrb[0].mxu0 %v215
      %v1446 = vpop.f32.mrb[0].mxu0
      %v1447 = vadd.f32 %v1312, %v1446
      %v1448 = vpop.f32.mrb[0].mxu0
      %1449 = vmatprep.mubr.f32.mxu0 %v232
      %1450 = vmatmul.mubr.f32.gmra.mrb[0].mxu0 %v216
      %v1451 = vpop.f32.mrb[0].mxu0
      %v1452 = vadd.f32 %v1317, %v1451
      %v1453 = vpop.f32.mrb[0].mxu0
      %1454 = vmatprep.mubr.f32.mxu0 %v233
      %1455 = vmatmul.mubr.f32.gmra.mrb[0].mxu0 %v217
      %v1456 = vpop.f32.mrb[0].mxu0
      %v1457 = vadd.f32 %v1322, %v1456
      %v1458 = vpop.f32.mrb[0].mxu0
      %1459 = vdwg.mxu0
      %1460 = vmatprep.subr.mxu0 0.0
      %1461 = vmatpush1.msra.mxu0 %v331
      %1462 = vmatprep.subr.mxu0 0.0
      %1463 = vmatpush1.msra.mxu0 %v332
      %1464 = vmatprep.subr.mxu0 0.0
      %1465 = vmatpush1.msra.mxu0 %v333
      %1466 = vmatprep.subr.mxu0 0.0
      %1467 = vmatpush1.msra.mxu0 %v334
      %1468 = vmatprep.subr.mxu0 0.0
      %1469 = vmatpush1.msra.mxu0 %v335
      %1470 = vmatprep.subr.mxu0 0.0
      %1471 = vmatpush1.msra.mxu0 %v336
      %1472 = vmatprep.subr.mxu0 0.0
      %1473 = vmatpush1.msra.mxu0 %v337
      %1474 = vmatprep.subr.mxu0 0.0
      %1475 = vmatpush1.msra.mxu0 %v338
      %1476 = vmatprep.subr.mxu0 0.0
      %1477 = vmatpush1.msra.mxu0 %v339
      %1478 = vmatprep.subr.mxu0 0.0
      %1479 = vmatpush1.msra.mxu0 %v340
      %1480 = vmatprep.subr.mxu0 0.0
      %1481 = vmatpush1.msra.mxu0 %v341
      %1482 = vmatprep.subr.mxu0 0.0
      %1483 = vmatpush1.msra.mxu0 %v342
      %1484 = vmatprep.subr.mxu0 0.0
      %1485 = vmatpush1.msra.mxu0 %v343
      %1486 = vmatprep.subr.mxu0 0.0
      %1487 = vmatpush1.msra.mxu0 %v344
      %1488 = vmatprep.subr.mxu0 0.0
      %1489 = vmatpush1.msra.mxu0 %v345
      %1490 = vmatprep.subr.mxu0 0.0
      %1491 = vmatpush1.msra.mxu0 %v346
      %1492 = vmatprep.subr.mxu0 0.0
      %1493 = vmatpush1.msra.mxu0 %v347
      %1494 = vmatprep.subr.mxu0 0.0
      %1495 = vmatpush1.msra.mxu0 %v348
      %1496 = vmatprep.subr.mxu0 0.0
      %1497 = vmatpush1.msra.mxu0 %v349
      %1498 = vmatprep.subr.mxu0 0.0
      %1499 = vmatpush1.msra.mxu0 %v350
      %1500 = vmatprep.subr.mxu0 0.0
      %1501 = vmatpush1.msra.mxu0 %v351
      %1502 = vmatprep.subr.mxu0 0.0
      %1503 = vmatpush1.msra.mxu0 %v352
      %1504 = vmatprep.subr.mxu0 0.0
      %1505 = vmatpush1.msra.mxu0 %v353
      %1506 = vmatprep.subr.mxu0 0.0
      %1507 = vmatpush1.msra.mxu0 %v354
      %1508 = vmatprep.subr.mxu0 0.0
      %1509 = vmatpush1.msra.mxu0 %v355
      %1510 = vmatprep.subr.mxu0 0.0
      %1511 = vmatpush1.msra.mxu0 %v356
      %1512 = vmatprep.subr.mxu0 0.0
      %1513 = vmatpush1.msra.mxu0 %v357
      %1514 = vmatprep.subr.mxu0 0.0
      %1515 = vmatpush1.msra.mxu0 %v358
      %1516 = vmatprep.subr.mxu0 0.0
      %1517 = vmatpush1.msra.mxu0 %v359
      %1518 = vmatprep.subr.mxu0 0.0
      %1519 = vmatpush1.msra.mxu0 %v360
      %1520 = vmatprep.subr.mxu0 0.0
      %1521 = vmatpush1.msra.mxu0 %v361
      %1522 = vmatprep.subr.mxu0 0.0
      %1523 = vmatpush1.msra.mxu0 %v362
      %1524 = vmatprep.mubr.f32.mxu0 %v205
      %1525 = vmatmul.mubr.f32.gmra.mrb[0].mxu0 %v189
      %v1526 = vpop.f32.mrb[0].mxu0
      %v1527 = vadd.f32 %v1392, %v1526
      %v1528 = vpop.f32.mrb[0].mxu0
      %1529 = vmatprep.mubr.f32.mxu0 %v206
      %1530 = vmatmul.mubr.f32.gmra.mrb[0].mxu0 %v190
      %v1531 = vpop.f32.mrb[0].mxu0
      %v1532 = vadd.f32 %v1397, %v1531
      %v1533 = vpop.f32.mrb[0].mxu0
      %1534 = vmatprep.mubr.f32.mxu0 %v207
      %1535 = vmatmul.mubr.f32.gmra.mrb[0].mxu0 %v191
      %v1536 = vpop.f32.mrb[0].mxu0
      %v1537 = vadd.f32 %v1402, %v1536
      %v1538 = vpop.f32.mrb[0].mxu0
      %1539 = vmatprep.mubr.f32.mxu0 %v208
      %1540 = vmatmul.mubr.f32.gmra.mrb[0].mxu0 %v192
      %v1541 = vpop.f32.mrb[0].mxu0
      %v1542 = vadd.f32 %v1407, %v1541
      %v1543 = vpop.f32.mrb[0].mxu0
      %1544 = vmatprep.mubr.f32.mxu0 %v209
      %1545 = vmatmul.mubr.f32.gmra.mrb[0].mxu0 %v193
      %v1546 = vpop.f32.mrb[0].mxu0
      %v1547 = vadd.f32 %v1412, %v1546
      %v1548 = vpop.f32.mrb[0].mxu0
      %1549 = vmatprep.mubr.f32.mxu0 %v210
      %1550 = vmatmul.mubr.f32.gmra.mrb[0].mxu0 %v194
      %v1551 = vpop.f32.mrb[0].mxu0
      %v1552 = vadd.f32 %v1417, %v1551
      %v1553 = vpop.f32.mrb[0].mxu0
      %1554 = vmatprep.mubr.f32.mxu0 %v211
      %1555 = vmatmul.mubr.f32.gmra.mrb[0].mxu0 %v195
      %v1556 = vpop.f32.mrb[0].mxu0
      %v1557 = vadd.f32 %v1422, %v1556
      %v1558 = vpop.f32.mrb[0].mxu0
      %1559 = vmatprep.mubr.f32.mxu0 %v212
      %1560 = vmatmul.mubr.f32.gmra.mrb[0].mxu0 %v196
      %v1561 = vpop.f32.mrb[0].mxu0
      %v1562 = vadd.f32 %v1427, %v1561
      %v1563 = vpop.f32.mrb[0].mxu0
      %1564 = vmatprep.mubr.f32.mxu0 %v213
      %1565 = vmatmul.mubr.f32.gmra.mrb[0].mxu0 %v197
      %v1566 = vpop.f32.mrb[0].mxu0
      %v1567 = vadd.f32 %v1432, %v1566
      %v1568 = vpop.f32.mrb[0].mxu0
      %1569 = vmatprep.mubr.f32.mxu0 %v214
      %1570 = vmatmul.mubr.f32.gmra.mrb[0].mxu0 %v198
      %v1571 = vpop.f32.mrb[0].mxu0
      %v1572 = vadd.f32 %v1437, %v1571
      %v1573 = vpop.f32.mrb[0].mxu0
      %1574 = vmatprep.mubr.f32.mxu0 %v215
      %1575 = vmatmul.mubr.f32.gmra.mrb[0].mxu0 %v199
      %v1576 = vpop.f32.mrb[0].mxu0
      %v1577 = vadd.f32 %v1442, %v1576
      %v1578 = vpop.f32.mrb[0].mxu0
      %1579 = vmatprep.mubr.f32.mxu0 %v216
      %1580 = vmatmul.mubr.f32.gmra.mrb[0].mxu0 %v200
      %v1581 = vpop.f32.mrb[0].mxu0
      %v1582 = vadd.f32 %v1447, %v1581
      %v1583 = vpop.f32.mrb[0].mxu0
      %1584 = vmatprep.mubr.f32.mxu0 %v217
      %1585 = vmatmul.mubr.f32.gmra.mrb[0].mxu0 %v201
      %v1586 = vpop.f32.mrb[0].mxu0
      %v1587 = vadd.f32 %v1452, %v1586
      %v1588 = vpop.f32.mrb[0].mxu0
      %1589 = vmatprep.mubr.f32.mxu0 %v218
      %1590 = vmatmul.mubr.f32.gmra.mrb[0].mxu0 %v202
      %v1591 = vpop.f32.mrb[0].mxu0
      %v1592 = vadd.f32 %v1457, %v1591
      %v1593 = vpop.f32.mrb[0].mxu0
      %1594 = vdwg.mxu0
      %1595 = vmatprep.subr.mxu0 0.0
      %1596 = vmatpush1.msra.mxu0 %v363
      %1597 = vmatprep.subr.mxu0 0.0
      %1598 = vmatpush1.msra.mxu0 %v364
      %1599 = vmatprep.subr.mxu0 0.0
      %1600 = vmatpush1.msra.mxu0 %v365
      %1601 = vmatprep.subr.mxu0 0.0
      %1602 = vmatpush1.msra.mxu0 %v366
      %1603 = vmatprep.subr.mxu0 0.0
      %1604 = vmatpush1.msra.mxu0 %v367
      %1605 = vmatprep.subr.mxu0 0.0
      %1606 = vmatpush1.msra.mxu0 %v368
      %1607 = vmatprep.subr.mxu0 0.0
      %1608 = vmatpush1.msra.mxu0 %v369
      %1609 = vmatprep.subr.mxu0 0.0
      %1610 = vmatpush1.msra.mxu0 %v370
      %1611 = vmatprep.subr.mxu0 0.0
      %1612 = vmatpush1.msra.mxu0 %v371
      %1613 = vmatprep.subr.mxu0 0.0
      %1614 = vmatpush1.msra.mxu0 %v372
      %1615 = vmatprep.subr.mxu0 0.0
      %1616 = vmatpush1.msra.mxu0 %v373
      %1617 = vmatprep.subr.mxu0 0.0
      %1618 = vmatpush1.msra.mxu0 %v374
      %1619 = vmatprep.subr.mxu0 0.0
      %1620 = vmatpush1.msra.mxu0 %v375
      %1621 = vmatprep.subr.mxu0 0.0
      %1622 = vmatpush1.msra.mxu0 %v376
      %1623 = vmatprep.subr.mxu0 0.0
      %1624 = vmatpush1.msra.mxu0 %v377
      %1625 = vmatprep.subr.mxu0 0.0
      %1626 = vmatpush1.msra.mxu0 %v378
      %1627 = vmatprep.subr.mxu0 0.0
      %1628 = vmatpush1.msra.mxu0 0.0
      %1629 = vmatprep.subr.mxu0 0.0
      %1630 = vmatpush1.msra.mxu0 0.0
      %1631 = vmatprep.subr.mxu0 0.0
      %1632 = vmatpush1.msra.mxu0 0.0
      %1633 = vmatprep.subr.mxu0 0.0
      %1634 = vmatpush1.msra.mxu0 0.0
      %1635 = vmatprep.subr.mxu0 0.0
      %1636 = vmatpush1.msra.mxu0 0.0
      %1637 = vmatprep.subr.mxu0 0.0
      %1638 = vmatpush1.msra.mxu0 0.0
      %1639 = vmatprep.subr.mxu0 0.0
      %1640 = vmatpush1.msra.mxu0 0.0
      %1641 = vmatprep.subr.mxu0 0.0
      %1642 = vmatpush1.msra.mxu0 0.0
      %1643 = vmatprep.subr.mxu0 0.0
      %1644 = vmatpush1.msra.mxu0 0.0
      %1645 = vmatprep.subr.mxu0 0.0
      %1646 = vmatpush1.msra.mxu0 0.0
      %1647 = vmatprep.subr.mxu0 0.0
      %1648 = vmatpush1.msra.mxu0 0.0
      %1649 = vmatprep.subr.mxu0 0.0
      %1650 = vmatpush1.msra.mxu0 0.0
      %1651 = vmatprep.subr.mxu0 0.0
      %1652 = vmatpush1.msra.mxu0 0.0
      %1653 = vmatprep.subr.mxu0 0.0
      %1654 = vmatpush1.msra.mxu0 0.0
      %1655 = vmatprep.subr.mxu0 0.0
      %1656 = vmatpush1.msra.mxu0 0.0
      %1657 = vmatprep.subr.mxu0 0.0
      %1658 = vmatpush1.msra.mxu0 0.0
      %1659 = vmatprep.mubr.f32.mxu0 0.0
      %1660 = vmatmul.mubr.f32.gmra.mrb[0].mxu0 %v221
      %v1661 = vpop.f32.mrb[0].mxu0
      %v1662 = vadd.f32 %v1527, %v1661
      %v1663 = vpop.f32.mrb[0].mxu0
      %1664 = vmatprep.mubr.f32.mxu0 0.0
      %1665 = vmatmul.mubr.f32.gmra.mrb[0].mxu0 %v222
      %v1666 = vpop.f32.mrb[0].mxu0
      %v1667 = vadd.f32 %v1532, %v1666
      %v1668 = vpop.f32.mrb[0].mxu0
      %1669 = vmatprep.mubr.f32.mxu0 0.0
      %1670 = vmatmul.mubr.f32.gmra.mrb[0].mxu0 %v223
      %v1671 = vpop.f32.mrb[0].mxu0
      %v1672 = vadd.f32 %v1537, %v1671
      %v1673 = vpop.f32.mrb[0].mxu0
      %1674 = vmatprep.mubr.f32.mxu0 0.0
      %1675 = vmatmul.mubr.f32.gmra.mrb[0].mxu0 %v224
      %v1676 = vpop.f32.mrb[0].mxu0
      %v1677 = vadd.f32 %v1542, %v1676
      %v1678 = vpop.f32.mrb[0].mxu0
      %1679 = vmatprep.mubr.f32.mxu0 0.0
      %1680 = vmatmul.mubr.f32.gmra.mrb[0].mxu0 %v225
      %v1681 = vpop.f32.mrb[0].mxu0
      %v1682 = vadd.f32 %v1547, %v1681
      %v1683 = vpop.f32.mrb[0].mxu0
      %1684 = vmatprep.mubr.f32.mxu0 0.0
      %1685 = vmatmul.mubr.f32.gmra.mrb[0].mxu0 %v226
      %v1686 = vpop.f32.mrb[0].mxu0
      %v1687 = vadd.f32 %v1552, %v1686
      %v1688 = vpop.f32.mrb[0].mxu0
      %1689 = vmatprep.mubr.f32.mxu0 0.0
      %1690 = vmatmul.mubr.f32.gmra.mrb[0].mxu0 %v227
      %v1691 = vpop.f32.mrb[0].mxu0
      %v1692 = vadd.f32 %v1557, %v1691
      %v1693 = vpop.f32.mrb[0].mxu0
      %1694 = vmatprep.mubr.f32.mxu0 0.0
      %1695 = vmatmul.mubr.f32.gmra.mrb[0].mxu0 %v228
      %v1696 = vpop.f32.mrb[0].mxu0
      %v1697 = vadd.f32 %v1562, %v1696
      %v1698 = vpop.f32.mrb[0].mxu0
      %1699 = vmatprep.mubr.f32.mxu0 0.0
      %1700 = vmatmul.mubr.f32.gmra.mrb[0].mxu0 %v229
      %v1701 = vpop.f32.mrb[0].mxu0
      %v1702 = vadd.f32 %v1567, %v1701
      %v1703 = vpop.f32.mrb[0].mxu0
      %1704 = vmatprep.mubr.f32.mxu0 0.0
      %1705 = vmatmul.mubr.f32.gmra.mrb[0].mxu0 %v230
      %v1706 = vpop.f32.mrb[0].mxu0
      %v1707 = vadd.f32 %v1572, %v1706
      %v1708 = vpop.f32.mrb[0].mxu0
      %1709 = vmatprep.mubr.f32.mxu0 0.0
      %1710 = vmatmul.mubr.f32.gmra.mrb[0].mxu0 %v231
      %v1711 = vpop.f32.mrb[0].mxu0
      %v1712 = vadd.f32 %v1577, %v1711
      %v1713 = vpop.f32.mrb[0].mxu0
      %1714 = vmatprep.mubr.f32.mxu0 0.0
      %1715 = vmatmul.mubr.f32.gmra.mrb[0].mxu0 %v232
      %v1716 = vpop.f32.mrb[0].mxu0
      %v1717 = vadd.f32 %v1582, %v1716
      %v1718 = vpop.f32.mrb[0].mxu0
      %1719 = vmatprep.mubr.f32.mxu0 0.0
      %1720 = vmatmul.mubr.f32.gmra.mrb[0].mxu0 %v233
      %v1721 = vpop.f32.mrb[0].mxu0
      %v1722 = vadd.f32 %v1587, %v1721
      %v1723 = vpop.f32.mrb[0].mxu0
      %1724 = vmatprep.mubr.f32.mxu0 0.0
      %1725 = vmatmul.mubr.f32.gmra.mrb[0].mxu0 %v234
      %v1726 = vpop.f32.mrb[0].mxu0
      %v1727 = vadd.f32 %v1592, %v1726
      %v1728 = vpop.f32.mrb[0].mxu0
      %1729 = vdwg.mxu0
      %v1730 = vmax.f32 %v987, %v1662
      %v1731 = vmax.f32 %v992, %v1667
      %v1732 = vmax.f32 %v997, %v1672
      %v1733 = vmax.f32 %v1002, %v1677
      %v1734 = vmax.f32 %v1007, %v1682
      %v1735 = vmax.f32 %v1012, %v1687
      %v1736 = vmax.f32 %v1017, %v1692
      %v1737 = vmax.f32 %v1022, %v1697
      %v1738 = vmax.f32 %v1027, %v1702
      %v1739 = vmax.f32 %v1032, %v1707
      %v1740 = vmax.f32 %v1037, %v1712
      %v1741 = vmax.f32 %v1042, %v1717
      %v1742 = vmax.f32 %v1047, %v1722
      %v1743 = vmax.f32 %v1052, %v1727
      %v1745 = vlaneseq
      %v1746 = vshrl.u32 %v1745, 7
      %v1747 = vsub.s32 0, %v1746
      %v1748 = vrot.slane %v379, %v1747
      %v1750 = vadd.f32 %v1730, %v1748
      %v1751 = vadd.f32 %v1731, %v1748
      %v1752 = vadd.f32 %v1732, %v1748
      %v1753 = vadd.f32 %v1733, %v1748
      %v1754 = vadd.f32 %v1734, %v1748
      %v1755 = vadd.f32 %v1735, %v1748
      %v1756 = vadd.f32 %v1736, %v1748
      %v1757 = vadd.f32 %v1737, %v1748
      %v1758 = vadd.f32 %v1738, %v1748
      %v1759 = vadd.f32 %v1739, %v1748
      %v1760 = vadd.f32 %v1740, %v1748
      %v1761 = vadd.f32 %v1741, %v1748
      %v1762 = vadd.f32 %v1742, %v1748
      %v1763 = vadd.f32 %v1743, %v1748
      %v1764 = vmax.f32 %v1750, 0.0
      %v1765 = vmax.f32 %v1751, 0.0
      %v1766 = vmax.f32 %v1752, 0.0
      %v1767 = vmax.f32 %v1753, 0.0
      %v1768 = vmax.f32 %v1754, 0.0
      %v1769 = vmax.f32 %v1755, 0.0
      %v1770 = vmax.f32 %v1756, 0.0
      %v1771 = vmax.f32 %v1757, 0.0
      %v1772 = vmax.f32 %v1758, 0.0
      %v1773 = vmax.f32 %v1759, 0.0
      %v1774 = vmax.f32 %v1760, 0.0
      %v1775 = vmax.f32 %v1761, 0.0
      %v1776 = vmax.f32 %v1762, 0.0
      %v1777 = vmax.f32 %v1763, 0.0
      %v1778 = vmax.f32 %v1764, %v1765
      %v1779 = vmax.f32 %v1766, %v1767
      %v1780 = vmax.f32 %v1768, %v1769
      %v1781 = vmax.f32 %v1770, %v1771
      %v1782 = vmax.f32 %v1772, %v1773
      %v1783 = vmax.f32 %v1774, %v1775
      %v1784 = vmax.f32 %v1776, %v1777
      %1785 = vst [vmem:[%s170] sm:$0x7f] %v1778
      %1786 = vst [vmem:[%s170 + $0x8] sm:$0x7f] %v1779
      %1787 = vst [vmem:[%s170 + $0x10] sm:$0x7f] %v1780
      %1788 = vst [vmem:[%s170 + $0x18] sm:$0x7f] %v1781
      %1789 = vst [vmem:[%s170 + $0x20] sm:$0x7f] %v1782
      %1790 = vst [vmem:[%s170 + $0x28] sm:$0x7f] %v1783
      %1791 = vst [vmem:[%s170 + $0x30] sm:$0x7f] %v1784
      %p1792 = scmp.lt.s32.totalorder %s14, 1
      %s1793 = scalar_select %p1792, %s14, 1
      %s1794 = smul.addr %s1793, 7
      %s1795 = smul.addr %s1794, 8
      %s1796 = scalar_lea.vmem %s3, %s1795
      // Predicated region
      $region33: #{fashion_classifier_forward.4} parent=31 // pred_check
        %p1797 = pneg %p100
      $region34: #{fashion_classifier_forward.4} parent=31 // pred_check_branch
        %1799 = sbr.rel (%p1797) target = $region36
      $region35: #{fashion_classifier_forward.4} parent=31 // pred_region
        _
      $region36: #{fashion_classifier_forward.4} parent=31 // pred_fallthru
        _
    $region32: #{fashion_classifier_forward.4} parent=5 // pred_fallthru
      _
    %p1800 = scmp.le.s32.totalorder 2, %s9
    // Predicated region
    $region37: #{fashion_classifier_forward.4} parent=5 // pred_check
      %p1801 = pneg %p1800
    $region38: #{fashion_classifier_forward.4} parent=5 // pred_check_branch
      %1803 = sbr.rel (%p1801) target = $region40
    $region39: #{fashion_classifier_forward.4} parent=5 // pred_region
      %s1804 = ssub.s32 %s9, 2
      // Predicated region
      $region41: #{fashion_classifier_forward.4} parent=39 // pred_check
        %p1805 = pneg %p106
      $region42: #{fashion_classifier_forward.4} parent=39 // pred_check_branch
        %1807 = sbr.rel (%p1805) target = $region44
      $region43: #{fashion_classifier_forward.4} parent=39 // pred_region
        %p1808 = scmp.lt.s32.totalorder %s15, 1
        %s1809 = scalar_select %p1808, %s15, 1
        %s1810 = smul.addr %s1809, 7
        %s1811 = smul.addr %s1810, 8
        %s1812 = scalar_lea.vmem %s3, %s1811
      $region44: #{fashion_classifier_forward.4} parent=39 // pred_fallthru
        _
    $region40: #{fashion_classifier_forward.4} parent=5 // pred_fallthru
      _
  $region6: #{fashion_classifier_forward.4} parent=0 // loop_footer
    %s13 = sadd.s32 1, %s9
  $region7: #{fashion_classifier_forward.4} parent=0 // loop_footer_branch
    %8 = sbr.rel target = $region3
  $region8: #{fashion_classifier_forward.4} parent=0 // loop_exit
    _

// kernel: fashion_classifier_forward.3
$region0: #{fashion_classifier_forward.3}
  #allocation0 [shape = 'u32[]', space=smem, size = 0x4, offset = 0x4, fixed_abs, tag = 'smem constant byte address 0x4 - core index']
  #allocation1 [shape = 'u32[144,128]{1,0:T(1,128)}', space=vmem, size = 0x12000, scoped, tag = 'internal scratch']
  %s0 = inlined_call_operand.vmem [shape: f32[2,30,4,14,1], index: 0, kind: input, shape index: {}]
  %s1 = inlined_call_operand.hbm [shape: f32[9,128], index: 1, kind: input, shape index: {}]
  %s2 = inlined_call_operand.hbm [shape: f32[1,128], index: 2, kind: input, shape index: {}]
  %s3 = inlined_call_operand.vmem [shape: f32[2,14,14,128], index: 3, kind: output, shape index: {}]
  %s4 = sld [smem:[#allocation0]]
  $region53: #{fashion_classifier_forward.3} parent=0
    _
  %s6 = ssub.s32 1, %s4
  %s7 = scalar_select 0, %s6, %s4
  $region1: #{fashion_classifier_forward.3} parent=0
    #allocation2 [shape = 'u8[8192]{0}', space=vmem, size = 0x2000, scoped, tag = 'input window, operand 1, single buffered']
    #allocation3 [shape = 's32[2]{0}', space=sflag, size = 0x8, scoped, tag = 'scoped memory for fashion_classifier_forward.3']
    #allocation4 [shape = 'u8[512]{0}', space=vmem, size = 0x400, scoped, tag = 'input window, operand 2, single buffered']
    #allocation5 [shape = 's32[1]{0}', space=sflag, size = 0x4, scoped, tag = 'scoped memory for fashion_classifier_forward.3']
    %8 = vsyncpa [#allocation3], 0
    %9 = vsyncpa [#allocation5], 0
    loop: start=0, step=1, limit=4
    $region2: #{fashion_classifier_forward.3} parent=1 // loop_pre_header
      _
    $region3: #{fashion_classifier_forward.3} parent=1 // loop_header
      %s11 = sphi 0, %s15
      %p12 = scmp.ge.s32.totalorder %s11, 4
      %s21 = sphi 0, %s23
      %s24 = sphi 0, %s21
      %s25 = sphi 0, %s24
      %s41 = sphi 0, %s25
      %s45 = sphi 0, %s45
      %s47 = sphi 0, %s45
      %s48 = sphi 0, %s47
      %s62 = sphi 0, %s48
      %s66 = sphi 0, %s66
      %s68 = sphi 0, %s66
      %s69 = sphi 0, %s68
      %s83 = sphi 0, %s69
      %s89 = sphi 0, %s91
      %s92 = sphi 0, %s89
      %s93 = sphi 0, %s92
      %s109 = sphi 0, %s93
    $region4: #{fashion_classifier_forward.3} parent=1 // loop_header_branch
      %14 = sbr.rel (%p12) target = $region8
    $region5: #{fashion_classifier_forward.3} parent=1 // loop_body
      %s16 = ssub.s32 %s11, 1
      %s17 = ssub.s32 %s11, 2
      %s18 = sadd.s32 %s11, 1
      %s19 = ssub.s32 %s11, %s18
      %p20 = scmp.eq.s32.totalorder %s19, 0
      %s22 = sadd.s32 %s21, 1
      %s23 = scalar_select %p20, %s21, %s22
      %p26 = pneg %p20
      %p27 = scmp.eq.s32.totalorder %s11, 1
      %p28 = por %p26, %p27
      %p29 = scmp.ne.s32.totalorder %s21, %s24
      %p30 = scmp.eq.s32.totalorder %s11, 0
      %p31 = por %p29, %p30
      %p32 = scmp.ne.s32.totalorder %s21, %s24
      %p33 = scmp.eq.s32.totalorder %s16, 1
      %p34 = por %p32, %p33
      %p35 = scmp.ne.s32.totalorder %s24, %s25
      %p36 = scmp.eq.s32.totalorder %s16, 0
      %p37 = por %p35, %p36
      %p38 = scmp.ne.s32.totalorder %s24, %s25
      %p39 = scmp.eq.s32.totalorder %s17, 1
      %p40 = por %p38, %p39
      %p42 = scmp.ne.s32.totalorder %s25, %s41
      %p43 = scmp.eq.s32.totalorder %s17, 0
      %p44 = por %p42, %p43
      %s46 = sadd.s32 %s45, 1
      %p49 = scmp.eq.s32.totalorder %s11, 1
      %p50 = scmp.ne.s32.totalorder %s45, %s47
      %p51 = scmp.eq.s32.totalorder %s11, 0
      %p52 = por %p50, %p51
      %p53 = scmp.ne.s32.totalorder %s45, %s47
      %p54 = scmp.eq.s32.totalorder %s16, 1
      %p55 = por %p53, %p54
      %p56 = scmp.ne.s32.totalorder %s47, %s48
      %p57 = scmp.eq.s32.totalorder %s16, 0
      %p58 = por %p56, %p57
      %p59 = scmp.ne.s32.totalorder %s47, %s48
      %p60 = scmp.eq.s32.totalorder %s17, 1
      %p61 = por %p59, %p60
      %p63 = scmp.ne.s32.totalorder %s48, %s62
      %p64 = scmp.eq.s32.totalorder %s17, 0
      %p65 = por %p63, %p64
      %s67 = sadd.s32 %s66, 1
      %p70 = scmp.eq.s32.totalorder %s11, 1
      %p71 = scmp.ne.s32.totalorder %s66, %s68
      %p72 = scmp.eq.s32.totalorder %s11, 0
      %p73 = por %p71, %p72
      %p74 = scmp.ne.s32.totalorder %s66, %s68
      %p75 = scmp.eq.s32.totalorder %s16, 1
      %p76 = por %p74, %p75
      %p77 = scmp.ne.s32.totalorder %s68, %s69
      %p78 = scmp.eq.s32.totalorder %s16, 0
      %p79 = por %p77, %p78
      %p80 = scmp.ne.s32.totalorder %s68, %s69
      %p81 = scmp.eq.s32.totalorder %s17, 1
      %p82 = por %p80, %p81
      %p84 = scmp.ne.s32.totalorder %s69, %s83
      %p85 = scmp.eq.s32.totalorder %s17, 0
      %p86 = por %p84, %p85
      %s87 = ssub.s32 %s11, %s18
      %p88 = scmp.eq.s32.totalorder %s87, 0
      %s90 = sadd.s32 %s89, 1
      %s91 = scalar_select %p88, %s89, %s90
      %p94 = pneg %p88
      %p95 = scmp.eq.s32.totalorder %s11, 1
      %p96 = por %p94, %p95
      %p97 = scmp.ne.s32.totalorder %s89, %s92
      %p98 = scmp.eq.s32.totalorder %s11, 0
      %p99 = por %p97, %p98
      %p100 = scmp.ne.s32.totalorder %s89, %s92
      %p101 = scmp.eq.s32.totalorder %s16, 1
      %p102 = por %p100, %p101
      %p103 = scmp.ne.s32.totalorder %s92, %s93
      %p104 = scmp.eq.s32.totalorder %s16, 0
      %p105 = por %p103, %p104
      %p106 = scmp.ne.s32.totalorder %s92, %s93
      %p107 = scmp.eq.s32.totalorder %s17, 1
      %p108 = por %p106, %p107
      %p110 = scmp.ne.s32.totalorder %s93, %s109
      %p111 = scmp.eq.s32.totalorder %s17, 0
      %p112 = por %p110, %p111
      %p113 = scmp.le.s32.totalorder 1, %s11
      %p114 = scmp.lt.s32.totalorder %s11, 3
      %p115 = pnand %p113, %p114
      %p116 = pneg %p115
      // Predicated region
      $region9: #{fashion_classifier_forward.3} parent=5 // pred_check
        _
      $region10: #{fashion_classifier_forward.3} parent=5 // pred_check_branch
        %118 = sbr.rel (%p115) target = $region12
      $region11: #{fashion_classifier_forward.3} parent=5 // pred_region
        %s119 = ssub.s32 %s11, 1
        // Predicated region
        $region13: #{fashion_classifier_forward.3} parent=11 // pred_check
          %p120 = pneg %p58
        $region14: #{fashion_classifier_forward.3} parent=11 // pred_check_branch
          %122 = sbr.rel (%p120) target = $region16
        $region15: #{fashion_classifier_forward.3} parent=11 // pred_region
          %s124 = ssub.s32 256, 256
          %125 = vsyncadd [#allocation3], %s124
          %s126 = sshll.u32 [#allocation2], 4
          %s127 = int_to_ptr.vmem [resolvable:$true] %s126
          %132 = dma.hbm_to_vmem [thread:$0]  %s1, 256, %s127, [#allocation3], 128, 128, 8
        $region16: #{fashion_classifier_forward.3} parent=11 // pred_fallthru
          _
        // Predicated region
        $region17: #{fashion_classifier_forward.3} parent=11 // pred_check
          %p133 = pneg %p79
        $region18: #{fashion_classifier_forward.3} parent=11 // pred_check_branch
          %135 = sbr.rel (%p133) target = $region20
        $region19: #{fashion_classifier_forward.3} parent=11 // pred_region
          %s137 = ssub.s32 16, 16
          %138 = vsyncadd [#allocation5], %s137
          %s140 = sshll.u32 [#allocation4], 4
          %s141 = int_to_ptr.vmem [resolvable:$true] %s140
          %143 = dma.hbm_to_vmem [thread:$0]  %s2, 16, %s141, [#allocation5]
        $region20: #{fashion_classifier_forward.3} parent=11 // pred_fallthru
          _
      $region12: #{fashion_classifier_forward.3} parent=5 // pred_fallthru
        _
      %p144 = scmp.lt.s32.totalorder %s11, 2
      // Predicated region
      $region21: #{fashion_classifier_forward.3} parent=5 // pred_check
        %p145 = pneg %p144
      $region22: #{fashion_classifier_forward.3} parent=5 // pred_check_branch
        %147 = sbr.rel (%p145) target = $region24
      $region23: #{fashion_classifier_forward.3} parent=5 // pred_region
        // Predicated region
        $region25: #{fashion_classifier_forward.3} parent=23 // pred_check
          %p148 = pneg %p31
        $region26: #{fashion_classifier_forward.3} parent=23 // pred_check_branch
          %150 = sbr.rel (%p148) target = $region28
        $region27: #{fashion_classifier_forward.3} parent=23 // pred_region
          %p151 = scmp.lt.s32.totalorder %s11, 1
          %s152 = scalar_select %p151, %s11, 1
          %s153 = smul.addr %s152, 240
          %s154 = smul.addr %s153, 8
          %s155 = scalar_lea.vmem %s0, %s154
        $region28: #{fashion_classifier_forward.3} parent=23 // pred_fallthru
          _
      $region24: #{fashion_classifier_forward.3} parent=5 // pred_fallthru
        _
      %p156 = scmp.le.s32.totalorder 1, %s11
      %p157 = scmp.lt.s32.totalorder %s11, 3
      %p158 = pnand %p156, %p157
      %p159 = pneg %p158
      // Predicated region
      $region29: #{fashion_classifier_forward.3} parent=5 // pred_check
        _
      $region30: #{fashion_classifier_forward.3} parent=5 // pred_check_branch
        %161 = sbr.rel (%p158) target = $region32
      $region31: #{fashion_classifier_forward.3} parent=5 // pred_region
        %s162 = ssub.s32 %s11, 1
        // Predicated region
        $region33: #{fashion_classifier_forward.3} parent=31 // pred_check
          %p163 = pneg %p58
        $region34: #{fashion_classifier_forward.3} parent=31 // pred_check_branch
          %165 = sbr.rel (%p163) target = $region36
        $region35: #{fashion_classifier_forward.3} parent=31 // pred_region
          %166 = dma.done [#allocation3], 256
        $region36: #{fashion_classifier_forward.3} parent=31 // pred_fallthru
          _
        // Predicated region
        $region37: #{fashion_classifier_forward.3} parent=31 // pred_check
          %p167 = pneg %p79
        $region38: #{fashion_classifier_forward.3} parent=31 // pred_check_branch
          %169 = sbr.rel (%p167) target = $region40
        $region39: #{fashion_classifier_forward.3} parent=31 // pred_region
          %170 = dma.done [#allocation5], 16
        $region40: #{fashion_classifier_forward.3} parent=31 // pred_fallthru
          _
        %p171 = scmp.lt.s32.totalorder %s16, 1
        %s172 = scalar_select %p171, %s16, 1
        %s173 = smul.addr %s172, 240
        %s174 = smul.addr %s173, 8
        %s175 = scalar_lea.vmem %s0, %s174
        %p176 = pneg %p37
        %p177 = pneg %p34
        %p178 = pneg %p58
        %p179 = pneg %p55
        %p180 = pneg %p79
        %p181 = pneg %p76
        %p182 = pneg %p105
        %p183 = pneg %p102
        %p184 = scmp.lt.s32.totalorder %s16, 1
        %s185 = scalar_select %p184, %s16, 1
        %s186 = smul.addr %s185, 28
        %s187 = smul.addr %s186, 8
        %s188 = scalar_lea.vmem %s3, %s187
        %p189 = scmp.lt.s32.totalorder %s16, 1
        %s190 = scalar_select %p189, %s16, 1
        %s191 = smul.addr %s190, 240
        %s192 = smul.addr %s191, 8
        %s193 = scalar_lea.vmem %s0, %s192
        %p194 = scmp.lt.s32.totalorder %s16, 1
        %s195 = scalar_select %p194, %s16, 1
        %s196 = smul.addr %s195, 28
        %s197 = smul.addr %s196, 8
        %s198 = scalar_lea.vmem %s3, %s197
        %v199 = vld [vmem:[%s193] sm:$0xff]
        %v200 = vld [vmem:[%s193 + $0x8] sm:$0x3f]
        %v201 = vld [vmem:[%s193 + $0x10] sm:$0xff]
        %v202 = vld [vmem:[%s193 + $0x18] sm:$0x3f]
        %v203 = vld [vmem:[%s193 + $0x20] sm:$0xff]
        %v204 = vld [vmem:[%s193 + $0x28] sm:$0x3f]
        %v205 = vld [vmem:[%s193 + $0x30] sm:$0xff]
        %v206 = vld [vmem:[%s193 + $0x38] sm:$0x3f]
        %v207 = vld [vmem:[%s193 + $0x40] sm:$0xff]
        %v208 = vld [vmem:[%s193 + $0x48] sm:$0x3f]
        %v209 = vld [vmem:[%s193 + $0x50] sm:$0xff]
        %v210 = vld [vmem:[%s193 + $0x58] sm:$0x3f]
        %v211 = vld [vmem:[%s193 + $0x60] sm:$0xff]
        %v212 = vld [vmem:[%s193 + $0x68] sm:$0x3f]
        %v213 = vld [vmem:[%s193 + $0x70] sm:$0xff]
        %v214 = vld [vmem:[%s193 + $0x78] sm:$0x3f]
        %v215 = vld [vmem:[%s193 + $0x80] sm:$0xff]
        %v216 = vld [vmem:[%s193 + $0x88] sm:$0x3f]
        %v217 = vld [vmem:[%s193 + $0x90] sm:$0xff]
        %v218 = vld [vmem:[%s193 + $0x98] sm:$0x3f]
        %v219 = vld [vmem:[%s193 + $0xa0] sm:$0xff]
        %v220 = vld [vmem:[%s193 + $0xa8] sm:$0x3f]
        %v221 = vld [vmem:[%s193 + $0xb0] sm:$0xff]
        %v222 = vld [vmem:[%s193 + $0xb8] sm:$0x3f]
        %v223 = vld [vmem:[%s193 + $0xc0] sm:$0xff]
        %v224 = vld [vmem:[%s193 + $0xc8] sm:$0x3f]
        %v225 = vld [vmem:[%s193 + $0xd0] sm:$0xff]
        %v226 = vld [vmem:[%s193 + $0xd8] sm:$0x3f]
        %v227 = vld [vmem:[%s193 + $0xe0] sm:$0xff]
        %v228 = vld [vmem:[%s193 + $0xe8] sm:$0x3f]
        %v229 = vld [vmem:[%s193 + $0xf0] sm:$0xff]
        %v230 = vld [vmem:[%s193 + $0xf8] sm:$0x3f]
        %v231 = vld [vmem:[%s193 + $0x100] sm:$0xff]
        %v232 = vld [vmem:[%s193 + $0x108] sm:$0x3f]
        %v233 = vld [vmem:[%s193 + $0x110] sm:$0xff]
        %v234 = vld [vmem:[%s193 + $0x118] sm:$0x3f]
        %v235 = vld [vmem:[%s193 + $0x120] sm:$0xff]
        %v236 = vld [vmem:[%s193 + $0x128] sm:$0x3f]
        %v237 = vld [vmem:[%s193 + $0x130] sm:$0xff]
        %v238 = vld [vmem:[%s193 + $0x138] sm:$0x3f]
        %v239 = vld [vmem:[%s193 + $0x140] sm:$0xff]
        %v240 = vld [vmem:[%s193 + $0x148] sm:$0x3f]
        %v241 = vld [vmem:[%s193 + $0x150] sm:$0xff]
        %v242 = vld [vmem:[%s193 + $0x158] sm:$0x3f]
        %v243 = vld [vmem:[%s193 + $0x160] sm:$0xff]
        %v244 = vld [vmem:[%s193 + $0x168] sm:$0x3f]
        %v245 = vld [vmem:[%s193 + $0x170] sm:$0xff]
        %v246 = vld [vmem:[%s193 + $0x178] sm:$0x3f]
        %v247 = vld [vmem:[%s193 + $0x180] sm:$0xff]
        %v248 = vld [vmem:[%s193 + $0x188] sm:$0x3f]
        %v249 = vld [vmem:[%s193 + $0x190] sm:$0xff]
        %v250 = vld [vmem:[%s193 + $0x198] sm:$0x3f]
        %v251 = vld [vmem:[%s193 + $0x1a0] sm:$0xff]
        %v252 = vld [vmem:[%s193 + $0x1a8] sm:$0x3f]
        %v253 = vld [vmem:[%s193 + $0x1b0] sm:$0xff]
        %v254 = vld [vmem:[%s193 + $0x1b8] sm:$0x3f]
        %v255 = vld [vmem:[%s193 + $0x1c0] sm:$0xff]
        %v256 = vld [vmem:[%s193 + $0x1c8] sm:$0x3f]
        %v257 = vld [vmem:[%s193 + $0x1d0] sm:$0xff]
        %v258 = vld [vmem:[%s193 + $0x1d8] sm:$0x3f]
        %v259 = vld [vmem:[%s193 + $0x1e0] sm:$0xff]
        %v260 = vld [vmem:[%s193 + $0x1e8] sm:$0x3f]
        %v261 = vld [vmem:[%s193 + $0x1f0] sm:$0xff]
        %v262 = vld [vmem:[%s193 + $0x1f8] sm:$0x3f]
        %v263 = vld [vmem:[%s193 + $0x200] sm:$0xff]
        %v264 = vld [vmem:[%s193 + $0x208] sm:$0x3f]
        %v265 = vld [vmem:[%s193 + $0x210] sm:$0xff]
        %v266 = vld [vmem:[%s193 + $0x218] sm:$0x3f]
        %v267 = vld [vmem:[%s193 + $0x220] sm:$0xff]
        %v268 = vld [vmem:[%s193 + $0x228] sm:$0x3f]
        %v269 = vld [vmem:[%s193 + $0x230] sm:$0xff]
        %v270 = vld [vmem:[%s193 + $0x238] sm:$0x3f]
        %v271 = vld [vmem:[%s193 + $0x240] sm:$0xff]
        %v272 = vld [vmem:[%s193 + $0x248] sm:$0x3f]
        %v273 = vld [vmem:[%s193 + $0x250] sm:$0xff]
        %v274 = vld [vmem:[%s193 + $0x258] sm:$0x3f]
        %v275 = vld [vmem:[%s193 + $0x260] sm:$0xff]
        %v276 = vld [vmem:[%s193 + $0x268] sm:$0x3f]
        %v277 = vld [vmem:[%s193 + $0x270] sm:$0xff]
        %v278 = vld [vmem:[%s193 + $0x278] sm:$0x3f]
        %v279 = vld [vmem:[%s193 + $0x280] sm:$0xff]
        %v280 = vld [vmem:[%s193 + $0x288] sm:$0x3f]
        %v281 = vld [vmem:[%s193 + $0x290] sm:$0xff]
        %v282 = vld [vmem:[%s193 + $0x298] sm:$0x3f]
        %v283 = vld [vmem:[%s193 + $0x2a0] sm:$0xff]
        %v284 = vld [vmem:[%s193 + $0x2a8] sm:$0x3f]
        %v285 = vld [vmem:[%s193 + $0x2b0] sm:$0xff]
        %v286 = vld [vmem:[%s193 + $0x2b8] sm:$0x3f]
        %v287 = vld [vmem:[%s193 + $0x2c0] sm:$0xff]
        %v288 = vld [vmem:[%s193 + $0x2c8] sm:$0x3f]
        %v289 = vld [vmem:[%s193 + $0x2d0] sm:$0xff]
        %v290 = vld [vmem:[%s193 + $0x2d8] sm:$0x3f]
        %v291 = vld [vmem:[%s193 + $0x2e0] sm:$0xff]
        %v292 = vld [vmem:[%s193 + $0x2e8] sm:$0x3f]
        %v293 = vld [vmem:[%s193 + $0x2f0] sm:$0xff]
        %v294 = vld [vmem:[%s193 + $0x2f8] sm:$0x3f]
        %v295 = vld [vmem:[%s193 + $0x300] sm:$0xff]
        %v296 = vld [vmem:[%s193 + $0x308] sm:$0x3f]
        %v297 = vld [vmem:[%s193 + $0x310] sm:$0xff]
        %v298 = vld [vmem:[%s193 + $0x318] sm:$0x3f]
        %v299 = vld [vmem:[%s193 + $0x320] sm:$0xff]
        %v300 = vld [vmem:[%s193 + $0x328] sm:$0x3f]
        %v301 = vld [vmem:[%s193 + $0x330] sm:$0xff]
        %v302 = vld [vmem:[%s193 + $0x338] sm:$0x3f]
        %v303 = vld [vmem:[%s193 + $0x340] sm:$0xff]
        %v304 = vld [vmem:[%s193 + $0x348] sm:$0x3f]
        %v305 = vld [vmem:[%s193 + $0x350] sm:$0xff]
        %v306 = vld [vmem:[%s193 + $0x358] sm:$0x3f]
        %v307 = vld [vmem:[%s193 + $0x360] sm:$0xff]
        %v308 = vld [vmem:[%s193 + $0x368] sm:$0x3f]
        %v309 = vld [vmem:[%s193 + $0x370] sm:$0xff]
        %v310 = vld [vmem:[%s193 + $0x378] sm:$0x3f]
        %v311 = vld [vmem:[%s193 + $0x380] sm:$0xff]
        %v312 = vld [vmem:[%s193 + $0x388] sm:$0x3f]
        %v313 = vld [vmem:[%s193 + $0x390] sm:$0xff]
        %v314 = vld [vmem:[%s193 + $0x398] sm:$0x3f]
        %v315 = vld [vmem:[%s193 + $0x3a0] sm:$0xff]
        %v316 = vld [vmem:[%s193 + $0x3a8] sm:$0x3f]
        %v317 = vld [vmem:[%s193 + $0x3b0] sm:$0xff]
        %v318 = vld [vmem:[%s193 + $0x3b8] sm:$0x3f]
        %v319 = vld [vmem:[%s193 + $0x3c0] sm:$0xff]
        %v320 = vld [vmem:[%s193 + $0x3c8] sm:$0x3f]
        %v321 = vld [vmem:[%s193 + $0x3d0] sm:$0xff]
        %v322 = vld [vmem:[%s193 + $0x3d8] sm:$0x3f]
        %v323 = vld [vmem:[%s193 + $0x3e0] sm:$0xff]
        %v324 = vld [vmem:[%s193 + $0x3e8] sm:$0x3f]
        %v325 = vld [vmem:[%s193 + $0x3f0] sm:$0xff]
        %v326 = vld [vmem:[%s193 + $0x3f8] sm:$0x3f]
        %v327 = vld [vmem:[%s193 + $0x400] sm:$0xff]
        %v328 = vld [vmem:[%s193 + $0x408] sm:$0x3f]
        %v329 = vld [vmem:[%s193 + $0x410] sm:$0xff]
        %v330 = vld [vmem:[%s193 + $0x418] sm:$0x3f]
        %v331 = vld [vmem:[%s193 + $0x420] sm:$0xff]
        %v332 = vld [vmem:[%s193 + $0x428] sm:$0x3f]
        %v333 = vld [vmem:[%s193 + $0x430] sm:$0xff]
        %v334 = vld [vmem:[%s193 + $0x438] sm:$0x3f]
        %v335 = vld [vmem:[%s193 + $0x440] sm:$0xff]
        %v336 = vld [vmem:[%s193 + $0x448] sm:$0x3f]
        %v337 = vld [vmem:[%s193 + $0x450] sm:$0xff]
        %v338 = vld [vmem:[%s193 + $0x458] sm:$0x3f]
        %v339 = vld [vmem:[%s193 + $0x460] sm:$0xff]
        %v340 = vld [vmem:[%s193 + $0x468] sm:$0x3f]
        %v341 = vld [vmem:[%s193 + $0x470] sm:$0xff]
        %v342 = vld [vmem:[%s193 + $0x478] sm:$0x3f]
        %v343 = vld [vmem:[%s193 + $0x480] sm:$0xff]
        %v344 = vld [vmem:[%s193 + $0x488] sm:$0x3f]
        %v345 = vld [vmem:[%s193 + $0x490] sm:$0xff]
        %v346 = vld [vmem:[%s193 + $0x498] sm:$0x3f]
        %v347 = vld [vmem:[%s193 + $0x4a0] sm:$0xff]
        %v348 = vld [vmem:[%s193 + $0x4a8] sm:$0x3f]
        %v349 = vld [vmem:[%s193 + $0x4b0] sm:$0xff]
        %v350 = vld [vmem:[%s193 + $0x4b8] sm:$0x3f]
        %v351 = vld [vmem:[%s193 + $0x4c0] sm:$0xff]
        %v352 = vld [vmem:[%s193 + $0x4c8] sm:$0x3f]
        %v353 = vld [vmem:[%s193 + $0x4d0] sm:$0xff]
        %v354 = vld [vmem:[%s193 + $0x4d8] sm:$0x3f]
        %v355 = vld [vmem:[%s193 + $0x4e0] sm:$0xff]
        %v356 = vld [vmem:[%s193 + $0x4e8] sm:$0x3f]
        %v357 = vld [vmem:[%s193 + $0x4f0] sm:$0xff]
        %v358 = vld [vmem:[%s193 + $0x4f8] sm:$0x3f]
        %v359 = vld [vmem:[%s193 + $0x500] sm:$0xff]
        %v360 = vld [vmem:[%s193 + $0x508] sm:$0x3f]
        %v361 = vld [vmem:[%s193 + $0x510] sm:$0xff]
        %v362 = vld [vmem:[%s193 + $0x518] sm:$0x3f]
        %v363 = vld [vmem:[%s193 + $0x520] sm:$0xff]
        %v364 = vld [vmem:[%s193 + $0x528] sm:$0x3f]
        %v365 = vld [vmem:[%s193 + $0x530] sm:$0xff]
        %v366 = vld [vmem:[%s193 + $0x538] sm:$0x3f]
        %v367 = vld [vmem:[%s193 + $0x540] sm:$0xff]
        %v368 = vld [vmem:[%s193 + $0x548] sm:$0x3f]
        %v369 = vld [vmem:[%s193 + $0x550] sm:$0xff]
        %v370 = vld [vmem:[%s193 + $0x558] sm:$0x3f]
        %v371 = vld [vmem:[%s193 + $0x560] sm:$0xff]
        %v372 = vld [vmem:[%s193 + $0x568] sm:$0x3f]
        %v373 = vld [vmem:[%s193 + $0x570] sm:$0xff]
        %v374 = vld [vmem:[%s193 + $0x578] sm:$0x3f]
        %v375 = vld [vmem:[%s193 + $0x580] sm:$0xff]
        %v376 = vld [vmem:[%s193 + $0x588] sm:$0x3f]
        %v377 = vld [vmem:[%s193 + $0x590] sm:$0xff]
        %v378 = vld [vmem:[%s193 + $0x598] sm:$0x3f]
        %v379 = vld [vmem:[%s193 + $0x5a0] sm:$0xff]
        %v380 = vld [vmem:[%s193 + $0x5a8] sm:$0x3f]
        %v381 = vld [vmem:[%s193 + $0x5b0] sm:$0xff]
        %v382 = vld [vmem:[%s193 + $0x5b8] sm:$0x3f]
        %v383 = vld [vmem:[%s193 + $0x5c0] sm:$0xff]
        %v384 = vld [vmem:[%s193 + $0x5c8] sm:$0x3f]
        %v385 = vld [vmem:[%s193 + $0x5d0] sm:$0xff]
        %v386 = vld [vmem:[%s193 + $0x5d8] sm:$0x3f]
        %v387 = vld [vmem:[%s193 + $0x5e0] sm:$0xff]
        %v388 = vld [vmem:[%s193 + $0x5e8] sm:$0x3f]
        %v389 = vld [vmem:[%s193 + $0x5f0] sm:$0xff]
        %v390 = vld [vmem:[%s193 + $0x5f8] sm:$0x3f]
        %v391 = vld [vmem:[%s193 + $0x600] sm:$0xff]
        %v392 = vld [vmem:[%s193 + $0x608] sm:$0x3f]
        %v393 = vld [vmem:[%s193 + $0x610] sm:$0xff]
        %v394 = vld [vmem:[%s193 + $0x618] sm:$0x3f]
        %v395 = vld [vmem:[%s193 + $0x620] sm:$0xff]
        %v396 = vld [vmem:[%s193 + $0x628] sm:$0x3f]
        %v397 = vld [vmem:[%s193 + $0x630] sm:$0xff]
        %v398 = vld [vmem:[%s193 + $0x638] sm:$0x3f]
        %v399 = vld [vmem:[%s193 + $0x640] sm:$0xff]
        %v400 = vld [vmem:[%s193 + $0x648] sm:$0x3f]
        %v401 = vld [vmem:[%s193 + $0x650] sm:$0xff]
        %v402 = vld [vmem:[%s193 + $0x658] sm:$0x3f]
        %v403 = vld [vmem:[%s193 + $0x660] sm:$0xff]
        %v404 = vld [vmem:[%s193 + $0x668] sm:$0x3f]
        %v405 = vld [vmem:[%s193 + $0x670] sm:$0xff]
        %v406 = vld [vmem:[%s193 + $0x678] sm:$0x3f]
        %v407 = vld [vmem:[%s193 + $0x680] sm:$0xff]
        %v408 = vld [vmem:[%s193 + $0x688] sm:$0x3f]
        %v409 = vld [vmem:[%s193 + $0x690] sm:$0xff]
        %v410 = vld [vmem:[%s193 + $0x698] sm:$0x3f]
        %v411 = vld [vmem:[%s193 + $0x6a0] sm:$0xff]
        %v412 = vld [vmem:[%s193 + $0x6a8] sm:$0x3f]
        %v413 = vld [vmem:[%s193 + $0x6b0] sm:$0xff]
        %v414 = vld [vmem:[%s193 + $0x6b8] sm:$0x3f]
        %v415 = vld [vmem:[%s193 + $0x6c0] sm:$0xff]
        %v416 = vld [vmem:[%s193 + $0x6c8] sm:$0x3f]
        %v417 = vld [vmem:[%s193 + $0x6d0] sm:$0xff]
        %v418 = vld [vmem:[%s193 + $0x6d8] sm:$0x3f]
        %v419 = vld [vmem:[%s193 + $0x6e0] sm:$0xff]
        %v420 = vld [vmem:[%s193 + $0x6e8] sm:$0x3f]
        %v421 = vld [vmem:[%s193 + $0x6f0] sm:$0xff]
        %v422 = vld [vmem:[%s193 + $0x6f8] sm:$0x3f]
        %v423 = vld [vmem:[%s193 + $0x700] sm:$0xff]
        %v424 = vld [vmem:[%s193 + $0x708] sm:$0x3f]
        %v425 = vld [vmem:[%s193 + $0x710] sm:$0xff]
        %v426 = vld [vmem:[%s193 + $0x718] sm:$0x3f]
        %v427 = vld [vmem:[%s193 + $0x720] sm:$0xff]
        %v428 = vld [vmem:[%s193 + $0x728] sm:$0x3f]
        %v429 = vld [vmem:[%s193 + $0x730] sm:$0xff]
        %v430 = vld [vmem:[%s193 + $0x738] sm:$0x3f]
        %v431 = vld [vmem:[%s193 + $0x740] sm:$0xff]
        %v432 = vld [vmem:[%s193 + $0x748] sm:$0x3f]
        %v433 = vld [vmem:[%s193 + $0x750] sm:$0xff]
        %v434 = vld [vmem:[%s193 + $0x758] sm:$0x3f]
        %v435 = vld [vmem:[%s193 + $0x760] sm:$0xff]
        %v436 = vld [vmem:[%s193 + $0x768] sm:$0x3f]
        %v437 = vld [vmem:[%s193 + $0x770] sm:$0xff]
        %v438 = vld [vmem:[%s193 + $0x778] sm:$0x3f]
        %v439 = vld [vmem:[#allocation2] sm:$0x1]
        %v440 = vld [vmem:[#allocation2 + $0x1] sm:$0x1]
        %v441 = vld [vmem:[#allocation2 + $0x2] sm:$0x1]
        %v442 = vld [vmem:[#allocation2 + $0x3] sm:$0x1]
        %v443 = vld [vmem:[#allocation2 + $0x4] sm:$0x1]
        %v444 = vld [vmem:[#allocation2 + $0x5] sm:$0x1]
        %v445 = vld [vmem:[#allocation2 + $0x6] sm:$0x1]
        %v446 = vld [vmem:[#allocation2 + $0x7] sm:$0x1]
        %v447 = vld [vmem:[#allocation2 + $0x8] sm:$0x1]
        %v448 = vld [vmem:[#allocation4] sm:$0x1]
        %450 = vset.pattern.permute.xlu0 0
        %451 = vperm.xlu0 %450, %v199
        %v452 = vpop.permute.xlu0 %451
        %455 = vset.pattern.permute.xlu0 0
        %456 = vperm.xlu0 %455, %v200
        %v457 = vpop.permute.xlu0 %456
        %460 = vset.pattern.permute.xlu0 0
        %461 = vperm.xlu0 %460, %v207
        %v462 = vpop.permute.xlu0 %461
        %465 = vset.pattern.permute.xlu0 0
        %466 = vperm.xlu0 %465, %v208
        %v467 = vpop.permute.xlu0 %466
        %470 = vset.pattern.permute.xlu0 0
        %471 = vperm.xlu0 %470, %v215
        %v472 = vpop.permute.xlu0 %471
        %475 = vset.pattern.permute.xlu0 0
        %476 = vperm.xlu0 %475, %v216
        %v477 = vpop.permute.xlu0 %476
        %480 = vset.pattern.permute.xlu0 0
        %481 = vperm.xlu0 %480, %v223
        %v482 = vpop.permute.xlu0 %481
        %485 = vset.pattern.permute.xlu0 0
        %486 = vperm.xlu0 %485, %v224
        %v487 = vpop.permute.xlu0 %486
        %490 = vset.pattern.permute.xlu0 0
        %491 = vperm.xlu0 %490, %v231
        %v492 = vpop.permute.xlu0 %491
        %495 = vset.pattern.permute.xlu0 0
        %496 = vperm.xlu0 %495, %v232
        %v497 = vpop.permute.xlu0 %496
        %500 = vset.pattern.permute.xlu0 0
        %501 = vperm.xlu0 %500, %v239
        %v502 = vpop.permute.xlu0 %501
        %505 = vset.pattern.permute.xlu0 0
        %506 = vperm.xlu0 %505, %v240
        %v507 = vpop.permute.xlu0 %506
        %510 = vset.pattern.permute.xlu0 0
        %511 = vperm.xlu0 %510, %v247
        %v512 = vpop.permute.xlu0 %511
        %515 = vset.pattern.permute.xlu0 0
        %516 = vperm.xlu0 %515, %v248
        %v517 = vpop.permute.xlu0 %516
        %520 = vset.pattern.permute.xlu0 0
        %521 = vperm.xlu0 %520, %v255
        %v522 = vpop.permute.xlu0 %521
        %525 = vset.pattern.permute.xlu0 0
        %526 = vperm.xlu0 %525, %v256
        %v527 = vpop.permute.xlu0 %526
        %530 = vset.pattern.permute.xlu0 0
        %531 = vperm.xlu0 %530, %v263
        %v532 = vpop.permute.xlu0 %531
        %535 = vset.pattern.permute.xlu0 0
        %536 = vperm.xlu0 %535, %v264
        %v537 = vpop.permute.xlu0 %536
        %540 = vset.pattern.permute.xlu0 0
        %541 = vperm.xlu0 %540, %v271
        %v542 = vpop.permute.xlu0 %541
        %545 = vset.pattern.permute.xlu0 0
        %546 = vperm.xlu0 %545, %v272
        %v547 = vpop.permute.xlu0 %546
        %550 = vset.pattern.permute.xlu0 0
        %551 = vperm.xlu0 %550, %v279
        %v552 = vpop.permute.xlu0 %551
        %555 = vset.pattern.permute.xlu0 0
        %556 = vperm.xlu0 %555, %v280
        %v557 = vpop.permute.xlu0 %556
        %560 = vset.pattern.permute.xlu0 0
        %561 = vperm.xlu0 %560, %v287
        %v562 = vpop.permute.xlu0 %561
        %565 = vset.pattern.permute.xlu0 0
        %566 = vperm.xlu0 %565, %v288
        %v567 = vpop.permute.xlu0 %566
        %570 = vset.pattern.permute.xlu0 0
        %571 = vperm.xlu0 %570, %v295
        %v572 = vpop.permute.xlu0 %571
        %575 = vset.pattern.permute.xlu0 0
        %576 = vperm.xlu0 %575, %v296
        %v577 = vpop.permute.xlu0 %576
        %580 = vset.pattern.permute.xlu0 0
        %581 = vperm.xlu0 %580, %v303
        %v582 = vpop.permute.xlu0 %581
        %585 = vset.pattern.permute.xlu0 0
        %586 = vperm.xlu0 %585, %v304
        %v587 = vpop.permute.xlu0 %586
        %590 = vset.pattern.permute.xlu0 0
        %591 = vperm.xlu0 %590, %v311
        %v592 = vpop.permute.xlu0 %591
        %595 = vset.pattern.permute.xlu0 0
        %596 = vperm.xlu0 %595, %v312
        %v597 = vpop.permute.xlu0 %596
        %600 = vset.pattern.permute.xlu0 0
        %601 = vperm.xlu0 %600, %v319
        %v602 = vpop.permute.xlu0 %601
        %605 = vset.pattern.permute.xlu0 0
        %606 = vperm.xlu0 %605, %v320
        %v607 = vpop.permute.xlu0 %606
        %610 = vset.pattern.permute.xlu0 0
        %611 = vperm.xlu0 %610, %v327
        %v612 = vpop.permute.xlu0 %611
        %615 = vset.pattern.permute.xlu0 0
        %616 = vperm.xlu0 %615, %v328
        %v617 = vpop.permute.xlu0 %616
        %620 = vset.pattern.permute.xlu0 0
        %621 = vperm.xlu0 %620, %v335
        %v622 = vpop.permute.xlu0 %621
        %625 = vset.pattern.permute.xlu0 0
        %626 = vperm.xlu0 %625, %v336
        %v627 = vpop.permute.xlu0 %626
        %630 = vset.pattern.permute.xlu0 0
        %631 = vperm.xlu0 %630, %v343
        %v632 = vpop.permute.xlu0 %631
        %635 = vset.pattern.permute.xlu0 0
        %636 = vperm.xlu0 %635, %v344
        %v637 = vpop.permute.xlu0 %636
        %640 = vset.pattern.permute.xlu0 0
        %641 = vperm.xlu0 %640, %v351
        %v642 = vpop.permute.xlu0 %641
        %645 = vset.pattern.permute.xlu0 0
        %646 = vperm.xlu0 %645, %v352
        %v647 = vpop.permute.xlu0 %646
        %650 = vset.pattern.permute.xlu0 0
        %651 = vperm.xlu0 %650, %v359
        %v652 = vpop.permute.xlu0 %651
        %655 = vset.pattern.permute.xlu0 0
        %656 = vperm.xlu0 %655, %v360
        %v657 = vpop.permute.xlu0 %656
        %660 = vset.pattern.permute.xlu0 0
        %661 = vperm.xlu0 %660, %v367
        %v662 = vpop.permute.xlu0 %661
        %665 = vset.pattern.permute.xlu0 0
        %666 = vperm.xlu0 %665, %v368
        %v667 = vpop.permute.xlu0 %666
        %670 = vset.pattern.permute.xlu0 0
        %671 = vperm.xlu0 %670, %v375
        %v672 = vpop.permute.xlu0 %671
        %675 = vset.pattern.permute.xlu0 0
        %676 = vperm.xlu0 %675, %v376
        %v677 = vpop.permute.xlu0 %676
        %680 = vset.pattern.permute.xlu0 0
        %681 = vperm.xlu0 %680, %v383
        %v682 = vpop.permute.xlu0 %681
        %685 = vset.pattern.permute.xlu0 0
        %686 = vperm.xlu0 %685, %v384
        %v687 = vpop.permute.xlu0 %686
        %690 = vset.pattern.permute.xlu0 0
        %691 = vperm.xlu0 %690, %v391
        %v692 = vpop.permute.xlu0 %691
        %695 = vset.pattern.permute.xlu0 0
        %696 = vperm.xlu0 %695, %v392
        %v697 = vpop.permute.xlu0 %696
        %700 = vset.pattern.permute.xlu0 0
        %701 = vperm.xlu0 %700, %v399
        %v702 = vpop.permute.xlu0 %701
        %705 = vset.pattern.permute.xlu0 0
        %706 = vperm.xlu0 %705, %v400
        %v707 = vpop.permute.xlu0 %706
        %710 = vset.pattern.permute.xlu0 0
        %711 = vperm.xlu0 %710, %v407
        %v712 = vpop.permute.xlu0 %711
        %715 = vset.pattern.permute.xlu0 0
        %716 = vperm.xlu0 %715, %v408
        %v717 = vpop.permute.xlu0 %716
        %720 = vset.pattern.permute.xlu0 0
        %721 = vperm.xlu0 %720, %v415
        %v722 = vpop.permute.xlu0 %721
        %725 = vset.pattern.permute.xlu0 0
        %726 = vperm.xlu0 %725, %v416
        %v727 = vpop.permute.xlu0 %726
        %v729 = vlaneseq
        %v730 = vshrl.u32 %v729, 7
        %v731 = vsub.s32 0, %v730
        %v732 = vrot.slane %v439, %v731
        %v733 = vmul.f32 %v452, %v732
        %v734 = vmul.f32 %v457, %v732
        %v735 = vmul.f32 %v462, %v732
        %v736 = vmul.f32 %v467, %v732
        %v737 = vmul.f32 %v472, %v732
        %v738 = vmul.f32 %v477, %v732
        %v739 = vmul.f32 %v482, %v732
        %v740 = vmul.f32 %v487, %v732
        %v741 = vmul.f32 %v492, %v732
        %v742 = vmul.f32 %v497, %v732
        %v743 = vmul.f32 %v502, %v732
        %v744 = vmul.f32 %v507, %v732
        %v745 = vmul.f32 %v512, %v732
        %v746 = vmul.f32 %v517, %v732
        %v747 = vmul.f32 %v522, %v732
        %v748 = vmul.f32 %v527, %v732
        %v749 = vmul.f32 %v532, %v732
        %v750 = vmul.f32 %v537, %v732
        %v751 = vmul.f32 %v542, %v732
        %v752 = vmul.f32 %v547, %v732
        %v753 = vmul.f32 %v552, %v732
        %v754 = vmul.f32 %v557, %v732
        %v755 = vmul.f32 %v562, %v732
        %v756 = vmul.f32 %v567, %v732
        %v757 = vmul.f32 %v572, %v732
        %v758 = vmul.f32 %v577, %v732
        %v759 = vmul.f32 %v582, %v732
        %v760 = vmul.f32 %v587, %v732
        %v761 = vmul.f32 %v592, %v732
        %v762 = vmul.f32 %v597, %v732
        %v763 = vmul.f32 %v602, %v732
        %v764 = vmul.f32 %v607, %v732
        %v765 = vmul.f32 %v612, %v732
        %v766 = vmul.f32 %v617, %v732
        %v767 = vmul.f32 %v622, %v732
        %v768 = vmul.f32 %v627, %v732
        %v769 = vmul.f32 %v632, %v732
        %v770 = vmul.f32 %v637, %v732
        %v771 = vmul.f32 %v642, %v732
        %v772 = vmul.f32 %v647, %v732
        %v773 = vmul.f32 %v652, %v732
        %v774 = vmul.f32 %v657, %v732
        %v775 = vmul.f32 %v662, %v732
        %v776 = vmul.f32 %v667, %v732
        %v777 = vmul.f32 %v672, %v732
        %v778 = vmul.f32 %v677, %v732
        %v779 = vmul.f32 %v682, %v732
        %v780 = vmul.f32 %v687, %v732
        %v781 = vmul.f32 %v692, %v732
        %v782 = vmul.f32 %v697, %v732
        %v783 = vmul.f32 %v702, %v732
        %v784 = vmul.f32 %v707, %v732
        %v785 = vmul.f32 %v712, %v732
        %v786 = vmul.f32 %v717, %v732
        %v787 = vmul.f32 %v722, %v732
        %v788 = vmul.f32 %v727, %v732
        %v789 = vadd.f32 %v733, 0.0
        %v790 = vadd.f32 %v734, 0.0
        %v791 = vadd.f32 %v735, 0.0
        %v792 = vadd.f32 %v736, 0.0
        %v793 = vadd.f32 %v737, 0.0
        %v794 = vadd.f32 %v738, 0.0
        %v795 = vadd.f32 %v739, 0.0
        %v796 = vadd.f32 %v740, 0.0
        %v797 = vadd.f32 %v741, 0.0
        %v798 = vadd.f32 %v742, 0.0
        %v799 = vadd.f32 %v743, 0.0
        %v800 = vadd.f32 %v744, 0.0
        %v801 = vadd.f32 %v745, 0.0
        %v802 = vadd.f32 %v746, 0.0
        %v803 = vadd.f32 %v747, 0.0
        %v804 = vadd.f32 %v748, 0.0
        %v805 = vadd.f32 %v749, 0.0
        %v806 = vadd.f32 %v750, 0.0
        %v807 = vadd.f32 %v751, 0.0
        %v808 = vadd.f32 %v752, 0.0
        %v809 = vadd.f32 %v753, 0.0
        %v810 = vadd.f32 %v754, 0.0
        %v811 = vadd.f32 %v755, 0.0
        %v812 = vadd.f32 %v756, 0.0
        %v813 = vadd.f32 %v757, 0.0
        %v814 = vadd.f32 %v758, 0.0
        %v815 = vadd.f32 %v759, 0.0
        %v816 = vadd.f32 %v760, 0.0
        %v817 = vadd.f32 %v761, 0.0
        %v818 = vadd.f32 %v762, 0.0
        %v819 = vadd.f32 %v763, 0.0
        %v820 = vadd.f32 %v764, 0.0
        %v821 = vadd.f32 %v765, 0.0
        %v822 = vadd.f32 %v766, 0.0
        %v823 = vadd.f32 %v767, 0.0
        %v824 = vadd.f32 %v768, 0.0
        %v825 = vadd.f32 %v769, 0.0
        %v826 = vadd.f32 %v770, 0.0
        %v827 = vadd.f32 %v771, 0.0
        %v828 = vadd.f32 %v772, 0.0
        %v829 = vadd.f32 %v773, 0.0
        %v830 = vadd.f32 %v774, 0.0
        %v831 = vadd.f32 %v775, 0.0
        %v832 = vadd.f32 %v776, 0.0
        %v833 = vadd.f32 %v777, 0.0
        %v834 = vadd.f32 %v778, 0.0
        %v835 = vadd.f32 %v779, 0.0
        %v836 = vadd.f32 %v780, 0.0
        %v837 = vadd.f32 %v781, 0.0
        %v838 = vadd.f32 %v782, 0.0
        %v839 = vadd.f32 %v783, 0.0
        %v840 = vadd.f32 %v784, 0.0
        %v841 = vadd.f32 %v785, 0.0
        %v842 = vadd.f32 %v786, 0.0
        %v843 = vadd.f32 %v787, 0.0
        %v844 = vadd.f32 %v788, 0.0
        %846 = vset.pattern.permute.xlu0 0
        %847 = vperm.xlu0 %846, %v201
        %v848 = vpop.permute.xlu0 %847
        %851 = vset.pattern.permute.xlu0 0
        %852 = vperm.xlu0 %851, %v202
        %v853 = vpop.permute.xlu0 %852
        %856 = vset.pattern.permute.xlu0 0
        %857 = vperm.xlu0 %856, %v209
        %v858 = vpop.permute.xlu0 %857
        %861 = vset.pattern.permute.xlu0 0
        %862 = vperm.xlu0 %861, %v210
        %v863 = vpop.permute.xlu0 %862
        %866 = vset.pattern.permute.xlu0 0
        %867 = vperm.xlu0 %866, %v217
        %v868 = vpop.permute.xlu0 %867
        %871 = vset.pattern.permute.xlu0 0
        %872 = vperm.xlu0 %871, %v218
        %v873 = vpop.permute.xlu0 %872
        %876 = vset.pattern.permute.xlu0 0
        %877 = vperm.xlu0 %876, %v225
        %v878 = vpop.permute.xlu0 %877
        %881 = vset.pattern.permute.xlu0 0
        %882 = vperm.xlu0 %881, %v226
        %v883 = vpop.permute.xlu0 %882
        %886 = vset.pattern.permute.xlu0 0
        %887 = vperm.xlu0 %886, %v233
        %v888 = vpop.permute.xlu0 %887
        %891 = vset.pattern.permute.xlu0 0
        %892 = vperm.xlu0 %891, %v234
        %v893 = vpop.permute.xlu0 %892
        %896 = vset.pattern.permute.xlu0 0
        %897 = vperm.xlu0 %896, %v241
        %v898 = vpop.permute.xlu0 %897
        %901 = vset.pattern.permute.xlu0 0
        %902 = vperm.xlu0 %901, %v242
        %v903 = vpop.permute.xlu0 %902
        %906 = vset.pattern.permute.xlu0 0
        %907 = vperm.xlu0 %906, %v249
        %v908 = vpop.permute.xlu0 %907
        %911 = vset.pattern.permute.xlu0 0
        %912 = vperm.xlu0 %911, %v250
        %v913 = vpop.permute.xlu0 %912
        %916 = vset.pattern.permute.xlu0 0
        %917 = vperm.xlu0 %916, %v257
        %v918 = vpop.permute.xlu0 %917
        %921 = vset.pattern.permute.xlu0 0
        %922 = vperm.xlu0 %921, %v258
        %v923 = vpop.permute.xlu0 %922
        %926 = vset.pattern.permute.xlu0 0
        %927 = vperm.xlu0 %926, %v265
        %v928 = vpop.permute.xlu0 %927
        %931 = vset.pattern.permute.xlu0 0
        %932 = vperm.xlu0 %931, %v266
        %v933 = vpop.permute.xlu0 %932
        %936 = vset.pattern.permute.xlu0 0
        %937 = vperm.xlu0 %936, %v273
        %v938 = vpop.permute.xlu0 %937
        %941 = vset.pattern.permute.xlu0 0
        %942 = vperm.xlu0 %941, %v274
        %v943 = vpop.permute.xlu0 %942
        %946 = vset.pattern.permute.xlu0 0
        %947 = vperm.xlu0 %946, %v281
        %v948 = vpop.permute.xlu0 %947
        %951 = vset.pattern.permute.xlu0 0
        %952 = vperm.xlu0 %951, %v282
        %v953 = vpop.permute.xlu0 %952
        %956 = vset.pattern.permute.xlu0 0
        %957 = vperm.xlu0 %956, %v289
        %v958 = vpop.permute.xlu0 %957
        %961 = vset.pattern.permute.xlu0 0
        %962 = vperm.xlu0 %961, %v290
        %v963 = vpop.permute.xlu0 %962
        %966 = vset.pattern.permute.xlu0 0
        %967 = vperm.xlu0 %966, %v297
        %v968 = vpop.permute.xlu0 %967
        %971 = vset.pattern.permute.xlu0 0
        %972 = vperm.xlu0 %971, %v298
        %v973 = vpop.permute.xlu0 %972
        %976 = vset.pattern.permute.xlu0 0
        %977 = vperm.xlu0 %976, %v305
        %v978 = vpop.permute.xlu0 %977
        %981 = vset.pattern.permute.xlu0 0
        %982 = vperm.xlu0 %981, %v306
        %v983 = vpop.permute.xlu0 %982
        %986 = vset.pattern.permute.xlu0 0
        %987 = vperm.xlu0 %986, %v313
        %v988 = vpop.permute.xlu0 %987
        %991 = vset.pattern.permute.xlu0 0
        %992 = vperm.xlu0 %991, %v314
        %v993 = vpop.permute.xlu0 %992
        %996 = vset.pattern.permute.xlu0 0
        %997 = vperm.xlu0 %996, %v321
        %v998 = vpop.permute.xlu0 %997
        %1001 = vset.pattern.permute.xlu0 0
        %1002 = vperm.xlu0 %1001, %v322
        %v1003 = vpop.permute.xlu0 %1002
        %1006 = vset.pattern.permute.xlu0 0
        %1007 = vperm.xlu0 %1006, %v329
        %v1008 = vpop.permute.xlu0 %1007
        %1011 = vset.pattern.permute.xlu0 0
        %1012 = vperm.xlu0 %1011, %v330
        %v1013 = vpop.permute.xlu0 %1012
        %1016 = vset.pattern.permute.xlu0 0
        %1017 = vperm.xlu0 %1016, %v337
        %v1018 = vpop.permute.xlu0 %1017
        %1021 = vset.pattern.permute.xlu0 0
        %1022 = vperm.xlu0 %1021, %v338
        %v1023 = vpop.permute.xlu0 %1022
        %1026 = vset.pattern.permute.xlu0 0
        %1027 = vperm.xlu0 %1026, %v345
        %v1028 = vpop.permute.xlu0 %1027
        %1031 = vset.pattern.permute.xlu0 0
        %1032 = vperm.xlu0 %1031, %v346
        %v1033 = vpop.permute.xlu0 %1032
        %1036 = vset.pattern.permute.xlu0 0
        %1037 = vperm.xlu0 %1036, %v353
        %v1038 = vpop.permute.xlu0 %1037
        %1041 = vset.pattern.permute.xlu0 0
        %1042 = vperm.xlu0 %1041, %v354
        %v1043 = vpop.permute.xlu0 %1042
        %1046 = vset.pattern.permute.xlu0 0
        %1047 = vperm.xlu0 %1046, %v361
        %v1048 = vpop.permute.xlu0 %1047
        %1051 = vset.pattern.permute.xlu0 0
        %1052 = vperm.xlu0 %1051, %v362
        %v1053 = vpop.permute.xlu0 %1052
        %1056 = vset.pattern.permute.xlu0 0
        %1057 = vperm.xlu0 %1056, %v369
        %v1058 = vpop.permute.xlu0 %1057
        %1061 = vset.pattern.permute.xlu0 0
        %1062 = vperm.xlu0 %1061, %v370
        %v1063 = vpop.permute.xlu0 %1062
        %1066 = vset.pattern.permute.xlu0 0
        %1067 = vperm.xlu0 %1066, %v377
        %v1068 = vpop.permute.xlu0 %1067
        %1071 = vset.pattern.permute.xlu0 0
        %1072 = vperm.xlu0 %1071, %v378
        %v1073 = vpop.permute.xlu0 %1072
        %1076 = vset.pattern.permute.xlu0 0
        %1077 = vperm.xlu0 %1076, %v385
        %v1078 = vpop.permute.xlu0 %1077
        %1081 = vset.pattern.permute.xlu0 0
        %1082 = vperm.xlu0 %1081, %v386
        %v1083 = vpop.permute.xlu0 %1082
        %1086 = vset.pattern.permute.xlu0 0
        %1087 = vperm.xlu0 %1086, %v393
        %v1088 = vpop.permute.xlu0 %1087
        %1091 = vset.pattern.permute.xlu0 0
        %1092 = vperm.xlu0 %1091, %v394
        %v1093 = vpop.permute.xlu0 %1092
        %1096 = vset.pattern.permute.xlu0 0
        %1097 = vperm.xlu0 %1096, %v401
        %v1098 = vpop.permute.xlu0 %1097
        %1101 = vset.pattern.permute.xlu0 0
        %1102 = vperm.xlu0 %1101, %v402
        %v1103 = vpop.permute.xlu0 %1102
        %1106 = vset.pattern.permute.xlu0 0
        %1107 = vperm.xlu0 %1106, %v409
        %v1108 = vpop.permute.xlu0 %1107
        %1111 = vset.pattern.permute.xlu0 0
        %1112 = vperm.xlu0 %1111, %v410
        %v1113 = vpop.permute.xlu0 %1112
        %1116 = vset.pattern.permute.xlu0 0
        %1117 = vperm.xlu0 %1116, %v417
        %v1118 = vpop.permute.xlu0 %1117
        %1121 = vset.pattern.permute.xlu0 0
        %1122 = vperm.xlu0 %1121, %v418
        %v1123 = vpop.permute.xlu0 %1122
        %v1125 = vlaneseq
        %v1126 = vshrl.u32 %v1125, 7
        %v1127 = vsub.s32 0, %v1126
        %v1128 = vrot.slane %v440, %v1127
        %v1129 = vmul.f32 %v848, %v1128
        %v1130 = vmul.f32 %v853, %v1128
        %v1131 = vmul.f32 %v858, %v1128
        %v1132 = vmul.f32 %v863, %v1128
        %v1133 = vmul.f32 %v868, %v1128
        %v1134 = vmul.f32 %v873, %v1128
        %v1135 = vmul.f32 %v878, %v1128
        %v1136 = vmul.f32 %v883, %v1128
        %v1137 = vmul.f32 %v888, %v1128
        %v1138 = vmul.f32 %v893, %v1128
        %v1139 = vmul.f32 %v898, %v1128
        %v1140 = vmul.f32 %v903, %v1128
        %v1141 = vmul.f32 %v908, %v1128
        %v1142 = vmul.f32 %v913, %v1128
        %v1143 = vmul.f32 %v918, %v1128
        %v1144 = vmul.f32 %v923, %v1128
        %v1145 = vmul.f32 %v928, %v1128
        %v1146 = vmul.f32 %v933, %v1128
        %v1147 = vmul.f32 %v938, %v1128
        %v1148 = vmul.f32 %v943, %v1128
        %v1149 = vmul.f32 %v948, %v1128
        %v1150 = vmul.f32 %v953, %v1128
        %v1151 = vmul.f32 %v958, %v1128
        %v1152 = vmul.f32 %v963, %v1128
        %v1153 = vmul.f32 %v968, %v1128
        %v1154 = vmul.f32 %v973, %v1128
        %v1155 = vmul.f32 %v978, %v1128
        %v1156 = vmul.f32 %v983, %v1128
        %v1157 = vmul.f32 %v988, %v1128
        %v1158 = vmul.f32 %v993, %v1128
        %v1159 = vmul.f32 %v998, %v1128
        %v1160 = vmul.f32 %v1003, %v1128
        %v1161 = vmul.f32 %v1008, %v1128
        %v1162 = vmul.f32 %v1013, %v1128
        %v1163 = vmul.f32 %v1018, %v1128
        %v1164 = vmul.f32 %v1023, %v1128
        %v1165 = vmul.f32 %v1028, %v1128
        %v1166 = vmul.f32 %v1033, %v1128
        %v1167 = vmul.f32 %v1038, %v1128
        %v1168 = vmul.f32 %v1043, %v1128
        %v1169 = vmul.f32 %v1048, %v1128
        %v1170 = vmul.f32 %v1053, %v1128
        %v1171 = vmul.f32 %v1058, %v1128
        %v1172 = vmul.f32 %v1063, %v1128
        %v1173 = vmul.f32 %v1068, %v1128
        %v1174 = vmul.f32 %v1073, %v1128
        %v1175 = vmul.f32 %v1078, %v1128
        %v1176 = vmul.f32 %v1083, %v1128
        %v1177 = vmul.f32 %v1088, %v1128
        %v1178 = vmul.f32 %v1093, %v1128
        %v1179 = vmul.f32 %v1098, %v1128
        %v1180 = vmul.f32 %v1103, %v1128
        %v1181 = vmul.f32 %v1108, %v1128
        %v1182 = vmul.f32 %v1113, %v1128
        %v1183 = vmul.f32 %v1118, %v1128
        %v1184 = vmul.f32 %v1123, %v1128
        %v1185 = vadd.f32 %v789, %v1129
        %v1186 = vadd.f32 %v790, %v1130
        %v1187 = vadd.f32 %v791, %v1131
        %v1188 = vadd.f32 %v792, %v1132
        %v1189 = vadd.f32 %v793, %v1133
        %v1190 = vadd.f32 %v794, %v1134
        %v1191 = vadd.f32 %v795, %v1135
        %v1192 = vadd.f32 %v796, %v1136
        %v1193 = vadd.f32 %v797, %v1137
        %v1194 = vadd.f32 %v798, %v1138
        %v1195 = vadd.f32 %v799, %v1139
        %v1196 = vadd.f32 %v800, %v1140
        %v1197 = vadd.f32 %v801, %v1141
        %v1198 = vadd.f32 %v802, %v1142
        %v1199 = vadd.f32 %v803, %v1143
        %v1200 = vadd.f32 %v804, %v1144
        %v1201 = vadd.f32 %v805, %v1145
        %v1202 = vadd.f32 %v806, %v1146
        %v1203 = vadd.f32 %v807, %v1147
        %v1204 = vadd.f32 %v808, %v1148
        %v1205 = vadd.f32 %v809, %v1149
        %v1206 = vadd.f32 %v810, %v1150
        %v1207 = vadd.f32 %v811, %v1151
        %v1208 = vadd.f32 %v812, %v1152
        %v1209 = vadd.f32 %v813, %v1153
        %v1210 = vadd.f32 %v814, %v1154
        %v1211 = vadd.f32 %v815, %v1155
        %v1212 = vadd.f32 %v816, %v1156
        %v1213 = vadd.f32 %v817, %v1157
        %v1214 = vadd.f32 %v818, %v1158
        %v1215 = vadd.f32 %v819, %v1159
        %v1216 = vadd.f32 %v820, %v1160
        %v1217 = vadd.f32 %v821, %v1161
        %v1218 = vadd.f32 %v822, %v1162
        %v1219 = vadd.f32 %v823, %v1163
        %v1220 = vadd.f32 %v824, %v1164
        %v1221 = vadd.f32 %v825, %v1165
        %v1222 = vadd.f32 %v826, %v1166
        %v1223 = vadd.f32 %v827, %v1167
        %v1224 = vadd.f32 %v828, %v1168
        %v1225 = vadd.f32 %v829, %v1169
        %v1226 = vadd.f32 %v830, %v1170
        %v1227 = vadd.f32 %v831, %v1171
        %v1228 = vadd.f32 %v832, %v1172
        %v1229 = vadd.f32 %v833, %v1173
        %v1230 = vadd.f32 %v834, %v1174
        %v1231 = vadd.f32 %v835, %v1175
        %v1232 = vadd.f32 %v836, %v1176
        %v1233 = vadd.f32 %v837, %v1177
        %v1234 = vadd.f32 %v838, %v1178
        %v1235 = vadd.f32 %v839, %v1179
        %v1236 = vadd.f32 %v840, %v1180
        %v1237 = vadd.f32 %v841, %v1181
        %v1238 = vadd.f32 %v842, %v1182
        %v1239 = vadd.f32 %v843, %v1183
        %v1240 = vadd.f32 %v844, %v1184
        %1242 = vset.pattern.permute.xlu0 0
        %1243 = vperm.xlu0 %1242, %v203
        %v1244 = vpop.permute.xlu0 %1243
        %1247 = vset.pattern.permute.xlu0 0
        %1248 = vperm.xlu0 %1247, %v204
        %v1249 = vpop.permute.xlu0 %1248
        %1252 = vset.pattern.permute.xlu0 0
        %1253 = vperm.xlu0 %1252, %v211
        %v1254 = vpop.permute.xlu0 %1253
        %1257 = vset.pattern.permute.xlu0 0
        %1258 = vperm.xlu0 %1257, %v212
        %v1259 = vpop.permute.xlu0 %1258
        %1262 = vset.pattern.permute.xlu0 0
        %1263 = vperm.xlu0 %1262, %v219
        %v1264 = vpop.permute.xlu0 %1263
        %1267 = vset.pattern.permute.xlu0 0
        %1268 = vperm.xlu0 %1267, %v220
        %v1269 = vpop.permute.xlu0 %1268
        %1272 = vset.pattern.permute.xlu0 0
        %1273 = vperm.xlu0 %1272, %v227
        %v1274 = vpop.permute.xlu0 %1273
        %1277 = vset.pattern.permute.xlu0 0
        %1278 = vperm.xlu0 %1277, %v228
        %v1279 = vpop.permute.xlu0 %1278
        %1282 = vset.pattern.permute.xlu0 0
        %1283 = vperm.xlu0 %1282, %v235
        %v1284 = vpop.permute.xlu0 %1283
        %1287 = vset.pattern.permute.xlu0 0
        %1288 = vperm.xlu0 %1287, %v236
        %v1289 = vpop.permute.xlu0 %1288
        %1292 = vset.pattern.permute.xlu0 0
        %1293 = vperm.xlu0 %1292, %v243
        %v1294 = vpop.permute.xlu0 %1293
        %1297 = vset.pattern.permute.xlu0 0
        %1298 = vperm.xlu0 %1297, %v244
        %v1299 = vpop.permute.xlu0 %1298
        %1302 = vset.pattern.permute.xlu0 0
        %1303 = vperm.xlu0 %1302, %v251
        %v1304 = vpop.permute.xlu0 %1303
        %1307 = vset.pattern.permute.xlu0 0
        %1308 = vperm.xlu0 %1307, %v252
        %v1309 = vpop.permute.xlu0 %1308
        %1312 = vset.pattern.permute.xlu0 0
        %1313 = vperm.xlu0 %1312, %v259
        %v1314 = vpop.permute.xlu0 %1313
        %1317 = vset.pattern.permute.xlu0 0
        %1318 = vperm.xlu0 %1317, %v260
        %v1319 = vpop.permute.xlu0 %1318
        %1322 = vset.pattern.permute.xlu0 0
        %1323 = vperm.xlu0 %1322, %v267
        %v1324 = vpop.permute.xlu0 %1323
        %1327 = vset.pattern.permute.xlu0 0
        %1328 = vperm.xlu0 %1327, %v268
        %v1329 = vpop.permute.xlu0 %1328
        %1332 = vset.pattern.permute.xlu0 0
        %1333 = vperm.xlu0 %1332, %v275
        %v1334 = vpop.permute.xlu0 %1333
        %1337 = vset.pattern.permute.xlu0 0
        %1338 = vperm.xlu0 %1337, %v276
        %v1339 = vpop.permute.xlu0 %1338
        %1342 = vset.pattern.permute.xlu0 0
        %1343 = vperm.xlu0 %1342, %v283
        %v1344 = vpop.permute.xlu0 %1343
        %1347 = vset.pattern.permute.xlu0 0
        %1348 = vperm.xlu0 %1347, %v284
        %v1349 = vpop.permute.xlu0 %1348
        %1352 = vset.pattern.permute.xlu0 0
        %1353 = vperm.xlu0 %1352, %v291
        %v1354 = vpop.permute.xlu0 %1353
        %1357 = vset.pattern.permute.xlu0 0
        %1358 = vperm.xlu0 %1357, %v292
        %v1359 = vpop.permute.xlu0 %1358
        %1362 = vset.pattern.permute.xlu0 0
        %1363 = vperm.xlu0 %1362, %v299
        %v1364 = vpop.permute.xlu0 %1363
        %1367 = vset.pattern.permute.xlu0 0
        %1368 = vperm.xlu0 %1367, %v300
        %v1369 = vpop.permute.xlu0 %1368
        %1372 = vset.pattern.permute.xlu0 0
        %1373 = vperm.xlu0 %1372, %v307
        %v1374 = vpop.permute.xlu0 %1373
        %1377 = vset.pattern.permute.xlu0 0
        %1378 = vperm.xlu0 %1377, %v308
        %v1379 = vpop.permute.xlu0 %1378
        %1382 = vset.pattern.permute.xlu0 0
        %1383 = vperm.xlu0 %1382, %v315
        %v1384 = vpop.permute.xlu0 %1383
        %1387 = vset.pattern.permute.xlu0 0
        %1388 = vperm.xlu0 %1387, %v316
        %v1389 = vpop.permute.xlu0 %1388
        %1392 = vset.pattern.permute.xlu0 0
        %1393 = vperm.xlu0 %1392, %v323
        %v1394 = vpop.permute.xlu0 %1393
        %1397 = vset.pattern.permute.xlu0 0
        %1398 = vperm.xlu0 %1397, %v324
        %v1399 = vpop.permute.xlu0 %1398
        %1402 = vset.pattern.permute.xlu0 0
        %1403 = vperm.xlu0 %1402, %v331
        %v1404 = vpop.permute.xlu0 %1403
        %1407 = vset.pattern.permute.xlu0 0
        %1408 = vperm.xlu0 %1407, %v332
        %v1409 = vpop.permute.xlu0 %1408
        %1412 = vset.pattern.permute.xlu0 0
        %1413 = vperm.xlu0 %1412, %v339
        %v1414 = vpop.permute.xlu0 %1413
        %1417 = vset.pattern.permute.xlu0 0
        %1418 = vperm.xlu0 %1417, %v340
        %v1419 = vpop.permute.xlu0 %1418
        %1422 = vset.pattern.permute.xlu0 0
        %1423 = vperm.xlu0 %1422, %v347
        %v1424 = vpop.permute.xlu0 %1423
        %1427 = vset.pattern.permute.xlu0 0
        %1428 = vperm.xlu0 %1427, %v348
        %v1429 = vpop.permute.xlu0 %1428
        %1432 = vset.pattern.permute.xlu0 0
        %1433 = vperm.xlu0 %1432, %v355
        %v1434 = vpop.permute.xlu0 %1433
        %1437 = vset.pattern.permute.xlu0 0
        %1438 = vperm.xlu0 %1437, %v356
        %v1439 = vpop.permute.xlu0 %1438
        %1442 = vset.pattern.permute.xlu0 0
        %1443 = vperm.xlu0 %1442, %v363
        %v1444 = vpop.permute.xlu0 %1443
        %1447 = vset.pattern.permute.xlu0 0
        %1448 = vperm.xlu0 %1447, %v364
        %v1449 = vpop.permute.xlu0 %1448
        %1452 = vset.pattern.permute.xlu0 0
        %1453 = vperm.xlu0 %1452, %v371
        %v1454 = vpop.permute.xlu0 %1453
        %1457 = vset.pattern.permute.xlu0 0
        %1458 = vperm.xlu0 %1457, %v372
        %v1459 = vpop.permute.xlu0 %1458
        %1462 = vset.pattern.permute.xlu0 0
        %1463 = vperm.xlu0 %1462, %v379
        %v1464 = vpop.permute.xlu0 %1463
        %1467 = vset.pattern.permute.xlu0 0
        %1468 = vperm.xlu0 %1467, %v380
        %v1469 = vpop.permute.xlu0 %1468
        %1472 = vset.pattern.permute.xlu0 0
        %1473 = vperm.xlu0 %1472, %v387
        %v1474 = vpop.permute.xlu0 %1473
        %1477 = vset.pattern.permute.xlu0 0
        %1478 = vperm.xlu0 %1477, %v388
        %v1479 = vpop.permute.xlu0 %1478
        %1482 = vset.pattern.permute.xlu0 0
        %1483 = vperm.xlu0 %1482, %v395
        %v1484 = vpop.permute.xlu0 %1483
        %1487 = vset.pattern.permute.xlu0 0
        %1488 = vperm.xlu0 %1487, %v396
        %v1489 = vpop.permute.xlu0 %1488
        %1492 = vset.pattern.permute.xlu0 0
        %1493 = vperm.xlu0 %1492, %v403
        %v1494 = vpop.permute.xlu0 %1493
        %1497 = vset.pattern.permute.xlu0 0
        %1498 = vperm.xlu0 %1497, %v404
        %v1499 = vpop.permute.xlu0 %1498
        %1502 = vset.pattern.permute.xlu0 0
        %1503 = vperm.xlu0 %1502, %v411
        %v1504 = vpop.permute.xlu0 %1503
        %1507 = vset.pattern.permute.xlu0 0
        %1508 = vperm.xlu0 %1507, %v412
        %v1509 = vpop.permute.xlu0 %1508
        %1512 = vset.pattern.permute.xlu0 0
        %1513 = vperm.xlu0 %1512, %v419
        %v1514 = vpop.permute.xlu0 %1513
        %1517 = vset.pattern.permute.xlu0 0
        %1518 = vperm.xlu0 %1517, %v420
        %v1519 = vpop.permute.xlu0 %1518
        %v1521 = vlaneseq
        %v1522 = vshrl.u32 %v1521, 7
        %v1523 = vsub.s32 0, %v1522
        %v1524 = vrot.slane %v441, %v1523
        %v1525 = vmul.f32 %v1244, %v1524
        %v1526 = vmul.f32 %v1249, %v1524
        %v1527 = vmul.f32 %v1254, %v1524
        %v1528 = vmul.f32 %v1259, %v1524
        %v1529 = vmul.f32 %v1264, %v1524
        %v1530 = vmul.f32 %v1269, %v1524
        %v1531 = vmul.f32 %v1274, %v1524
        %v1532 = vmul.f32 %v1279, %v1524
        %v1533 = vmul.f32 %v1284, %v1524
        %v1534 = vmul.f32 %v1289, %v1524
        %v1535 = vmul.f32 %v1294, %v1524
        %v1536 = vmul.f32 %v1299, %v1524
        %v1537 = vmul.f32 %v1304, %v1524
        %v1538 = vmul.f32 %v1309, %v1524
        %v1539 = vmul.f32 %v1314, %v1524
        %v1540 = vmul.f32 %v1319, %v1524
        %v1541 = vmul.f32 %v1324, %v1524
        %v1542 = vmul.f32 %v1329, %v1524
        %v1543 = vmul.f32 %v1334, %v1524
        %v1544 = vmul.f32 %v1339, %v1524
        %v1545 = vmul.f32 %v1344, %v1524
        %v1546 = vmul.f32 %v1349, %v1524
        %v1547 = vmul.f32 %v1354, %v1524
        %v1548 = vmul.f32 %v1359, %v1524
        %v1549 = vmul.f32 %v1364, %v1524
        %v1550 = vmul.f32 %v1369, %v1524
        %v1551 = vmul.f32 %v1374, %v1524
        %v1552 = vmul.f32 %v1379, %v1524
        %v1553 = vmul.f32 %v1384, %v1524
        %v1554 = vmul.f32 %v1389, %v1524
        %v1555 = vmul.f32 %v1394, %v1524
        %v1556 = vmul.f32 %v1399, %v1524
        %v1557 = vmul.f32 %v1404, %v1524
        %v1558 = vmul.f32 %v1409, %v1524
        %v1559 = vmul.f32 %v1414, %v1524
        %v1560 = vmul.f32 %v1419, %v1524
        %v1561 = vmul.f32 %v1424, %v1524
        %v1562 = vmul.f32 %v1429, %v1524
        %v1563 = vmul.f32 %v1434, %v1524
        %v1564 = vmul.f32 %v1439, %v1524
        %v1565 = vmul.f32 %v1444, %v1524
        %v1566 = vmul.f32 %v1449, %v1524
        %v1567 = vmul.f32 %v1454, %v1524
        %v1568 = vmul.f32 %v1459, %v1524
        %v1569 = vmul.f32 %v1464, %v1524
        %v1570 = vmul.f32 %v1469, %v1524
        %v1571 = vmul.f32 %v1474, %v1524
        %v1572 = vmul.f32 %v1479, %v1524
        %v1573 = vmul.f32 %v1484, %v1524
        %v1574 = vmul.f32 %v1489, %v1524
        %v1575 = vmul.f32 %v1494, %v1524
        %v1576 = vmul.f32 %v1499, %v1524
        %v1577 = vmul.f32 %v1504, %v1524
        %v1578 = vmul.f32 %v1509, %v1524
        %v1579 = vmul.f32 %v1514, %v1524
        %v1580 = vmul.f32 %v1519, %v1524
        %v1581 = vadd.f32 %v1185, %v1525
        %v1582 = vadd.f32 %v1186, %v1526
        %v1583 = vadd.f32 %v1187, %v1527
        %v1584 = vadd.f32 %v1188, %v1528
        %v1585 = vadd.f32 %v1189, %v1529
        %v1586 = vadd.f32 %v1190, %v1530
        %v1587 = vadd.f32 %v1191, %v1531
        %v1588 = vadd.f32 %v1192, %v1532
        %v1589 = vadd.f32 %v1193, %v1533
        %v1590 = vadd.f32 %v1194, %v1534
        %v1591 = vadd.f32 %v1195, %v1535
        %v1592 = vadd.f32 %v1196, %v1536
        %v1593 = vadd.f32 %v1197, %v1537
        %v1594 = vadd.f32 %v1198, %v1538
        %v1595 = vadd.f32 %v1199, %v1539
        %v1596 = vadd.f32 %v1200, %v1540
        %v1597 = vadd.f32 %v1201, %v1541
        %v1598 = vadd.f32 %v1202, %v1542
        %v1599 = vadd.f32 %v1203, %v1543
        %v1600 = vadd.f32 %v1204, %v1544
        %v1601 = vadd.f32 %v1205, %v1545
        %v1602 = vadd.f32 %v1206, %v1546
        %v1603 = vadd.f32 %v1207, %v1547
        %v1604 = vadd.f32 %v1208, %v1548
        %v1605 = vadd.f32 %v1209, %v1549
        %v1606 = vadd.f32 %v1210, %v1550
        %v1607 = vadd.f32 %v1211, %v1551
        %v1608 = vadd.f32 %v1212, %v1552
        %v1609 = vadd.f32 %v1213, %v1553
        %v1610 = vadd.f32 %v1214, %v1554
        %v1611 = vadd.f32 %v1215, %v1555
        %v1612 = vadd.f32 %v1216, %v1556
        %v1613 = vadd.f32 %v1217, %v1557
        %v1614 = vadd.f32 %v1218, %v1558
        %v1615 = vadd.f32 %v1219, %v1559
        %v1616 = vadd.f32 %v1220, %v1560
        %v1617 = vadd.f32 %v1221, %v1561
        %v1618 = vadd.f32 %v1222, %v1562
        %v1619 = vadd.f32 %v1223, %v1563
        %v1620 = vadd.f32 %v1224, %v1564
        %v1621 = vadd.f32 %v1225, %v1565
        %v1622 = vadd.f32 %v1226, %v1566
        %v1623 = vadd.f32 %v1227, %v1567
        %v1624 = vadd.f32 %v1228, %v1568
        %v1625 = vadd.f32 %v1229, %v1569
        %v1626 = vadd.f32 %v1230, %v1570
        %v1627 = vadd.f32 %v1231, %v1571
        %v1628 = vadd.f32 %v1232, %v1572
        %v1629 = vadd.f32 %v1233, %v1573
        %v1630 = vadd.f32 %v1234, %v1574
        %v1631 = vadd.f32 %v1235, %v1575
        %v1632 = vadd.f32 %v1236, %v1576
        %v1633 = vadd.f32 %v1237, %v1577
        %v1634 = vadd.f32 %v1238, %v1578
        %v1635 = vadd.f32 %v1239, %v1579
        %v1636 = vadd.f32 %v1240, %v1580
        %1638 = vset.pattern.permute.xlu0 0
        %1639 = vperm.xlu0 %1638, %v423
        %v1640 = vpop.permute.xlu0 %1639
        %1643 = vset.pattern.permute.xlu0 0
        %1644 = vperm.xlu0 %1643, %v424
        %v1645 = vpop.permute.xlu0 %1644
        %v1647 = vlaneseq
        %v1648 = vshrl.u32 %v1647, 7
        %v1649 = vsub.s32 0, %v1648
        %v1650 = vrot.slane %v442, %v1649
        %v1651 = vmul.f32 %v462, %v1650
        %v1652 = vmul.f32 %v467, %v1650
        %v1653 = vmul.f32 %v472, %v1650
        %v1654 = vmul.f32 %v477, %v1650
        %v1655 = vmul.f32 %v482, %v1650
        %v1656 = vmul.f32 %v487, %v1650
        %v1657 = vmul.f32 %v492, %v1650
        %v1658 = vmul.f32 %v497, %v1650
        %v1659 = vmul.f32 %v502, %v1650
        %v1660 = vmul.f32 %v507, %v1650
        %v1661 = vmul.f32 %v512, %v1650
        %v1662 = vmul.f32 %v517, %v1650
        %v1663 = vmul.f32 %v522, %v1650
        %v1664 = vmul.f32 %v527, %v1650
        %v1665 = vmul.f32 %v532, %v1650
        %v1666 = vmul.f32 %v537, %v1650
        %v1667 = vmul.f32 %v542, %v1650
        %v1668 = vmul.f32 %v547, %v1650
        %v1669 = vmul.f32 %v552, %v1650
        %v1670 = vmul.f32 %v557, %v1650
        %v1671 = vmul.f32 %v562, %v1650
        %v1672 = vmul.f32 %v567, %v1650
        %v1673 = vmul.f32 %v572, %v1650
        %v1674 = vmul.f32 %v577, %v1650
        %v1675 = vmul.f32 %v582, %v1650
        %v1676 = vmul.f32 %v587, %v1650
        %v1677 = vmul.f32 %v592, %v1650
        %v1678 = vmul.f32 %v597, %v1650
        %v1679 = vmul.f32 %v602, %v1650
        %v1680 = vmul.f32 %v607, %v1650
        %v1681 = vmul.f32 %v612, %v1650
        %v1682 = vmul.f32 %v617, %v1650
        %v1683 = vmul.f32 %v622, %v1650
        %v1684 = vmul.f32 %v627, %v1650
        %v1685 = vmul.f32 %v632, %v1650
        %v1686 = vmul.f32 %v637, %v1650
        %v1687 = vmul.f32 %v642, %v1650
        %v1688 = vmul.f32 %v647, %v1650
        %v1689 = vmul.f32 %v652, %v1650
        %v1690 = vmul.f32 %v657, %v1650
        %v1691 = vmul.f32 %v662, %v1650
        %v1692 = vmul.f32 %v667, %v1650
        %v1693 = vmul.f32 %v672, %v1650
        %v1694 = vmul.f32 %v677, %v1650
        %v1695 = vmul.f32 %v682, %v1650
        %v1696 = vmul.f32 %v687, %v1650
        %v1697 = vmul.f32 %v692, %v1650
        %v1698 = vmul.f32 %v697, %v1650
        %v1699 = vmul.f32 %v702, %v1650
        %v1700 = vmul.f32 %v707, %v1650
        %v1701 = vmul.f32 %v712, %v1650
        %v1702 = vmul.f32 %v717, %v1650
        %v1703 = vmul.f32 %v722, %v1650
        %v1704 = vmul.f32 %v727, %v1650
        %v1705 = vmul.f32 %v1640, %v1650
        %v1706 = vmul.f32 %v1645, %v1650
        %v1707 = vadd.f32 %v1581, %v1651
        %v1708 = vadd.f32 %v1582, %v1652
        %v1709 = vadd.f32 %v1583, %v1653
        %v1710 = vadd.f32 %v1584, %v1654
        %v1711 = vadd.f32 %v1585, %v1655
        %v1712 = vadd.f32 %v1586, %v1656
        %v1713 = vadd.f32 %v1587, %v1657
        %v1714 = vadd.f32 %v1588, %v1658
        %v1715 = vadd.f32 %v1589, %v1659
        %v1716 = vadd.f32 %v1590, %v1660
        %v1717 = vadd.f32 %v1591, %v1661
        %v1718 = vadd.f32 %v1592, %v1662
        %v1719 = vadd.f32 %v1593, %v1663
        %v1720 = vadd.f32 %v1594, %v1664
        %v1721 = vadd.f32 %v1595, %v1665
        %v1722 = vadd.f32 %v1596, %v1666
        %v1723 = vadd.f32 %v1597, %v1667
        %v1724 = vadd.f32 %v1598, %v1668
        %v1725 = vadd.f32 %v1599, %v1669
        %v1726 = vadd.f32 %v1600, %v1670
        %v1727 = vadd.f32 %v1601, %v1671
        %v1728 = vadd.f32 %v1602, %v1672
        %v1729 = vadd.f32 %v1603, %v1673
        %v1730 = vadd.f32 %v1604, %v1674
        %v1731 = vadd.f32 %v1605, %v1675
        %v1732 = vadd.f32 %v1606, %v1676
        %v1733 = vadd.f32 %v1607, %v1677
        %v1734 = vadd.f32 %v1608, %v1678
        %v1735 = vadd.f32 %v1609, %v1679
        %v1736 = vadd.f32 %v1610, %v1680
        %v1737 = vadd.f32 %v1611, %v1681
        %v1738 = vadd.f32 %v1612, %v1682
        %v1739 = vadd.f32 %v1613, %v1683
        %v1740 = vadd.f32 %v1614, %v1684
        %v1741 = vadd.f32 %v1615, %v1685
        %v1742 = vadd.f32 %v1616, %v1686
        %v1743 = vadd.f32 %v1617, %v1687
        %v1744 = vadd.f32 %v1618, %v1688
        %v1745 = vadd.f32 %v1619, %v1689
        %v1746 = vadd.f32 %v1620, %v1690
        %v1747 = vadd.f32 %v1621, %v1691
        %v1748 = vadd.f32 %v1622, %v1692
        %v1749 = vadd.f32 %v1623, %v1693
        %v1750 = vadd.f32 %v1624, %v1694
        %v1751 = vadd.f32 %v1625, %v1695
        %v1752 = vadd.f32 %v1626, %v1696
        %v1753 = vadd.f32 %v1627, %v1697
        %v1754 = vadd.f32 %v1628, %v1698
        %v1755 = vadd.f32 %v1629, %v1699
        %v1756 = vadd.f32 %v1630, %v1700
        %v1757 = vadd.f32 %v1631, %v1701
        %v1758 = vadd.f32 %v1632, %v1702
        %v1759 = vadd.f32 %v1633, %v1703
        %v1760 = vadd.f32 %v1634, %v1704
        %v1761 = vadd.f32 %v1635, %v1705
        %v1762 = vadd.f32 %v1636, %v1706
        %1764 = vset.pattern.permute.xlu0 0
        %1765 = vperm.xlu0 %1764, %v425
        %v1766 = vpop.permute.xlu0 %1765
        %1769 = vset.pattern.permute.xlu0 0
        %1770 = vperm.xlu0 %1769, %v426
        %v1771 = vpop.permute.xlu0 %1770
        %v1773 = vlaneseq
        %v1774 = vshrl.u32 %v1773, 7
        %v1775 = vsub.s32 0, %v1774
        %v1776 = vrot.slane %v443, %v1775
        %v1777 = vmul.f32 %v858, %v1776
        %v1778 = vmul.f32 %v863, %v1776
        %v1779 = vmul.f32 %v868, %v1776
        %v1780 = vmul.f32 %v873, %v1776
        %v1781 = vmul.f32 %v878, %v1776
        %v1782 = vmul.f32 %v883, %v1776
        %v1783 = vmul.f32 %v888, %v1776
        %v1784 = vmul.f32 %v893, %v1776
        %v1785 = vmul.f32 %v898, %v1776
        %v1786 = vmul.f32 %v903, %v1776
        %v1787 = vmul.f32 %v908, %v1776
        %v1788 = vmul.f32 %v913, %v1776
        %v1789 = vmul.f32 %v918, %v1776
        %v1790 = vmul.f32 %v923, %v1776
        %v1791 = vmul.f32 %v928, %v1776
        %v1792 = vmul.f32 %v933, %v1776
        %v1793 = vmul.f32 %v938, %v1776
        %v1794 = vmul.f32 %v943, %v1776
        %v1795 = vmul.f32 %v948, %v1776
        %v1796 = vmul.f32 %v953, %v1776
        %v1797 = vmul.f32 %v958, %v1776
        %v1798 = vmul.f32 %v963, %v1776
        %v1799 = vmul.f32 %v968, %v1776
        %v1800 = vmul.f32 %v973, %v1776
        %v1801 = vmul.f32 %v978, %v1776
        %v1802 = vmul.f32 %v983, %v1776
        %v1803 = vmul.f32 %v988, %v1776
        %v1804 = vmul.f32 %v993, %v1776
        %v1805 = vmul.f32 %v998, %v1776
        %v1806 = vmul.f32 %v1003, %v1776
        %v1807 = vmul.f32 %v1008, %v1776
        %v1808 = vmul.f32 %v1013, %v1776
        %v1809 = vmul.f32 %v1018, %v1776
        %v1810 = vmul.f32 %v1023, %v1776
        %v1811 = vmul.f32 %v1028, %v1776
        %v1812 = vmul.f32 %v1033, %v1776
        %v1813 = vmul.f32 %v1038, %v1776
        %v1814 = vmul.f32 %v1043, %v1776
        %v1815 = vmul.f32 %v1048, %v1776
        %v1816 = vmul.f32 %v1053, %v1776
        %v1817 = vmul.f32 %v1058, %v1776
        %v1818 = vmul.f32 %v1063, %v1776
        %v1819 = vmul.f32 %v1068, %v1776
        %v1820 = vmul.f32 %v1073, %v1776
        %v1821 = vmul.f32 %v1078, %v1776
        %v1822 = vmul.f32 %v1083, %v1776
        %v1823 = vmul.f32 %v1088, %v1776
        %v1824 = vmul.f32 %v1093, %v1776
        %v1825 = vmul.f32 %v1098, %v1776
        %v1826 = vmul.f32 %v1103, %v1776
        %v1827 = vmul.f32 %v1108, %v1776
        %v1828 = vmul.f32 %v1113, %v1776
        %v1829 = vmul.f32 %v1118, %v1776
        %v1830 = vmul.f32 %v1123, %v1776
        %v1831 = vmul.f32 %v1766, %v1776
        %v1832 = vmul.f32 %v1771, %v1776
        %v1833 = vadd.f32 %v1707, %v1777
        %v1834 = vadd.f32 %v1708, %v1778
        %v1835 = vadd.f32 %v1709, %v1779
        %v1836 = vadd.f32 %v1710, %v1780
        %v1837 = vadd.f32 %v1711, %v1781
        %v1838 = vadd.f32 %v1712, %v1782
        %v1839 = vadd.f32 %v1713, %v1783
        %v1840 = vadd.f32 %v1714, %v1784
        %v1841 = vadd.f32 %v1715, %v1785
        %v1842 = vadd.f32 %v1716, %v1786
        %v1843 = vadd.f32 %v1717, %v1787
        %v1844 = vadd.f32 %v1718, %v1788
        %v1845 = vadd.f32 %v1719, %v1789
        %v1846 = vadd.f32 %v1720, %v1790
        %v1847 = vadd.f32 %v1721, %v1791
        %v1848 = vadd.f32 %v1722, %v1792
        %v1849 = vadd.f32 %v1723, %v1793
        %v1850 = vadd.f32 %v1724, %v1794
        %v1851 = vadd.f32 %v1725, %v1795
        %v1852 = vadd.f32 %v1726, %v1796
        %v1853 = vadd.f32 %v1727, %v1797
        %v1854 = vadd.f32 %v1728, %v1798
        %v1855 = vadd.f32 %v1729, %v1799
        %v1856 = vadd.f32 %v1730, %v1800
        %v1857 = vadd.f32 %v1731, %v1801
        %v1858 = vadd.f32 %v1732, %v1802
        %v1859 = vadd.f32 %v1733, %v1803
        %v1860 = vadd.f32 %v1734, %v1804
        %v1861 = vadd.f32 %v1735, %v1805
        %v1862 = vadd.f32 %v1736, %v1806
        %v1863 = vadd.f32 %v1737, %v1807
        %v1864 = vadd.f32 %v1738, %v1808
        %v1865 = vadd.f32 %v1739, %v1809
        %v1866 = vadd.f32 %v1740, %v1810
        %v1867 = vadd.f32 %v1741, %v1811
        %v1868 = vadd.f32 %v1742, %v1812
        %v1869 = vadd.f32 %v1743, %v1813
        %v1870 = vadd.f32 %v1744, %v1814
        %v1871 = vadd.f32 %v1745, %v1815
        %v1872 = vadd.f32 %v1746, %v1816
        %v1873 = vadd.f32 %v1747, %v1817
        %v1874 = vadd.f32 %v1748, %v1818
        %v1875 = vadd.f32 %v1749, %v1819
        %v1876 = vadd.f32 %v1750, %v1820
        %v1877 = vadd.f32 %v1751, %v1821
        %v1878 = vadd.f32 %v1752, %v1822
        %v1879 = vadd.f32 %v1753, %v1823
        %v1880 = vadd.f32 %v1754, %v1824
        %v1881 = vadd.f32 %v1755, %v1825
        %v1882 = vadd.f32 %v1756, %v1826
        %v1883 = vadd.f32 %v1757, %v1827
        %v1884 = vadd.f32 %v1758, %v1828
        %v1885 = vadd.f32 %v1759, %v1829
        %v1886 = vadd.f32 %v1760, %v1830
        %v1887 = vadd.f32 %v1761, %v1831
        %v1888 = vadd.f32 %v1762, %v1832
        %1890 = vset.pattern.permute.xlu0 0
        %1891 = vperm.xlu0 %1890, %v427
        %v1892 = vpop.permute.xlu0 %1891
        %1895 = vset.pattern.permute.xlu0 0
        %1896 = vperm.xlu0 %1895, %v428
        %v1897 = vpop.permute.xlu0 %1896
        %v1899 = vlaneseq
        %v1900 = vshrl.u32 %v1899, 7
        %v1901 = vsub.s32 0, %v1900
        %v1902 = vrot.slane %v444, %v1901
        %v1903 = vmul.f32 %v1254, %v1902
        %v1904 = vmul.f32 %v1259, %v1902
        %v1905 = vmul.f32 %v1264, %v1902
        %v1906 = vmul.f32 %v1269, %v1902
        %v1907 = vmul.f32 %v1274, %v1902
        %v1908 = vmul.f32 %v1279, %v1902
        %v1909 = vmul.f32 %v1284, %v1902
        %v1910 = vmul.f32 %v1289, %v1902
        %v1911 = vmul.f32 %v1294, %v1902
        %v1912 = vmul.f32 %v1299, %v1902
        %v1913 = vmul.f32 %v1304, %v1902
        %v1914 = vmul.f32 %v1309, %v1902
        %v1915 = vmul.f32 %v1314, %v1902
        %v1916 = vmul.f32 %v1319, %v1902
        %v1917 = vmul.f32 %v1324, %v1902
        %v1918 = vmul.f32 %v1329, %v1902
        %v1919 = vmul.f32 %v1334, %v1902
        %v1920 = vmul.f32 %v1339, %v1902
        %v1921 = vmul.f32 %v1344, %v1902
        %v1922 = vmul.f32 %v1349, %v1902
        %v1923 = vmul.f32 %v1354, %v1902
        %v1924 = vmul.f32 %v1359, %v1902
        %v1925 = vmul.f32 %v1364, %v1902
        %v1926 = vmul.f32 %v1369, %v1902
        %v1927 = vmul.f32 %v1374, %v1902
        %v1928 = vmul.f32 %v1379, %v1902
        %v1929 = vmul.f32 %v1384, %v1902
        %v1930 = vmul.f32 %v1389, %v1902
        %v1931 = vmul.f32 %v1394, %v1902
        %v1932 = vmul.f32 %v1399, %v1902
        %v1933 = vmul.f32 %v1404, %v1902
        %v1934 = vmul.f32 %v1409, %v1902
        %v1935 = vmul.f32 %v1414, %v1902
        %v1936 = vmul.f32 %v1419, %v1902
        %v1937 = vmul.f32 %v1424, %v1902
        %v1938 = vmul.f32 %v1429, %v1902
        %v1939 = vmul.f32 %v1434, %v1902
        %v1940 = vmul.f32 %v1439, %v1902
        %v1941 = vmul.f32 %v1444, %v1902
        %v1942 = vmul.f32 %v1449, %v1902
        %v1943 = vmul.f32 %v1454, %v1902
        %v1944 = vmul.f32 %v1459, %v1902
        %v1945 = vmul.f32 %v1464, %v1902
        %v1946 = vmul.f32 %v1469, %v1902
        %v1947 = vmul.f32 %v1474, %v1902
        %v1948 = vmul.f32 %v1479, %v1902
        %v1949 = vmul.f32 %v1484, %v1902
        %v1950 = vmul.f32 %v1489, %v1902
        %v1951 = vmul.f32 %v1494, %v1902
        %v1952 = vmul.f32 %v1499, %v1902
        %v1953 = vmul.f32 %v1504, %v1902
        %v1954 = vmul.f32 %v1509, %v1902
        %v1955 = vmul.f32 %v1514, %v1902
        %v1956 = vmul.f32 %v1519, %v1902
        %v1957 = vmul.f32 %v1892, %v1902
        %v1958 = vmul.f32 %v1897, %v1902
        %v1959 = vadd.f32 %v1833, %v1903
        %v1960 = vadd.f32 %v1834, %v1904
        %v1961 = vadd.f32 %v1835, %v1905
        %v1962 = vadd.f32 %v1836, %v1906
        %v1963 = vadd.f32 %v1837, %v1907
        %v1964 = vadd.f32 %v1838, %v1908
        %v1965 = vadd.f32 %v1839, %v1909
        %v1966 = vadd.f32 %v1840, %v1910
        %v1967 = vadd.f32 %v1841, %v1911
        %v1968 = vadd.f32 %v1842, %v1912
        %v1969 = vadd.f32 %v1843, %v1913
        %v1970 = vadd.f32 %v1844, %v1914
        %v1971 = vadd.f32 %v1845, %v1915
        %v1972 = vadd.f32 %v1846, %v1916
        %v1973 = vadd.f32 %v1847, %v1917
        %v1974 = vadd.f32 %v1848, %v1918
        %v1975 = vadd.f32 %v1849, %v1919
        %v1976 = vadd.f32 %v1850, %v1920
        %v1977 = vadd.f32 %v1851, %v1921
        %v1978 = vadd.f32 %v1852, %v1922
        %v1979 = vadd.f32 %v1853, %v1923
        %v1980 = vadd.f32 %v1854, %v1924
        %v1981 = vadd.f32 %v1855, %v1925
        %v1982 = vadd.f32 %v1856, %v1926
        %v1983 = vadd.f32 %v1857, %v1927
        %v1984 = vadd.f32 %v1858, %v1928
        %v1985 = vadd.f32 %v1859, %v1929
        %v1986 = vadd.f32 %v1860, %v1930
        %v1987 = vadd.f32 %v1861, %v1931
        %v1988 = vadd.f32 %v1862, %v1932
        %v1989 = vadd.f32 %v1863, %v1933
        %v1990 = vadd.f32 %v1864, %v1934
        %v1991 = vadd.f32 %v1865, %v1935
        %v1992 = vadd.f32 %v1866, %v1936
        %v1993 = vadd.f32 %v1867, %v1937
        %v1994 = vadd.f32 %v1868, %v1938
        %v1995 = vadd.f32 %v1869, %v1939
        %v1996 = vadd.f32 %v1870, %v1940
        %v1997 = vadd.f32 %v1871, %v1941
        %v1998 = vadd.f32 %v1872, %v1942
        %v1999 = vadd.f32 %v1873, %v1943
        %v2000 = vadd.f32 %v1874, %v1944
        %v2001 = vadd.f32 %v1875, %v1945
        %v2002 = vadd.f32 %v1876, %v1946
        %v2003 = vadd.f32 %v1877, %v1947
        %v2004 = vadd.f32 %v1878, %v1948
        %v2005 = vadd.f32 %v1879, %v1949
        %v2006 = vadd.f32 %v1880, %v1950
        %v2007 = vadd.f32 %v1881, %v1951
        %v2008 = vadd.f32 %v1882, %v1952
        %v2009 = vadd.f32 %v1883, %v1953
        %v2010 = vadd.f32 %v1884, %v1954
        %v2011 = vadd.f32 %v1885, %v1955
        %v2012 = vadd.f32 %v1886, %v1956
        %v2013 = vadd.f32 %v1887, %v1957
        %v2014 = vadd.f32 %v1888, %v1958
        %2016 = vset.pattern.permute.xlu0 0
        %2017 = vperm.xlu0 %2016, %v431
        %v2018 = vpop.permute.xlu0 %2017
        %2021 = vset.pattern.permute.xlu0 0
        %2022 = vperm.xlu0 %2021, %v432
        %v2023 = vpop.permute.xlu0 %2022
        %v2025 = vlaneseq
        %v2026 = vshrl.u32 %v2025, 7
        %v2027 = vsub.s32 0, %v2026
        %v2028 = vrot.slane %v445, %v2027
        %v2029 = vmul.f32 %v472, %v2028
        %v2030 = vmul.f32 %v477, %v2028
        %v2031 = vmul.f32 %v482, %v2028
        %v2032 = vmul.f32 %v487, %v2028
        %v2033 = vmul.f32 %v492, %v2028
        %v2034 = vmul.f32 %v497, %v2028
        %v2035 = vmul.f32 %v502, %v2028
        %v2036 = vmul.f32 %v507, %v2028
        %v2037 = vmul.f32 %v512, %v2028
        %v2038 = vmul.f32 %v517, %v2028
        %v2039 = vmul.f32 %v522, %v2028
        %v2040 = vmul.f32 %v527, %v2028
        %v2041 = vmul.f32 %v532, %v2028
        %v2042 = vmul.f32 %v537, %v2028
        %v2043 = vmul.f32 %v542, %v2028
        %v2044 = vmul.f32 %v547, %v2028
        %v2045 = vmul.f32 %v552, %v2028
        %v2046 = vmul.f32 %v557, %v2028
        %v2047 = vmul.f32 %v562, %v2028
        %v2048 = vmul.f32 %v567, %v2028
        %v2049 = vmul.f32 %v572, %v2028
        %v2050 = vmul.f32 %v577, %v2028
        %v2051 = vmul.f32 %v582, %v2028
        %v2052 = vmul.f32 %v587, %v2028
        %v2053 = vmul.f32 %v592, %v2028
        %v2054 = vmul.f32 %v597, %v2028
        %v2055 = vmul.f32 %v602, %v2028
        %v2056 = vmul.f32 %v607, %v2028
        %v2057 = vmul.f32 %v612, %v2028
        %v2058 = vmul.f32 %v617, %v2028
        %v2059 = vmul.f32 %v622, %v2028
        %v2060 = vmul.f32 %v627, %v2028
        %v2061 = vmul.f32 %v632, %v2028
        %v2062 = vmul.f32 %v637, %v2028
        %v2063 = vmul.f32 %v642, %v2028
        %v2064 = vmul.f32 %v647, %v2028
        %v2065 = vmul.f32 %v652, %v2028
        %v2066 = vmul.f32 %v657, %v2028
        %v2067 = vmul.f32 %v662, %v2028
        %v2068 = vmul.f32 %v667, %v2028
        %v2069 = vmul.f32 %v672, %v2028
        %v2070 = vmul.f32 %v677, %v2028
        %v2071 = vmul.f32 %v682, %v2028
        %v2072 = vmul.f32 %v687, %v2028
        %v2073 = vmul.f32 %v692, %v2028
        %v2074 = vmul.f32 %v697, %v2028
        %v2075 = vmul.f32 %v702, %v2028
        %v2076 = vmul.f32 %v707, %v2028
        %v2077 = vmul.f32 %v712, %v2028
        %v2078 = vmul.f32 %v717, %v2028
        %v2079 = vmul.f32 %v722, %v2028
        %v2080 = vmul.f32 %v727, %v2028
        %v2081 = vmul.f32 %v1640, %v2028
        %v2082 = vmul.f32 %v1645, %v2028
        %v2083 = vmul.f32 %v2018, %v2028
        %v2084 = vmul.f32 %v2023, %v2028
        %v2085 = vadd.f32 %v1959, %v2029
        %v2086 = vadd.f32 %v1960, %v2030
        %v2087 = vadd.f32 %v1961, %v2031
        %v2088 = vadd.f32 %v1962, %v2032
        %v2089 = vadd.f32 %v1963, %v2033
        %v2090 = vadd.f32 %v1964, %v2034
        %v2091 = vadd.f32 %v1965, %v2035
        %v2092 = vadd.f32 %v1966, %v2036
        %v2093 = vadd.f32 %v1967, %v2037
        %v2094 = vadd.f32 %v1968, %v2038
        %v2095 = vadd.f32 %v1969, %v2039
        %v2096 = vadd.f32 %v1970, %v2040
        %v2097 = vadd.f32 %v1971, %v2041
        %v2098 = vadd.f32 %v1972, %v2042
        %v2099 = vadd.f32 %v1973, %v2043
        %v2100 = vadd.f32 %v1974, %v2044
        %v2101 = vadd.f32 %v1975, %v2045
        %v2102 = vadd.f32 %v1976, %v2046
        %v2103 = vadd.f32 %v1977, %v2047
        %v2104 = vadd.f32 %v1978, %v2048
        %v2105 = vadd.f32 %v1979, %v2049
        %v2106 = vadd.f32 %v1980, %v2050
        %v2107 = vadd.f32 %v1981, %v2051
        %v2108 = vadd.f32 %v1982, %v2052
        %v2109 = vadd.f32 %v1983, %v2053
        %v2110 = vadd.f32 %v1984, %v2054
        %v2111 = vadd.f32 %v1985, %v2055
        %v2112 = vadd.f32 %v1986, %v2056
        %v2113 = vadd.f32 %v1987, %v2057
        %v2114 = vadd.f32 %v1988, %v2058
        %v2115 = vadd.f32 %v1989, %v2059
        %v2116 = vadd.f32 %v1990, %v2060
        %v2117 = vadd.f32 %v1991, %v2061
        %v2118 = vadd.f32 %v1992, %v2062
        %v2119 = vadd.f32 %v1993, %v2063
        %v2120 = vadd.f32 %v1994, %v2064
        %v2121 = vadd.f32 %v1995, %v2065
        %v2122 = vadd.f32 %v1996, %v2066
        %v2123 = vadd.f32 %v1997, %v2067
        %v2124 = vadd.f32 %v1998, %v2068
        %v2125 = vadd.f32 %v1999, %v2069
        %v2126 = vadd.f32 %v2000, %v2070
        %v2127 = vadd.f32 %v2001, %v2071
        %v2128 = vadd.f32 %v2002, %v2072
        %v2129 = vadd.f32 %v2003, %v2073
        %v2130 = vadd.f32 %v2004, %v2074
        %v2131 = vadd.f32 %v2005, %v2075
        %v2132 = vadd.f32 %v2006, %v2076
        %v2133 = vadd.f32 %v2007, %v2077
        %v2134 = vadd.f32 %v2008, %v2078
        %v2135 = vadd.f32 %v2009, %v2079
        %v2136 = vadd.f32 %v2010, %v2080
        %v2137 = vadd.f32 %v2011, %v2081
        %v2138 = vadd.f32 %v2012, %v2082
        %v2139 = vadd.f32 %v2013, %v2083
        %v2140 = vadd.f32 %v2014, %v2084
        %2142 = vset.pattern.permute.xlu0 0
        %2143 = vperm.xlu0 %2142, %v433
        %v2144 = vpop.permute.xlu0 %2143
        %2147 = vset.pattern.permute.xlu0 0
        %2148 = vperm.xlu0 %2147, %v434
        %v2149 = vpop.permute.xlu0 %2148
        %v2151 = vlaneseq
        %v2152 = vshrl.u32 %v2151, 7
        %v2153 = vsub.s32 0, %v2152
        %v2154 = vrot.slane %v446, %v2153
        %v2155 = vmul.f32 %v868, %v2154
        %v2156 = vmul.f32 %v873, %v2154
        %v2157 = vmul.f32 %v878, %v2154
        %v2158 = vmul.f32 %v883, %v2154
        %v2159 = vmul.f32 %v888, %v2154
        %v2160 = vmul.f32 %v893, %v2154
        %v2161 = vmul.f32 %v898, %v2154
        %v2162 = vmul.f32 %v903, %v2154
        %v2163 = vmul.f32 %v908, %v2154
        %v2164 = vmul.f32 %v913, %v2154
        %v2165 = vmul.f32 %v918, %v2154
        %v2166 = vmul.f32 %v923, %v2154
        %v2167 = vmul.f32 %v928, %v2154
        %v2168 = vmul.f32 %v933, %v2154
        %v2169 = vmul.f32 %v938, %v2154
        %v2170 = vmul.f32 %v943, %v2154
        %v2171 = vmul.f32 %v948, %v2154
        %v2172 = vmul.f32 %v953, %v2154
        %v2173 = vmul.f32 %v958, %v2154
        %v2174 = vmul.f32 %v963, %v2154
        %v2175 = vmul.f32 %v968, %v2154
        %v2176 = vmul.f32 %v973, %v2154
        %v2177 = vmul.f32 %v978, %v2154
        %v2178 = vmul.f32 %v983, %v2154
        %v2179 = vmul.f32 %v988, %v2154
        %v2180 = vmul.f32 %v993, %v2154
        %v2181 = vmul.f32 %v998, %v2154
        %v2182 = vmul.f32 %v1003, %v2154
        %v2183 = vmul.f32 %v1008, %v2154
        %v2184 = vmul.f32 %v1013, %v2154
        %v2185 = vmul.f32 %v1018, %v2154
        %v2186 = vmul.f32 %v1023, %v2154
        %v2187 = vmul.f32 %v1028, %v2154
        %v2188 = vmul.f32 %v1033, %v2154
        %v2189 = vmul.f32 %v1038, %v2154
        %v2190 = vmul.f32 %v1043, %v2154
        %v2191 = vmul.f32 %v1048, %v2154
        %v2192 = vmul.f32 %v1053, %v2154
        %v2193 = vmul.f32 %v1058, %v2154
        %v2194 = vmul.f32 %v1063, %v2154
        %v2195 = vmul.f32 %v1068, %v2154
        %v2196 = vmul.f32 %v1073, %v2154
        %v2197 = vmul.f32 %v1078, %v2154
        %v2198 = vmul.f32 %v1083, %v2154
        %v2199 = vmul.f32 %v1088, %v2154
        %v2200 = vmul.f32 %v1093, %v2154
        %v2201 = vmul.f32 %v1098, %v2154
        %v2202 = vmul.f32 %v1103, %v2154
        %v2203 = vmul.f32 %v1108, %v2154
        %v2204 = vmul.f32 %v1113, %v2154
        %v2205 = vmul.f32 %v1118, %v2154
        %v2206 = vmul.f32 %v1123, %v2154
        %v2207 = vmul.f32 %v1766, %v2154
        %v2208 = vmul.f32 %v1771, %v2154
        %v2209 = vmul.f32 %v2144, %v2154
        %v2210 = vmul.f32 %v2149, %v2154
        %v2211 = vadd.f32 %v2085, %v2155
        %v2212 = vadd.f32 %v2086, %v2156
        %v2213 = vadd.f32 %v2087, %v2157
        %v2214 = vadd.f32 %v2088, %v2158
        %v2215 = vadd.f32 %v2089, %v2159
        %v2216 = vadd.f32 %v2090, %v2160
        %v2217 = vadd.f32 %v2091, %v2161
        %v2218 = vadd.f32 %v2092, %v2162
        %v2219 = vadd.f32 %v2093, %v2163
        %v2220 = vadd.f32 %v2094, %v2164
        %v2221 = vadd.f32 %v2095, %v2165
        %v2222 = vadd.f32 %v2096, %v2166
        %v2223 = vadd.f32 %v2097, %v2167
        %v2224 = vadd.f32 %v2098, %v2168
        %v2225 = vadd.f32 %v2099, %v2169
        %v2226 = vadd.f32 %v2100, %v2170
        %v2227 = vadd.f32 %v2101, %v2171
        %v2228 = vadd.f32 %v2102, %v2172
        %v2229 = vadd.f32 %v2103, %v2173
        %v2230 = vadd.f32 %v2104, %v2174
        %v2231 = vadd.f32 %v2105, %v2175
        %v2232 = vadd.f32 %v2106, %v2176
        %v2233 = vadd.f32 %v2107, %v2177
        %v2234 = vadd.f32 %v2108, %v2178
        %v2235 = vadd.f32 %v2109, %v2179
        %v2236 = vadd.f32 %v2110, %v2180
        %v2237 = vadd.f32 %v2111, %v2181
        %v2238 = vadd.f32 %v2112, %v2182
        %v2239 = vadd.f32 %v2113, %v2183
        %v2240 = vadd.f32 %v2114, %v2184
        %v2241 = vadd.f32 %v2115, %v2185
        %v2242 = vadd.f32 %v2116, %v2186
        %v2243 = vadd.f32 %v2117, %v2187
        %v2244 = vadd.f32 %v2118, %v2188
        %v2245 = vadd.f32 %v2119, %v2189
        %v2246 = vadd.f32 %v2120, %v2190
        %v2247 = vadd.f32 %v2121, %v2191
        %v2248 = vadd.f32 %v2122, %v2192
        %v2249 = vadd.f32 %v2123, %v2193
        %v2250 = vadd.f32 %v2124, %v2194
        %v2251 = vadd.f32 %v2125, %v2195
        %v2252 = vadd.f32 %v2126, %v2196
        %v2253 = vadd.f32 %v2127, %v2197
        %v2254 = vadd.f32 %v2128, %v2198
        %v2255 = vadd.f32 %v2129, %v2199
        %v2256 = vadd.f32 %v2130, %v2200
        %v2257 = vadd.f32 %v2131, %v2201
        %v2258 = vadd.f32 %v2132, %v2202
        %v2259 = vadd.f32 %v2133, %v2203
        %v2260 = vadd.f32 %v2134, %v2204
        %v2261 = vadd.f32 %v2135, %v2205
        %v2262 = vadd.f32 %v2136, %v2206
        %v2263 = vadd.f32 %v2137, %v2207
        %v2264 = vadd.f32 %v2138, %v2208
        %v2265 = vadd.f32 %v2139, %v2209
        %v2266 = vadd.f32 %v2140, %v2210
        %2268 = vset.pattern.permute.xlu0 0
        %2269 = vperm.xlu0 %2268, %v435
        %v2270 = vpop.permute.xlu0 %2269
        %2273 = vset.pattern.permute.xlu0 0
        %2274 = vperm.xlu0 %2273, %v436
        %v2275 = vpop.permute.xlu0 %2274
        %v2277 = vlaneseq
        %v2278 = vshrl.u32 %v2277, 7
        %v2279 = vsub.s32 0, %v2278
        %v2280 = vrot.slane %v447, %v2279
        %v2281 = vmul.f32 %v1264, %v2280
        %v2282 = vmul.f32 %v1269, %v2280
        %v2283 = vmul.f32 %v1274, %v2280
        %v2284 = vmul.f32 %v1279, %v2280
        %v2285 = vmul.f32 %v1284, %v2280
        %v2286 = vmul.f32 %v1289, %v2280
        %v2287 = vmul.f32 %v1294, %v2280
        %v2288 = vmul.f32 %v1299, %v2280
        %v2289 = vmul.f32 %v1304, %v2280
        %v2290 = vmul.f32 %v1309, %v2280
        %v2291 = vmul.f32 %v1314, %v2280
        %v2292 = vmul.f32 %v1319, %v2280
        %v2293 = vmul.f32 %v1324, %v2280
        %v2294 = vmul.f32 %v1329, %v2280
        %v2295 = vmul.f32 %v1334, %v2280
        %v2296 = vmul.f32 %v1339, %v2280
        %v2297 = vmul.f32 %v1344, %v2280
        %v2298 = vmul.f32 %v1349, %v2280
        %v2299 = vmul.f32 %v1354, %v2280
        %v2300 = vmul.f32 %v1359, %v2280
        %v2301 = vmul.f32 %v1364, %v2280
        %v2302 = vmul.f32 %v1369, %v2280
        %v2303 = vmul.f32 %v1374, %v2280
        %v2304 = vmul.f32 %v1379, %v2280
        %v2305 = vmul.f32 %v1384, %v2280
        %v2306 = vmul.f32 %v1389, %v2280
        %v2307 = vmul.f32 %v1394, %v2280
        %v2308 = vmul.f32 %v1399, %v2280
        %v2309 = vmul.f32 %v1404, %v2280
        %v2310 = vmul.f32 %v1409, %v2280
        %v2311 = vmul.f32 %v1414, %v2280
        %v2312 = vmul.f32 %v1419, %v2280
        %v2313 = vmul.f32 %v1424, %v2280
        %v2314 = vmul.f32 %v1429, %v2280
        %v2315 = vmul.f32 %v1434, %v2280
        %v2316 = vmul.f32 %v1439, %v2280
        %v2317 = vmul.f32 %v1444, %v2280
        %v2318 = vmul.f32 %v1449, %v2280
        %v2319 = vmul.f32 %v1454, %v2280
        %v2320 = vmul.f32 %v1459, %v2280
        %v2321 = vmul.f32 %v1464, %v2280
        %v2322 = vmul.f32 %v1469, %v2280
        %v2323 = vmul.f32 %v1474, %v2280
        %v2324 = vmul.f32 %v1479, %v2280
        %v2325 = vmul.f32 %v1484, %v2280
        %v2326 = vmul.f32 %v1489, %v2280
        %v2327 = vmul.f32 %v1494, %v2280
        %v2328 = vmul.f32 %v1499, %v2280
        %v2329 = vmul.f32 %v1504, %v2280
        %v2330 = vmul.f32 %v1509, %v2280
        %v2331 = vmul.f32 %v1514, %v2280
        %v2332 = vmul.f32 %v1519, %v2280
        %v2333 = vmul.f32 %v1892, %v2280
        %v2334 = vmul.f32 %v1897, %v2280
        %v2335 = vmul.f32 %v2270, %v2280
        %v2336 = vmul.f32 %v2275, %v2280
        %v2337 = vadd.f32 %v2211, %v2281
        %v2338 = vadd.f32 %v2212, %v2282
        %v2339 = vadd.f32 %v2213, %v2283
        %v2340 = vadd.f32 %v2214, %v2284
        %v2341 = vadd.f32 %v2215, %v2285
        %v2342 = vadd.f32 %v2216, %v2286
        %v2343 = vadd.f32 %v2217, %v2287
        %v2344 = vadd.f32 %v2218, %v2288
        %v2345 = vadd.f32 %v2219, %v2289
        %v2346 = vadd.f32 %v2220, %v2290
        %v2347 = vadd.f32 %v2221, %v2291
        %v2348 = vadd.f32 %v2222, %v2292
        %v2349 = vadd.f32 %v2223, %v2293
        %v2350 = vadd.f32 %v2224, %v2294
        %v2351 = vadd.f32 %v2225, %v2295
        %v2352 = vadd.f32 %v2226, %v2296
        %v2353 = vadd.f32 %v2227, %v2297
        %v2354 = vadd.f32 %v2228, %v2298
        %v2355 = vadd.f32 %v2229, %v2299
        %v2356 = vadd.f32 %v2230, %v2300
        %v2357 = vadd.f32 %v2231, %v2301
        %v2358 = vadd.f32 %v2232, %v2302
        %v2359 = vadd.f32 %v2233, %v2303
        %v2360 = vadd.f32 %v2234, %v2304
        %v2361 = vadd.f32 %v2235, %v2305
        %v2362 = vadd.f32 %v2236, %v2306
        %v2363 = vadd.f32 %v2237, %v2307
        %v2364 = vadd.f32 %v2238, %v2308
        %v2365 = vadd.f32 %v2239, %v2309
        %v2366 = vadd.f32 %v2240, %v2310
        %v2367 = vadd.f32 %v2241, %v2311
        %v2368 = vadd.f32 %v2242, %v2312
        %v2369 = vadd.f32 %v2243, %v2313
        %v2370 = vadd.f32 %v2244, %v2314
        %v2371 = vadd.f32 %v2245, %v2315
        %v2372 = vadd.f32 %v2246, %v2316
        %v2373 = vadd.f32 %v2247, %v2317
        %v2374 = vadd.f32 %v2248, %v2318
        %v2375 = vadd.f32 %v2249, %v2319
        %v2376 = vadd.f32 %v2250, %v2320
        %v2377 = vadd.f32 %v2251, %v2321
        %v2378 = vadd.f32 %v2252, %v2322
        %v2379 = vadd.f32 %v2253, %v2323
        %v2380 = vadd.f32 %v2254, %v2324
        %v2381 = vadd.f32 %v2255, %v2325
        %v2382 = vadd.f32 %v2256, %v2326
        %v2383 = vadd.f32 %v2257, %v2327
        %v2384 = vadd.f32 %v2258, %v2328
        %v2385 = vadd.f32 %v2259, %v2329
        %v2386 = vadd.f32 %v2260, %v2330
        %v2387 = vadd.f32 %v2261, %v2331
        %v2388 = vadd.f32 %v2262, %v2332
        %v2389 = vadd.f32 %v2263, %v2333
        %v2390 = vadd.f32 %v2264, %v2334
        %v2391 = vadd.f32 %v2265, %v2335
        %v2392 = vadd.f32 %v2266, %v2336
        %v2393 = vmul.f32 %v848, %v732
        %v2394 = vmul.f32 %v853, %v732
        %v2395 = vmul.f32 %v858, %v732
        %v2396 = vmul.f32 %v863, %v732
        %v2397 = vmul.f32 %v868, %v732
        %v2398 = vmul.f32 %v873, %v732
        %v2399 = vmul.f32 %v878, %v732
        %v2400 = vmul.f32 %v883, %v732
        %v2401 = vmul.f32 %v888, %v732
        %v2402 = vmul.f32 %v893, %v732
        %v2403 = vmul.f32 %v898, %v732
        %v2404 = vmul.f32 %v903, %v732
        %v2405 = vmul.f32 %v908, %v732
        %v2406 = vmul.f32 %v913, %v732
        %v2407 = vmul.f32 %v918, %v732
        %v2408 = vmul.f32 %v923, %v732
        %v2409 = vmul.f32 %v928, %v732
        %v2410 = vmul.f32 %v933, %v732
        %v2411 = vmul.f32 %v938, %v732
        %v2412 = vmul.f32 %v943, %v732
        %v2413 = vmul.f32 %v948, %v732
        %v2414 = vmul.f32 %v953, %v732
        %v2415 = vmul.f32 %v958, %v732
        %v2416 = vmul.f32 %v963, %v732
        %v2417 = vmul.f32 %v968, %v732
        %v2418 = vmul.f32 %v973, %v732
        %v2419 = vmul.f32 %v978, %v732
        %v2420 = vmul.f32 %v983, %v732
        %v2421 = vmul.f32 %v988, %v732
        %v2422 = vmul.f32 %v993, %v732
        %v2423 = vmul.f32 %v998, %v732
        %v2424 = vmul.f32 %v1003, %v732
        %v2425 = vmul.f32 %v1008, %v732
        %v2426 = vmul.f32 %v1013, %v732
        %v2427 = vmul.f32 %v1018, %v732
        %v2428 = vmul.f32 %v1023, %v732
        %v2429 = vmul.f32 %v1028, %v732
        %v2430 = vmul.f32 %v1033, %v732
        %v2431 = vmul.f32 %v1038, %v732
        %v2432 = vmul.f32 %v1043, %v732
        %v2433 = vmul.f32 %v1048, %v732
        %v2434 = vmul.f32 %v1053, %v732
        %v2435 = vmul.f32 %v1058, %v732
        %v2436 = vmul.f32 %v1063, %v732
        %v2437 = vmul.f32 %v1068, %v732
        %v2438 = vmul.f32 %v1073, %v732
        %v2439 = vmul.f32 %v1078, %v732
        %v2440 = vmul.f32 %v1083, %v732
        %v2441 = vmul.f32 %v1088, %v732
        %v2442 = vmul.f32 %v1093, %v732
        %v2443 = vmul.f32 %v1098, %v732
        %v2444 = vmul.f32 %v1103, %v732
        %v2445 = vmul.f32 %v1108, %v732
        %v2446 = vmul.f32 %v1113, %v732
        %v2447 = vmul.f32 %v1118, %v732
        %v2448 = vmul.f32 %v1123, %v732
        %v2449 = vadd.f32 %v2393, 0.0
        %v2450 = vadd.f32 %v2394, 0.0
        %v2451 = vadd.f32 %v2395, 0.0
        %v2452 = vadd.f32 %v2396, 0.0
        %v2453 = vadd.f32 %v2397, 0.0
        %v2454 = vadd.f32 %v2398, 0.0
        %v2455 = vadd.f32 %v2399, 0.0
        %v2456 = vadd.f32 %v2400, 0.0
        %v2457 = vadd.f32 %v2401, 0.0
        %v2458 = vadd.f32 %v2402, 0.0
        %v2459 = vadd.f32 %v2403, 0.0
        %v2460 = vadd.f32 %v2404, 0.0
        %v2461 = vadd.f32 %v2405, 0.0
        %v2462 = vadd.f32 %v2406, 0.0
        %v2463 = vadd.f32 %v2407, 0.0
        %v2464 = vadd.f32 %v2408, 0.0
        %v2465 = vadd.f32 %v2409, 0.0
        %v2466 = vadd.f32 %v2410, 0.0
        %v2467 = vadd.f32 %v2411, 0.0
        %v2468 = vadd.f32 %v2412, 0.0
        %v2469 = vadd.f32 %v2413, 0.0
        %v2470 = vadd.f32 %v2414, 0.0
        %v2471 = vadd.f32 %v2415, 0.0
        %v2472 = vadd.f32 %v2416, 0.0
        %v2473 = vadd.f32 %v2417, 0.0
        %v2474 = vadd.f32 %v2418, 0.0
        %v2475 = vadd.f32 %v2419, 0.0
        %v2476 = vadd.f32 %v2420, 0.0
        %v2477 = vadd.f32 %v2421, 0.0
        %v2478 = vadd.f32 %v2422, 0.0
        %v2479 = vadd.f32 %v2423, 0.0
        %v2480 = vadd.f32 %v2424, 0.0
        %v2481 = vadd.f32 %v2425, 0.0
        %v2482 = vadd.f32 %v2426, 0.0
        %v2483 = vadd.f32 %v2427, 0.0
        %v2484 = vadd.f32 %v2428, 0.0
        %v2485 = vadd.f32 %v2429, 0.0
        %v2486 = vadd.f32 %v2430, 0.0
        %v2487 = vadd.f32 %v2431, 0.0
        %v2488 = vadd.f32 %v2432, 0.0
        %v2489 = vadd.f32 %v2433, 0.0
        %v2490 = vadd.f32 %v2434, 0.0
        %v2491 = vadd.f32 %v2435, 0.0
        %v2492 = vadd.f32 %v2436, 0.0
        %v2493 = vadd.f32 %v2437, 0.0
        %v2494 = vadd.f32 %v2438, 0.0
        %v2495 = vadd.f32 %v2439, 0.0
        %v2496 = vadd.f32 %v2440, 0.0
        %v2497 = vadd.f32 %v2441, 0.0
        %v2498 = vadd.f32 %v2442, 0.0
        %v2499 = vadd.f32 %v2443, 0.0
        %v2500 = vadd.f32 %v2444, 0.0
        %v2501 = vadd.f32 %v2445, 0.0
        %v2502 = vadd.f32 %v2446, 0.0
        %v2503 = vadd.f32 %v2447, 0.0
        %v2504 = vadd.f32 %v2448, 0.0
        %v2505 = vmul.f32 %v1244, %v1128
        %v2506 = vmul.f32 %v1249, %v1128
        %v2507 = vmul.f32 %v1254, %v1128
        %v2508 = vmul.f32 %v1259, %v1128
        %v2509 = vmul.f32 %v1264, %v1128
        %v2510 = vmul.f32 %v1269, %v1128
        %v2511 = vmul.f32 %v1274, %v1128
        %v2512 = vmul.f32 %v1279, %v1128
        %v2513 = vmul.f32 %v1284, %v1128
        %v2514 = vmul.f32 %v1289, %v1128
        %v2515 = vmul.f32 %v1294, %v1128
        %v2516 = vmul.f32 %v1299, %v1128
        %v2517 = vmul.f32 %v1304, %v1128
        %v2518 = vmul.f32 %v1309, %v1128
        %v2519 = vmul.f32 %v1314, %v1128
        %v2520 = vmul.f32 %v1319, %v1128
        %v2521 = vmul.f32 %v1324, %v1128
        %v2522 = vmul.f32 %v1329, %v1128
        %v2523 = vmul.f32 %v1334, %v1128
        %v2524 = vmul.f32 %v1339, %v1128
        %v2525 = vmul.f32 %v1344, %v1128
        %v2526 = vmul.f32 %v1349, %v1128
        %v2527 = vmul.f32 %v1354, %v1128
        %v2528 = vmul.f32 %v1359, %v1128
        %v2529 = vmul.f32 %v1364, %v1128
        %v2530 = vmul.f32 %v1369, %v1128
        %v2531 = vmul.f32 %v1374, %v1128
        %v2532 = vmul.f32 %v1379, %v1128
        %v2533 = vmul.f32 %v1384, %v1128
        %v2534 = vmul.f32 %v1389, %v1128
        %v2535 = vmul.f32 %v1394, %v1128
        %v2536 = vmul.f32 %v1399, %v1128
        %v2537 = vmul.f32 %v1404, %v1128
        %v2538 = vmul.f32 %v1409, %v1128
        %v2539 = vmul.f32 %v1414, %v1128
        %v2540 = vmul.f32 %v1419, %v1128
        %v2541 = vmul.f32 %v1424, %v1128
        %v2542 = vmul.f32 %v1429, %v1128
        %v2543 = vmul.f32 %v1434, %v1128
        %v2544 = vmul.f32 %v1439, %v1128
        %v2545 = vmul.f32 %v1444, %v1128
        %v2546 = vmul.f32 %v1449, %v1128
        %v2547 = vmul.f32 %v1454, %v1128
        %v2548 = vmul.f32 %v1459, %v1128
        %v2549 = vmul.f32 %v1464, %v1128
        %v2550 = vmul.f32 %v1469, %v1128
        %v2551 = vmul.f32 %v1474, %v1128
        %v2552 = vmul.f32 %v1479, %v1128
        %v2553 = vmul.f32 %v1484, %v1128
        %v2554 = vmul.f32 %v1489, %v1128
        %v2555 = vmul.f32 %v1494, %v1128
        %v2556 = vmul.f32 %v1499, %v1128
        %v2557 = vmul.f32 %v1504, %v1128
        %v2558 = vmul.f32 %v1509, %v1128
        %v2559 = vmul.f32 %v1514, %v1128
        %v2560 = vmul.f32 %v1519, %v1128
        %v2561 = vadd.f32 %v2449, %v2505
        %v2562 = vadd.f32 %v2450, %v2506
        %v2563 = vadd.f32 %v2451, %v2507
        %v2564 = vadd.f32 %v2452, %v2508
        %v2565 = vadd.f32 %v2453, %v2509
        %v2566 = vadd.f32 %v2454, %v2510
        %v2567 = vadd.f32 %v2455, %v2511
        %v2568 = vadd.f32 %v2456, %v2512
        %v2569 = vadd.f32 %v2457, %v2513
        %v2570 = vadd.f32 %v2458, %v2514
        %v2571 = vadd.f32 %v2459, %v2515
        %v2572 = vadd.f32 %v2460, %v2516
        %v2573 = vadd.f32 %v2461, %v2517
        %v2574 = vadd.f32 %v2462, %v2518
        %v2575 = vadd.f32 %v2463, %v2519
        %v2576 = vadd.f32 %v2464, %v2520
        %v2577 = vadd.f32 %v2465, %v2521
        %v2578 = vadd.f32 %v2466, %v2522
        %v2579 = vadd.f32 %v2467, %v2523
        %v2580 = vadd.f32 %v2468, %v2524
        %v2581 = vadd.f32 %v2469, %v2525
        %v2582 = vadd.f32 %v2470, %v2526
        %v2583 = vadd.f32 %v2471, %v2527
        %v2584 = vadd.f32 %v2472, %v2528
        %v2585 = vadd.f32 %v2473, %v2529
        %v2586 = vadd.f32 %v2474, %v2530
        %v2587 = vadd.f32 %v2475, %v2531
        %v2588 = vadd.f32 %v2476, %v2532
        %v2589 = vadd.f32 %v2477, %v2533
        %v2590 = vadd.f32 %v2478, %v2534
        %v2591 = vadd.f32 %v2479, %v2535
        %v2592 = vadd.f32 %v2480, %v2536
        %v2593 = vadd.f32 %v2481, %v2537
        %v2594 = vadd.f32 %v2482, %v2538
        %v2595 = vadd.f32 %v2483, %v2539
        %v2596 = vadd.f32 %v2484, %v2540
        %v2597 = vadd.f32 %v2485, %v2541
        %v2598 = vadd.f32 %v2486, %v2542
        %v2599 = vadd.f32 %v2487, %v2543
        %v2600 = vadd.f32 %v2488, %v2544
        %v2601 = vadd.f32 %v2489, %v2545
        %v2602 = vadd.f32 %v2490, %v2546
        %v2603 = vadd.f32 %v2491, %v2547
        %v2604 = vadd.f32 %v2492, %v2548
        %v2605 = vadd.f32 %v2493, %v2549
        %v2606 = vadd.f32 %v2494, %v2550
        %v2607 = vadd.f32 %v2495, %v2551
        %v2608 = vadd.f32 %v2496, %v2552
        %v2609 = vadd.f32 %v2497, %v2553
        %v2610 = vadd.f32 %v2498, %v2554
        %v2611 = vadd.f32 %v2499, %v2555
        %v2612 = vadd.f32 %v2500, %v2556
        %v2613 = vadd.f32 %v2501, %v2557
        %v2614 = vadd.f32 %v2502, %v2558
        %v2615 = vadd.f32 %v2503, %v2559
        %v2616 = vadd.f32 %v2504, %v2560
        %2618 = vset.pattern.permute.xlu0 0
        %2619 = vperm.xlu0 %2618, %v205
        %v2620 = vpop.permute.xlu0 %2619
        %2623 = vset.pattern.permute.xlu0 0
        %2624 = vperm.xlu0 %2623, %v206
        %v2625 = vpop.permute.xlu0 %2624
        %2628 = vset.pattern.permute.xlu0 0
        %2629 = vperm.xlu0 %2628, %v213
        %v2630 = vpop.permute.xlu0 %2629
        %2633 = vset.pattern.permute.xlu0 0
        %2634 = vperm.xlu0 %2633, %v214
        %v2635 = vpop.permute.xlu0 %2634
        %2638 = vset.pattern.permute.xlu0 0
        %2639 = vperm.xlu0 %2638, %v221
        %v2640 = vpop.permute.xlu0 %2639
        %2643 = vset.pattern.permute.xlu0 0
        %2644 = vperm.xlu0 %2643, %v222
        %v2645 = vpop.permute.xlu0 %2644
        %2648 = vset.pattern.permute.xlu0 0
        %2649 = vperm.xlu0 %2648, %v229
        %v2650 = vpop.permute.xlu0 %2649
        %2653 = vset.pattern.permute.xlu0 0
        %2654 = vperm.xlu0 %2653, %v230
        %v2655 = vpop.permute.xlu0 %2654
        %2658 = vset.pattern.permute.xlu0 0
        %2659 = vperm.xlu0 %2658, %v237
        %v2660 = vpop.permute.xlu0 %2659
        %2663 = vset.pattern.permute.xlu0 0
        %2664 = vperm.xlu0 %2663, %v238
        %v2665 = vpop.permute.xlu0 %2664
        %2668 = vset.pattern.permute.xlu0 0
        %2669 = vperm.xlu0 %2668, %v245
        %v2670 = vpop.permute.xlu0 %2669
        %2673 = vset.pattern.permute.xlu0 0
        %2674 = vperm.xlu0 %2673, %v246
        %v2675 = vpop.permute.xlu0 %2674
        %2678 = vset.pattern.permute.xlu0 0
        %2679 = vperm.xlu0 %2678, %v253
        %v2680 = vpop.permute.xlu0 %2679
        %2683 = vset.pattern.permute.xlu0 0
        %2684 = vperm.xlu0 %2683, %v254
        %v2685 = vpop.permute.xlu0 %2684
        %2688 = vset.pattern.permute.xlu0 0
        %2689 = vperm.xlu0 %2688, %v261
        %v2690 = vpop.permute.xlu0 %2689
        %2693 = vset.pattern.permute.xlu0 0
        %2694 = vperm.xlu0 %2693, %v262
        %v2695 = vpop.permute.xlu0 %2694
        %2698 = vset.pattern.permute.xlu0 0
        %2699 = vperm.xlu0 %2698, %v269
        %v2700 = vpop.permute.xlu0 %2699
        %2703 = vset.pattern.permute.xlu0 0
        %2704 = vperm.xlu0 %2703, %v270
        %v2705 = vpop.permute.xlu0 %2704
        %2708 = vset.pattern.permute.xlu0 0
        %2709 = vperm.xlu0 %2708, %v277
        %v2710 = vpop.permute.xlu0 %2709
        %2713 = vset.pattern.permute.xlu0 0
        %2714 = vperm.xlu0 %2713, %v278
        %v2715 = vpop.permute.xlu0 %2714
        %2718 = vset.pattern.permute.xlu0 0
        %2719 = vperm.xlu0 %2718, %v285
        %v2720 = vpop.permute.xlu0 %2719
        %2723 = vset.pattern.permute.xlu0 0
        %2724 = vperm.xlu0 %2723, %v286
        %v2725 = vpop.permute.xlu0 %2724
        %2728 = vset.pattern.permute.xlu0 0
        %2729 = vperm.xlu0 %2728, %v293
        %v2730 = vpop.permute.xlu0 %2729
        %2733 = vset.pattern.permute.xlu0 0
        %2734 = vperm.xlu0 %2733, %v294
        %v2735 = vpop.permute.xlu0 %2734
        %2738 = vset.pattern.permute.xlu0 0
        %2739 = vperm.xlu0 %2738, %v301
        %v2740 = vpop.permute.xlu0 %2739
        %2743 = vset.pattern.permute.xlu0 0
        %2744 = vperm.xlu0 %2743, %v302
        %v2745 = vpop.permute.xlu0 %2744
        %2748 = vset.pattern.permute.xlu0 0
        %2749 = vperm.xlu0 %2748, %v309
        %v2750 = vpop.permute.xlu0 %2749
        %2753 = vset.pattern.permute.xlu0 0
        %2754 = vperm.xlu0 %2753, %v310
        %v2755 = vpop.permute.xlu0 %2754
        %2758 = vset.pattern.permute.xlu0 0
        %2759 = vperm.xlu0 %2758, %v317
        %v2760 = vpop.permute.xlu0 %2759
        %2763 = vset.pattern.permute.xlu0 0
        %2764 = vperm.xlu0 %2763, %v318
        %v2765 = vpop.permute.xlu0 %2764
        %2768 = vset.pattern.permute.xlu0 0
        %2769 = vperm.xlu0 %2768, %v325
        %v2770 = vpop.permute.xlu0 %2769
        %2773 = vset.pattern.permute.xlu0 0
        %2774 = vperm.xlu0 %2773, %v326
        %v2775 = vpop.permute.xlu0 %2774
        %2778 = vset.pattern.permute.xlu0 0
        %2779 = vperm.xlu0 %2778, %v333
        %v2780 = vpop.permute.xlu0 %2779
        %2783 = vset.pattern.permute.xlu0 0
        %2784 = vperm.xlu0 %2783, %v334
        %v2785 = vpop.permute.xlu0 %2784
        %2788 = vset.pattern.permute.xlu0 0
        %2789 = vperm.xlu0 %2788, %v341
        %v2790 = vpop.permute.xlu0 %2789
        %2793 = vset.pattern.permute.xlu0 0
        %2794 = vperm.xlu0 %2793, %v342
        %v2795 = vpop.permute.xlu0 %2794
        %2798 = vset.pattern.permute.xlu0 0
        %2799 = vperm.xlu0 %2798, %v349
        %v2800 = vpop.permute.xlu0 %2799
        %2803 = vset.pattern.permute.xlu0 0
        %2804 = vperm.xlu0 %2803, %v350
        %v2805 = vpop.permute.xlu0 %2804
        %2808 = vset.pattern.permute.xlu0 0
        %2809 = vperm.xlu0 %2808, %v357
        %v2810 = vpop.permute.xlu0 %2809
        %2813 = vset.pattern.permute.xlu0 0
        %2814 = vperm.xlu0 %2813, %v358
        %v2815 = vpop.permute.xlu0 %2814
        %2818 = vset.pattern.permute.xlu0 0
        %2819 = vperm.xlu0 %2818, %v365
        %v2820 = vpop.permute.xlu0 %2819
        %2823 = vset.pattern.permute.xlu0 0
        %2824 = vperm.xlu0 %2823, %v366
        %v2825 = vpop.permute.xlu0 %2824
        %2828 = vset.pattern.permute.xlu0 0
        %2829 = vperm.xlu0 %2828, %v373
        %v2830 = vpop.permute.xlu0 %2829
        %2833 = vset.pattern.permute.xlu0 0
        %2834 = vperm.xlu0 %2833, %v374
        %v2835 = vpop.permute.xlu0 %2834
        %2838 = vset.pattern.permute.xlu0 0
        %2839 = vperm.xlu0 %2838, %v381
        %v2840 = vpop.permute.xlu0 %2839
        %2843 = vset.pattern.permute.xlu0 0
        %2844 = vperm.xlu0 %2843, %v382
        %v2845 = vpop.permute.xlu0 %2844
        %2848 = vset.pattern.permute.xlu0 0
        %2849 = vperm.xlu0 %2848, %v389
        %v2850 = vpop.permute.xlu0 %2849
        %2853 = vset.pattern.permute.xlu0 0
        %2854 = vperm.xlu0 %2853, %v390
        %v2855 = vpop.permute.xlu0 %2854
        %2858 = vset.pattern.permute.xlu0 0
        %2859 = vperm.xlu0 %2858, %v397
        %v2860 = vpop.permute.xlu0 %2859
        %2863 = vset.pattern.permute.xlu0 0
        %2864 = vperm.xlu0 %2863, %v398
        %v2865 = vpop.permute.xlu0 %2864
        %2868 = vset.pattern.permute.xlu0 0
        %2869 = vperm.xlu0 %2868, %v405
        %v2870 = vpop.permute.xlu0 %2869
        %2873 = vset.pattern.permute.xlu0 0
        %2874 = vperm.xlu0 %2873, %v406
        %v2875 = vpop.permute.xlu0 %2874
        %2878 = vset.pattern.permute.xlu0 0
        %2879 = vperm.xlu0 %2878, %v413
        %v2880 = vpop.permute.xlu0 %2879
        %2883 = vset.pattern.permute.xlu0 0
        %2884 = vperm.xlu0 %2883, %v414
        %v2885 = vpop.permute.xlu0 %2884
        %2888 = vset.pattern.permute.xlu0 0
        %2889 = vperm.xlu0 %2888, %v421
        %v2890 = vpop.permute.xlu0 %2889
        %2893 = vset.pattern.permute.xlu0 0
        %2894 = vperm.xlu0 %2893, %v422
        %v2895 = vpop.permute.xlu0 %2894
        %v2897 = vmul.f32 %v2620, %v1524
        %v2898 = vmul.f32 %v2625, %v1524
        %v2899 = vmul.f32 %v2630, %v1524
        %v2900 = vmul.f32 %v2635, %v1524
        %v2901 = vmul.f32 %v2640, %v1524
        %v2902 = vmul.f32 %v2645, %v1524
        %v2903 = vmul.f32 %v2650, %v1524
        %v2904 = vmul.f32 %v2655, %v1524
        %v2905 = vmul.f32 %v2660, %v1524
        %v2906 = vmul.f32 %v2665, %v1524
        %v2907 = vmul.f32 %v2670, %v1524
        %v2908 = vmul.f32 %v2675, %v1524
        %v2909 = vmul.f32 %v2680, %v1524
        %v2910 = vmul.f32 %v2685, %v1524
        %v2911 = vmul.f32 %v2690, %v1524
        %v2912 = vmul.f32 %v2695, %v1524
        %v2913 = vmul.f32 %v2700, %v1524
        %v2914 = vmul.f32 %v2705, %v1524
        %v2915 = vmul.f32 %v2710, %v1524
        %v2916 = vmul.f32 %v2715, %v1524
        %v2917 = vmul.f32 %v2720, %v1524
        %v2918 = vmul.f32 %v2725, %v1524
        %v2919 = vmul.f32 %v2730, %v1524
        %v2920 = vmul.f32 %v2735, %v1524
        %v2921 = vmul.f32 %v2740, %v1524
        %v2922 = vmul.f32 %v2745, %v1524
        %v2923 = vmul.f32 %v2750, %v1524
        %v2924 = vmul.f32 %v2755, %v1524
        %v2925 = vmul.f32 %v2760, %v1524
        %v2926 = vmul.f32 %v2765, %v1524
        %v2927 = vmul.f32 %v2770, %v1524
        %v2928 = vmul.f32 %v2775, %v1524
        %v2929 = vmul.f32 %v2780, %v1524
        %v2930 = vmul.f32 %v2785, %v1524
        %v2931 = vmul.f32 %v2790, %v1524
        %v2932 = vmul.f32 %v2795, %v1524
        %v2933 = vmul.f32 %v2800, %v1524
        %v2934 = vmul.f32 %v2805, %v1524
        %v2935 = vmul.f32 %v2810, %v1524
        %v2936 = vmul.f32 %v2815, %v1524
        %v2937 = vmul.f32 %v2820, %v1524
        %v2938 = vmul.f32 %v2825, %v1524
        %v2939 = vmul.f32 %v2830, %v1524
        %v2940 = vmul.f32 %v2835, %v1524
        %v2941 = vmul.f32 %v2840, %v1524
        %v2942 = vmul.f32 %v2845, %v1524
        %v2943 = vmul.f32 %v2850, %v1524
        %v2944 = vmul.f32 %v2855, %v1524
        %v2945 = vmul.f32 %v2860, %v1524
        %v2946 = vmul.f32 %v2865, %v1524
        %v2947 = vmul.f32 %v2870, %v1524
        %v2948 = vmul.f32 %v2875, %v1524
        %v2949 = vmul.f32 %v2880, %v1524
        %v2950 = vmul.f32 %v2885, %v1524
        %v2951 = vmul.f32 %v2890, %v1524
        %v2952 = vmul.f32 %v2895, %v1524
        %v2953 = vadd.f32 %v2561, %v2897
        %v2954 = vadd.f32 %v2562, %v2898
        %v2955 = vadd.f32 %v2563, %v2899
        %v2956 = vadd.f32 %v2564, %v2900
        %v2957 = vadd.f32 %v2565, %v2901
        %v2958 = vadd.f32 %v2566, %v2902
        %v2959 = vadd.f32 %v2567, %v2903
        %v2960 = vadd.f32 %v2568, %v2904
        %v2961 = vadd.f32 %v2569, %v2905
        %v2962 = vadd.f32 %v2570, %v2906
        %v2963 = vadd.f32 %v2571, %v2907
        %v2964 = vadd.f32 %v2572, %v2908
        %v2965 = vadd.f32 %v2573, %v2909
        %v2966 = vadd.f32 %v2574, %v2910
        %v2967 = vadd.f32 %v2575, %v2911
        %v2968 = vadd.f32 %v2576, %v2912
        %v2969 = vadd.f32 %v2577, %v2913
        %v2970 = vadd.f32 %v2578, %v2914
        %v2971 = vadd.f32 %v2579, %v2915
        %v2972 = vadd.f32 %v2580, %v2916
        %v2973 = vadd.f32 %v2581, %v2917
        %v2974 = vadd.f32 %v2582, %v2918
        %v2975 = vadd.f32 %v2583, %v2919
        %v2976 = vadd.f32 %v2584, %v2920
        %v2977 = vadd.f32 %v2585, %v2921
        %v2978 = vadd.f32 %v2586, %v2922
        %v2979 = vadd.f32 %v2587, %v2923
        %v2980 = vadd.f32 %v2588, %v2924
        %v2981 = vadd.f32 %v2589, %v2925
        %v2982 = vadd.f32 %v2590, %v2926
        %v2983 = vadd.f32 %v2591, %v2927
        %v2984 = vadd.f32 %v2592, %v2928
        %v2985 = vadd.f32 %v2593, %v2929
        %v2986 = vadd.f32 %v2594, %v2930
        %v2987 = vadd.f32 %v2595, %v2931
        %v2988 = vadd.f32 %v2596, %v2932
        %v2989 = vadd.f32 %v2597, %v2933
        %v2990 = vadd.f32 %v2598, %v2934
        %v2991 = vadd.f32 %v2599, %v2935
        %v2992 = vadd.f32 %v2600, %v2936
        %v2993 = vadd.f32 %v2601, %v2937
        %v2994 = vadd.f32 %v2602, %v2938
        %v2995 = vadd.f32 %v2603, %v2939
        %v2996 = vadd.f32 %v2604, %v2940
        %v2997 = vadd.f32 %v2605, %v2941
        %v2998 = vadd.f32 %v2606, %v2942
        %v2999 = vadd.f32 %v2607, %v2943
        %v3000 = vadd.f32 %v2608, %v2944
        %v3001 = vadd.f32 %v2609, %v2945
        %v3002 = vadd.f32 %v2610, %v2946
        %v3003 = vadd.f32 %v2611, %v2947
        %v3004 = vadd.f32 %v2612, %v2948
        %v3005 = vadd.f32 %v2613, %v2949
        %v3006 = vadd.f32 %v2614, %v2950
        %v3007 = vadd.f32 %v2615, %v2951
        %v3008 = vadd.f32 %v2616, %v2952
        %v3009 = vmul.f32 %v858, %v1650
        %v3010 = vmul.f32 %v863, %v1650
        %v3011 = vmul.f32 %v868, %v1650
        %v3012 = vmul.f32 %v873, %v1650
        %v3013 = vmul.f32 %v878, %v1650
        %v3014 = vmul.f32 %v883, %v1650
        %v3015 = vmul.f32 %v888, %v1650
        %v3016 = vmul.f32 %v893, %v1650
        %v3017 = vmul.f32 %v898, %v1650
        %v3018 = vmul.f32 %v903, %v1650
        %v3019 = vmul.f32 %v908, %v1650
        %v3020 = vmul.f32 %v913, %v1650
        %v3021 = vmul.f32 %v918, %v1650
        %v3022 = vmul.f32 %v923, %v1650
        %v3023 = vmul.f32 %v928, %v1650
        %v3024 = vmul.f32 %v933, %v1650
        %v3025 = vmul.f32 %v938, %v1650
        %v3026 = vmul.f32 %v943, %v1650
        %v3027 = vmul.f32 %v948, %v1650
        %v3028 = vmul.f32 %v953, %v1650
        %v3029 = vmul.f32 %v958, %v1650
        %v3030 = vmul.f32 %v963, %v1650
        %v3031 = vmul.f32 %v968, %v1650
        %v3032 = vmul.f32 %v973, %v1650
        %v3033 = vmul.f32 %v978, %v1650
        %v3034 = vmul.f32 %v983, %v1650
        %v3035 = vmul.f32 %v988, %v1650
        %v3036 = vmul.f32 %v993, %v1650
        %v3037 = vmul.f32 %v998, %v1650
        %v3038 = vmul.f32 %v1003, %v1650
        %v3039 = vmul.f32 %v1008, %v1650
        %v3040 = vmul.f32 %v1013, %v1650
        %v3041 = vmul.f32 %v1018, %v1650
        %v3042 = vmul.f32 %v1023, %v1650
        %v3043 = vmul.f32 %v1028, %v1650
        %v3044 = vmul.f32 %v1033, %v1650
        %v3045 = vmul.f32 %v1038, %v1650
        %v3046 = vmul.f32 %v1043, %v1650
        %v3047 = vmul.f32 %v1048, %v1650
        %v3048 = vmul.f32 %v1053, %v1650
        %v3049 = vmul.f32 %v1058, %v1650
        %v3050 = vmul.f32 %v1063, %v1650
        %v3051 = vmul.f32 %v1068, %v1650
        %v3052 = vmul.f32 %v1073, %v1650
        %v3053 = vmul.f32 %v1078, %v1650
        %v3054 = vmul.f32 %v1083, %v1650
        %v3055 = vmul.f32 %v1088, %v1650
        %v3056 = vmul.f32 %v1093, %v1650
        %v3057 = vmul.f32 %v1098, %v1650
        %v3058 = vmul.f32 %v1103, %v1650
        %v3059 = vmul.f32 %v1108, %v1650
        %v3060 = vmul.f32 %v1113, %v1650
        %v3061 = vmul.f32 %v1118, %v1650
        %v3062 = vmul.f32 %v1123, %v1650
        %v3063 = vmul.f32 %v1766, %v1650
        %v3064 = vmul.f32 %v1771, %v1650
        %v3065 = vadd.f32 %v2953, %v3009
        %v3066 = vadd.f32 %v2954, %v3010
        %v3067 = vadd.f32 %v2955, %v3011
        %v3068 = vadd.f32 %v2956, %v3012
        %v3069 = vadd.f32 %v2957, %v3013
        %v3070 = vadd.f32 %v2958, %v3014
        %v3071 = vadd.f32 %v2959, %v3015
        %v3072 = vadd.f32 %v2960, %v3016
        %v3073 = vadd.f32 %v2961, %v3017
        %v3074 = vadd.f32 %v2962, %v3018
        %v3075 = vadd.f32 %v2963, %v3019
        %v3076 = vadd.f32 %v2964, %v3020
        %v3077 = vadd.f32 %v2965, %v3021
        %v3078 = vadd.f32 %v2966, %v3022
        %v3079 = vadd.f32 %v2967, %v3023
        %v3080 = vadd.f32 %v2968, %v3024
        %v3081 = vadd.f32 %v2969, %v3025
        %v3082 = vadd.f32 %v2970, %v3026
        %v3083 = vadd.f32 %v2971, %v3027
        %v3084 = vadd.f32 %v2972, %v3028
        %v3085 = vadd.f32 %v2973, %v3029
        %v3086 = vadd.f32 %v2974, %v3030
        %v3087 = vadd.f32 %v2975, %v3031
        %v3088 = vadd.f32 %v2976, %v3032
        %v3089 = vadd.f32 %v2977, %v3033
        %v3090 = vadd.f32 %v2978, %v3034
        %v3091 = vadd.f32 %v2979, %v3035
        %v3092 = vadd.f32 %v2980, %v3036
        %v3093 = vadd.f32 %v2981, %v3037
        %v3094 = vadd.f32 %v2982, %v3038
        %v3095 = vadd.f32 %v2983, %v3039
        %v3096 = vadd.f32 %v2984, %v3040
        %v3097 = vadd.f32 %v2985, %v3041
        %v3098 = vadd.f32 %v2986, %v3042
        %v3099 = vadd.f32 %v2987, %v3043
        %v3100 = vadd.f32 %v2988, %v3044
        %v3101 = vadd.f32 %v2989, %v3045
        %v3102 = vadd.f32 %v2990, %v3046
        %v3103 = vadd.f32 %v2991, %v3047
        %v3104 = vadd.f32 %v2992, %v3048
        %v3105 = vadd.f32 %v2993, %v3049
        %v3106 = vadd.f32 %v2994, %v3050
        %v3107 = vadd.f32 %v2995, %v3051
        %v3108 = vadd.f32 %v2996, %v3052
        %v3109 = vadd.f32 %v2997, %v3053
        %v3110 = vadd.f32 %v2998, %v3054
        %v3111 = vadd.f32 %v2999, %v3055
        %v3112 = vadd.f32 %v3000, %v3056
        %v3113 = vadd.f32 %v3001, %v3057
        %v3114 = vadd.f32 %v3002, %v3058
        %v3115 = vadd.f32 %v3003, %v3059
        %v3116 = vadd.f32 %v3004, %v3060
        %v3117 = vadd.f32 %v3005, %v3061
        %v3118 = vadd.f32 %v3006, %v3062
        %v3119 = vadd.f32 %v3007, %v3063
        %v3120 = vadd.f32 %v3008, %v3064
        %v3121 = vmul.f32 %v1254, %v1776
        %v3122 = vmul.f32 %v1259, %v1776
        %v3123 = vmul.f32 %v1264, %v1776
        %v3124 = vmul.f32 %v1269, %v1776
        %v3125 = vmul.f32 %v1274, %v1776
        %v3126 = vmul.f32 %v1279, %v1776
        %v3127 = vmul.f32 %v1284, %v1776
        %v3128 = vmul.f32 %v1289, %v1776
        %v3129 = vmul.f32 %v1294, %v1776
        %v3130 = vmul.f32 %v1299, %v1776
        %v3131 = vmul.f32 %v1304, %v1776
        %v3132 = vmul.f32 %v1309, %v1776
        %v3133 = vmul.f32 %v1314, %v1776
        %v3134 = vmul.f32 %v1319, %v1776
        %v3135 = vmul.f32 %v1324, %v1776
        %v3136 = vmul.f32 %v1329, %v1776
        %v3137 = vmul.f32 %v1334, %v1776
        %v3138 = vmul.f32 %v1339, %v1776
        %v3139 = vmul.f32 %v1344, %v1776
        %v3140 = vmul.f32 %v1349, %v1776
        %v3141 = vmul.f32 %v1354, %v1776
        %v3142 = vmul.f32 %v1359, %v1776
        %v3143 = vmul.f32 %v1364, %v1776
        %v3144 = vmul.f32 %v1369, %v1776
        %v3145 = vmul.f32 %v1374, %v1776
        %v3146 = vmul.f32 %v1379, %v1776
        %v3147 = vmul.f32 %v1384, %v1776
        %v3148 = vmul.f32 %v1389, %v1776
        %v3149 = vmul.f32 %v1394, %v1776
        %v3150 = vmul.f32 %v1399, %v1776
        %v3151 = vmul.f32 %v1404, %v1776
        %v3152 = vmul.f32 %v1409, %v1776
        %v3153 = vmul.f32 %v1414, %v1776
        %v3154 = vmul.f32 %v1419, %v1776
        %v3155 = vmul.f32 %v1424, %v1776
        %v3156 = vmul.f32 %v1429, %v1776
        %v3157 = vmul.f32 %v1434, %v1776
        %v3158 = vmul.f32 %v1439, %v1776
        %v3159 = vmul.f32 %v1444, %v1776
        %v3160 = vmul.f32 %v1449, %v1776
        %v3161 = vmul.f32 %v1454, %v1776
        %v3162 = vmul.f32 %v1459, %v1776
        %v3163 = vmul.f32 %v1464, %v1776
        %v3164 = vmul.f32 %v1469, %v1776
        %v3165 = vmul.f32 %v1474, %v1776
        %v3166 = vmul.f32 %v1479, %v1776
        %v3167 = vmul.f32 %v1484, %v1776
        %v3168 = vmul.f32 %v1489, %v1776
        %v3169 = vmul.f32 %v1494, %v1776
        %v3170 = vmul.f32 %v1499, %v1776
        %v3171 = vmul.f32 %v1504, %v1776
        %v3172 = vmul.f32 %v1509, %v1776
        %v3173 = vmul.f32 %v1514, %v1776
        %v3174 = vmul.f32 %v1519, %v1776
        %v3175 = vmul.f32 %v1892, %v1776
        %v3176 = vmul.f32 %v1897, %v1776
        %v3177 = vadd.f32 %v3065, %v3121
        %v3178 = vadd.f32 %v3066, %v3122
        %v3179 = vadd.f32 %v3067, %v3123
        %v3180 = vadd.f32 %v3068, %v3124
        %v3181 = vadd.f32 %v3069, %v3125
        %v3182 = vadd.f32 %v3070, %v3126
        %v3183 = vadd.f32 %v3071, %v3127
        %v3184 = vadd.f32 %v3072, %v3128
        %v3185 = vadd.f32 %v3073, %v3129
        %v3186 = vadd.f32 %v3074, %v3130
        %v3187 = vadd.f32 %v3075, %v3131
        %v3188 = vadd.f32 %v3076, %v3132
        %v3189 = vadd.f32 %v3077, %v3133
        %v3190 = vadd.f32 %v3078, %v3134
        %v3191 = vadd.f32 %v3079, %v3135
        %v3192 = vadd.f32 %v3080, %v3136
        %v3193 = vadd.f32 %v3081, %v3137
        %v3194 = vadd.f32 %v3082, %v3138
        %v3195 = vadd.f32 %v3083, %v3139
        %v3196 = vadd.f32 %v3084, %v3140
        %v3197 = vadd.f32 %v3085, %v3141
        %v3198 = vadd.f32 %v3086, %v3142
        %v3199 = vadd.f32 %v3087, %v3143
        %v3200 = vadd.f32 %v3088, %v3144
        %v3201 = vadd.f32 %v3089, %v3145
        %v3202 = vadd.f32 %v3090, %v3146
        %v3203 = vadd.f32 %v3091, %v3147
        %v3204 = vadd.f32 %v3092, %v3148
        %v3205 = vadd.f32 %v3093, %v3149
        %v3206 = vadd.f32 %v3094, %v3150
        %v3207 = vadd.f32 %v3095, %v3151
        %v3208 = vadd.f32 %v3096, %v3152
        %v3209 = vadd.f32 %v3097, %v3153
        %v3210 = vadd.f32 %v3098, %v3154
        %v3211 = vadd.f32 %v3099, %v3155
        %v3212 = vadd.f32 %v3100, %v3156
        %v3213 = vadd.f32 %v3101, %v3157
        %v3214 = vadd.f32 %v3102, %v3158
        %v3215 = vadd.f32 %v3103, %v3159
        %v3216 = vadd.f32 %v3104, %v3160
        %v3217 = vadd.f32 %v3105, %v3161
        %v3218 = vadd.f32 %v3106, %v3162
        %v3219 = vadd.f32 %v3107, %v3163
        %v3220 = vadd.f32 %v3108, %v3164
        %v3221 = vadd.f32 %v3109, %v3165
        %v3222 = vadd.f32 %v3110, %v3166
        %v3223 = vadd.f32 %v3111, %v3167
        %v3224 = vadd.f32 %v3112, %v3168
        %v3225 = vadd.f32 %v3113, %v3169
        %v3226 = vadd.f32 %v3114, %v3170
        %v3227 = vadd.f32 %v3115, %v3171
        %v3228 = vadd.f32 %v3116, %v3172
        %v3229 = vadd.f32 %v3117, %v3173
        %v3230 = vadd.f32 %v3118, %v3174
        %v3231 = vadd.f32 %v3119, %v3175
        %v3232 = vadd.f32 %v3120, %v3176
        %3234 = vset.pattern.permute.xlu0 0
        %3235 = vperm.xlu0 %3234, %v429
        %v3236 = vpop.permute.xlu0 %3235
        %3239 = vset.pattern.permute.xlu0 0
        %3240 = vperm.xlu0 %3239, %v430
        %v3241 = vpop.permute.xlu0 %3240
        %v3243 = vmul.f32 %v2630, %v1902
        %v3244 = vmul.f32 %v2635, %v1902
        %v3245 = vmul.f32 %v2640, %v1902
        %v3246 = vmul.f32 %v2645, %v1902
        %v3247 = vmul.f32 %v2650, %v1902
        %v3248 = vmul.f32 %v2655, %v1902
        %v3249 = vmul.f32 %v2660, %v1902
        %v3250 = vmul.f32 %v2665, %v1902
        %v3251 = vmul.f32 %v2670, %v1902
        %v3252 = vmul.f32 %v2675, %v1902
        %v3253 = vmul.f32 %v2680, %v1902
        %v3254 = vmul.f32 %v2685, %v1902
        %v3255 = vmul.f32 %v2690, %v1902
        %v3256 = vmul.f32 %v2695, %v1902
        %v3257 = vmul.f32 %v2700, %v1902
        %v3258 = vmul.f32 %v2705, %v1902
        %v3259 = vmul.f32 %v2710, %v1902
        %v3260 = vmul.f32 %v2715, %v1902
        %v3261 = vmul.f32 %v2720, %v1902
        %v3262 = vmul.f32 %v2725, %v1902
        %v3263 = vmul.f32 %v2730, %v1902
        %v3264 = vmul.f32 %v2735, %v1902
        %v3265 = vmul.f32 %v2740, %v1902
        %v3266 = vmul.f32 %v2745, %v1902
        %v3267 = vmul.f32 %v2750, %v1902
        %v3268 = vmul.f32 %v2755, %v1902
        %v3269 = vmul.f32 %v2760, %v1902
        %v3270 = vmul.f32 %v2765, %v1902
        %v3271 = vmul.f32 %v2770, %v1902
        %v3272 = vmul.f32 %v2775, %v1902
        %v3273 = vmul.f32 %v2780, %v1902
        %v3274 = vmul.f32 %v2785, %v1902
        %v3275 = vmul.f32 %v2790, %v1902
        %v3276 = vmul.f32 %v2795, %v1902
        %v3277 = vmul.f32 %v2800, %v1902
        %v3278 = vmul.f32 %v2805, %v1902
        %v3279 = vmul.f32 %v2810, %v1902
        %v3280 = vmul.f32 %v2815, %v1902
        %v3281 = vmul.f32 %v2820, %v1902
        %v3282 = vmul.f32 %v2825, %v1902
        %v3283 = vmul.f32 %v2830, %v1902
        %v3284 = vmul.f32 %v2835, %v1902
        %v3285 = vmul.f32 %v2840, %v1902
        %v3286 = vmul.f32 %v2845, %v1902
        %v3287 = vmul.f32 %v2850, %v1902
        %v3288 = vmul.f32 %v2855, %v1902
        %v3289 = vmul.f32 %v2860, %v1902
        %v3290 = vmul.f32 %v2865, %v1902
        %v3291 = vmul.f32 %v2870, %v1902
        %v3292 = vmul.f32 %v2875, %v1902
        %v3293 = vmul.f32 %v2880, %v1902
        %v3294 = vmul.f32 %v2885, %v1902
        %v3295 = vmul.f32 %v2890, %v1902
        %v3296 = vmul.f32 %v2895, %v1902
        %v3297 = vmul.f32 %v3236, %v1902
        %v3298 = vmul.f32 %v3241, %v1902
        %v3299 = vadd.f32 %v3177, %v3243
        %v3300 = vadd.f32 %v3178, %v3244
        %v3301 = vadd.f32 %v3179, %v3245
        %v3302 = vadd.f32 %v3180, %v3246
        %v3303 = vadd.f32 %v3181, %v3247
        %v3304 = vadd.f32 %v3182, %v3248
        %v3305 = vadd.f32 %v3183, %v3249
        %v3306 = vadd.f32 %v3184, %v3250
        %v3307 = vadd.f32 %v3185, %v3251
        %v3308 = vadd.f32 %v3186, %v3252
        %v3309 = vadd.f32 %v3187, %v3253
        %v3310 = vadd.f32 %v3188, %v3254
        %v3311 = vadd.f32 %v3189, %v3255
        %v3312 = vadd.f32 %v3190, %v3256
        %v3313 = vadd.f32 %v3191, %v3257
        %v3314 = vadd.f32 %v3192, %v3258
        %v3315 = vadd.f32 %v3193, %v3259
        %v3316 = vadd.f32 %v3194, %v3260
        %v3317 = vadd.f32 %v3195, %v3261
        %v3318 = vadd.f32 %v3196, %v3262
        %v3319 = vadd.f32 %v3197, %v3263
        %v3320 = vadd.f32 %v3198, %v3264
        %v3321 = vadd.f32 %v3199, %v3265
        %v3322 = vadd.f32 %v3200, %v3266
        %v3323 = vadd.f32 %v3201, %v3267
        %v3324 = vadd.f32 %v3202, %v3268
        %v3325 = vadd.f32 %v3203, %v3269
        %v3326 = vadd.f32 %v3204, %v3270
        %v3327 = vadd.f32 %v3205, %v3271
        %v3328 = vadd.f32 %v3206, %v3272
        %v3329 = vadd.f32 %v3207, %v3273
        %v3330 = vadd.f32 %v3208, %v3274
        %v3331 = vadd.f32 %v3209, %v3275
        %v3332 = vadd.f32 %v3210, %v3276
        %v3333 = vadd.f32 %v3211, %v3277
        %v3334 = vadd.f32 %v3212, %v3278
        %v3335 = vadd.f32 %v3213, %v3279
        %v3336 = vadd.f32 %v3214, %v3280
        %v3337 = vadd.f32 %v3215, %v3281
        %v3338 = vadd.f32 %v3216, %v3282
        %v3339 = vadd.f32 %v3217, %v3283
        %v3340 = vadd.f32 %v3218, %v3284
        %v3341 = vadd.f32 %v3219, %v3285
        %v3342 = vadd.f32 %v3220, %v3286
        %v3343 = vadd.f32 %v3221, %v3287
        %v3344 = vadd.f32 %v3222, %v3288
        %v3345 = vadd.f32 %v3223, %v3289
        %v3346 = vadd.f32 %v3224, %v3290
        %v3347 = vadd.f32 %v3225, %v3291
        %v3348 = vadd.f32 %v3226, %v3292
        %v3349 = vadd.f32 %v3227, %v3293
        %v3350 = vadd.f32 %v3228, %v3294
        %v3351 = vadd.f32 %v3229, %v3295
        %v3352 = vadd.f32 %v3230, %v3296
        %v3353 = vadd.f32 %v3231, %v3297
        %v3354 = vadd.f32 %v3232, %v3298
        %v3355 = vmul.f32 %v868, %v2028
        %v3356 = vmul.f32 %v873, %v2028
        %v3357 = vmul.f32 %v878, %v2028
        %v3358 = vmul.f32 %v883, %v2028
        %v3359 = vmul.f32 %v888, %v2028
        %v3360 = vmul.f32 %v893, %v2028
        %v3361 = vmul.f32 %v898, %v2028
        %v3362 = vmul.f32 %v903, %v2028
        %v3363 = vmul.f32 %v908, %v2028
        %v3364 = vmul.f32 %v913, %v2028
        %v3365 = vmul.f32 %v918, %v2028
        %v3366 = vmul.f32 %v923, %v2028
        %v3367 = vmul.f32 %v928, %v2028
        %v3368 = vmul.f32 %v933, %v2028
        %v3369 = vmul.f32 %v938, %v2028
        %v3370 = vmul.f32 %v943, %v2028
        %v3371 = vmul.f32 %v948, %v2028
        %v3372 = vmul.f32 %v953, %v2028
        %v3373 = vmul.f32 %v958, %v2028
        %v3374 = vmul.f32 %v963, %v2028
        %v3375 = vmul.f32 %v968, %v2028
        %v3376 = vmul.f32 %v973, %v2028
        %v3377 = vmul.f32 %v978, %v2028
        %v3378 = vmul.f32 %v983, %v2028
        %v3379 = vmul.f32 %v988, %v2028
        %v3380 = vmul.f32 %v993, %v2028
        %v3381 = vmul.f32 %v998, %v2028
        %v3382 = vmul.f32 %v1003, %v2028
        %v3383 = vmul.f32 %v1008, %v2028
        %v3384 = vmul.f32 %v1013, %v2028
        %v3385 = vmul.f32 %v1018, %v2028
        %v3386 = vmul.f32 %v1023, %v2028
        %v3387 = vmul.f32 %v1028, %v2028
        %v3388 = vmul.f32 %v1033, %v2028
        %v3389 = vmul.f32 %v1038, %v2028
        %v3390 = vmul.f32 %v1043, %v2028
        %v3391 = vmul.f32 %v1048, %v2028
        %v3392 = vmul.f32 %v1053, %v2028
        %v3393 = vmul.f32 %v1058, %v2028
        %v3394 = vmul.f32 %v1063, %v2028
        %v3395 = vmul.f32 %v1068, %v2028
        %v3396 = vmul.f32 %v1073, %v2028
        %v3397 = vmul.f32 %v1078, %v2028
        %v3398 = vmul.f32 %v1083, %v2028
        %v3399 = vmul.f32 %v1088, %v2028
        %v3400 = vmul.f32 %v1093, %v2028
        %v3401 = vmul.f32 %v1098, %v2028
        %v3402 = vmul.f32 %v1103, %v2028
        %v3403 = vmul.f32 %v1108, %v2028
        %v3404 = vmul.f32 %v1113, %v2028
        %v3405 = vmul.f32 %v1118, %v2028
        %v3406 = vmul.f32 %v1123, %v2028
        %v3407 = vmul.f32 %v1766, %v2028
        %v3408 = vmul.f32 %v1771, %v2028
        %v3409 = vmul.f32 %v2144, %v2028
        %v3410 = vmul.f32 %v2149, %v2028
        %v3411 = vadd.f32 %v3299, %v3355
        %v3412 = vadd.f32 %v3300, %v3356
        %v3413 = vadd.f32 %v3301, %v3357
        %v3414 = vadd.f32 %v3302, %v3358
        %v3415 = vadd.f32 %v3303, %v3359
        %v3416 = vadd.f32 %v3304, %v3360
        %v3417 = vadd.f32 %v3305, %v3361
        %v3418 = vadd.f32 %v3306, %v3362
        %v3419 = vadd.f32 %v3307, %v3363
        %v3420 = vadd.f32 %v3308, %v3364
        %v3421 = vadd.f32 %v3309, %v3365
        %v3422 = vadd.f32 %v3310, %v3366
        %v3423 = vadd.f32 %v3311, %v3367
        %v3424 = vadd.f32 %v3312, %v3368
        %v3425 = vadd.f32 %v3313, %v3369
        %v3426 = vadd.f32 %v3314, %v3370
        %v3427 = vadd.f32 %v3315, %v3371
        %v3428 = vadd.f32 %v3316, %v3372
        %v3429 = vadd.f32 %v3317, %v3373
        %v3430 = vadd.f32 %v3318, %v3374
        %v3431 = vadd.f32 %v3319, %v3375
        %v3432 = vadd.f32 %v3320, %v3376
        %v3433 = vadd.f32 %v3321, %v3377
        %v3434 = vadd.f32 %v3322, %v3378
        %v3435 = vadd.f32 %v3323, %v3379
        %v3436 = vadd.f32 %v3324, %v3380
        %v3437 = vadd.f32 %v3325, %v3381
        %v3438 = vadd.f32 %v3326, %v3382
        %v3439 = vadd.f32 %v3327, %v3383
        %v3440 = vadd.f32 %v3328, %v3384
        %v3441 = vadd.f32 %v3329, %v3385
        %v3442 = vadd.f32 %v3330, %v3386
        %v3443 = vadd.f32 %v3331, %v3387
        %v3444 = vadd.f32 %v3332, %v3388
        %v3445 = vadd.f32 %v3333, %v3389
        %v3446 = vadd.f32 %v3334, %v3390
        %v3447 = vadd.f32 %v3335, %v3391
        %v3448 = vadd.f32 %v3336, %v3392
        %v3449 = vadd.f32 %v3337, %v3393
        %v3450 = vadd.f32 %v3338, %v3394
        %v3451 = vadd.f32 %v3339, %v3395
        %v3452 = vadd.f32 %v3340, %v3396
        %v3453 = vadd.f32 %v3341, %v3397
        %v3454 = vadd.f32 %v3342, %v3398
        %v3455 = vadd.f32 %v3343, %v3399
        %v3456 = vadd.f32 %v3344, %v3400
        %v3457 = vadd.f32 %v3345, %v3401
        %v3458 = vadd.f32 %v3346, %v3402
        %v3459 = vadd.f32 %v3347, %v3403
        %v3460 = vadd.f32 %v3348, %v3404
        %v3461 = vadd.f32 %v3349, %v3405
        %v3462 = vadd.f32 %v3350, %v3406
        %v3463 = vadd.f32 %v3351, %v3407
        %v3464 = vadd.f32 %v3352, %v3408
        %v3465 = vadd.f32 %v3353, %v3409
        %v3466 = vadd.f32 %v3354, %v3410
        %v3467 = vmul.f32 %v1264, %v2154
        %v3468 = vmul.f32 %v1269, %v2154
        %v3469 = vmul.f32 %v1274, %v2154
        %v3470 = vmul.f32 %v1279, %v2154
        %v3471 = vmul.f32 %v1284, %v2154
        %v3472 = vmul.f32 %v1289, %v2154
        %v3473 = vmul.f32 %v1294, %v2154
        %v3474 = vmul.f32 %v1299, %v2154
        %v3475 = vmul.f32 %v1304, %v2154
        %v3476 = vmul.f32 %v1309, %v2154
        %v3477 = vmul.f32 %v1314, %v2154
        %v3478 = vmul.f32 %v1319, %v2154
        %v3479 = vmul.f32 %v1324, %v2154
        %v3480 = vmul.f32 %v1329, %v2154
        %v3481 = vmul.f32 %v1334, %v2154
        %v3482 = vmul.f32 %v1339, %v2154
        %v3483 = vmul.f32 %v1344, %v2154
        %v3484 = vmul.f32 %v1349, %v2154
        %v3485 = vmul.f32 %v1354, %v2154
        %v3486 = vmul.f32 %v1359, %v2154
        %v3487 = vmul.f32 %v1364, %v2154
        %v3488 = vmul.f32 %v1369, %v2154
        %v3489 = vmul.f32 %v1374, %v2154
        %v3490 = vmul.f32 %v1379, %v2154
        %v3491 = vmul.f32 %v1384, %v2154
        %v3492 = vmul.f32 %v1389, %v2154
        %v3493 = vmul.f32 %v1394, %v2154
        %v3494 = vmul.f32 %v1399, %v2154
        %v3495 = vmul.f32 %v1404, %v2154
        %v3496 = vmul.f32 %v1409, %v2154
        %v3497 = vmul.f32 %v1414, %v2154
        %v3498 = vmul.f32 %v1419, %v2154
        %v3499 = vmul.f32 %v1424, %v2154
        %v3500 = vmul.f32 %v1429, %v2154
        %v3501 = vmul.f32 %v1434, %v2154
        %v3502 = vmul.f32 %v1439, %v2154
        %v3503 = vmul.f32 %v1444, %v2154
        %v3504 = vmul.f32 %v1449, %v2154
        %v3505 = vmul.f32 %v1454, %v2154
        %v3506 = vmul.f32 %v1459, %v2154
        %v3507 = vmul.f32 %v1464, %v2154
        %v3508 = vmul.f32 %v1469, %v2154
        %v3509 = vmul.f32 %v1474, %v2154
        %v3510 = vmul.f32 %v1479, %v2154
        %v3511 = vmul.f32 %v1484, %v2154
        %v3512 = vmul.f32 %v1489, %v2154
        %v3513 = vmul.f32 %v1494, %v2154
        %v3514 = vmul.f32 %v1499, %v2154
        %v3515 = vmul.f32 %v1504, %v2154
        %v3516 = vmul.f32 %v1509, %v2154
        %v3517 = vmul.f32 %v1514, %v2154
        %v3518 = vmul.f32 %v1519, %v2154
        %v3519 = vmul.f32 %v1892, %v2154
        %v3520 = vmul.f32 %v1897, %v2154
        %v3521 = vmul.f32 %v2270, %v2154
        %v3522 = vmul.f32 %v2275, %v2154
        %v3523 = vadd.f32 %v3411, %v3467
        %v3524 = vadd.f32 %v3412, %v3468
        %v3525 = vadd.f32 %v3413, %v3469
        %v3526 = vadd.f32 %v3414, %v3470
        %v3527 = vadd.f32 %v3415, %v3471
        %v3528 = vadd.f32 %v3416, %v3472
        %v3529 = vadd.f32 %v3417, %v3473
        %v3530 = vadd.f32 %v3418, %v3474
        %v3531 = vadd.f32 %v3419, %v3475
        %v3532 = vadd.f32 %v3420, %v3476
        %v3533 = vadd.f32 %v3421, %v3477
        %v3534 = vadd.f32 %v3422, %v3478
        %v3535 = vadd.f32 %v3423, %v3479
        %v3536 = vadd.f32 %v3424, %v3480
        %v3537 = vadd.f32 %v3425, %v3481
        %v3538 = vadd.f32 %v3426, %v3482
        %v3539 = vadd.f32 %v3427, %v3483
        %v3540 = vadd.f32 %v3428, %v3484
        %v3541 = vadd.f32 %v3429, %v3485
        %v3542 = vadd.f32 %v3430, %v3486
        %v3543 = vadd.f32 %v3431, %v3487
        %v3544 = vadd.f32 %v3432, %v3488
        %v3545 = vadd.f32 %v3433, %v3489
        %v3546 = vadd.f32 %v3434, %v3490
        %v3547 = vadd.f32 %v3435, %v3491
        %v3548 = vadd.f32 %v3436, %v3492
        %v3549 = vadd.f32 %v3437, %v3493
        %v3550 = vadd.f32 %v3438, %v3494
        %v3551 = vadd.f32 %v3439, %v3495
        %v3552 = vadd.f32 %v3440, %v3496
        %v3553 = vadd.f32 %v3441, %v3497
        %v3554 = vadd.f32 %v3442, %v3498
        %v3555 = vadd.f32 %v3443, %v3499
        %v3556 = vadd.f32 %v3444, %v3500
        %v3557 = vadd.f32 %v3445, %v3501
        %v3558 = vadd.f32 %v3446, %v3502
        %v3559 = vadd.f32 %v3447, %v3503
        %v3560 = vadd.f32 %v3448, %v3504
        %v3561 = vadd.f32 %v3449, %v3505
        %v3562 = vadd.f32 %v3450, %v3506
        %v3563 = vadd.f32 %v3451, %v3507
        %v3564 = vadd.f32 %v3452, %v3508
        %v3565 = vadd.f32 %v3453, %v3509
        %v3566 = vadd.f32 %v3454, %v3510
        %v3567 = vadd.f32 %v3455, %v3511
        %v3568 = vadd.f32 %v3456, %v3512
        %v3569 = vadd.f32 %v3457, %v3513
        %v3570 = vadd.f32 %v3458, %v3514
        %v3571 = vadd.f32 %v3459, %v3515
        %v3572 = vadd.f32 %v3460, %v3516
        %v3573 = vadd.f32 %v3461, %v3517
        %v3574 = vadd.f32 %v3462, %v3518
        %v3575 = vadd.f32 %v3463, %v3519
        %v3576 = vadd.f32 %v3464, %v3520
        %v3577 = vadd.f32 %v3465, %v3521
        %v3578 = vadd.f32 %v3466, %v3522
        %3580 = vset.pattern.permute.xlu0 0
        %3581 = vperm.xlu0 %3580, %v437
        %v3582 = vpop.permute.xlu0 %3581
        %3585 = vset.pattern.permute.xlu0 0
        %3586 = vperm.xlu0 %3585, %v438
        %v3587 = vpop.permute.xlu0 %3586
        %v3589 = vmul.f32 %v2640, %v2280
        %v3590 = vmul.f32 %v2645, %v2280
        %v3591 = vmul.f32 %v2650, %v2280
        %v3592 = vmul.f32 %v2655, %v2280
        %v3593 = vmul.f32 %v2660, %v2280
        %v3594 = vmul.f32 %v2665, %v2280
        %v3595 = vmul.f32 %v2670, %v2280
        %v3596 = vmul.f32 %v2675, %v2280
        %v3597 = vmul.f32 %v2680, %v2280
        %v3598 = vmul.f32 %v2685, %v2280
        %v3599 = vmul.f32 %v2690, %v2280
        %v3600 = vmul.f32 %v2695, %v2280
        %v3601 = vmul.f32 %v2700, %v2280
        %v3602 = vmul.f32 %v2705, %v2280
        %v3603 = vmul.f32 %v2710, %v2280
        %v3604 = vmul.f32 %v2715, %v2280
        %v3605 = vmul.f32 %v2720, %v2280
        %v3606 = vmul.f32 %v2725, %v2280
        %v3607 = vmul.f32 %v2730, %v2280
        %v3608 = vmul.f32 %v2735, %v2280
        %v3609 = vmul.f32 %v2740, %v2280
        %v3610 = vmul.f32 %v2745, %v2280
        %v3611 = vmul.f32 %v2750, %v2280
        %v3612 = vmul.f32 %v2755, %v2280
        %v3613 = vmul.f32 %v2760, %v2280
        %v3614 = vmul.f32 %v2765, %v2280
        %v3615 = vmul.f32 %v2770, %v2280
        %v3616 = vmul.f32 %v2775, %v2280
        %v3617 = vmul.f32 %v2780, %v2280
        %v3618 = vmul.f32 %v2785, %v2280
        %v3619 = vmul.f32 %v2790, %v2280
        %v3620 = vmul.f32 %v2795, %v2280
        %v3621 = vmul.f32 %v2800, %v2280
        %v3622 = vmul.f32 %v2805, %v2280
        %v3623 = vmul.f32 %v2810, %v2280
        %v3624 = vmul.f32 %v2815, %v2280
        %v3625 = vmul.f32 %v2820, %v2280
        %v3626 = vmul.f32 %v2825, %v2280
        %v3627 = vmul.f32 %v2830, %v2280
        %v3628 = vmul.f32 %v2835, %v2280
        %v3629 = vmul.f32 %v2840, %v2280
        %v3630 = vmul.f32 %v2845, %v2280
        %v3631 = vmul.f32 %v2850, %v2280
        %v3632 = vmul.f32 %v2855, %v2280
        %v3633 = vmul.f32 %v2860, %v2280
        %v3634 = vmul.f32 %v2865, %v2280
        %v3635 = vmul.f32 %v2870, %v2280
        %v3636 = vmul.f32 %v2875, %v2280
        %v3637 = vmul.f32 %v2880, %v2280
        %v3638 = vmul.f32 %v2885, %v2280
        %v3639 = vmul.f32 %v2890, %v2280
        %v3640 = vmul.f32 %v2895, %v2280
        %v3641 = vmul.f32 %v3236, %v2280
        %v3642 = vmul.f32 %v3241, %v2280
        %v3643 = vmul.f32 %v3582, %v2280
        %v3644 = vmul.f32 %v3587, %v2280
        %v3645 = vadd.f32 %v3523, %v3589
        %v3646 = vadd.f32 %v3524, %v3590
        %v3647 = vadd.f32 %v3525, %v3591
        %v3648 = vadd.f32 %v3526, %v3592
        %v3649 = vadd.f32 %v3527, %v3593
        %v3650 = vadd.f32 %v3528, %v3594
        %v3651 = vadd.f32 %v3529, %v3595
        %v3652 = vadd.f32 %v3530, %v3596
        %v3653 = vadd.f32 %v3531, %v3597
        %v3654 = vadd.f32 %v3532, %v3598
        %v3655 = vadd.f32 %v3533, %v3599
        %v3656 = vadd.f32 %v3534, %v3600
        %v3657 = vadd.f32 %v3535, %v3601
        %v3658 = vadd.f32 %v3536, %v3602
        %v3659 = vadd.f32 %v3537, %v3603
        %v3660 = vadd.f32 %v3538, %v3604
        %v3661 = vadd.f32 %v3539, %v3605
        %v3662 = vadd.f32 %v3540, %v3606
        %v3663 = vadd.f32 %v3541, %v3607
        %v3664 = vadd.f32 %v3542, %v3608
        %v3665 = vadd.f32 %v3543, %v3609
        %v3666 = vadd.f32 %v3544, %v3610
        %v3667 = vadd.f32 %v3545, %v3611
        %v3668 = vadd.f32 %v3546, %v3612
        %v3669 = vadd.f32 %v3547, %v3613
        %v3670 = vadd.f32 %v3548, %v3614
        %v3671 = vadd.f32 %v3549, %v3615
        %v3672 = vadd.f32 %v3550, %v3616
        %v3673 = vadd.f32 %v3551, %v3617
        %v3674 = vadd.f32 %v3552, %v3618
        %v3675 = vadd.f32 %v3553, %v3619
        %v3676 = vadd.f32 %v3554, %v3620
        %v3677 = vadd.f32 %v3555, %v3621
        %v3678 = vadd.f32 %v3556, %v3622
        %v3679 = vadd.f32 %v3557, %v3623
        %v3680 = vadd.f32 %v3558, %v3624
        %v3681 = vadd.f32 %v3559, %v3625
        %v3682 = vadd.f32 %v3560, %v3626
        %v3683 = vadd.f32 %v3561, %v3627
        %v3684 = vadd.f32 %v3562, %v3628
        %v3685 = vadd.f32 %v3563, %v3629
        %v3686 = vadd.f32 %v3564, %v3630
        %v3687 = vadd.f32 %v3565, %v3631
        %v3688 = vadd.f32 %v3566, %v3632
        %v3689 = vadd.f32 %v3567, %v3633
        %v3690 = vadd.f32 %v3568, %v3634
        %v3691 = vadd.f32 %v3569, %v3635
        %v3692 = vadd.f32 %v3570, %v3636
        %v3693 = vadd.f32 %v3571, %v3637
        %v3694 = vadd.f32 %v3572, %v3638
        %v3695 = vadd.f32 %v3573, %v3639
        %v3696 = vadd.f32 %v3574, %v3640
        %v3697 = vadd.f32 %v3575, %v3641
        %v3698 = vadd.f32 %v3576, %v3642
        %v3699 = vadd.f32 %v3577, %v3643
        %v3700 = vadd.f32 %v3578, %v3644
        %v3701 = vmax.f32 %v2337, %v3645
        %v3702 = vmax.f32 %v2338, %v3646
        %v3703 = vmax.f32 %v2339, %v3647
        %v3704 = vmax.f32 %v2340, %v3648
        %v3705 = vmax.f32 %v2341, %v3649
        %v3706 = vmax.f32 %v2342, %v3650
        %v3707 = vmax.f32 %v2343, %v3651
        %v3708 = vmax.f32 %v2344, %v3652
        %v3709 = vmax.f32 %v2345, %v3653
        %v3710 = vmax.f32 %v2346, %v3654
        %v3711 = vmax.f32 %v2347, %v3655
        %v3712 = vmax.f32 %v2348, %v3656
        %v3713 = vmax.f32 %v2349, %v3657
        %v3714 = vmax.f32 %v2350, %v3658
        %v3715 = vmax.f32 %v2351, %v3659
        %v3716 = vmax.f32 %v2352, %v3660
        %v3717 = vmax.f32 %v2353, %v3661
        %v3718 = vmax.f32 %v2354, %v3662
        %v3719 = vmax.f32 %v2355, %v3663
        %v3720 = vmax.f32 %v2356, %v3664
        %v3721 = vmax.f32 %v2357, %v3665
        %v3722 = vmax.f32 %v2358, %v3666
        %v3723 = vmax.f32 %v2359, %v3667
        %v3724 = vmax.f32 %v2360, %v3668
        %v3725 = vmax.f32 %v2361, %v3669
        %v3726 = vmax.f32 %v2362, %v3670
        %v3727 = vmax.f32 %v2363, %v3671
        %v3728 = vmax.f32 %v2364, %v3672
        %v3729 = vmax.f32 %v2365, %v3673
        %v3730 = vmax.f32 %v2366, %v3674
        %v3731 = vmax.f32 %v2367, %v3675
        %v3732 = vmax.f32 %v2368, %v3676
        %v3733 = vmax.f32 %v2369, %v3677
        %v3734 = vmax.f32 %v2370, %v3678
        %v3735 = vmax.f32 %v2371, %v3679
        %v3736 = vmax.f32 %v2372, %v3680
        %v3737 = vmax.f32 %v2373, %v3681
        %v3738 = vmax.f32 %v2374, %v3682
        %v3739 = vmax.f32 %v2375, %v3683
        %v3740 = vmax.f32 %v2376, %v3684
        %v3741 = vmax.f32 %v2377, %v3685
        %v3742 = vmax.f32 %v2378, %v3686
        %v3743 = vmax.f32 %v2379, %v3687
        %v3744 = vmax.f32 %v2380, %v3688
        %v3745 = vmax.f32 %v2381, %v3689
        %v3746 = vmax.f32 %v2382, %v3690
        %v3747 = vmax.f32 %v2383, %v3691
        %v3748 = vmax.f32 %v2384, %v3692
        %v3749 = vmax.f32 %v2385, %v3693
        %v3750 = vmax.f32 %v2386, %v3694
        %v3751 = vmax.f32 %v2387, %v3695
        %v3752 = vmax.f32 %v2388, %v3696
        %v3753 = vmax.f32 %v2389, %v3697
        %v3754 = vmax.f32 %v2390, %v3698
        %v3755 = vmax.f32 %v2391, %v3699
        %v3756 = vmax.f32 %v2392, %v3700
        %v3758 = vlaneseq
        %v3759 = vshrl.u32 %v3758, 7
        %v3760 = vsub.s32 0, %v3759
        %v3761 = vrot.slane %v448, %v3760
        %v3763 = vadd.f32 %v3701, %v3761
        %v3764 = vadd.f32 %v3702, %v3761
        %v3765 = vadd.f32 %v3703, %v3761
        %v3766 = vadd.f32 %v3704, %v3761
        %v3767 = vadd.f32 %v3705, %v3761
        %v3768 = vadd.f32 %v3706, %v3761
        %v3769 = vadd.f32 %v3707, %v3761
        %v3770 = vadd.f32 %v3708, %v3761
        %v3771 = vadd.f32 %v3709, %v3761
        %v3772 = vadd.f32 %v3710, %v3761
        %v3773 = vadd.f32 %v3711, %v3761
        %v3774 = vadd.f32 %v3712, %v3761
        %v3775 = vadd.f32 %v3713, %v3761
        %v3776 = vadd.f32 %v3714, %v3761
        %v3777 = vadd.f32 %v3715, %v3761
        %v3778 = vadd.f32 %v3716, %v3761
        %v3779 = vadd.f32 %v3717, %v3761
        %v3780 = vadd.f32 %v3718, %v3761
        %v3781 = vadd.f32 %v3719, %v3761
        %v3782 = vadd.f32 %v3720, %v3761
        %v3783 = vadd.f32 %v3721, %v3761
        %v3784 = vadd.f32 %v3722, %v3761
        %v3785 = vadd.f32 %v3723, %v3761
        %v3786 = vadd.f32 %v3724, %v3761
        %v3787 = vadd.f32 %v3725, %v3761
        %v3788 = vadd.f32 %v3726, %v3761
        %v3789 = vadd.f32 %v3727, %v3761
        %v3790 = vadd.f32 %v3728, %v3761
        %v3791 = vadd.f32 %v3729, %v3761
        %v3792 = vadd.f32 %v3730, %v3761
        %v3793 = vadd.f32 %v3731, %v3761
        %v3794 = vadd.f32 %v3732, %v3761
        %v3795 = vadd.f32 %v3733, %v3761
        %v3796 = vadd.f32 %v3734, %v3761
        %v3797 = vadd.f32 %v3735, %v3761
        %v3798 = vadd.f32 %v3736, %v3761
        %v3799 = vadd.f32 %v3737, %v3761
        %v3800 = vadd.f32 %v3738, %v3761
        %v3801 = vadd.f32 %v3739, %v3761
        %v3802 = vadd.f32 %v3740, %v3761
        %v3803 = vadd.f32 %v3741, %v3761
        %v3804 = vadd.f32 %v3742, %v3761
        %v3805 = vadd.f32 %v3743, %v3761
        %v3806 = vadd.f32 %v3744, %v3761
        %v3807 = vadd.f32 %v3745, %v3761
        %v3808 = vadd.f32 %v3746, %v3761
        %v3809 = vadd.f32 %v3747, %v3761
        %v3810 = vadd.f32 %v3748, %v3761
        %v3811 = vadd.f32 %v3749, %v3761
        %v3812 = vadd.f32 %v3750, %v3761
        %v3813 = vadd.f32 %v3751, %v3761
        %v3814 = vadd.f32 %v3752, %v3761
        %v3815 = vadd.f32 %v3753, %v3761
        %v3816 = vadd.f32 %v3754, %v3761
        %v3817 = vadd.f32 %v3755, %v3761
        %v3818 = vadd.f32 %v3756, %v3761
        %v3819 = vmax.f32 %v3763, 0.0
        %v3820 = vmax.f32 %v3764, 0.0
        %v3821 = vmax.f32 %v3765, 0.0
        %v3822 = vmax.f32 %v3766, 0.0
        %v3823 = vmax.f32 %v3767, 0.0
        %v3824 = vmax.f32 %v3768, 0.0
        %v3825 = vmax.f32 %v3769, 0.0
        %v3826 = vmax.f32 %v3770, 0.0
        %v3827 = vmax.f32 %v3771, 0.0
        %v3828 = vmax.f32 %v3772, 0.0
        %v3829 = vmax.f32 %v3773, 0.0
        %v3830 = vmax.f32 %v3774, 0.0
        %v3831 = vmax.f32 %v3775, 0.0
        %v3832 = vmax.f32 %v3776, 0.0
        %v3833 = vmax.f32 %v3777, 0.0
        %v3834 = vmax.f32 %v3778, 0.0
        %v3835 = vmax.f32 %v3779, 0.0
        %v3836 = vmax.f32 %v3780, 0.0
        %v3837 = vmax.f32 %v3781, 0.0
        %v3838 = vmax.f32 %v3782, 0.0
        %v3839 = vmax.f32 %v3783, 0.0
        %v3840 = vmax.f32 %v3784, 0.0
        %v3841 = vmax.f32 %v3785, 0.0
        %v3842 = vmax.f32 %v3786, 0.0
        %v3843 = vmax.f32 %v3787, 0.0
        %v3844 = vmax.f32 %v3788, 0.0
        %v3845 = vmax.f32 %v3789, 0.0
        %v3846 = vmax.f32 %v3790, 0.0
        %v3847 = vmax.f32 %v3791, 0.0
        %v3848 = vmax.f32 %v3792, 0.0
        %v3849 = vmax.f32 %v3793, 0.0
        %v3850 = vmax.f32 %v3794, 0.0
        %v3851 = vmax.f32 %v3795, 0.0
        %v3852 = vmax.f32 %v3796, 0.0
        %v3853 = vmax.f32 %v3797, 0.0
        %v3854 = vmax.f32 %v3798, 0.0
        %v3855 = vmax.f32 %v3799, 0.0
        %v3856 = vmax.f32 %v3800, 0.0
        %v3857 = vmax.f32 %v3801, 0.0
        %v3858 = vmax.f32 %v3802, 0.0
        %v3859 = vmax.f32 %v3803, 0.0
        %v3860 = vmax.f32 %v3804, 0.0
        %v3861 = vmax.f32 %v3805, 0.0
        %v3862 = vmax.f32 %v3806, 0.0
        %v3863 = vmax.f32 %v3807, 0.0
        %v3864 = vmax.f32 %v3808, 0.0
        %v3865 = vmax.f32 %v3809, 0.0
        %v3866 = vmax.f32 %v3810, 0.0
        %v3867 = vmax.f32 %v3811, 0.0
        %v3868 = vmax.f32 %v3812, 0.0
        %v3869 = vmax.f32 %v3813, 0.0
        %v3870 = vmax.f32 %v3814, 0.0
        %v3871 = vmax.f32 %v3815, 0.0
        %v3872 = vmax.f32 %v3816, 0.0
        %v3873 = vmax.f32 %v3817, 0.0
        %v3874 = vmax.f32 %v3818, 0.0
        %v3875 = vmax.f32 %v3819, %v3821
        %vm3876 = vcmask 1045504
        %v3877 = vsel %vm3876, %v3820, -inf
        %v3878 = vsel %vm3876, %v3822, -inf
        %v3879 = vmax.f32 %v3877, %v3878
        %v3880 = vmax.f32 %v3823, %v3825
        %v3881 = vsel %vm3876, %v3824, -inf
        %v3882 = vsel %vm3876, %v3826, -inf
        %v3883 = vmax.f32 %v3881, %v3882
        %v3884 = vmax.f32 %v3827, %v3829
        %v3885 = vsel %vm3876, %v3828, -inf
        %v3886 = vsel %vm3876, %v3830, -inf
        %v3887 = vmax.f32 %v3885, %v3886
        %v3888 = vmax.f32 %v3831, %v3833
        %v3889 = vsel %vm3876, %v3832, -inf
        %v3890 = vsel %vm3876, %v3834, -inf
        %v3891 = vmax.f32 %v3889, %v3890
        %v3892 = vmax.f32 %v3835, %v3837
        %v3893 = vsel %vm3876, %v3836, -inf
        %v3894 = vsel %vm3876, %v3838, -inf
        %v3895 = vmax.f32 %v3893, %v3894
        %v3896 = vmax.f32 %v3839, %v3841
        %v3897 = vsel %vm3876, %v3840, -inf
        %v3898 = vsel %vm3876, %v3842, -inf
        %v3899 = vmax.f32 %v3897, %v3898
        %v3900 = vmax.f32 %v3843, %v3845
        %v3901 = vsel %vm3876, %v3844, -inf
        %v3902 = vsel %vm3876, %v3846, -inf
        %v3903 = vmax.f32 %v3901, %v3902
        %v3904 = vmax.f32 %v3847, %v3849
        %v3905 = vsel %vm3876, %v3848, -inf
        %v3906 = vsel %vm3876, %v3850, -inf
        %v3907 = vmax.f32 %v3905, %v3906
        %v3908 = vmax.f32 %v3851, %v3853
        %v3909 = vsel %vm3876, %v3852, -inf
        %v3910 = vsel %vm3876, %v3854, -inf
        %v3911 = vmax.f32 %v3909, %v3910
        %v3912 = vmax.f32 %v3855, %v3857
        %v3913 = vsel %vm3876, %v3856, -inf
        %v3914 = vsel %vm3876, %v3858, -inf
        %v3915 = vmax.f32 %v3913, %v3914
        %v3916 = vmax.f32 %v3859, %v3861
        %v3917 = vsel %vm3876, %v3860, -inf
        %v3918 = vsel %vm3876, %v3862, -inf
        %v3919 = vmax.f32 %v3917, %v3918
        %v3920 = vmax.f32 %v3863, %v3865
        %v3921 = vsel %vm3876, %v3864, -inf
        %v3922 = vsel %vm3876, %v3866, -inf
        %v3923 = vmax.f32 %v3921, %v3922
        %v3924 = vmax.f32 %v3867, %v3869
        %v3925 = vsel %vm3876, %v3868, -inf
        %v3926 = vsel %vm3876, %v3870, -inf
        %v3927 = vmax.f32 %v3925, %v3926
        %v3928 = vmax.f32 %v3871, %v3873
        %v3929 = vsel %vm3876, %v3872, -inf
        %v3930 = vsel %vm3876, %v3874, -inf
        %v3931 = vmax.f32 %v3929, %v3930
        %3932 = vst [vmem:[%s198] sm:$0xff] %v3875
        %3933 = vst [vmem:[%s198 + $0x8] sm:$0x3f] %v3879
        %3934 = vst [vmem:[%s198 + $0x10] sm:$0xff] %v3880
        %3935 = vst [vmem:[%s198 + $0x18] sm:$0x3f] %v3883
        %3936 = vst [vmem:[%s198 + $0x20] sm:$0xff] %v3884
        %3937 = vst [vmem:[%s198 + $0x28] sm:$0x3f] %v3887
        %3938 = vst [vmem:[%s198 + $0x30] sm:$0xff] %v3888
        %3939 = vst [vmem:[%s198 + $0x38] sm:$0x3f] %v3891
        %3940 = vst [vmem:[%s198 + $0x40] sm:$0xff] %v3892
        %3941 = vst [vmem:[%s198 + $0x48] sm:$0x3f] %v3895
        %3942 = vst [vmem:[%s198 + $0x50] sm:$0xff] %v3896
        %3943 = vst [vmem:[%s198 + $0x58] sm:$0x3f] %v3899
        %3944 = vst [vmem:[%s198 + $0x60] sm:$0xff] %v3900
        %3945 = vst [vmem:[%s198 + $0x68] sm:$0x3f] %v3903
        %3946 = vst [vmem:[%s198 + $0x70] sm:$0xff] %v3904
        %3947 = vst [vmem:[%s198 + $0x78] sm:$0x3f] %v3907
        %3948 = vst [vmem:[%s198 + $0x80] sm:$0xff] %v3908
        %3949 = vst [vmem:[%s198 + $0x88] sm:$0x3f] %v3911
        %3950 = vst [vmem:[%s198 + $0x90] sm:$0xff] %v3912
        %3951 = vst [vmem:[%s198 + $0x98] sm:$0x3f] %v3915
        %3952 = vst [vmem:[%s198 + $0xa0] sm:$0xff] %v3916
        %3953 = vst [vmem:[%s198 + $0xa8] sm:$0x3f] %v3919
        %3954 = vst [vmem:[%s198 + $0xb0] sm:$0xff] %v3920
        %3955 = vst [vmem:[%s198 + $0xb8] sm:$0x3f] %v3923
        %3956 = vst [vmem:[%s198 + $0xc0] sm:$0xff] %v3924
        %3957 = vst [vmem:[%s198 + $0xc8] sm:$0x3f] %v3927
        %3958 = vst [vmem:[%s198 + $0xd0] sm:$0xff] %v3928
        %3959 = vst [vmem:[%s198 + $0xd8] sm:$0x3f] %v3931
        %p3960 = scmp.lt.s32.totalorder %s16, 1
        %s3961 = scalar_select %p3960, %s16, 1
        %s3962 = smul.addr %s3961, 28
        %s3963 = smul.addr %s3962, 8
        %s3964 = scalar_lea.vmem %s3, %s3963
        // Predicated region
        $region41: #{fashion_classifier_forward.3} parent=31 // pred_check
          %p3965 = pneg %p102
        $region42: #{fashion_classifier_forward.3} parent=31 // pred_check_branch
          %3967 = sbr.rel (%p3965) target = $region44
        $region43: #{fashion_classifier_forward.3} parent=31 // pred_region
          _
        $region44: #{fashion_classifier_forward.3} parent=31 // pred_fallthru
          _
      $region32: #{fashion_classifier_forward.3} parent=5 // pred_fallthru
        _
      %p3968 = scmp.le.s32.totalorder 2, %s11
      // Predicated region
      $region45: #{fashion_classifier_forward.3} parent=5 // pred_check
        %p3969 = pneg %p3968
      $region46: #{fashion_classifier_forward.3} parent=5 // pred_check_branch
        %3971 = sbr.rel (%p3969) target = $region48
      $region47: #{fashion_classifier_forward.3} parent=5 // pred_region
        %s3972 = ssub.s32 %s11, 2
        // Predicated region
        $region49: #{fashion_classifier_forward.3} parent=47 // pred_check
          %p3973 = pneg %p108
        $region50: #{fashion_classifier_forward.3} parent=47 // pred_check_branch
          %3975 = sbr.rel (%p3973) target = $region52
        $region51: #{fashion_classifier_forward.3} parent=47 // pred_region
          %p3976 = scmp.lt.s32.totalorder %s17, 1
          %s3977 = scalar_select %p3976, %s17, 1
          %s3978 = smul.addr %s3977, 28
          %s3979 = smul.addr %s3978, 8
          %s3980 = scalar_lea.vmem %s3, %s3979
        $region52: #{fashion_classifier_forward.3} parent=47 // pred_fallthru
          _
      $region48: #{fashion_classifier_forward.3} parent=5 // pred_fallthru
        _
    $region6: #{fashion_classifier_forward.3} parent=1 // loop_footer
      %s15 = sadd.s32 1, %s11
    $region7: #{fashion_classifier_forward.3} parent=1 // loop_footer_branch
      %10 = sbr.rel target = $region3
    $region8: #{fashion_classifier_forward.3} parent=1 // loop_exit
      _
    %3981 = vsyncpa [#allocation3], 1
    %s3982 = scalar_lea.sflag [#allocation3], 1
    %3983 = vsyncpa %s3982, 1
    %3984 = vsyncpa [#allocation5], 1

// kernel: fashion_classifier_forward.5
$region0: #{fashion_classifier_forward.5}
  #allocation0 [shape = 'u32[]', space=smem, size = 0x4, offset = 0x4, fixed_abs, tag = 'smem constant byte address 0x4 - core index']
  #allocation1 [shape = 'u32[144,128]{1,0:T(1,128)}', space=vmem, size = 0x12000, scoped, tag = 'internal scratch']
  %s0 = inlined_call_operand.vmem [shape: f32[2,6272], index: 0, kind: input, shape index: {}]
  %s1 = inlined_call_operand.vmem [shape: f32[6272,128], index: 1, kind: input, shape index: {}]
  %s2 = inlined_call_operand.vmem [shape: f32[1,128], index: 2, kind: input, shape index: {}]
  %s3 = inlined_call_operand.hbm [shape: f32[2,128], index: 3, kind: output, shape index: {}]
  %s4 = sld [smem:[#allocation0]]
  $region22: #{fashion_classifier_forward.5} parent=0
    _
  %s6 = ssub.s32 1, %s4
  %s7 = scalar_select 0, %s6, %s4
  $region1: #{fashion_classifier_forward.5} parent=0
    #allocation2 [shape = 'u8[1024]{0}', space=vmem, size = 0x400, scoped, tag = 'output window, operand 0, single buffered']
    #allocation3 [shape = 's32[1]{0}', space=sflag, size = 0x4, scoped, tag = 'scoped memory for fashion_classifier_forward.5']
    %8 = vsyncpa [#allocation3], 0
    // Predicated region
    $region2: #{fashion_classifier_forward.5} parent=1 // pred_check
      _
    $region3: #{fashion_classifier_forward.5} parent=1 // pred_check_branch
      %10 = sbr.rel (0) target = $region5
    $region4: #{fashion_classifier_forward.5} parent=1 // pred_region
      _
    $region5: #{fashion_classifier_forward.5} parent=1 // pred_fallthru
      _
    // Predicated region
    $region6: #{fashion_classifier_forward.5} parent=1 // pred_check
      _
    $region7: #{fashion_classifier_forward.5} parent=1 // pred_check_branch
      %12 = sbr.rel (0) target = $region9
    $region8: #{fashion_classifier_forward.5} parent=1 // pred_region
      _
    $region9: #{fashion_classifier_forward.5} parent=1 // pred_fallthru
      _
    // Predicated region
    $region10: #{fashion_classifier_forward.5} parent=1 // pred_check
      _
    $region11: #{fashion_classifier_forward.5} parent=1 // pred_check_branch
      %14 = sbr.rel (0) target = $region13
    $region12: #{fashion_classifier_forward.5} parent=1 // pred_region
      _
    $region13: #{fashion_classifier_forward.5} parent=1 // pred_fallthru
      _
    %v15 = vld [vmem:[%s0] sm:$0xff]
    %v16 = vld [vmem:[%s0 + $0x8] sm:$0xff]
    %v17 = vld [vmem:[%s0 + $0x10] sm:$0xff]
    %v18 = vld [vmem:[%s0 + $0x18] sm:$0xff]
    %v19 = vld [vmem:[%s0 + $0x20] sm:$0xff]
    %v20 = vld [vmem:[%s0 + $0x28] sm:$0xff]
    %v21 = vld [vmem:[%s0 + $0x30] sm:$0xff]
    %v22 = vld [vmem:[%s0 + $0x38] sm:$0xff]
    %v23 = vld [vmem:[%s0 + $0x40] sm:$0xff]
    %v24 = vld [vmem:[%s0 + $0x48] sm:$0xff]
    %v25 = vld [vmem:[%s0 + $0x50] sm:$0xff]
    %v26 = vld [vmem:[%s0 + $0x58] sm:$0xff]
    %v27 = vld [vmem:[%s0 + $0x60] sm:$0x3]
    %v28 = vld [vmem:[%s1] sm:$0xff]
    %v29 = vld [vmem:[%s1 + $0x8] sm:$0xff]
    %v30 = vld [vmem:[%s1 + $0x10] sm:$0xff]
    %v31 = vld [vmem:[%s1 + $0x18] sm:$0xff]
    %v32 = vld [vmem:[%s1 + $0x20] sm:$0xff]
    %v33 = vld [vmem:[%s1 + $0x28] sm:$0xff]
    %v34 = vld [vmem:[%s1 + $0x30] sm:$0xff]
    %v35 = vld [vmem:[%s1 + $0x38] sm:$0xff]
    %v36 = vld [vmem:[%s1 + $0x40] sm:$0xff]
    %v37 = vld [vmem:[%s1 + $0x48] sm:$0xff]
    %v38 = vld [vmem:[%s1 + $0x50] sm:$0xff]
    %v39 = vld [vmem:[%s1 + $0x58] sm:$0xff]
    %v40 = vld [vmem:[%s1 + $0x60] sm:$0xff]
    %v41 = vld [vmem:[%s1 + $0x68] sm:$0xff]
    %v42 = vld [vmem:[%s1 + $0x70] sm:$0xff]
    %v43 = vld [vmem:[%s1 + $0x78] sm:$0xff]
    %v44 = vld [vmem:[%s1 + $0x80] sm:$0xff]
    %v45 = vld [vmem:[%s1 + $0x88] sm:$0xff]
    %v46 = vld [vmem:[%s1 + $0x90] sm:$0xff]
    %v47 = vld [vmem:[%s1 + $0x98] sm:$0xff]
    %v48 = vld [vmem:[%s1 + $0xa0] sm:$0xff]
    %v49 = vld [vmem:[%s1 + $0xa8] sm:$0xff]
    %v50 = vld [vmem:[%s1 + $0xb0] sm:$0xff]
    %v51 = vld [vmem:[%s1 + $0xb8] sm:$0xff]
    %v52 = vld [vmem:[%s1 + $0xc0] sm:$0xff]
    %v53 = vld [vmem:[%s1 + $0xc8] sm:$0xff]
    %v54 = vld [vmem:[%s1 + $0xd0] sm:$0xff]
    %v55 = vld [vmem:[%s1 + $0xd8] sm:$0xff]
    %v56 = vld [vmem:[%s1 + $0xe0] sm:$0xff]
    %v57 = vld [vmem:[%s1 + $0xe8] sm:$0xff]
    %v58 = vld [vmem:[%s1 + $0xf0] sm:$0xff]
    %v59 = vld [vmem:[%s1 + $0xf8] sm:$0xff]
    %v60 = vld [vmem:[%s1 + $0x100] sm:$0xff]
    %v61 = vld [vmem:[%s1 + $0x108] sm:$0xff]
    %v62 = vld [vmem:[%s1 + $0x110] sm:$0xff]
    %v63 = vld [vmem:[%s1 + $0x118] sm:$0xff]
    %v64 = vld [vmem:[%s1 + $0x120] sm:$0xff]
    %v65 = vld [vmem:[%s1 + $0x128] sm:$0xff]
    %v66 = vld [vmem:[%s1 + $0x130] sm:$0xff]
    %v67 = vld [vmem:[%s1 + $0x138] sm:$0xff]
    %v68 = vld [vmem:[%s1 + $0x140] sm:$0xff]
    %v69 = vld [vmem:[%s1 + $0x148] sm:$0xff]
    %v70 = vld [vmem:[%s1 + $0x150] sm:$0xff]
    %v71 = vld [vmem:[%s1 + $0x158] sm:$0xff]
    %v72 = vld [vmem:[%s1 + $0x160] sm:$0xff]
    %v73 = vld [vmem:[%s1 + $0x168] sm:$0xff]
    %v74 = vld [vmem:[%s1 + $0x170] sm:$0xff]
    %v75 = vld [vmem:[%s1 + $0x178] sm:$0xff]
    %v76 = vld [vmem:[%s1 + $0x180] sm:$0xff]
    %v77 = vld [vmem:[%s1 + $0x188] sm:$0xff]
    %v78 = vld [vmem:[%s1 + $0x190] sm:$0xff]
    %v79 = vld [vmem:[%s1 + $0x198] sm:$0xff]
    %v80 = vld [vmem:[%s1 + $0x1a0] sm:$0xff]
    %v81 = vld [vmem:[%s1 + $0x1a8] sm:$0xff]
    %v82 = vld [vmem:[%s1 + $0x1b0] sm:$0xff]
    %v83 = vld [vmem:[%s1 + $0x1b8] sm:$0xff]
    %v84 = vld [vmem:[%s1 + $0x1c0] sm:$0xff]
    %v85 = vld [vmem:[%s1 + $0x1c8] sm:$0xff]
    %v86 = vld [vmem:[%s1 + $0x1d0] sm:$0xff]
    %v87 = vld [vmem:[%s1 + $0x1d8] sm:$0xff]
    %v88 = vld [vmem:[%s1 + $0x1e0] sm:$0xff]
    %v89 = vld [vmem:[%s1 + $0x1e8] sm:$0xff]
    %v90 = vld [vmem:[%s1 + $0x1f0] sm:$0xff]
    %v91 = vld [vmem:[%s1 + $0x1f8] sm:$0xff]
    %v92 = vld [vmem:[%s1 + $0x200] sm:$0xff]
    %v93 = vld [vmem:[%s1 + $0x208] sm:$0xff]
    %v94 = vld [vmem:[%s1 + $0x210] sm:$0xff]
    %v95 = vld [vmem:[%s1 + $0x218] sm:$0xff]
    %v96 = vld [vmem:[%s1 + $0x220] sm:$0xff]
    %v97 = vld [vmem:[%s1 + $0x228] sm:$0xff]
    %v98 = vld [vmem:[%s1 + $0x230] sm:$0xff]
    %v99 = vld [vmem:[%s1 + $0x238] sm:$0xff]
    %v100 = vld [vmem:[%s1 + $0x240] sm:$0xff]
    %v101 = vld [vmem:[%s1 + $0x248] sm:$0xff]
    %v102 = vld [vmem:[%s1 + $0x250] sm:$0xff]
    %v103 = vld [vmem:[%s1 + $0x258] sm:$0xff]
    %v104 = vld [vmem:[%s1 + $0x260] sm:$0xff]
    %v105 = vld [vmem:[%s1 + $0x268] sm:$0xff]
    %v106 = vld [vmem:[%s1 + $0x270] sm:$0xff]
    %v107 = vld [vmem:[%s1 + $0x278] sm:$0xff]
    %v108 = vld [vmem:[%s1 + $0x280] sm:$0xff]
    %v109 = vld [vmem:[%s1 + $0x288] sm:$0xff]
    %v110 = vld [vmem:[%s1 + $0x290] sm:$0xff]
    %v111 = vld [vmem:[%s1 + $0x298] sm:$0xff]
    %v112 = vld [vmem:[%s1 + $0x2a0] sm:$0xff]
    %v113 = vld [vmem:[%s1 + $0x2a8] sm:$0xff]
    %v114 = vld [vmem:[%s1 + $0x2b0] sm:$0xff]
    %v115 = vld [vmem:[%s1 + $0x2b8] sm:$0xff]
    %v116 = vld [vmem:[%s1 + $0x2c0] sm:$0xff]
    %v117 = vld [vmem:[%s1 + $0x2c8] sm:$0xff]
    %v118 = vld [vmem:[%s1 + $0x2d0] sm:$0xff]
    %v119 = vld [vmem:[%s1 + $0x2d8] sm:$0xff]
    %v120 = vld [vmem:[%s1 + $0x2e0] sm:$0xff]
    %v121 = vld [vmem:[%s1 + $0x2e8] sm:$0xff]
    %v122 = vld [vmem:[%s1 + $0x2f0] sm:$0xff]
    %v123 = vld [vmem:[%s1 + $0x2f8] sm:$0xff]
    %v124 = vld [vmem:[%s1 + $0x300] sm:$0xff]
    %v125 = vld [vmem:[%s1 + $0x308] sm:$0xff]
    %v126 = vld [vmem:[%s1 + $0x310] sm:$0xff]
    %v127 = vld [vmem:[%s1 + $0x318] sm:$0xff]
    %v128 = vld [vmem:[%s1 + $0x320] sm:$0xff]
    %v129 = vld [vmem:[%s1 + $0x328] sm:$0xff]
    %v130 = vld [vmem:[%s1 + $0x330] sm:$0xff]
    %v131 = vld [vmem:[%s1 + $0x338] sm:$0xff]
    %v132 = vld [vmem:[%s1 + $0x340] sm:$0xff]
    %v133 = vld [vmem:[%s1 + $0x348] sm:$0xff]
    %v134 = vld [vmem:[%s1 + $0x350] sm:$0xff]
    %v135 = vld [vmem:[%s1 + $0x358] sm:$0xff]
    %v136 = vld [vmem:[%s1 + $0x360] sm:$0xff]
    %v137 = vld [vmem:[%s1 + $0x368] sm:$0xff]
    %v138 = vld [vmem:[%s1 + $0x370] sm:$0xff]
    %v139 = vld [vmem:[%s1 + $0x378] sm:$0xff]
    %v140 = vld [vmem:[%s1 + $0x380] sm:$0xff]
    %v141 = vld [vmem:[%s1 + $0x388] sm:$0xff]
    %v142 = vld [vmem:[%s1 + $0x390] sm:$0xff]
    %v143 = vld [vmem:[%s1 + $0x398] sm:$0xff]
    %v144 = vld [vmem:[%s1 + $0x3a0] sm:$0xff]
    %v145 = vld [vmem:[%s1 + $0x3a8] sm:$0xff]
    %v146 = vld [vmem:[%s1 + $0x3b0] sm:$0xff]
    %v147 = vld [vmem:[%s1 + $0x3b8] sm:$0xff]
    %v148 = vld [vmem:[%s1 + $0x3c0] sm:$0xff]
    %v149 = vld [vmem:[%s1 + $0x3c8] sm:$0xff]
    %v150 = vld [vmem:[%s1 + $0x3d0] sm:$0xff]
    %v151 = vld [vmem:[%s1 + $0x3d8] sm:$0xff]
    %v152 = vld [vmem:[%s1 + $0x3e0] sm:$0xff]
    %v153 = vld [vmem:[%s1 + $0x3e8] sm:$0xff]
    %v154 = vld [vmem:[%s1 + $0x3f0] sm:$0xff]
    %v155 = vld [vmem:[%s1 + $0x3f8] sm:$0xff]
    %v156 = vld [vmem:[%s1 + $0x400] sm:$0xff]
    %v157 = vld [vmem:[%s1 + $0x408] sm:$0xff]
    %v158 = vld [vmem:[%s1 + $0x410] sm:$0xff]
    %v159 = vld [vmem:[%s1 + $0x418] sm:$0xff]
    %v160 = vld [vmem:[%s1 + $0x420] sm:$0xff]
    %v161 = vld [vmem:[%s1 + $0x428] sm:$0xff]
    %v162 = vld [vmem:[%s1 + $0x430] sm:$0xff]
    %v163 = vld [vmem:[%s1 + $0x438] sm:$0xff]
    %v164 = vld [vmem:[%s1 + $0x440] sm:$0xff]
    %v165 = vld [vmem:[%s1 + $0x448] sm:$0xff]
    %v166 = vld [vmem:[%s1 + $0x450] sm:$0xff]
    %v167 = vld [vmem:[%s1 + $0x458] sm:$0xff]
    %v168 = vld [vmem:[%s1 + $0x460] sm:$0xff]
    %v169 = vld [vmem:[%s1 + $0x468] sm:$0xff]
    %v170 = vld [vmem:[%s1 + $0x470] sm:$0xff]
    %v171 = vld [vmem:[%s1 + $0x478] sm:$0xff]
    %v172 = vld [vmem:[%s1 + $0x480] sm:$0xff]
    %v173 = vld [vmem:[%s1 + $0x488] sm:$0xff]
    %v174 = vld [vmem:[%s1 + $0x490] sm:$0xff]
    %v175 = vld [vmem:[%s1 + $0x498] sm:$0xff]
    %v176 = vld [vmem:[%s1 + $0x4a0] sm:$0xff]
    %v177 = vld [vmem:[%s1 + $0x4a8] sm:$0xff]
    %v178 = vld [vmem:[%s1 + $0x4b0] sm:$0xff]
    %v179 = vld [vmem:[%s1 + $0x4b8] sm:$0xff]
    %v180 = vld [vmem:[%s1 + $0x4c0] sm:$0xff]
    %v181 = vld [vmem:[%s1 + $0x4c8] sm:$0xff]
    %v182 = vld [vmem:[%s1 + $0x4d0] sm:$0xff]
    %v183 = vld [vmem:[%s1 + $0x4d8] sm:$0xff]
    %v184 = vld [vmem:[%s1 + $0x4e0] sm:$0xff]
    %v185 = vld [vmem:[%s1 + $0x4e8] sm:$0xff]
    %v186 = vld [vmem:[%s1 + $0x4f0] sm:$0xff]
    %v187 = vld [vmem:[%s1 + $0x4f8] sm:$0xff]
    %v188 = vld [vmem:[%s1 + $0x500] sm:$0xff]
    %v189 = vld [vmem:[%s1 + $0x508] sm:$0xff]
    %v190 = vld [vmem:[%s1 + $0x510] sm:$0xff]
    %v191 = vld [vmem:[%s1 + $0x518] sm:$0xff]
    %v192 = vld [vmem:[%s1 + $0x520] sm:$0xff]
    %v193 = vld [vmem:[%s1 + $0x528] sm:$0xff]
    %v194 = vld [vmem:[%s1 + $0x530] sm:$0xff]
    %v195 = vld [vmem:[%s1 + $0x538] sm:$0xff]
    %v196 = vld [vmem:[%s1 + $0x540] sm:$0xff]
    %v197 = vld [vmem:[%s1 + $0x548] sm:$0xff]
    %v198 = vld [vmem:[%s1 + $0x550] sm:$0xff]
    %v199 = vld [vmem:[%s1 + $0x558] sm:$0xff]
    %v200 = vld [vmem:[%s1 + $0x560] sm:$0xff]
    %v201 = vld [vmem:[%s1 + $0x568] sm:$0xff]
    %v202 = vld [vmem:[%s1 + $0x570] sm:$0xff]
    %v203 = vld [vmem:[%s1 + $0x578] sm:$0xff]
    %v204 = vld [vmem:[%s1 + $0x580] sm:$0xff]
    %v205 = vld [vmem:[%s1 + $0x588] sm:$0xff]
    %v206 = vld [vmem:[%s1 + $0x590] sm:$0xff]
    %v207 = vld [vmem:[%s1 + $0x598] sm:$0xff]
    %v208 = vld [vmem:[%s1 + $0x5a0] sm:$0xff]
    %v209 = vld [vmem:[%s1 + $0x5a8] sm:$0xff]
    %v210 = vld [vmem:[%s1 + $0x5b0] sm:$0xff]
    %v211 = vld [vmem:[%s1 + $0x5b8] sm:$0xff]
    %v212 = vld [vmem:[%s1 + $0x5c0] sm:$0xff]
    %v213 = vld [vmem:[%s1 + $0x5c8] sm:$0xff]
    %v214 = vld [vmem:[%s1 + $0x5d0] sm:$0xff]
    %v215 = vld [vmem:[%s1 + $0x5d8] sm:$0xff]
    %v216 = vld [vmem:[%s1 + $0x5e0] sm:$0xff]
    %v217 = vld [vmem:[%s1 + $0x5e8] sm:$0xff]
    %v218 = vld [vmem:[%s1 + $0x5f0] sm:$0xff]
    %v219 = vld [vmem:[%s1 + $0x5f8] sm:$0xff]
    %v220 = vld [vmem:[%s1 + $0x600] sm:$0xff]
    %v221 = vld [vmem:[%s1 + $0x608] sm:$0xff]
    %v222 = vld [vmem:[%s1 + $0x610] sm:$0xff]
    %v223 = vld [vmem:[%s1 + $0x618] sm:$0xff]
    %v224 = vld [vmem:[%s1 + $0x620] sm:$0xff]
    %v225 = vld [vmem:[%s1 + $0x628] sm:$0xff]
    %v226 = vld [vmem:[%s1 + $0x630] sm:$0xff]
    %v227 = vld [vmem:[%s1 + $0x638] sm:$0xff]
    %v228 = vld [vmem:[%s1 + $0x640] sm:$0xff]
    %v229 = vld [vmem:[%s1 + $0x648] sm:$0xff]
    %v230 = vld [vmem:[%s1 + $0x650] sm:$0xff]
    %v231 = vld [vmem:[%s1 + $0x658] sm:$0xff]
    %v232 = vld [vmem:[%s1 + $0x660] sm:$0xff]
    %v233 = vld [vmem:[%s1 + $0x668] sm:$0xff]
    %v234 = vld [vmem:[%s1 + $0x670] sm:$0xff]
    %v235 = vld [vmem:[%s1 + $0x678] sm:$0xff]
    %v236 = vld [vmem:[%s1 + $0x680] sm:$0xff]
    %v237 = vld [vmem:[%s1 + $0x688] sm:$0xff]
    %v238 = vld [vmem:[%s1 + $0x690] sm:$0xff]
    %v239 = vld [vmem:[%s1 + $0x698] sm:$0xff]
    %v240 = vld [vmem:[%s1 + $0x6a0] sm:$0xff]
    %v241 = vld [vmem:[%s1 + $0x6a8] sm:$0xff]
    %v242 = vld [vmem:[%s1 + $0x6b0] sm:$0xff]
    %v243 = vld [vmem:[%s1 + $0x6b8] sm:$0xff]
    %v244 = vld [vmem:[%s1 + $0x6c0] sm:$0xff]
    %v245 = vld [vmem:[%s1 + $0x6c8] sm:$0xff]
    %v246 = vld [vmem:[%s1 + $0x6d0] sm:$0xff]
    %v247 = vld [vmem:[%s1 + $0x6d8] sm:$0xff]
    %v248 = vld [vmem:[%s1 + $0x6e0] sm:$0xff]
    %v249 = vld [vmem:[%s1 + $0x6e8] sm:$0xff]
    %v250 = vld [vmem:[%s1 + $0x6f0] sm:$0xff]
    %v251 = vld [vmem:[%s1 + $0x6f8] sm:$0xff]
    %v252 = vld [vmem:[%s1 + $0x700] sm:$0xff]
    %v253 = vld [vmem:[%s1 + $0x708] sm:$0xff]
    %v254 = vld [vmem:[%s1 + $0x710] sm:$0xff]
    %v255 = vld [vmem:[%s1 + $0x718] sm:$0xff]
    %v256 = vld [vmem:[%s1 + $0x720] sm:$0xff]
    %v257 = vld [vmem:[%s1 + $0x728] sm:$0xff]
    %v258 = vld [vmem:[%s1 + $0x730] sm:$0xff]
    %v259 = vld [vmem:[%s1 + $0x738] sm:$0xff]
    %v260 = vld [vmem:[%s1 + $0x740] sm:$0xff]
    %v261 = vld [vmem:[%s1 + $0x748] sm:$0xff]
    %v262 = vld [vmem:[%s1 + $0x750] sm:$0xff]
    %v263 = vld [vmem:[%s1 + $0x758] sm:$0xff]
    %v264 = vld [vmem:[%s1 + $0x760] sm:$0xff]
    %v265 = vld [vmem:[%s1 + $0x768] sm:$0xff]
    %v266 = vld [vmem:[%s1 + $0x770] sm:$0xff]
    %v267 = vld [vmem:[%s1 + $0x778] sm:$0xff]
    %v268 = vld [vmem:[%s1 + $0x780] sm:$0xff]
    %v269 = vld [vmem:[%s1 + $0x788] sm:$0xff]
    %v270 = vld [vmem:[%s1 + $0x790] sm:$0xff]
    %v271 = vld [vmem:[%s1 + $0x798] sm:$0xff]
    %v272 = vld [vmem:[%s1 + $0x7a0] sm:$0xff]
    %v273 = vld [vmem:[%s1 + $0x7a8] sm:$0xff]
    %v274 = vld [vmem:[%s1 + $0x7b0] sm:$0xff]
    %v275 = vld [vmem:[%s1 + $0x7b8] sm:$0xff]
    %v276 = vld [vmem:[%s1 + $0x7c0] sm:$0xff]
    %v277 = vld [vmem:[%s1 + $0x7c8] sm:$0xff]
    %v278 = vld [vmem:[%s1 + $0x7d0] sm:$0xff]
    %v279 = vld [vmem:[%s1 + $0x7d8] sm:$0xff]
    %v280 = vld [vmem:[%s1 + $0x7e0] sm:$0xff]
    %v281 = vld [vmem:[%s1 + $0x7e8] sm:$0xff]
    %v282 = vld [vmem:[%s1 + $0x7f0] sm:$0xff]
    %v283 = vld [vmem:[%s1 + $0x7f8] sm:$0xff]
    %v284 = vld [vmem:[%s1 + $0x800] sm:$0xff]
    %v285 = vld [vmem:[%s1 + $0x808] sm:$0xff]
    %v286 = vld [vmem:[%s1 + $0x810] sm:$0xff]
    %v287 = vld [vmem:[%s1 + $0x818] sm:$0xff]
    %v288 = vld [vmem:[%s1 + $0x820] sm:$0xff]
    %v289 = vld [vmem:[%s1 + $0x828] sm:$0xff]
    %v290 = vld [vmem:[%s1 + $0x830] sm:$0xff]
    %v291 = vld [vmem:[%s1 + $0x838] sm:$0xff]
    %v292 = vld [vmem:[%s1 + $0x840] sm:$0xff]
    %v293 = vld [vmem:[%s1 + $0x848] sm:$0xff]
    %v294 = vld [vmem:[%s1 + $0x850] sm:$0xff]
    %v295 = vld [vmem:[%s1 + $0x858] sm:$0xff]
    %v296 = vld [vmem:[%s1 + $0x860] sm:$0xff]
    %v297 = vld [vmem:[%s1 + $0x868] sm:$0xff]
    %v298 = vld [vmem:[%s1 + $0x870] sm:$0xff]
    %v299 = vld [vmem:[%s1 + $0x878] sm:$0xff]
    %v300 = vld [vmem:[%s1 + $0x880] sm:$0xff]
    %v301 = vld [vmem:[%s1 + $0x888] sm:$0xff]
    %v302 = vld [vmem:[%s1 + $0x890] sm:$0xff]
    %v303 = vld [vmem:[%s1 + $0x898] sm:$0xff]
    %v304 = vld [vmem:[%s1 + $0x8a0] sm:$0xff]
    %v305 = vld [vmem:[%s1 + $0x8a8] sm:$0xff]
    %v306 = vld [vmem:[%s1 + $0x8b0] sm:$0xff]
    %v307 = vld [vmem:[%s1 + $0x8b8] sm:$0xff]
    %v308 = vld [vmem:[%s1 + $0x8c0] sm:$0xff]
    %v309 = vld [vmem:[%s1 + $0x8c8] sm:$0xff]
    %v310 = vld [vmem:[%s1 + $0x8d0] sm:$0xff]
    %v311 = vld [vmem:[%s1 + $0x8d8] sm:$0xff]
    %v312 = vld [vmem:[%s1 + $0x8e0] sm:$0xff]
    %v313 = vld [vmem:[%s1 + $0x8e8] sm:$0xff]
    %v314 = vld [vmem:[%s1 + $0x8f0] sm:$0xff]
    %v315 = vld [vmem:[%s1 + $0x8f8] sm:$0xff]
    %v316 = vld [vmem:[%s1 + $0x900] sm:$0xff]
    %v317 = vld [vmem:[%s1 + $0x908] sm:$0xff]
    %v318 = vld [vmem:[%s1 + $0x910] sm:$0xff]
    %v319 = vld [vmem:[%s1 + $0x918] sm:$0xff]
    %v320 = vld [vmem:[%s1 + $0x920] sm:$0xff]
    %v321 = vld [vmem:[%s1 + $0x928] sm:$0xff]
    %v322 = vld [vmem:[%s1 + $0x930] sm:$0xff]
    %v323 = vld [vmem:[%s1 + $0x938] sm:$0xff]
    %v324 = vld [vmem:[%s1 + $0x940] sm:$0xff]
    %v325 = vld [vmem:[%s1 + $0x948] sm:$0xff]
    %v326 = vld [vmem:[%s1 + $0x950] sm:$0xff]
    %v327 = vld [vmem:[%s1 + $0x958] sm:$0xff]
    %v328 = vld [vmem:[%s1 + $0x960] sm:$0xff]
    %v329 = vld [vmem:[%s1 + $0x968] sm:$0xff]
    %v330 = vld [vmem:[%s1 + $0x970] sm:$0xff]
    %v331 = vld [vmem:[%s1 + $0x978] sm:$0xff]
    %v332 = vld [vmem:[%s1 + $0x980] sm:$0xff]
    %v333 = vld [vmem:[%s1 + $0x988] sm:$0xff]
    %v334 = vld [vmem:[%s1 + $0x990] sm:$0xff]
    %v335 = vld [vmem:[%s1 + $0x998] sm:$0xff]
    %v336 = vld [vmem:[%s1 + $0x9a0] sm:$0xff]
    %v337 = vld [vmem:[%s1 + $0x9a8] sm:$0xff]
    %v338 = vld [vmem:[%s1 + $0x9b0] sm:$0xff]
    %v339 = vld [vmem:[%s1 + $0x9b8] sm:$0xff]
    %v340 = vld [vmem:[%s1 + $0x9c0] sm:$0xff]
    %v341 = vld [vmem:[%s1 + $0x9c8] sm:$0xff]
    %v342 = vld [vmem:[%s1 + $0x9d0] sm:$0xff]
    %v343 = vld [vmem:[%s1 + $0x9d8] sm:$0xff]
    %v344 = vld [vmem:[%s1 + $0x9e0] sm:$0xff]
    %v345 = vld [vmem:[%s1 + $0x9e8] sm:$0xff]
    %v346 = vld [vmem:[%s1 + $0x9f0] sm:$0xff]
    %v347 = vld [vmem:[%s1 + $0x9f8] sm:$0xff]
    %v348 = vld [vmem:[%s1 + $0xa00] sm:$0xff]
    %v349 = vld [vmem:[%s1 + $0xa08] sm:$0xff]
    %v350 = vld [vmem:[%s1 + $0xa10] sm:$0xff]
    %v351 = vld [vmem:[%s1 + $0xa18] sm:$0xff]
    %v352 = vld [vmem:[%s1 + $0xa20] sm:$0xff]
    %v353 = vld [vmem:[%s1 + $0xa28] sm:$0xff]
    %v354 = vld [vmem:[%s1 + $0xa30] sm:$0xff]
    %v355 = vld [vmem:[%s1 + $0xa38] sm:$0xff]
    %v356 = vld [vmem:[%s1 + $0xa40] sm:$0xff]
    %v357 = vld [vmem:[%s1 + $0xa48] sm:$0xff]
    %v358 = vld [vmem:[%s1 + $0xa50] sm:$0xff]
    %v359 = vld [vmem:[%s1 + $0xa58] sm:$0xff]
    %v360 = vld [vmem:[%s1 + $0xa60] sm:$0xff]
    %v361 = vld [vmem:[%s1 + $0xa68] sm:$0xff]
    %v362 = vld [vmem:[%s1 + $0xa70] sm:$0xff]
    %v363 = vld [vmem:[%s1 + $0xa78] sm:$0xff]
    %v364 = vld [vmem:[%s1 + $0xa80] sm:$0xff]
    %v365 = vld [vmem:[%s1 + $0xa88] sm:$0xff]
    %v366 = vld [vmem:[%s1 + $0xa90] sm:$0xff]
    %v367 = vld [vmem:[%s1 + $0xa98] sm:$0xff]
    %v368 = vld [vmem:[%s1 + $0xaa0] sm:$0xff]
    %v369 = vld [vmem:[%s1 + $0xaa8] sm:$0xff]
    %v370 = vld [vmem:[%s1 + $0xab0] sm:$0xff]
    %v371 = vld [vmem:[%s1 + $0xab8] sm:$0xff]
    %v372 = vld [vmem:[%s1 + $0xac0] sm:$0xff]
    %v373 = vld [vmem:[%s1 + $0xac8] sm:$0xff]
    %v374 = vld [vmem:[%s1 + $0xad0] sm:$0xff]
    %v375 = vld [vmem:[%s1 + $0xad8] sm:$0xff]
    %v376 = vld [vmem:[%s1 + $0xae0] sm:$0xff]
    %v377 = vld [vmem:[%s1 + $0xae8] sm:$0xff]
    %v378 = vld [vmem:[%s1 + $0xaf0] sm:$0xff]
    %v379 = vld [vmem:[%s1 + $0xaf8] sm:$0xff]
    %v380 = vld [vmem:[%s1 + $0xb00] sm:$0xff]
    %v381 = vld [vmem:[%s1 + $0xb08] sm:$0xff]
    %v382 = vld [vmem:[%s1 + $0xb10] sm:$0xff]
    %v383 = vld [vmem:[%s1 + $0xb18] sm:$0xff]
    %v384 = vld [vmem:[%s1 + $0xb20] sm:$0xff]
    %v385 = vld [vmem:[%s1 + $0xb28] sm:$0xff]
    %v386 = vld [vmem:[%s1 + $0xb30] sm:$0xff]
    %v387 = vld [vmem:[%s1 + $0xb38] sm:$0xff]
    %v388 = vld [vmem:[%s1 + $0xb40] sm:$0xff]
    %v389 = vld [vmem:[%s1 + $0xb48] sm:$0xff]
    %v390 = vld [vmem:[%s1 + $0xb50] sm:$0xff]
    %v391 = vld [vmem:[%s1 + $0xb58] sm:$0xff]
    %v392 = vld [vmem:[%s1 + $0xb60] sm:$0xff]
    %v393 = vld [vmem:[%s1 + $0xb68] sm:$0xff]
    %v394 = vld [vmem:[%s1 + $0xb70] sm:$0xff]
    %v395 = vld [vmem:[%s1 + $0xb78] sm:$0xff]
    %v396 = vld [vmem:[%s1 + $0xb80] sm:$0xff]
    %v397 = vld [vmem:[%s1 + $0xb88] sm:$0xff]
    %v398 = vld [vmem:[%s1 + $0xb90] sm:$0xff]
    %v399 = vld [vmem:[%s1 + $0xb98] sm:$0xff]
    %v400 = vld [vmem:[%s1 + $0xba0] sm:$0xff]
    %v401 = vld [vmem:[%s1 + $0xba8] sm:$0xff]
    %v402 = vld [vmem:[%s1 + $0xbb0] sm:$0xff]
    %v403 = vld [vmem:[%s1 + $0xbb8] sm:$0xff]
    %v404 = vld [vmem:[%s1 + $0xbc0] sm:$0xff]
    %v405 = vld [vmem:[%s1 + $0xbc8] sm:$0xff]
    %v406 = vld [vmem:[%s1 + $0xbd0] sm:$0xff]
    %v407 = vld [vmem:[%s1 + $0xbd8] sm:$0xff]
    %v408 = vld [vmem:[%s1 + $0xbe0] sm:$0xff]
    %v409 = vld [vmem:[%s1 + $0xbe8] sm:$0xff]
    %v410 = vld [vmem:[%s1 + $0xbf0] sm:$0xff]
    %v411 = vld [vmem:[%s1 + $0xbf8] sm:$0xff]
    %v412 = vld [vmem:[%s1 + $0xc00] sm:$0xff]
    %v413 = vld [vmem:[%s1 + $0xc08] sm:$0xff]
    %v414 = vld [vmem:[%s1 + $0xc10] sm:$0xff]
    %v415 = vld [vmem:[%s1 + $0xc18] sm:$0xff]
    %v416 = vld [vmem:[%s1 + $0xc20] sm:$0xff]
    %v417 = vld [vmem:[%s1 + $0xc28] sm:$0xff]
    %v418 = vld [vmem:[%s1 + $0xc30] sm:$0xff]
    %v419 = vld [vmem:[%s1 + $0xc38] sm:$0xff]
    %v420 = vld [vmem:[%s1 + $0xc40] sm:$0xff]
    %v421 = vld [vmem:[%s1 + $0xc48] sm:$0xff]
    %v422 = vld [vmem:[%s1 + $0xc50] sm:$0xff]
    %v423 = vld [vmem:[%s1 + $0xc58] sm:$0xff]
    %v424 = vld [vmem:[%s1 + $0xc60] sm:$0xff]
    %v425 = vld [vmem:[%s1 + $0xc68] sm:$0xff]
    %v426 = vld [vmem:[%s1 + $0xc70] sm:$0xff]
    %v427 = vld [vmem:[%s1 + $0xc78] sm:$0xff]
    %v428 = vld [vmem:[%s1 + $0xc80] sm:$0xff]
    %v429 = vld [vmem:[%s1 + $0xc88] sm:$0xff]
    %v430 = vld [vmem:[%s1 + $0xc90] sm:$0xff]
    %v431 = vld [vmem:[%s1 + $0xc98] sm:$0xff]
    %v432 = vld [vmem:[%s1 + $0xca0] sm:$0xff]
    %v433 = vld [vmem:[%s1 + $0xca8] sm:$0xff]
    %v434 = vld [vmem:[%s1 + $0xcb0] sm:$0xff]
    %v435 = vld [vmem:[%s1 + $0xcb8] sm:$0xff]
    %v436 = vld [vmem:[%s1 + $0xcc0] sm:$0xff]
    %v437 = vld [vmem:[%s1 + $0xcc8] sm:$0xff]
    %v438 = vld [vmem:[%s1 + $0xcd0] sm:$0xff]
    %v439 = vld [vmem:[%s1 + $0xcd8] sm:$0xff]
    %v440 = vld [vmem:[%s1 + $0xce0] sm:$0xff]
    %v441 = vld [vmem:[%s1 + $0xce8] sm:$0xff]
    %v442 = vld [vmem:[%s1 + $0xcf0] sm:$0xff]
    %v443 = vld [vmem:[%s1 + $0xcf8] sm:$0xff]
    %v444 = vld [vmem:[%s1 + $0xd00] sm:$0xff]
    %v445 = vld [vmem:[%s1 + $0xd08] sm:$0xff]
    %v446 = vld [vmem:[%s1 + $0xd10] sm:$0xff]
    %v447 = vld [vmem:[%s1 + $0xd18] sm:$0xff]
    %v448 = vld [vmem:[%s1 + $0xd20] sm:$0xff]
    %v449 = vld [vmem:[%s1 + $0xd28] sm:$0xff]
    %v450 = vld [vmem:[%s1 + $0xd30] sm:$0xff]
    %v451 = vld [vmem:[%s1 + $0xd38] sm:$0xff]
    %v452 = vld [vmem:[%s1 + $0xd40] sm:$0xff]
    %v453 = vld [vmem:[%s1 + $0xd48] sm:$0xff]
    %v454 = vld [vmem:[%s1 + $0xd50] sm:$0xff]
    %v455 = vld [vmem:[%s1 + $0xd58] sm:$0xff]
    %v456 = vld [vmem:[%s1 + $0xd60] sm:$0xff]
    %v457 = vld [vmem:[%s1 + $0xd68] sm:$0xff]
    %v458 = vld [vmem:[%s1 + $0xd70] sm:$0xff]
    %v459 = vld [vmem:[%s1 + $0xd78] sm:$0xff]
    %v460 = vld [vmem:[%s1 + $0xd80] sm:$0xff]
    %v461 = vld [vmem:[%s1 + $0xd88] sm:$0xff]
    %v462 = vld [vmem:[%s1 + $0xd90] sm:$0xff]
    %v463 = vld [vmem:[%s1 + $0xd98] sm:$0xff]
    %v464 = vld [vmem:[%s1 + $0xda0] sm:$0xff]
    %v465 = vld [vmem:[%s1 + $0xda8] sm:$0xff]
    %v466 = vld [vmem:[%s1 + $0xdb0] sm:$0xff]
    %v467 = vld [vmem:[%s1 + $0xdb8] sm:$0xff]
    %v468 = vld [vmem:[%s1 + $0xdc0] sm:$0xff]
    %v469 = vld [vmem:[%s1 + $0xdc8] sm:$0xff]
    %v470 = vld [vmem:[%s1 + $0xdd0] sm:$0xff]
    %v471 = vld [vmem:[%s1 + $0xdd8] sm:$0xff]
    %v472 = vld [vmem:[%s1 + $0xde0] sm:$0xff]
    %v473 = vld [vmem:[%s1 + $0xde8] sm:$0xff]
    %v474 = vld [vmem:[%s1 + $0xdf0] sm:$0xff]
    %v475 = vld [vmem:[%s1 + $0xdf8] sm:$0xff]
    %v476 = vld [vmem:[%s1 + $0xe00] sm:$0xff]
    %v477 = vld [vmem:[%s1 + $0xe08] sm:$0xff]
    %v478 = vld [vmem:[%s1 + $0xe10] sm:$0xff]
    %v479 = vld [vmem:[%s1 + $0xe18] sm:$0xff]
    %v480 = vld [vmem:[%s1 + $0xe20] sm:$0xff]
    %v481 = vld [vmem:[%s1 + $0xe28] sm:$0xff]
    %v482 = vld [vmem:[%s1 + $0xe30] sm:$0xff]
    %v483 = vld [vmem:[%s1 + $0xe38] sm:$0xff]
    %v484 = vld [vmem:[%s1 + $0xe40] sm:$0xff]
    %v485 = vld [vmem:[%s1 + $0xe48] sm:$0xff]
    %v486 = vld [vmem:[%s1 + $0xe50] sm:$0xff]
    %v487 = vld [vmem:[%s1 + $0xe58] sm:$0xff]
    %v488 = vld [vmem:[%s1 + $0xe60] sm:$0xff]
    %v489 = vld [vmem:[%s1 + $0xe68] sm:$0xff]
    %v490 = vld [vmem:[%s1 + $0xe70] sm:$0xff]
    %v491 = vld [vmem:[%s1 + $0xe78] sm:$0xff]
    %v492 = vld [vmem:[%s1 + $0xe80] sm:$0xff]
    %v493 = vld [vmem:[%s1 + $0xe88] sm:$0xff]
    %v494 = vld [vmem:[%s1 + $0xe90] sm:$0xff]
    %v495 = vld [vmem:[%s1 + $0xe98] sm:$0xff]
    %v496 = vld [vmem:[%s1 + $0xea0] sm:$0xff]
    %v497 = vld [vmem:[%s1 + $0xea8] sm:$0xff]
    %v498 = vld [vmem:[%s1 + $0xeb0] sm:$0xff]
    %v499 = vld [vmem:[%s1 + $0xeb8] sm:$0xff]
    %v500 = vld [vmem:[%s1 + $0xec0] sm:$0xff]
    %v501 = vld [vmem:[%s1 + $0xec8] sm:$0xff]
    %v502 = vld [vmem:[%s1 + $0xed0] sm:$0xff]
    %v503 = vld [vmem:[%s1 + $0xed8] sm:$0xff]
    %v504 = vld [vmem:[%s1 + $0xee0] sm:$0xff]
    %v505 = vld [vmem:[%s1 + $0xee8] sm:$0xff]
    %v506 = vld [vmem:[%s1 + $0xef0] sm:$0xff]
    %v507 = vld [vmem:[%s1 + $0xef8] sm:$0xff]
    %v508 = vld [vmem:[%s1 + $0xf00] sm:$0xff]
    %v509 = vld [vmem:[%s1 + $0xf08] sm:$0xff]
    %v510 = vld [vmem:[%s1 + $0xf10] sm:$0xff]
    %v511 = vld [vmem:[%s1 + $0xf18] sm:$0xff]
    %v512 = vld [vmem:[%s1 + $0xf20] sm:$0xff]
    %v513 = vld [vmem:[%s1 + $0xf28] sm:$0xff]
    %v514 = vld [vmem:[%s1 + $0xf30] sm:$0xff]
    %v515 = vld [vmem:[%s1 + $0xf38] sm:$0xff]
    %v516 = vld [vmem:[%s1 + $0xf40] sm:$0xff]
    %v517 = vld [vmem:[%s1 + $0xf48] sm:$0xff]
    %v518 = vld [vmem:[%s1 + $0xf50] sm:$0xff]
    %v519 = vld [vmem:[%s1 + $0xf58] sm:$0xff]
    %v520 = vld [vmem:[%s1 + $0xf60] sm:$0xff]
    %v521 = vld [vmem:[%s1 + $0xf68] sm:$0xff]
    %v522 = vld [vmem:[%s1 + $0xf70] sm:$0xff]
    %v523 = vld [vmem:[%s1 + $0xf78] sm:$0xff]
    %v524 = vld [vmem:[%s1 + $0xf80] sm:$0xff]
    %v525 = vld [vmem:[%s1 + $0xf88] sm:$0xff]
    %v526 = vld [vmem:[%s1 + $0xf90] sm:$0xff]
    %v527 = vld [vmem:[%s1 + $0xf98] sm:$0xff]
    %v528 = vld [vmem:[%s1 + $0xfa0] sm:$0xff]
    %v529 = vld [vmem:[%s1 + $0xfa8] sm:$0xff]
    %v530 = vld [vmem:[%s1 + $0xfb0] sm:$0xff]
    %v531 = vld [vmem:[%s1 + $0xfb8] sm:$0xff]
    %v532 = vld [vmem:[%s1 + $0xfc0] sm:$0xff]
    %v533 = vld [vmem:[%s1 + $0xfc8] sm:$0xff]
    %v534 = vld [vmem:[%s1 + $0xfd0] sm:$0xff]
    %v535 = vld [vmem:[%s1 + $0xfd8] sm:$0xff]
    %v536 = vld [vmem:[%s1 + $0xfe0] sm:$0xff]
    %v537 = vld [vmem:[%s1 + $0xfe8] sm:$0xff]
    %v538 = vld [vmem:[%s1 + $0xff0] sm:$0xff]
    %v539 = vld [vmem:[%s1 + $0xff8] sm:$0xff]
    %v540 = vld [vmem:[%s1 + $0x1000] sm:$0xff]
    %v541 = vld [vmem:[%s1 + $0x1008] sm:$0xff]
    %v542 = vld [vmem:[%s1 + $0x1010] sm:$0xff]
    %v543 = vld [vmem:[%s1 + $0x1018] sm:$0xff]
    %v544 = vld [vmem:[%s1 + $0x1020] sm:$0xff]
    %v545 = vld [vmem:[%s1 + $0x1028] sm:$0xff]
    %v546 = vld [vmem:[%s1 + $0x1030] sm:$0xff]
    %v547 = vld [vmem:[%s1 + $0x1038] sm:$0xff]
    %v548 = vld [vmem:[%s1 + $0x1040] sm:$0xff]
    %v549 = vld [vmem:[%s1 + $0x1048] sm:$0xff]
    %v550 = vld [vmem:[%s1 + $0x1050] sm:$0xff]
    %v551 = vld [vmem:[%s1 + $0x1058] sm:$0xff]
    %v552 = vld [vmem:[%s1 + $0x1060] sm:$0xff]
    %v553 = vld [vmem:[%s1 + $0x1068] sm:$0xff]
    %v554 = vld [vmem:[%s1 + $0x1070] sm:$0xff]
    %v555 = vld [vmem:[%s1 + $0x1078] sm:$0xff]
    %v556 = vld [vmem:[%s1 + $0x1080] sm:$0xff]
    %v557 = vld [vmem:[%s1 + $0x1088] sm:$0xff]
    %v558 = vld [vmem:[%s1 + $0x1090] sm:$0xff]
    %v559 = vld [vmem:[%s1 + $0x1098] sm:$0xff]
    %v560 = vld [vmem:[%s1 + $0x10a0] sm:$0xff]
    %v561 = vld [vmem:[%s1 + $0x10a8] sm:$0xff]
    %v562 = vld [vmem:[%s1 + $0x10b0] sm:$0xff]
    %v563 = vld [vmem:[%s1 + $0x10b8] sm:$0xff]
    %v564 = vld [vmem:[%s1 + $0x10c0] sm:$0xff]
    %v565 = vld [vmem:[%s1 + $0x10c8] sm:$0xff]
    %v566 = vld [vmem:[%s1 + $0x10d0] sm:$0xff]
    %v567 = vld [vmem:[%s1 + $0x10d8] sm:$0xff]
    %v568 = vld [vmem:[%s1 + $0x10e0] sm:$0xff]
    %v569 = vld [vmem:[%s1 + $0x10e8] sm:$0xff]
    %v570 = vld [vmem:[%s1 + $0x10f0] sm:$0xff]
    %v571 = vld [vmem:[%s1 + $0x10f8] sm:$0xff]
    %v572 = vld [vmem:[%s1 + $0x1100] sm:$0xff]
    %v573 = vld [vmem:[%s1 + $0x1108] sm:$0xff]
    %v574 = vld [vmem:[%s1 + $0x1110] sm:$0xff]
    %v575 = vld [vmem:[%s1 + $0x1118] sm:$0xff]
    %v576 = vld [vmem:[%s1 + $0x1120] sm:$0xff]
    %v577 = vld [vmem:[%s1 + $0x1128] sm:$0xff]
    %v578 = vld [vmem:[%s1 + $0x1130] sm:$0xff]
    %v579 = vld [vmem:[%s1 + $0x1138] sm:$0xff]
    %v580 = vld [vmem:[%s1 + $0x1140] sm:$0xff]
    %v581 = vld [vmem:[%s1 + $0x1148] sm:$0xff]
    %v582 = vld [vmem:[%s1 + $0x1150] sm:$0xff]
    %v583 = vld [vmem:[%s1 + $0x1158] sm:$0xff]
    %v584 = vld [vmem:[%s1 + $0x1160] sm:$0xff]
    %v585 = vld [vmem:[%s1 + $0x1168] sm:$0xff]
    %v586 = vld [vmem:[%s1 + $0x1170] sm:$0xff]
    %v587 = vld [vmem:[%s1 + $0x1178] sm:$0xff]
    %v588 = vld [vmem:[%s1 + $0x1180] sm:$0xff]
    %v589 = vld [vmem:[%s1 + $0x1188] sm:$0xff]
    %v590 = vld [vmem:[%s1 + $0x1190] sm:$0xff]
    %v591 = vld [vmem:[%s1 + $0x1198] sm:$0xff]
    %v592 = vld [vmem:[%s1 + $0x11a0] sm:$0xff]
    %v593 = vld [vmem:[%s1 + $0x11a8] sm:$0xff]
    %v594 = vld [vmem:[%s1 + $0x11b0] sm:$0xff]
    %v595 = vld [vmem:[%s1 + $0x11b8] sm:$0xff]
    %v596 = vld [vmem:[%s1 + $0x11c0] sm:$0xff]
    %v597 = vld [vmem:[%s1 + $0x11c8] sm:$0xff]
    %v598 = vld [vmem:[%s1 + $0x11d0] sm:$0xff]
    %v599 = vld [vmem:[%s1 + $0x11d8] sm:$0xff]
    %v600 = vld [vmem:[%s1 + $0x11e0] sm:$0xff]
    %v601 = vld [vmem:[%s1 + $0x11e8] sm:$0xff]
    %v602 = vld [vmem:[%s1 + $0x11f0] sm:$0xff]
    %v603 = vld [vmem:[%s1 + $0x11f8] sm:$0xff]
    %v604 = vld [vmem:[%s1 + $0x1200] sm:$0xff]
    %v605 = vld [vmem:[%s1 + $0x1208] sm:$0xff]
    %v606 = vld [vmem:[%s1 + $0x1210] sm:$0xff]
    %v607 = vld [vmem:[%s1 + $0x1218] sm:$0xff]
    %v608 = vld [vmem:[%s1 + $0x1220] sm:$0xff]
    %v609 = vld [vmem:[%s1 + $0x1228] sm:$0xff]
    %v610 = vld [vmem:[%s1 + $0x1230] sm:$0xff]
    %v611 = vld [vmem:[%s1 + $0x1238] sm:$0xff]
    %v612 = vld [vmem:[%s1 + $0x1240] sm:$0xff]
    %v613 = vld [vmem:[%s1 + $0x1248] sm:$0xff]
    %v614 = vld [vmem:[%s1 + $0x1250] sm:$0xff]
    %v615 = vld [vmem:[%s1 + $0x1258] sm:$0xff]
    %v616 = vld [vmem:[%s1 + $0x1260] sm:$0xff]
    %v617 = vld [vmem:[%s1 + $0x1268] sm:$0xff]
    %v618 = vld [vmem:[%s1 + $0x1270] sm:$0xff]
    %v619 = vld [vmem:[%s1 + $0x1278] sm:$0xff]
    %v620 = vld [vmem:[%s1 + $0x1280] sm:$0xff]
    %v621 = vld [vmem:[%s1 + $0x1288] sm:$0xff]
    %v622 = vld [vmem:[%s1 + $0x1290] sm:$0xff]
    %v623 = vld [vmem:[%s1 + $0x1298] sm:$0xff]
    %v624 = vld [vmem:[%s1 + $0x12a0] sm:$0xff]
    %v625 = vld [vmem:[%s1 + $0x12a8] sm:$0xff]
    %v626 = vld [vmem:[%s1 + $0x12b0] sm:$0xff]
    %v627 = vld [vmem:[%s1 + $0x12b8] sm:$0xff]
    %v628 = vld [vmem:[%s1 + $0x12c0] sm:$0xff]
    %v629 = vld [vmem:[%s1 + $0x12c8] sm:$0xff]
    %v630 = vld [vmem:[%s1 + $0x12d0] sm:$0xff]
    %v631 = vld [vmem:[%s1 + $0x12d8] sm:$0xff]
    %v632 = vld [vmem:[%s1 + $0x12e0] sm:$0xff]
    %v633 = vld [vmem:[%s1 + $0x12e8] sm:$0xff]
    %v634 = vld [vmem:[%s1 + $0x12f0] sm:$0xff]
    %v635 = vld [vmem:[%s1 + $0x12f8] sm:$0xff]
    %v636 = vld [vmem:[%s1 + $0x1300] sm:$0xff]
    %v637 = vld [vmem:[%s1 + $0x1308] sm:$0xff]
    %v638 = vld [vmem:[%s1 + $0x1310] sm:$0xff]
    %v639 = vld [vmem:[%s1 + $0x1318] sm:$0xff]
    %v640 = vld [vmem:[%s1 + $0x1320] sm:$0xff]
    %v641 = vld [vmem:[%s1 + $0x1328] sm:$0xff]
    %v642 = vld [vmem:[%s1 + $0x1330] sm:$0xff]
    %v643 = vld [vmem:[%s1 + $0x1338] sm:$0xff]
    %v644 = vld [vmem:[%s1 + $0x1340] sm:$0xff]
    %v645 = vld [vmem:[%s1 + $0x1348] sm:$0xff]
    %v646 = vld [vmem:[%s1 + $0x1350] sm:$0xff]
    %v647 = vld [vmem:[%s1 + $0x1358] sm:$0xff]
    %v648 = vld [vmem:[%s1 + $0x1360] sm:$0xff]
    %v649 = vld [vmem:[%s1 + $0x1368] sm:$0xff]
    %v650 = vld [vmem:[%s1 + $0x1370] sm:$0xff]
    %v651 = vld [vmem:[%s1 + $0x1378] sm:$0xff]
    %v652 = vld [vmem:[%s1 + $0x1380] sm:$0xff]
    %v653 = vld [vmem:[%s1 + $0x1388] sm:$0xff]
    %v654 = vld [vmem:[%s1 + $0x1390] sm:$0xff]
    %v655 = vld [vmem:[%s1 + $0x1398] sm:$0xff]
    %v656 = vld [vmem:[%s1 + $0x13a0] sm:$0xff]
    %v657 = vld [vmem:[%s1 + $0x13a8] sm:$0xff]
    %v658 = vld [vmem:[%s1 + $0x13b0] sm:$0xff]
    %v659 = vld [vmem:[%s1 + $0x13b8] sm:$0xff]
    %v660 = vld [vmem:[%s1 + $0x13c0] sm:$0xff]
    %v661 = vld [vmem:[%s1 + $0x13c8] sm:$0xff]
    %v662 = vld [vmem:[%s1 + $0x13d0] sm:$0xff]
    %v663 = vld [vmem:[%s1 + $0x13d8] sm:$0xff]
    %v664 = vld [vmem:[%s1 + $0x13e0] sm:$0xff]
    %v665 = vld [vmem:[%s1 + $0x13e8] sm:$0xff]
    %v666 = vld [vmem:[%s1 + $0x13f0] sm:$0xff]
    %v667 = vld [vmem:[%s1 + $0x13f8] sm:$0xff]
    %v668 = vld [vmem:[%s1 + $0x1400] sm:$0xff]
    %v669 = vld [vmem:[%s1 + $0x1408] sm:$0xff]
    %v670 = vld [vmem:[%s1 + $0x1410] sm:$0xff]
    %v671 = vld [vmem:[%s1 + $0x1418] sm:$0xff]
    %v672 = vld [vmem:[%s1 + $0x1420] sm:$0xff]
    %v673 = vld [vmem:[%s1 + $0x1428] sm:$0xff]
    %v674 = vld [vmem:[%s1 + $0x1430] sm:$0xff]
    %v675 = vld [vmem:[%s1 + $0x1438] sm:$0xff]
    %v676 = vld [vmem:[%s1 + $0x1440] sm:$0xff]
    %v677 = vld [vmem:[%s1 + $0x1448] sm:$0xff]
    %v678 = vld [vmem:[%s1 + $0x1450] sm:$0xff]
    %v679 = vld [vmem:[%s1 + $0x1458] sm:$0xff]
    %v680 = vld [vmem:[%s1 + $0x1460] sm:$0xff]
    %v681 = vld [vmem:[%s1 + $0x1468] sm:$0xff]
    %v682 = vld [vmem:[%s1 + $0x1470] sm:$0xff]
    %v683 = vld [vmem:[%s1 + $0x1478] sm:$0xff]
    %v684 = vld [vmem:[%s1 + $0x1480] sm:$0xff]
    %v685 = vld [vmem:[%s1 + $0x1488] sm:$0xff]
    %v686 = vld [vmem:[%s1 + $0x1490] sm:$0xff]
    %v687 = vld [vmem:[%s1 + $0x1498] sm:$0xff]
    %v688 = vld [vmem:[%s1 + $0x14a0] sm:$0xff]
    %v689 = vld [vmem:[%s1 + $0x14a8] sm:$0xff]
    %v690 = vld [vmem:[%s1 + $0x14b0] sm:$0xff]
    %v691 = vld [vmem:[%s1 + $0x14b8] sm:$0xff]
    %v692 = vld [vmem:[%s1 + $0x14c0] sm:$0xff]
    %v693 = vld [vmem:[%s1 + $0x14c8] sm:$0xff]
    %v694 = vld [vmem:[%s1 + $0x14d0] sm:$0xff]
    %v695 = vld [vmem:[%s1 + $0x14d8] sm:$0xff]
    %v696 = vld [vmem:[%s1 + $0x14e0] sm:$0xff]
    %v697 = vld [vmem:[%s1 + $0x14e8] sm:$0xff]
    %v698 = vld [vmem:[%s1 + $0x14f0] sm:$0xff]
    %v699 = vld [vmem:[%s1 + $0x14f8] sm:$0xff]
    %v700 = vld [vmem:[%s1 + $0x1500] sm:$0xff]
    %v701 = vld [vmem:[%s1 + $0x1508] sm:$0xff]
    %v702 = vld [vmem:[%s1 + $0x1510] sm:$0xff]
    %v703 = vld [vmem:[%s1 + $0x1518] sm:$0xff]
    %v704 = vld [vmem:[%s1 + $0x1520] sm:$0xff]
    %v705 = vld [vmem:[%s1 + $0x1528] sm:$0xff]
    %v706 = vld [vmem:[%s1 + $0x1530] sm:$0xff]
    %v707 = vld [vmem:[%s1 + $0x1538] sm:$0xff]
    %v708 = vld [vmem:[%s1 + $0x1540] sm:$0xff]
    %v709 = vld [vmem:[%s1 + $0x1548] sm:$0xff]
    %v710 = vld [vmem:[%s1 + $0x1550] sm:$0xff]
    %v711 = vld [vmem:[%s1 + $0x1558] sm:$0xff]
    %v712 = vld [vmem:[%s1 + $0x1560] sm:$0xff]
    %v713 = vld [vmem:[%s1 + $0x1568] sm:$0xff]
    %v714 = vld [vmem:[%s1 + $0x1570] sm:$0xff]
    %v715 = vld [vmem:[%s1 + $0x1578] sm:$0xff]
    %v716 = vld [vmem:[%s1 + $0x1580] sm:$0xff]
    %v717 = vld [vmem:[%s1 + $0x1588] sm:$0xff]
    %v718 = vld [vmem:[%s1 + $0x1590] sm:$0xff]
    %v719 = vld [vmem:[%s1 + $0x1598] sm:$0xff]
    %v720 = vld [vmem:[%s1 + $0x15a0] sm:$0xff]
    %v721 = vld [vmem:[%s1 + $0x15a8] sm:$0xff]
    %v722 = vld [vmem:[%s1 + $0x15b0] sm:$0xff]
    %v723 = vld [vmem:[%s1 + $0x15b8] sm:$0xff]
    %v724 = vld [vmem:[%s1 + $0x15c0] sm:$0xff]
    %v725 = vld [vmem:[%s1 + $0x15c8] sm:$0xff]
    %v726 = vld [vmem:[%s1 + $0x15d0] sm:$0xff]
    %v727 = vld [vmem:[%s1 + $0x15d8] sm:$0xff]
    %v728 = vld [vmem:[%s1 + $0x15e0] sm:$0xff]
    %v729 = vld [vmem:[%s1 + $0x15e8] sm:$0xff]
    %v730 = vld [vmem:[%s1 + $0x15f0] sm:$0xff]
    %v731 = vld [vmem:[%s1 + $0x15f8] sm:$0xff]
    %v732 = vld [vmem:[%s1 + $0x1600] sm:$0xff]
    %v733 = vld [vmem:[%s1 + $0x1608] sm:$0xff]
    %v734 = vld [vmem:[%s1 + $0x1610] sm:$0xff]
    %v735 = vld [vmem:[%s1 + $0x1618] sm:$0xff]
    %v736 = vld [vmem:[%s1 + $0x1620] sm:$0xff]
    %v737 = vld [vmem:[%s1 + $0x1628] sm:$0xff]
    %v738 = vld [vmem:[%s1 + $0x1630] sm:$0xff]
    %v739 = vld [vmem:[%s1 + $0x1638] sm:$0xff]
    %v740 = vld [vmem:[%s1 + $0x1640] sm:$0xff]
    %v741 = vld [vmem:[%s1 + $0x1648] sm:$0xff]
    %v742 = vld [vmem:[%s1 + $0x1650] sm:$0xff]
    %v743 = vld [vmem:[%s1 + $0x1658] sm:$0xff]
    %v744 = vld [vmem:[%s1 + $0x1660] sm:$0xff]
    %v745 = vld [vmem:[%s1 + $0x1668] sm:$0xff]
    %v746 = vld [vmem:[%s1 + $0x1670] sm:$0xff]
    %v747 = vld [vmem:[%s1 + $0x1678] sm:$0xff]
    %v748 = vld [vmem:[%s1 + $0x1680] sm:$0xff]
    %v749 = vld [vmem:[%s1 + $0x1688] sm:$0xff]
    %v750 = vld [vmem:[%s1 + $0x1690] sm:$0xff]
    %v751 = vld [vmem:[%s1 + $0x1698] sm:$0xff]
    %v752 = vld [vmem:[%s1 + $0x16a0] sm:$0xff]
    %v753 = vld [vmem:[%s1 + $0x16a8] sm:$0xff]
    %v754 = vld [vmem:[%s1 + $0x16b0] sm:$0xff]
    %v755 = vld [vmem:[%s1 + $0x16b8] sm:$0xff]
    %v756 = vld [vmem:[%s1 + $0x16c0] sm:$0xff]
    %v757 = vld [vmem:[%s1 + $0x16c8] sm:$0xff]
    %v758 = vld [vmem:[%s1 + $0x16d0] sm:$0xff]
    %v759 = vld [vmem:[%s1 + $0x16d8] sm:$0xff]
    %v760 = vld [vmem:[%s1 + $0x16e0] sm:$0xff]
    %v761 = vld [vmem:[%s1 + $0x16e8] sm:$0xff]
    %v762 = vld [vmem:[%s1 + $0x16f0] sm:$0xff]
    %v763 = vld [vmem:[%s1 + $0x16f8] sm:$0xff]
    %v764 = vld [vmem:[%s1 + $0x1700] sm:$0xff]
    %v765 = vld [vmem:[%s1 + $0x1708] sm:$0xff]
    %v766 = vld [vmem:[%s1 + $0x1710] sm:$0xff]
    %v767 = vld [vmem:[%s1 + $0x1718] sm:$0xff]
    %v768 = vld [vmem:[%s1 + $0x1720] sm:$0xff]
    %v769 = vld [vmem:[%s1 + $0x1728] sm:$0xff]
    %v770 = vld [vmem:[%s1 + $0x1730] sm:$0xff]
    %v771 = vld [vmem:[%s1 + $0x1738] sm:$0xff]
    %v772 = vld [vmem:[%s1 + $0x1740] sm:$0xff]
    %v773 = vld [vmem:[%s1 + $0x1748] sm:$0xff]
    %v774 = vld [vmem:[%s1 + $0x1750] sm:$0xff]
    %v775 = vld [vmem:[%s1 + $0x1758] sm:$0xff]
    %v776 = vld [vmem:[%s1 + $0x1760] sm:$0xff]
    %v777 = vld [vmem:[%s1 + $0x1768] sm:$0xff]
    %v778 = vld [vmem:[%s1 + $0x1770] sm:$0xff]
    %v779 = vld [vmem:[%s1 + $0x1778] sm:$0xff]
    %v780 = vld [vmem:[%s1 + $0x1780] sm:$0xff]
    %v781 = vld [vmem:[%s1 + $0x1788] sm:$0xff]
    %v782 = vld [vmem:[%s1 + $0x1790] sm:$0xff]
    %v783 = vld [vmem:[%s1 + $0x1798] sm:$0xff]
    %v784 = vld [vmem:[%s1 + $0x17a0] sm:$0xff]
    %v785 = vld [vmem:[%s1 + $0x17a8] sm:$0xff]
    %v786 = vld [vmem:[%s1 + $0x17b0] sm:$0xff]
    %v787 = vld [vmem:[%s1 + $0x17b8] sm:$0xff]
    %v788 = vld [vmem:[%s1 + $0x17c0] sm:$0xff]
    %v789 = vld [vmem:[%s1 + $0x17c8] sm:$0xff]
    %v790 = vld [vmem:[%s1 + $0x17d0] sm:$0xff]
    %v791 = vld [vmem:[%s1 + $0x17d8] sm:$0xff]
    %v792 = vld [vmem:[%s1 + $0x17e0] sm:$0xff]
    %v793 = vld [vmem:[%s1 + $0x17e8] sm:$0xff]
    %v794 = vld [vmem:[%s1 + $0x17f0] sm:$0xff]
    %v795 = vld [vmem:[%s1 + $0x17f8] sm:$0xff]
    %v796 = vld [vmem:[%s1 + $0x1800] sm:$0xff]
    %v797 = vld [vmem:[%s1 + $0x1808] sm:$0xff]
    %v798 = vld [vmem:[%s1 + $0x1810] sm:$0xff]
    %v799 = vld [vmem:[%s1 + $0x1818] sm:$0xff]
    %v800 = vld [vmem:[%s1 + $0x1820] sm:$0xff]
    %v801 = vld [vmem:[%s1 + $0x1828] sm:$0xff]
    %v802 = vld [vmem:[%s1 + $0x1830] sm:$0xff]
    %v803 = vld [vmem:[%s1 + $0x1838] sm:$0xff]
    %v804 = vld [vmem:[%s1 + $0x1840] sm:$0xff]
    %v805 = vld [vmem:[%s1 + $0x1848] sm:$0xff]
    %v806 = vld [vmem:[%s1 + $0x1850] sm:$0xff]
    %v807 = vld [vmem:[%s1 + $0x1858] sm:$0xff]
    %v808 = vld [vmem:[%s1 + $0x1860] sm:$0xff]
    %v809 = vld [vmem:[%s1 + $0x1868] sm:$0xff]
    %v810 = vld [vmem:[%s1 + $0x1870] sm:$0xff]
    %v811 = vld [vmem:[%s1 + $0x1878] sm:$0xff]
    %v812 = vld [vmem:[%s2] sm:$0x1]
    %v814 = vlaneseq
    %v815 = vshrl.u32 %v814, 7
    %v816 = vsub.s32 0, %v815
    %v817 = vrot.slane %v812, %v816
    %v832 = vcombine.high %v15, %v15
    %v834 = vunpack.c.l.s4 1983009808
    %v835 = vunpack.c.0.s8 %v834
    %v836 = vlaneseq
    %v837 = vshrl.u32 %v836, 7
    %v838 = vsub.s32 %v835, %v837
    %v839 = vrot.slane %v15, %v838
    %v841 = vunpack.c.l.s4 1983009808
    %v842 = vunpack.c.0.s8 %v841
    %v843 = vlaneseq
    %v844 = vshrl.u32 %v843, 7
    %v845 = vsub.s32 %v842, %v844
    %v846 = vrot.slane %v832, %v845
    %v847 = vcombine.high %v839, %v839
    %v848 = vcombine.high %v846, %v846
    %v849 = vcombine.high %v16, %v16
    %v851 = vunpack.c.l.s4 1983009808
    %v852 = vunpack.c.0.s8 %v851
    %v853 = vlaneseq
    %v854 = vshrl.u32 %v853, 7
    %v855 = vsub.s32 %v852, %v854
    %v856 = vrot.slane %v16, %v855
    %v858 = vunpack.c.l.s4 1983009808
    %v859 = vunpack.c.0.s8 %v858
    %v860 = vlaneseq
    %v861 = vshrl.u32 %v860, 7
    %v862 = vsub.s32 %v859, %v861
    %v863 = vrot.slane %v849, %v862
    %v864 = vcombine.high %v856, %v856
    %v865 = vcombine.high %v863, %v863
    %v866 = vcombine.high %v17, %v17
    %v868 = vunpack.c.l.s4 1983009808
    %v869 = vunpack.c.0.s8 %v868
    %v870 = vlaneseq
    %v871 = vshrl.u32 %v870, 7
    %v872 = vsub.s32 %v869, %v871
    %v873 = vrot.slane %v17, %v872
    %v875 = vunpack.c.l.s4 1983009808
    %v876 = vunpack.c.0.s8 %v875
    %v877 = vlaneseq
    %v878 = vshrl.u32 %v877, 7
    %v879 = vsub.s32 %v876, %v878
    %v880 = vrot.slane %v866, %v879
    %v881 = vcombine.high %v873, %v873
    %v882 = vcombine.high %v880, %v880
    %v883 = vcombine.high %v18, %v18
    %v885 = vunpack.c.l.s4 1983009808
    %v886 = vunpack.c.0.s8 %v885
    %v887 = vlaneseq
    %v888 = vshrl.u32 %v887, 7
    %v889 = vsub.s32 %v886, %v888
    %v890 = vrot.slane %v18, %v889
    %v892 = vunpack.c.l.s4 1983009808
    %v893 = vunpack.c.0.s8 %v892
    %v894 = vlaneseq
    %v895 = vshrl.u32 %v894, 7
    %v896 = vsub.s32 %v893, %v895
    %v897 = vrot.slane %v883, %v896
    %v898 = vcombine.high %v890, %v890
    %v899 = vcombine.high %v897, %v897
    %v900 = vcombine.high %v19, %v19
    %v902 = vunpack.c.l.s4 1983009808
    %v903 = vunpack.c.0.s8 %v902
    %v904 = vlaneseq
    %v905 = vshrl.u32 %v904, 7
    %v906 = vsub.s32 %v903, %v905
    %v907 = vrot.slane %v19, %v906
    %v909 = vunpack.c.l.s4 1983009808
    %v910 = vunpack.c.0.s8 %v909
    %v911 = vlaneseq
    %v912 = vshrl.u32 %v911, 7
    %v913 = vsub.s32 %v910, %v912
    %v914 = vrot.slane %v900, %v913
    %v915 = vcombine.high %v907, %v907
    %v916 = vcombine.high %v914, %v914
    %v917 = vcombine.high %v20, %v20
    %v919 = vunpack.c.l.s4 1983009808
    %v920 = vunpack.c.0.s8 %v919
    %v921 = vlaneseq
    %v922 = vshrl.u32 %v921, 7
    %v923 = vsub.s32 %v920, %v922
    %v924 = vrot.slane %v20, %v923
    %v926 = vunpack.c.l.s4 1983009808
    %v927 = vunpack.c.0.s8 %v926
    %v928 = vlaneseq
    %v929 = vshrl.u32 %v928, 7
    %v930 = vsub.s32 %v927, %v929
    %v931 = vrot.slane %v917, %v930
    %v932 = vcombine.high %v924, %v924
    %v933 = vcombine.high %v931, %v931
    %v934 = vcombine.high %v21, %v21
    %v936 = vunpack.c.l.s4 1983009808
    %v937 = vunpack.c.0.s8 %v936
    %v938 = vlaneseq
    %v939 = vshrl.u32 %v938, 7
    %v940 = vsub.s32 %v937, %v939
    %v941 = vrot.slane %v21, %v940
    %v943 = vunpack.c.l.s4 1983009808
    %v944 = vunpack.c.0.s8 %v943
    %v945 = vlaneseq
    %v946 = vshrl.u32 %v945, 7
    %v947 = vsub.s32 %v944, %v946
    %v948 = vrot.slane %v934, %v947
    %v949 = vcombine.high %v941, %v941
    %v950 = vcombine.high %v948, %v948
    %v951 = vcombine.high %v22, %v22
    %v953 = vunpack.c.l.s4 1983009808
    %v954 = vunpack.c.0.s8 %v953
    %v955 = vlaneseq
    %v956 = vshrl.u32 %v955, 7
    %v957 = vsub.s32 %v954, %v956
    %v958 = vrot.slane %v22, %v957
    %v960 = vunpack.c.l.s4 1983009808
    %v961 = vunpack.c.0.s8 %v960
    %v962 = vlaneseq
    %v963 = vshrl.u32 %v962, 7
    %v964 = vsub.s32 %v961, %v963
    %v965 = vrot.slane %v951, %v964
    %v966 = vcombine.high %v958, %v958
    %v967 = vcombine.high %v965, %v965
    %v968 = vcombine.high %v23, %v23
    %v970 = vunpack.c.l.s4 1983009808
    %v971 = vunpack.c.0.s8 %v970
    %v972 = vlaneseq
    %v973 = vshrl.u32 %v972, 7
    %v974 = vsub.s32 %v971, %v973
    %v975 = vrot.slane %v23, %v974
    %v977 = vunpack.c.l.s4 1983009808
    %v978 = vunpack.c.0.s8 %v977
    %v979 = vlaneseq
    %v980 = vshrl.u32 %v979, 7
    %v981 = vsub.s32 %v978, %v980
    %v982 = vrot.slane %v968, %v981
    %v983 = vcombine.high %v975, %v975
    %v984 = vcombine.high %v982, %v982
    %v985 = vcombine.high %v24, %v24
    %v987 = vunpack.c.l.s4 1983009808
    %v988 = vunpack.c.0.s8 %v987
    %v989 = vlaneseq
    %v990 = vshrl.u32 %v989, 7
    %v991 = vsub.s32 %v988, %v990
    %v992 = vrot.slane %v24, %v991
    %v994 = vunpack.c.l.s4 1983009808
    %v995 = vunpack.c.0.s8 %v994
    %v996 = vlaneseq
    %v997 = vshrl.u32 %v996, 7
    %v998 = vsub.s32 %v995, %v997
    %v999 = vrot.slane %v985, %v998
    %v1000 = vcombine.high %v992, %v992
    %v1001 = vcombine.high %v999, %v999
    %v1002 = vcombine.high %v25, %v25
    %v1004 = vunpack.c.l.s4 1983009808
    %v1005 = vunpack.c.0.s8 %v1004
    %v1006 = vlaneseq
    %v1007 = vshrl.u32 %v1006, 7
    %v1008 = vsub.s32 %v1005, %v1007
    %v1009 = vrot.slane %v25, %v1008
    %v1011 = vunpack.c.l.s4 1983009808
    %v1012 = vunpack.c.0.s8 %v1011
    %v1013 = vlaneseq
    %v1014 = vshrl.u32 %v1013, 7
    %v1015 = vsub.s32 %v1012, %v1014
    %v1016 = vrot.slane %v1002, %v1015
    %v1017 = vcombine.high %v1009, %v1009
    %v1018 = vcombine.high %v1016, %v1016
    %v1019 = vcombine.high %v26, %v26
    %v1021 = vunpack.c.l.s4 1983009808
    %v1022 = vunpack.c.0.s8 %v1021
    %v1023 = vlaneseq
    %v1024 = vshrl.u32 %v1023, 7
    %v1025 = vsub.s32 %v1022, %v1024
    %v1026 = vrot.slane %v26, %v1025
    %v1028 = vunpack.c.l.s4 1983009808
    %v1029 = vunpack.c.0.s8 %v1028
    %v1030 = vlaneseq
    %v1031 = vshrl.u32 %v1030, 7
    %v1032 = vsub.s32 %v1029, %v1031
    %v1033 = vrot.slane %v1019, %v1032
    %v1034 = vcombine.high %v1026, %v1026
    %v1035 = vcombine.high %v1033, %v1033
    %v1037 = vunpack.c.l.s4 1983009808
    %v1038 = vunpack.c.0.s8 %v1037
    %v1039 = vlaneseq
    %v1040 = vshrl.u32 %v1039, 7
    %v1041 = vsub.s32 %v1038, %v1040
    %v1042 = vrot.slane %v27, %v1041
    %1092 = vmatprep.subr.mxu0 0.0
    %1093 = vmatpush1.msra.mxu0 %v28
    %1094 = vmatprep.subr.mxu0 0.0
    %1095 = vmatpush1.msra.mxu0 %v29
    %1096 = vmatprep.subr.mxu0 0.0
    %1097 = vmatpush1.msra.mxu0 %v30
    %1098 = vmatprep.subr.mxu0 0.0
    %1099 = vmatpush1.msra.mxu0 %v31
    %1100 = vmatprep.subr.mxu0 0.0
    %1101 = vmatpush1.msra.mxu0 %v32
    %1102 = vmatprep.subr.mxu0 0.0
    %1103 = vmatpush1.msra.mxu0 %v33
    %1104 = vmatprep.subr.mxu0 0.0
    %1105 = vmatpush1.msra.mxu0 %v34
    %1106 = vmatprep.subr.mxu0 0.0
    %1107 = vmatpush1.msra.mxu0 %v35
    %1108 = vmatprep.subr.mxu0 0.0
    %1109 = vmatpush1.msra.mxu0 %v36
    %1110 = vmatprep.subr.mxu0 0.0
    %1111 = vmatpush1.msra.mxu0 %v37
    %1112 = vmatprep.subr.mxu0 0.0
    %1113 = vmatpush1.msra.mxu0 %v38
    %1114 = vmatprep.subr.mxu0 0.0
    %1115 = vmatpush1.msra.mxu0 %v39
    %1116 = vmatprep.subr.mxu0 0.0
    %1117 = vmatpush1.msra.mxu0 %v40
    %1118 = vmatprep.subr.mxu0 0.0
    %1119 = vmatpush1.msra.mxu0 %v41
    %1120 = vmatprep.subr.mxu0 0.0
    %1121 = vmatpush1.msra.mxu0 %v42
    %1122 = vmatprep.subr.mxu0 0.0
    %1123 = vmatpush1.msra.mxu0 %v43
    %1124 = vmatprep.subr.mxu0 0.0
    %1125 = vmatpush1.msra.mxu0 %v44
    %1126 = vmatprep.subr.mxu0 0.0
    %1127 = vmatpush1.msra.mxu0 %v45
    %1128 = vmatprep.subr.mxu0 0.0
    %1129 = vmatpush1.msra.mxu0 %v46
    %1130 = vmatprep.subr.mxu0 0.0
    %1131 = vmatpush1.msra.mxu0 %v47
    %1132 = vmatprep.subr.mxu0 0.0
    %1133 = vmatpush1.msra.mxu0 %v48
    %1134 = vmatprep.subr.mxu0 0.0
    %1135 = vmatpush1.msra.mxu0 %v49
    %1136 = vmatprep.subr.mxu0 0.0
    %1137 = vmatpush1.msra.mxu0 %v50
    %1138 = vmatprep.subr.mxu0 0.0
    %1139 = vmatpush1.msra.mxu0 %v51
    %1140 = vmatprep.subr.mxu0 0.0
    %1141 = vmatpush1.msra.mxu0 %v52
    %1142 = vmatprep.subr.mxu0 0.0
    %1143 = vmatpush1.msra.mxu0 %v53
    %1144 = vmatprep.subr.mxu0 0.0
    %1145 = vmatpush1.msra.mxu0 %v54
    %1146 = vmatprep.subr.mxu0 0.0
    %1147 = vmatpush1.msra.mxu0 %v55
    %1148 = vmatprep.subr.mxu0 0.0
    %1149 = vmatpush1.msra.mxu0 %v56
    %1150 = vmatprep.subr.mxu0 0.0
    %1151 = vmatpush1.msra.mxu0 %v57
    %1152 = vmatprep.subr.mxu0 0.0
    %1153 = vmatpush1.msra.mxu0 %v58
    %1154 = vmatprep.subr.mxu0 0.0
    %1155 = vmatpush1.msra.mxu0 %v59
    %1156 = vmatprep.mubr.f32.mxu0 %v847
    %1157 = vmatmul.mubr.f32.gmra.mrb[0].mxu0 %v839
    %v1158 = vpop.f32.mrb[0].mxu0
    %v1159 = vadd.f32 %v817, %v1158
    %v1160 = vpop.f32.mrb[0].mxu0
    %1161 = vdwg.mxu0
    %1162 = vmatprep.subr.mxu0 0.0
    %1163 = vmatpush1.msra.mxu0 %v60
    %1164 = vmatprep.subr.mxu0 0.0
    %1165 = vmatpush1.msra.mxu0 %v61
    %1166 = vmatprep.subr.mxu0 0.0
    %1167 = vmatpush1.msra.mxu0 %v62
    %1168 = vmatprep.subr.mxu0 0.0
    %1169 = vmatpush1.msra.mxu0 %v63
    %1170 = vmatprep.subr.mxu0 0.0
    %1171 = vmatpush1.msra.mxu0 %v64
    %1172 = vmatprep.subr.mxu0 0.0
    %1173 = vmatpush1.msra.mxu0 %v65
    %1174 = vmatprep.subr.mxu0 0.0
    %1175 = vmatpush1.msra.mxu0 %v66
    %1176 = vmatprep.subr.mxu0 0.0
    %1177 = vmatpush1.msra.mxu0 %v67
    %1178 = vmatprep.subr.mxu0 0.0
    %1179 = vmatpush1.msra.mxu0 %v68
    %1180 = vmatprep.subr.mxu0 0.0
    %1181 = vmatpush1.msra.mxu0 %v69
    %1182 = vmatprep.subr.mxu0 0.0
    %1183 = vmatpush1.msra.mxu0 %v70
    %1184 = vmatprep.subr.mxu0 0.0
    %1185 = vmatpush1.msra.mxu0 %v71
    %1186 = vmatprep.subr.mxu0 0.0
    %1187 = vmatpush1.msra.mxu0 %v72
    %1188 = vmatprep.subr.mxu0 0.0
    %1189 = vmatpush1.msra.mxu0 %v73
    %1190 = vmatprep.subr.mxu0 0.0
    %1191 = vmatpush1.msra.mxu0 %v74
    %1192 = vmatprep.subr.mxu0 0.0
    %1193 = vmatpush1.msra.mxu0 %v75
    %1194 = vmatprep.subr.mxu0 0.0
    %1195 = vmatpush1.msra.mxu0 %v76
    %1196 = vmatprep.subr.mxu0 0.0
    %1197 = vmatpush1.msra.mxu0 %v77
    %1198 = vmatprep.subr.mxu0 0.0
    %1199 = vmatpush1.msra.mxu0 %v78
    %1200 = vmatprep.subr.mxu0 0.0
    %1201 = vmatpush1.msra.mxu0 %v79
    %1202 = vmatprep.subr.mxu0 0.0
    %1203 = vmatpush1.msra.mxu0 %v80
    %1204 = vmatprep.subr.mxu0 0.0
    %1205 = vmatpush1.msra.mxu0 %v81
    %1206 = vmatprep.subr.mxu0 0.0
    %1207 = vmatpush1.msra.mxu0 %v82
    %1208 = vmatprep.subr.mxu0 0.0
    %1209 = vmatpush1.msra.mxu0 %v83
    %1210 = vmatprep.subr.mxu0 0.0
    %1211 = vmatpush1.msra.mxu0 %v84
    %1212 = vmatprep.subr.mxu0 0.0
    %1213 = vmatpush1.msra.mxu0 %v85
    %1214 = vmatprep.subr.mxu0 0.0
    %1215 = vmatpush1.msra.mxu0 %v86
    %1216 = vmatprep.subr.mxu0 0.0
    %1217 = vmatpush1.msra.mxu0 %v87
    %1218 = vmatprep.subr.mxu0 0.0
    %1219 = vmatpush1.msra.mxu0 %v88
    %1220 = vmatprep.subr.mxu0 0.0
    %1221 = vmatpush1.msra.mxu0 %v89
    %1222 = vmatprep.subr.mxu0 0.0
    %1223 = vmatpush1.msra.mxu0 %v90
    %1224 = vmatprep.subr.mxu0 0.0
    %1225 = vmatpush1.msra.mxu0 %v91
    %1226 = vmatprep.mubr.f32.mxu0 %v848
    %1227 = vmatmul.mubr.f32.gmra.mrb[0].mxu0 %v846
    %v1228 = vpop.f32.mrb[0].mxu0
    %v1229 = vadd.f32 %v1159, %v1228
    %v1230 = vpop.f32.mrb[0].mxu0
    %1231 = vdwg.mxu0
    %1232 = vmatprep.subr.mxu0 0.0
    %1233 = vmatpush1.msra.mxu0 %v92
    %1234 = vmatprep.subr.mxu0 0.0
    %1235 = vmatpush1.msra.mxu0 %v93
    %1236 = vmatprep.subr.mxu0 0.0
    %1237 = vmatpush1.msra.mxu0 %v94
    %1238 = vmatprep.subr.mxu0 0.0
    %1239 = vmatpush1.msra.mxu0 %v95
    %1240 = vmatprep.subr.mxu0 0.0
    %1241 = vmatpush1.msra.mxu0 %v96
    %1242 = vmatprep.subr.mxu0 0.0
    %1243 = vmatpush1.msra.mxu0 %v97
    %1244 = vmatprep.subr.mxu0 0.0
    %1245 = vmatpush1.msra.mxu0 %v98
    %1246 = vmatprep.subr.mxu0 0.0
    %1247 = vmatpush1.msra.mxu0 %v99
    %1248 = vmatprep.subr.mxu0 0.0
    %1249 = vmatpush1.msra.mxu0 %v100
    %1250 = vmatprep.subr.mxu0 0.0
    %1251 = vmatpush1.msra.mxu0 %v101
    %1252 = vmatprep.subr.mxu0 0.0
    %1253 = vmatpush1.msra.mxu0 %v102
    %1254 = vmatprep.subr.mxu0 0.0
    %1255 = vmatpush1.msra.mxu0 %v103
    %1256 = vmatprep.subr.mxu0 0.0
    %1257 = vmatpush1.msra.mxu0 %v104
    %1258 = vmatprep.subr.mxu0 0.0
    %1259 = vmatpush1.msra.mxu0 %v105
    %1260 = vmatprep.subr.mxu0 0.0
    %1261 = vmatpush1.msra.mxu0 %v106
    %1262 = vmatprep.subr.mxu0 0.0
    %1263 = vmatpush1.msra.mxu0 %v107
    %1264 = vmatprep.subr.mxu0 0.0
    %1265 = vmatpush1.msra.mxu0 %v108
    %1266 = vmatprep.subr.mxu0 0.0
    %1267 = vmatpush1.msra.mxu0 %v109
    %1268 = vmatprep.subr.mxu0 0.0
    %1269 = vmatpush1.msra.mxu0 %v110
    %1270 = vmatprep.subr.mxu0 0.0
    %1271 = vmatpush1.msra.mxu0 %v111
    %1272 = vmatprep.subr.mxu0 0.0
    %1273 = vmatpush1.msra.mxu0 %v112
    %1274 = vmatprep.subr.mxu0 0.0
    %1275 = vmatpush1.msra.mxu0 %v113
    %1276 = vmatprep.subr.mxu0 0.0
    %1277 = vmatpush1.msra.mxu0 %v114
    %1278 = vmatprep.subr.mxu0 0.0
    %1279 = vmatpush1.msra.mxu0 %v115
    %1280 = vmatprep.subr.mxu0 0.0
    %1281 = vmatpush1.msra.mxu0 %v116
    %1282 = vmatprep.subr.mxu0 0.0
    %1283 = vmatpush1.msra.mxu0 %v117
    %1284 = vmatprep.subr.mxu0 0.0
    %1285 = vmatpush1.msra.mxu0 %v118
    %1286 = vmatprep.subr.mxu0 0.0
    %1287 = vmatpush1.msra.mxu0 %v119
    %1288 = vmatprep.subr.mxu0 0.0
    %1289 = vmatpush1.msra.mxu0 %v120
    %1290 = vmatprep.subr.mxu0 0.0
    %1291 = vmatpush1.msra.mxu0 %v121
    %1292 = vmatprep.subr.mxu0 0.0
    %1293 = vmatpush1.msra.mxu0 %v122
    %1294 = vmatprep.subr.mxu0 0.0
    %1295 = vmatpush1.msra.mxu0 %v123
    %1296 = vmatprep.mubr.f32.mxu0 %v864
    %1297 = vmatmul.mubr.f32.gmra.mrb[0].mxu0 %v856
    %v1298 = vpop.f32.mrb[0].mxu0
    %v1299 = vadd.f32 %v1229, %v1298
    %v1300 = vpop.f32.mrb[0].mxu0
    %1301 = vdwg.mxu0
    %1302 = vmatprep.subr.mxu0 0.0
    %1303 = vmatpush1.msra.mxu0 %v124
    %1304 = vmatprep.subr.mxu0 0.0
    %1305 = vmatpush1.msra.mxu0 %v125
    %1306 = vmatprep.subr.mxu0 0.0
    %1307 = vmatpush1.msra.mxu0 %v126
    %1308 = vmatprep.subr.mxu0 0.0
    %1309 = vmatpush1.msra.mxu0 %v127
    %1310 = vmatprep.subr.mxu0 0.0
    %1311 = vmatpush1.msra.mxu0 %v128
    %1312 = vmatprep.subr.mxu0 0.0
    %1313 = vmatpush1.msra.mxu0 %v129
    %1314 = vmatprep.subr.mxu0 0.0
    %1315 = vmatpush1.msra.mxu0 %v130
    %1316 = vmatprep.subr.mxu0 0.0
    %1317 = vmatpush1.msra.mxu0 %v131
    %1318 = vmatprep.subr.mxu0 0.0
    %1319 = vmatpush1.msra.mxu0 %v132
    %1320 = vmatprep.subr.mxu0 0.0
    %1321 = vmatpush1.msra.mxu0 %v133
    %1322 = vmatprep.subr.mxu0 0.0
    %1323 = vmatpush1.msra.mxu0 %v134
    %1324 = vmatprep.subr.mxu0 0.0
    %1325 = vmatpush1.msra.mxu0 %v135
    %1326 = vmatprep.subr.mxu0 0.0
    %1327 = vmatpush1.msra.mxu0 %v136
    %1328 = vmatprep.subr.mxu0 0.0
    %1329 = vmatpush1.msra.mxu0 %v137
    %1330 = vmatprep.subr.mxu0 0.0
    %1331 = vmatpush1.msra.mxu0 %v138
    %1332 = vmatprep.subr.mxu0 0.0
    %1333 = vmatpush1.msra.mxu0 %v139
    %1334 = vmatprep.subr.mxu0 0.0
    %1335 = vmatpush1.msra.mxu0 %v140
    %1336 = vmatprep.subr.mxu0 0.0
    %1337 = vmatpush1.msra.mxu0 %v141
    %1338 = vmatprep.subr.mxu0 0.0
    %1339 = vmatpush1.msra.mxu0 %v142
    %1340 = vmatprep.subr.mxu0 0.0
    %1341 = vmatpush1.msra.mxu0 %v143
    %1342 = vmatprep.subr.mxu0 0.0
    %1343 = vmatpush1.msra.mxu0 %v144
    %1344 = vmatprep.subr.mxu0 0.0
    %1345 = vmatpush1.msra.mxu0 %v145
    %1346 = vmatprep.subr.mxu0 0.0
    %1347 = vmatpush1.msra.mxu0 %v146
    %1348 = vmatprep.subr.mxu0 0.0
    %1349 = vmatpush1.msra.mxu0 %v147
    %1350 = vmatprep.subr.mxu0 0.0
    %1351 = vmatpush1.msra.mxu0 %v148
    %1352 = vmatprep.subr.mxu0 0.0
    %1353 = vmatpush1.msra.mxu0 %v149
    %1354 = vmatprep.subr.mxu0 0.0
    %1355 = vmatpush1.msra.mxu0 %v150
    %1356 = vmatprep.subr.mxu0 0.0
    %1357 = vmatpush1.msra.mxu0 %v151
    %1358 = vmatprep.subr.mxu0 0.0
    %1359 = vmatpush1.msra.mxu0 %v152
    %1360 = vmatprep.subr.mxu0 0.0
    %1361 = vmatpush1.msra.mxu0 %v153
    %1362 = vmatprep.subr.mxu0 0.0
    %1363 = vmatpush1.msra.mxu0 %v154
    %1364 = vmatprep.subr.mxu0 0.0
    %1365 = vmatpush1.msra.mxu0 %v155
    %1366 = vmatprep.mubr.f32.mxu0 %v865
    %1367 = vmatmul.mubr.f32.gmra.mrb[0].mxu0 %v863
    %v1368 = vpop.f32.mrb[0].mxu0
    %v1369 = vadd.f32 %v1299, %v1368
    %v1370 = vpop.f32.mrb[0].mxu0
    %1371 = vdwg.mxu0
    %1372 = vmatprep.subr.mxu0 0.0
    %1373 = vmatpush1.msra.mxu0 %v156
    %1374 = vmatprep.subr.mxu0 0.0
    %1375 = vmatpush1.msra.mxu0 %v157
    %1376 = vmatprep.subr.mxu0 0.0
    %1377 = vmatpush1.msra.mxu0 %v158
    %1378 = vmatprep.subr.mxu0 0.0
    %1379 = vmatpush1.msra.mxu0 %v159
    %1380 = vmatprep.subr.mxu0 0.0
    %1381 = vmatpush1.msra.mxu0 %v160
    %1382 = vmatprep.subr.mxu0 0.0
    %1383 = vmatpush1.msra.mxu0 %v161
    %1384 = vmatprep.subr.mxu0 0.0
    %1385 = vmatpush1.msra.mxu0 %v162
    %1386 = vmatprep.subr.mxu0 0.0
    %1387 = vmatpush1.msra.mxu0 %v163
    %1388 = vmatprep.subr.mxu0 0.0
    %1389 = vmatpush1.msra.mxu0 %v164
    %1390 = vmatprep.subr.mxu0 0.0
    %1391 = vmatpush1.msra.mxu0 %v165
    %1392 = vmatprep.subr.mxu0 0.0
    %1393 = vmatpush1.msra.mxu0 %v166
    %1394 = vmatprep.subr.mxu0 0.0
    %1395 = vmatpush1.msra.mxu0 %v167
    %1396 = vmatprep.subr.mxu0 0.0
    %1397 = vmatpush1.msra.mxu0 %v168
    %1398 = vmatprep.subr.mxu0 0.0
    %1399 = vmatpush1.msra.mxu0 %v169
    %1400 = vmatprep.subr.mxu0 0.0
    %1401 = vmatpush1.msra.mxu0 %v170
    %1402 = vmatprep.subr.mxu0 0.0
    %1403 = vmatpush1.msra.mxu0 %v171
    %1404 = vmatprep.subr.mxu0 0.0
    %1405 = vmatpush1.msra.mxu0 %v172
    %1406 = vmatprep.subr.mxu0 0.0
    %1407 = vmatpush1.msra.mxu0 %v173
    %1408 = vmatprep.subr.mxu0 0.0
    %1409 = vmatpush1.msra.mxu0 %v174
    %1410 = vmatprep.subr.mxu0 0.0
    %1411 = vmatpush1.msra.mxu0 %v175
    %1412 = vmatprep.subr.mxu0 0.0
    %1413 = vmatpush1.msra.mxu0 %v176
    %1414 = vmatprep.subr.mxu0 0.0
    %1415 = vmatpush1.msra.mxu0 %v177
    %1416 = vmatprep.subr.mxu0 0.0
    %1417 = vmatpush1.msra.mxu0 %v178
    %1418 = vmatprep.subr.mxu0 0.0
    %1419 = vmatpush1.msra.mxu0 %v179
    %1420 = vmatprep.subr.mxu0 0.0
    %1421 = vmatpush1.msra.mxu0 %v180
    %1422 = vmatprep.subr.mxu0 0.0
    %1423 = vmatpush1.msra.mxu0 %v181
    %1424 = vmatprep.subr.mxu0 0.0
    %1425 = vmatpush1.msra.mxu0 %v182
    %1426 = vmatprep.subr.mxu0 0.0
    %1427 = vmatpush1.msra.mxu0 %v183
    %1428 = vmatprep.subr.mxu0 0.0
    %1429 = vmatpush1.msra.mxu0 %v184
    %1430 = vmatprep.subr.mxu0 0.0
    %1431 = vmatpush1.msra.mxu0 %v185
    %1432 = vmatprep.subr.mxu0 0.0
    %1433 = vmatpush1.msra.mxu0 %v186
    %1434 = vmatprep.subr.mxu0 0.0
    %1435 = vmatpush1.msra.mxu0 %v187
    %1436 = vmatprep.mubr.f32.mxu0 %v881
    %1437 = vmatmul.mubr.f32.gmra.mrb[0].mxu0 %v873
    %v1438 = vpop.f32.mrb[0].mxu0
    %v1439 = vadd.f32 %v1369, %v1438
    %v1440 = vpop.f32.mrb[0].mxu0
    %1441 = vdwg.mxu0
    %1442 = vmatprep.subr.mxu0 0.0
    %1443 = vmatpush1.msra.mxu0 %v188
    %1444 = vmatprep.subr.mxu0 0.0
    %1445 = vmatpush1.msra.mxu0 %v189
    %1446 = vmatprep.subr.mxu0 0.0
    %1447 = vmatpush1.msra.mxu0 %v190
    %1448 = vmatprep.subr.mxu0 0.0
    %1449 = vmatpush1.msra.mxu0 %v191
    %1450 = vmatprep.subr.mxu0 0.0
    %1451 = vmatpush1.msra.mxu0 %v192
    %1452 = vmatprep.subr.mxu0 0.0
    %1453 = vmatpush1.msra.mxu0 %v193
    %1454 = vmatprep.subr.mxu0 0.0
    %1455 = vmatpush1.msra.mxu0 %v194
    %1456 = vmatprep.subr.mxu0 0.0
    %1457 = vmatpush1.msra.mxu0 %v195
    %1458 = vmatprep.subr.mxu0 0.0
    %1459 = vmatpush1.msra.mxu0 %v196
    %1460 = vmatprep.subr.mxu0 0.0
    %1461 = vmatpush1.msra.mxu0 %v197
    %1462 = vmatprep.subr.mxu0 0.0
    %1463 = vmatpush1.msra.mxu0 %v198
    %1464 = vmatprep.subr.mxu0 0.0
    %1465 = vmatpush1.msra.mxu0 %v199
    %1466 = vmatprep.subr.mxu0 0.0
    %1467 = vmatpush1.msra.mxu0 %v200
    %1468 = vmatprep.subr.mxu0 0.0
    %1469 = vmatpush1.msra.mxu0 %v201
    %1470 = vmatprep.subr.mxu0 0.0
    %1471 = vmatpush1.msra.mxu0 %v202
    %1472 = vmatprep.subr.mxu0 0.0
    %1473 = vmatpush1.msra.mxu0 %v203
    %1474 = vmatprep.subr.mxu0 0.0
    %1475 = vmatpush1.msra.mxu0 %v204
    %1476 = vmatprep.subr.mxu0 0.0
    %1477 = vmatpush1.msra.mxu0 %v205
    %1478 = vmatprep.subr.mxu0 0.0
    %1479 = vmatpush1.msra.mxu0 %v206
    %1480 = vmatprep.subr.mxu0 0.0
    %1481 = vmatpush1.msra.mxu0 %v207
    %1482 = vmatprep.subr.mxu0 0.0
    %1483 = vmatpush1.msra.mxu0 %v208
    %1484 = vmatprep.subr.mxu0 0.0
    %1485 = vmatpush1.msra.mxu0 %v209
    %1486 = vmatprep.subr.mxu0 0.0
    %1487 = vmatpush1.msra.mxu0 %v210
    %1488 = vmatprep.subr.mxu0 0.0
    %1489 = vmatpush1.msra.mxu0 %v211
    %1490 = vmatprep.subr.mxu0 0.0
    %1491 = vmatpush1.msra.mxu0 %v212
    %1492 = vmatprep.subr.mxu0 0.0
    %1493 = vmatpush1.msra.mxu0 %v213
    %1494 = vmatprep.subr.mxu0 0.0
    %1495 = vmatpush1.msra.mxu0 %v214
    %1496 = vmatprep.subr.mxu0 0.0
    %1497 = vmatpush1.msra.mxu0 %v215
    %1498 = vmatprep.subr.mxu0 0.0
    %1499 = vmatpush1.msra.mxu0 %v216
    %1500 = vmatprep.subr.mxu0 0.0
    %1501 = vmatpush1.msra.mxu0 %v217
    %1502 = vmatprep.subr.mxu0 0.0
    %1503 = vmatpush1.msra.mxu0 %v218
    %1504 = vmatprep.subr.mxu0 0.0
    %1505 = vmatpush1.msra.mxu0 %v219
    %1506 = vmatprep.mubr.f32.mxu0 %v882
    %1507 = vmatmul.mubr.f32.gmra.mrb[0].mxu0 %v880
    %v1508 = vpop.f32.mrb[0].mxu0
    %v1509 = vadd.f32 %v1439, %v1508
    %v1510 = vpop.f32.mrb[0].mxu0
    %1511 = vdwg.mxu0
    %1512 = vmatprep.subr.mxu0 0.0
    %1513 = vmatpush1.msra.mxu0 %v220
    %1514 = vmatprep.subr.mxu0 0.0
    %1515 = vmatpush1.msra.mxu0 %v221
    %1516 = vmatprep.subr.mxu0 0.0
    %1517 = vmatpush1.msra.mxu0 %v222
    %1518 = vmatprep.subr.mxu0 0.0
    %1519 = vmatpush1.msra.mxu0 %v223
    %1520 = vmatprep.subr.mxu0 0.0
    %1521 = vmatpush1.msra.mxu0 %v224
    %1522 = vmatprep.subr.mxu0 0.0
    %1523 = vmatpush1.msra.mxu0 %v225
    %1524 = vmatprep.subr.mxu0 0.0
    %1525 = vmatpush1.msra.mxu0 %v226
    %1526 = vmatprep.subr.mxu0 0.0
    %1527 = vmatpush1.msra.mxu0 %v227
    %1528 = vmatprep.subr.mxu0 0.0
    %1529 = vmatpush1.msra.mxu0 %v228
    %1530 = vmatprep.subr.mxu0 0.0
    %1531 = vmatpush1.msra.mxu0 %v229
    %1532 = vmatprep.subr.mxu0 0.0
    %1533 = vmatpush1.msra.mxu0 %v230
    %1534 = vmatprep.subr.mxu0 0.0
    %1535 = vmatpush1.msra.mxu0 %v231
    %1536 = vmatprep.subr.mxu0 0.0
    %1537 = vmatpush1.msra.mxu0 %v232
    %1538 = vmatprep.subr.mxu0 0.0
    %1539 = vmatpush1.msra.mxu0 %v233
    %1540 = vmatprep.subr.mxu0 0.0
    %1541 = vmatpush1.msra.mxu0 %v234
    %1542 = vmatprep.subr.mxu0 0.0
    %1543 = vmatpush1.msra.mxu0 %v235
    %1544 = vmatprep.subr.mxu0 0.0
    %1545 = vmatpush1.msra.mxu0 %v236
    %1546 = vmatprep.subr.mxu0 0.0
    %1547 = vmatpush1.msra.mxu0 %v237
    %1548 = vmatprep.subr.mxu0 0.0
    %1549 = vmatpush1.msra.mxu0 %v238
    %1550 = vmatprep.subr.mxu0 0.0
    %1551 = vmatpush1.msra.mxu0 %v239
    %1552 = vmatprep.subr.mxu0 0.0
    %1553 = vmatpush1.msra.mxu0 %v240
    %1554 = vmatprep.subr.mxu0 0.0
    %1555 = vmatpush1.msra.mxu0 %v241
    %1556 = vmatprep.subr.mxu0 0.0
    %1557 = vmatpush1.msra.mxu0 %v242
    %1558 = vmatprep.subr.mxu0 0.0
    %1559 = vmatpush1.msra.mxu0 %v243
    %1560 = vmatprep.subr.mxu0 0.0
    %1561 = vmatpush1.msra.mxu0 %v244
    %1562 = vmatprep.subr.mxu0 0.0
    %1563 = vmatpush1.msra.mxu0 %v245
    %1564 = vmatprep.subr.mxu0 0.0
    %1565 = vmatpush1.msra.mxu0 %v246
    %1566 = vmatprep.subr.mxu0 0.0
    %1567 = vmatpush1.msra.mxu0 %v247
    %1568 = vmatprep.subr.mxu0 0.0
    %1569 = vmatpush1.msra.mxu0 %v248
    %1570 = vmatprep.subr.mxu0 0.0
    %1571 = vmatpush1.msra.mxu0 %v249
    %1572 = vmatprep.subr.mxu0 0.0
    %1573 = vmatpush1.msra.mxu0 %v250
    %1574 = vmatprep.subr.mxu0 0.0
    %1575 = vmatpush1.msra.mxu0 %v251
    %1576 = vmatprep.mubr.f32.mxu0 %v898
    %1577 = vmatmul.mubr.f32.gmra.mrb[0].mxu0 %v890
    %v1578 = vpop.f32.mrb[0].mxu0
    %v1579 = vadd.f32 %v1509, %v1578
    %v1580 = vpop.f32.mrb[0].mxu0
    %1581 = vdwg.mxu0
    %1582 = vmatprep.subr.mxu0 0.0
    %1583 = vmatpush1.msra.mxu0 %v252
    %1584 = vmatprep.subr.mxu0 0.0
    %1585 = vmatpush1.msra.mxu0 %v253
    %1586 = vmatprep.subr.mxu0 0.0
    %1587 = vmatpush1.msra.mxu0 %v254
    %1588 = vmatprep.subr.mxu0 0.0
    %1589 = vmatpush1.msra.mxu0 %v255
    %1590 = vmatprep.subr.mxu0 0.0
    %1591 = vmatpush1.msra.mxu0 %v256
    %1592 = vmatprep.subr.mxu0 0.0
    %1593 = vmatpush1.msra.mxu0 %v257
    %1594 = vmatprep.subr.mxu0 0.0
    %1595 = vmatpush1.msra.mxu0 %v258
    %1596 = vmatprep.subr.mxu0 0.0
    %1597 = vmatpush1.msra.mxu0 %v259
    %1598 = vmatprep.subr.mxu0 0.0
    %1599 = vmatpush1.msra.mxu0 %v260
    %1600 = vmatprep.subr.mxu0 0.0
    %1601 = vmatpush1.msra.mxu0 %v261
    %1602 = vmatprep.subr.mxu0 0.0
    %1603 = vmatpush1.msra.mxu0 %v262
    %1604 = vmatprep.subr.mxu0 0.0
    %1605 = vmatpush1.msra.mxu0 %v263
    %1606 = vmatprep.subr.mxu0 0.0
    %1607 = vmatpush1.msra.mxu0 %v264
    %1608 = vmatprep.subr.mxu0 0.0
    %1609 = vmatpush1.msra.mxu0 %v265
    %1610 = vmatprep.subr.mxu0 0.0
    %1611 = vmatpush1.msra.mxu0 %v266
    %1612 = vmatprep.subr.mxu0 0.0
    %1613 = vmatpush1.msra.mxu0 %v267
    %1614 = vmatprep.subr.mxu0 0.0
    %1615 = vmatpush1.msra.mxu0 %v268
    %1616 = vmatprep.subr.mxu0 0.0
    %1617 = vmatpush1.msra.mxu0 %v269
    %1618 = vmatprep.subr.mxu0 0.0
    %1619 = vmatpush1.msra.mxu0 %v270
    %1620 = vmatprep.subr.mxu0 0.0
    %1621 = vmatpush1.msra.mxu0 %v271
    %1622 = vmatprep.subr.mxu0 0.0
    %1623 = vmatpush1.msra.mxu0 %v272
    %1624 = vmatprep.subr.mxu0 0.0
    %1625 = vmatpush1.msra.mxu0 %v273
    %1626 = vmatprep.subr.mxu0 0.0
    %1627 = vmatpush1.msra.mxu0 %v274
    %1628 = vmatprep.subr.mxu0 0.0
    %1629 = vmatpush1.msra.mxu0 %v275
    %1630 = vmatprep.subr.mxu0 0.0
    %1631 = vmatpush1.msra.mxu0 %v276
    %1632 = vmatprep.subr.mxu0 0.0
    %1633 = vmatpush1.msra.mxu0 %v277
    %1634 = vmatprep.subr.mxu0 0.0
    %1635 = vmatpush1.msra.mxu0 %v278
    %1636 = vmatprep.subr.mxu0 0.0
    %1637 = vmatpush1.msra.mxu0 %v279
    %1638 = vmatprep.subr.mxu0 0.0
    %1639 = vmatpush1.msra.mxu0 %v280
    %1640 = vmatprep.subr.mxu0 0.0
    %1641 = vmatpush1.msra.mxu0 %v281
    %1642 = vmatprep.subr.mxu0 0.0
    %1643 = vmatpush1.msra.mxu0 %v282
    %1644 = vmatprep.subr.mxu0 0.0
    %1645 = vmatpush1.msra.mxu0 %v283
    %1646 = vmatprep.mubr.f32.mxu0 %v899
    %1647 = vmatmul.mubr.f32.gmra.mrb[0].mxu0 %v897
    %v1648 = vpop.f32.mrb[0].mxu0
    %v1649 = vadd.f32 %v1579, %v1648
    %v1650 = vpop.f32.mrb[0].mxu0
    %1651 = vdwg.mxu0
    %1652 = vmatprep.subr.mxu0 0.0
    %1653 = vmatpush1.msra.mxu0 %v284
    %1654 = vmatprep.subr.mxu0 0.0
    %1655 = vmatpush1.msra.mxu0 %v285
    %1656 = vmatprep.subr.mxu0 0.0
    %1657 = vmatpush1.msra.mxu0 %v286
    %1658 = vmatprep.subr.mxu0 0.0
    %1659 = vmatpush1.msra.mxu0 %v287
    %1660 = vmatprep.subr.mxu0 0.0
    %1661 = vmatpush1.msra.mxu0 %v288
    %1662 = vmatprep.subr.mxu0 0.0
    %1663 = vmatpush1.msra.mxu0 %v289
    %1664 = vmatprep.subr.mxu0 0.0
    %1665 = vmatpush1.msra.mxu0 %v290
    %1666 = vmatprep.subr.mxu0 0.0
    %1667 = vmatpush1.msra.mxu0 %v291
    %1668 = vmatprep.subr.mxu0 0.0
    %1669 = vmatpush1.msra.mxu0 %v292
    %1670 = vmatprep.subr.mxu0 0.0
    %1671 = vmatpush1.msra.mxu0 %v293
    %1672 = vmatprep.subr.mxu0 0.0
    %1673 = vmatpush1.msra.mxu0 %v294
    %1674 = vmatprep.subr.mxu0 0.0
    %1675 = vmatpush1.msra.mxu0 %v295
    %1676 = vmatprep.subr.mxu0 0.0
    %1677 = vmatpush1.msra.mxu0 %v296
    %1678 = vmatprep.subr.mxu0 0.0
    %1679 = vmatpush1.msra.mxu0 %v297
    %1680 = vmatprep.subr.mxu0 0.0
    %1681 = vmatpush1.msra.mxu0 %v298
    %1682 = vmatprep.subr.mxu0 0.0
    %1683 = vmatpush1.msra.mxu0 %v299
    %1684 = vmatprep.subr.mxu0 0.0
    %1685 = vmatpush1.msra.mxu0 %v300
    %1686 = vmatprep.subr.mxu0 0.0
    %1687 = vmatpush1.msra.mxu0 %v301
    %1688 = vmatprep.subr.mxu0 0.0
    %1689 = vmatpush1.msra.mxu0 %v302
    %1690 = vmatprep.subr.mxu0 0.0
    %1691 = vmatpush1.msra.mxu0 %v303
    %1692 = vmatprep.subr.mxu0 0.0
    %1693 = vmatpush1.msra.mxu0 %v304
    %1694 = vmatprep.subr.mxu0 0.0
    %1695 = vmatpush1.msra.mxu0 %v305
    %1696 = vmatprep.subr.mxu0 0.0
    %1697 = vmatpush1.msra.mxu0 %v306
    %1698 = vmatprep.subr.mxu0 0.0
    %1699 = vmatpush1.msra.mxu0 %v307
    %1700 = vmatprep.subr.mxu0 0.0
    %1701 = vmatpush1.msra.mxu0 %v308
    %1702 = vmatprep.subr.mxu0 0.0
    %1703 = vmatpush1.msra.mxu0 %v309
    %1704 = vmatprep.subr.mxu0 0.0
    %1705 = vmatpush1.msra.mxu0 %v310
    %1706 = vmatprep.subr.mxu0 0.0
    %1707 = vmatpush1.msra.mxu0 %v311
    %1708 = vmatprep.subr.mxu0 0.0
    %1709 = vmatpush1.msra.mxu0 %v312
    %1710 = vmatprep.subr.mxu0 0.0
    %1711 = vmatpush1.msra.mxu0 %v313
    %1712 = vmatprep.subr.mxu0 0.0
    %1713 = vmatpush1.msra.mxu0 %v314
    %1714 = vmatprep.subr.mxu0 0.0
    %1715 = vmatpush1.msra.mxu0 %v315
    %1716 = vmatprep.mubr.f32.mxu0 %v915
    %1717 = vmatmul.mubr.f32.gmra.mrb[0].mxu0 %v907
    %v1718 = vpop.f32.mrb[0].mxu0
    %v1719 = vadd.f32 %v1649, %v1718
    %v1720 = vpop.f32.mrb[0].mxu0
    %1721 = vdwg.mxu0
    %1722 = vmatprep.subr.mxu0 0.0
    %1723 = vmatpush1.msra.mxu0 %v316
    %1724 = vmatprep.subr.mxu0 0.0
    %1725 = vmatpush1.msra.mxu0 %v317
    %1726 = vmatprep.subr.mxu0 0.0
    %1727 = vmatpush1.msra.mxu0 %v318
    %1728 = vmatprep.subr.mxu0 0.0
    %1729 = vmatpush1.msra.mxu0 %v319
    %1730 = vmatprep.subr.mxu0 0.0
    %1731 = vmatpush1.msra.mxu0 %v320
    %1732 = vmatprep.subr.mxu0 0.0
    %1733 = vmatpush1.msra.mxu0 %v321
    %1734 = vmatprep.subr.mxu0 0.0
    %1735 = vmatpush1.msra.mxu0 %v322
    %1736 = vmatprep.subr.mxu0 0.0
    %1737 = vmatpush1.msra.mxu0 %v323
    %1738 = vmatprep.subr.mxu0 0.0
    %1739 = vmatpush1.msra.mxu0 %v324
    %1740 = vmatprep.subr.mxu0 0.0
    %1741 = vmatpush1.msra.mxu0 %v325
    %1742 = vmatprep.subr.mxu0 0.0
    %1743 = vmatpush1.msra.mxu0 %v326
    %1744 = vmatprep.subr.mxu0 0.0
    %1745 = vmatpush1.msra.mxu0 %v327
    %1746 = vmatprep.subr.mxu0 0.0
    %1747 = vmatpush1.msra.mxu0 %v328
    %1748 = vmatprep.subr.mxu0 0.0
    %1749 = vmatpush1.msra.mxu0 %v329
    %1750 = vmatprep.subr.mxu0 0.0
    %1751 = vmatpush1.msra.mxu0 %v330
    %1752 = vmatprep.subr.mxu0 0.0
    %1753 = vmatpush1.msra.mxu0 %v331
    %1754 = vmatprep.subr.mxu0 0.0
    %1755 = vmatpush1.msra.mxu0 %v332
    %1756 = vmatprep.subr.mxu0 0.0
    %1757 = vmatpush1.msra.mxu0 %v333
    %1758 = vmatprep.subr.mxu0 0.0
    %1759 = vmatpush1.msra.mxu0 %v334
    %1760 = vmatprep.subr.mxu0 0.0
    %1761 = vmatpush1.msra.mxu0 %v335
    %1762 = vmatprep.subr.mxu0 0.0
    %1763 = vmatpush1.msra.mxu0 %v336
    %1764 = vmatprep.subr.mxu0 0.0
    %1765 = vmatpush1.msra.mxu0 %v337
    %1766 = vmatprep.subr.mxu0 0.0
    %1767 = vmatpush1.msra.mxu0 %v338
    %1768 = vmatprep.subr.mxu0 0.0
    %1769 = vmatpush1.msra.mxu0 %v339
    %1770 = vmatprep.subr.mxu0 0.0
    %1771 = vmatpush1.msra.mxu0 %v340
    %1772 = vmatprep.subr.mxu0 0.0
    %1773 = vmatpush1.msra.mxu0 %v341
    %1774 = vmatprep.subr.mxu0 0.0
    %1775 = vmatpush1.msra.mxu0 %v342
    %1776 = vmatprep.subr.mxu0 0.0
    %1777 = vmatpush1.msra.mxu0 %v343
    %1778 = vmatprep.subr.mxu0 0.0
    %1779 = vmatpush1.msra.mxu0 %v344
    %1780 = vmatprep.subr.mxu0 0.0
    %1781 = vmatpush1.msra.mxu0 %v345
    %1782 = vmatprep.subr.mxu0 0.0
    %1783 = vmatpush1.msra.mxu0 %v346
    %1784 = vmatprep.subr.mxu0 0.0
    %1785 = vmatpush1.msra.mxu0 %v347
    %1786 = vmatprep.mubr.f32.mxu0 %v916
    %1787 = vmatmul.mubr.f32.gmra.mrb[0].mxu0 %v914
    %v1788 = vpop.f32.mrb[0].mxu0
    %v1789 = vadd.f32 %v1719, %v1788
    %v1790 = vpop.f32.mrb[0].mxu0
    %1791 = vdwg.mxu0
    %1792 = vmatprep.subr.mxu0 0.0
    %1793 = vmatpush1.msra.mxu0 %v348
    %1794 = vmatprep.subr.mxu0 0.0
    %1795 = vmatpush1.msra.mxu0 %v349
    %1796 = vmatprep.subr.mxu0 0.0
    %1797 = vmatpush1.msra.mxu0 %v350
    %1798 = vmatprep.subr.mxu0 0.0
    %1799 = vmatpush1.msra.mxu0 %v351
    %1800 = vmatprep.subr.mxu0 0.0
    %1801 = vmatpush1.msra.mxu0 %v352
    %1802 = vmatprep.subr.mxu0 0.0
    %1803 = vmatpush1.msra.mxu0 %v353
    %1804 = vmatprep.subr.mxu0 0.0
    %1805 = vmatpush1.msra.mxu0 %v354
    %1806 = vmatprep.subr.mxu0 0.0
    %1807 = vmatpush1.msra.mxu0 %v355
    %1808 = vmatprep.subr.mxu0 0.0
    %1809 = vmatpush1.msra.mxu0 %v356
    %1810 = vmatprep.subr.mxu0 0.0
    %1811 = vmatpush1.msra.mxu0 %v357
    %1812 = vmatprep.subr.mxu0 0.0
    %1813 = vmatpush1.msra.mxu0 %v358
    %1814 = vmatprep.subr.mxu0 0.0
    %1815 = vmatpush1.msra.mxu0 %v359
    %1816 = vmatprep.subr.mxu0 0.0
    %1817 = vmatpush1.msra.mxu0 %v360
    %1818 = vmatprep.subr.mxu0 0.0
    %1819 = vmatpush1.msra.mxu0 %v361
    %1820 = vmatprep.subr.mxu0 0.0
    %1821 = vmatpush1.msra.mxu0 %v362
    %1822 = vmatprep.subr.mxu0 0.0
    %1823 = vmatpush1.msra.mxu0 %v363
    %1824 = vmatprep.subr.mxu0 0.0
    %1825 = vmatpush1.msra.mxu0 %v364
    %1826 = vmatprep.subr.mxu0 0.0
    %1827 = vmatpush1.msra.mxu0 %v365
    %1828 = vmatprep.subr.mxu0 0.0
    %1829 = vmatpush1.msra.mxu0 %v366
    %1830 = vmatprep.subr.mxu0 0.0
    %1831 = vmatpush1.msra.mxu0 %v367
    %1832 = vmatprep.subr.mxu0 0.0
    %1833 = vmatpush1.msra.mxu0 %v368
    %1834 = vmatprep.subr.mxu0 0.0
    %1835 = vmatpush1.msra.mxu0 %v369
    %1836 = vmatprep.subr.mxu0 0.0
    %1837 = vmatpush1.msra.mxu0 %v370
    %1838 = vmatprep.subr.mxu0 0.0
    %1839 = vmatpush1.msra.mxu0 %v371
    %1840 = vmatprep.subr.mxu0 0.0
    %1841 = vmatpush1.msra.mxu0 %v372
    %1842 = vmatprep.subr.mxu0 0.0
    %1843 = vmatpush1.msra.mxu0 %v373
    %1844 = vmatprep.subr.mxu0 0.0
    %1845 = vmatpush1.msra.mxu0 %v374
    %1846 = vmatprep.subr.mxu0 0.0
    %1847 = vmatpush1.msra.mxu0 %v375
    %1848 = vmatprep.subr.mxu0 0.0
    %1849 = vmatpush1.msra.mxu0 %v376
    %1850 = vmatprep.subr.mxu0 0.0
    %1851 = vmatpush1.msra.mxu0 %v377
    %1852 = vmatprep.subr.mxu0 0.0
    %1853 = vmatpush1.msra.mxu0 %v378
    %1854 = vmatprep.subr.mxu0 0.0
    %1855 = vmatpush1.msra.mxu0 %v379
    %1856 = vmatprep.mubr.f32.mxu0 %v932
    %1857 = vmatmul.mubr.f32.gmra.mrb[0].mxu0 %v924
    %v1858 = vpop.f32.mrb[0].mxu0
    %v1859 = vadd.f32 %v1789, %v1858
    %v1860 = vpop.f32.mrb[0].mxu0
    %1861 = vdwg.mxu0
    %1862 = vmatprep.subr.mxu0 0.0
    %1863 = vmatpush1.msra.mxu0 %v380
    %1864 = vmatprep.subr.mxu0 0.0
    %1865 = vmatpush1.msra.mxu0 %v381
    %1866 = vmatprep.subr.mxu0 0.0
    %1867 = vmatpush1.msra.mxu0 %v382
    %1868 = vmatprep.subr.mxu0 0.0
    %1869 = vmatpush1.msra.mxu0 %v383
    %1870 = vmatprep.subr.mxu0 0.0
    %1871 = vmatpush1.msra.mxu0 %v384
    %1872 = vmatprep.subr.mxu0 0.0
    %1873 = vmatpush1.msra.mxu0 %v385
    %1874 = vmatprep.subr.mxu0 0.0
    %1875 = vmatpush1.msra.mxu0 %v386
    %1876 = vmatprep.subr.mxu0 0.0
    %1877 = vmatpush1.msra.mxu0 %v387
    %1878 = vmatprep.subr.mxu0 0.0
    %1879 = vmatpush1.msra.mxu0 %v388
    %1880 = vmatprep.subr.mxu0 0.0
    %1881 = vmatpush1.msra.mxu0 %v389
    %1882 = vmatprep.subr.mxu0 0.0
    %1883 = vmatpush1.msra.mxu0 %v390
    %1884 = vmatprep.subr.mxu0 0.0
    %1885 = vmatpush1.msra.mxu0 %v391
    %1886 = vmatprep.subr.mxu0 0.0
    %1887 = vmatpush1.msra.mxu0 %v392
    %1888 = vmatprep.subr.mxu0 0.0
    %1889 = vmatpush1.msra.mxu0 %v393
    %1890 = vmatprep.subr.mxu0 0.0
    %1891 = vmatpush1.msra.mxu0 %v394
    %1892 = vmatprep.subr.mxu0 0.0
    %1893 = vmatpush1.msra.mxu0 %v395
    %1894 = vmatprep.subr.mxu0 0.0
    %1895 = vmatpush1.msra.mxu0 %v396
    %1896 = vmatprep.subr.mxu0 0.0
    %1897 = vmatpush1.msra.mxu0 %v397
    %1898 = vmatprep.subr.mxu0 0.0
    %1899 = vmatpush1.msra.mxu0 %v398
    %1900 = vmatprep.subr.mxu0 0.0
    %1901 = vmatpush1.msra.mxu0 %v399
    %1902 = vmatprep.subr.mxu0 0.0
    %1903 = vmatpush1.msra.mxu0 %v400
    %1904 = vmatprep.subr.mxu0 0.0
    %1905 = vmatpush1.msra.mxu0 %v401
    %1906 = vmatprep.subr.mxu0 0.0
    %1907 = vmatpush1.msra.mxu0 %v402
    %1908 = vmatprep.subr.mxu0 0.0
    %1909 = vmatpush1.msra.mxu0 %v403
    %1910 = vmatprep.subr.mxu0 0.0
    %1911 = vmatpush1.msra.mxu0 %v404
    %1912 = vmatprep.subr.mxu0 0.0
    %1913 = vmatpush1.msra.mxu0 %v405
    %1914 = vmatprep.subr.mxu0 0.0
    %1915 = vmatpush1.msra.mxu0 %v406
    %1916 = vmatprep.subr.mxu0 0.0
    %1917 = vmatpush1.msra.mxu0 %v407
    %1918 = vmatprep.subr.mxu0 0.0
    %1919 = vmatpush1.msra.mxu0 %v408
    %1920 = vmatprep.subr.mxu0 0.0
    %1921 = vmatpush1.msra.mxu0 %v409
    %1922 = vmatprep.subr.mxu0 0.0
    %1923 = vmatpush1.msra.mxu0 %v410
    %1924 = vmatprep.subr.mxu0 0.0
    %1925 = vmatpush1.msra.mxu0 %v411
    %1926 = vmatprep.mubr.f32.mxu0 %v933
    %1927 = vmatmul.mubr.f32.gmra.mrb[0].mxu0 %v931
    %v1928 = vpop.f32.mrb[0].mxu0
    %v1929 = vadd.f32 %v1859, %v1928
    %v1930 = vpop.f32.mrb[0].mxu0
    %1931 = vdwg.mxu0
    %1932 = vmatprep.subr.mxu0 0.0
    %1933 = vmatpush1.msra.mxu0 %v412
    %1934 = vmatprep.subr.mxu0 0.0
    %1935 = vmatpush1.msra.mxu0 %v413
    %1936 = vmatprep.subr.mxu0 0.0
    %1937 = vmatpush1.msra.mxu0 %v414
    %1938 = vmatprep.subr.mxu0 0.0
    %1939 = vmatpush1.msra.mxu0 %v415
    %1940 = vmatprep.subr.mxu0 0.0
    %1941 = vmatpush1.msra.mxu0 %v416
    %1942 = vmatprep.subr.mxu0 0.0
    %1943 = vmatpush1.msra.mxu0 %v417
    %1944 = vmatprep.subr.mxu0 0.0
    %1945 = vmatpush1.msra.mxu0 %v418
    %1946 = vmatprep.subr.mxu0 0.0
    %1947 = vmatpush1.msra.mxu0 %v419
    %1948 = vmatprep.subr.mxu0 0.0
    %1949 = vmatpush1.msra.mxu0 %v420
    %1950 = vmatprep.subr.mxu0 0.0
    %1951 = vmatpush1.msra.mxu0 %v421
    %1952 = vmatprep.subr.mxu0 0.0
    %1953 = vmatpush1.msra.mxu0 %v422
    %1954 = vmatprep.subr.mxu0 0.0
    %1955 = vmatpush1.msra.mxu0 %v423
    %1956 = vmatprep.subr.mxu0 0.0
    %1957 = vmatpush1.msra.mxu0 %v424
    %1958 = vmatprep.subr.mxu0 0.0
    %1959 = vmatpush1.msra.mxu0 %v425
    %1960 = vmatprep.subr.mxu0 0.0
    %1961 = vmatpush1.msra.mxu0 %v426
    %1962 = vmatprep.subr.mxu0 0.0
    %1963 = vmatpush1.msra.mxu0 %v427
    %1964 = vmatprep.subr.mxu0 0.0
    %1965 = vmatpush1.msra.mxu0 %v428
    %1966 = vmatprep.subr.mxu0 0.0
    %1967 = vmatpush1.msra.mxu0 %v429
    %1968 = vmatprep.subr.mxu0 0.0
    %1969 = vmatpush1.msra.mxu0 %v430
    %1970 = vmatprep.subr.mxu0 0.0
    %1971 = vmatpush1.msra.mxu0 %v431
    %1972 = vmatprep.subr.mxu0 0.0
    %1973 = vmatpush1.msra.mxu0 %v432
    %1974 = vmatprep.subr.mxu0 0.0
    %1975 = vmatpush1.msra.mxu0 %v433
    %1976 = vmatprep.subr.mxu0 0.0
    %1977 = vmatpush1.msra.mxu0 %v434
    %1978 = vmatprep.subr.mxu0 0.0
    %1979 = vmatpush1.msra.mxu0 %v435
    %1980 = vmatprep.subr.mxu0 0.0
    %1981 = vmatpush1.msra.mxu0 %v436
    %1982 = vmatprep.subr.mxu0 0.0
    %1983 = vmatpush1.msra.mxu0 %v437
    %1984 = vmatprep.subr.mxu0 0.0
    %1985 = vmatpush1.msra.mxu0 %v438
    %1986 = vmatprep.subr.mxu0 0.0
    %1987 = vmatpush1.msra.mxu0 %v439
    %1988 = vmatprep.subr.mxu0 0.0
    %1989 = vmatpush1.msra.mxu0 %v440
    %1990 = vmatprep.subr.mxu0 0.0
    %1991 = vmatpush1.msra.mxu0 %v441
    %1992 = vmatprep.subr.mxu0 0.0
    %1993 = vmatpush1.msra.mxu0 %v442
    %1994 = vmatprep.subr.mxu0 0.0
    %1995 = vmatpush1.msra.mxu0 %v443
    %1996 = vmatprep.mubr.f32.mxu0 %v949
    %1997 = vmatmul.mubr.f32.gmra.mrb[0].mxu0 %v941
    %v1998 = vpop.f32.mrb[0].mxu0
    %v1999 = vadd.f32 %v1929, %v1998
    %v2000 = vpop.f32.mrb[0].mxu0
    %2001 = vdwg.mxu0
    %2002 = vmatprep.subr.mxu0 0.0
    %2003 = vmatpush1.msra.mxu0 %v444
    %2004 = vmatprep.subr.mxu0 0.0
    %2005 = vmatpush1.msra.mxu0 %v445
    %2006 = vmatprep.subr.mxu0 0.0
    %2007 = vmatpush1.msra.mxu0 %v446
    %2008 = vmatprep.subr.mxu0 0.0
    %2009 = vmatpush1.msra.mxu0 %v447
    %2010 = vmatprep.subr.mxu0 0.0
    %2011 = vmatpush1.msra.mxu0 %v448
    %2012 = vmatprep.subr.mxu0 0.0
    %2013 = vmatpush1.msra.mxu0 %v449
    %2014 = vmatprep.subr.mxu0 0.0
    %2015 = vmatpush1.msra.mxu0 %v450
    %2016 = vmatprep.subr.mxu0 0.0
    %2017 = vmatpush1.msra.mxu0 %v451
    %2018 = vmatprep.subr.mxu0 0.0
    %2019 = vmatpush1.msra.mxu0 %v452
    %2020 = vmatprep.subr.mxu0 0.0
    %2021 = vmatpush1.msra.mxu0 %v453
    %2022 = vmatprep.subr.mxu0 0.0
    %2023 = vmatpush1.msra.mxu0 %v454
    %2024 = vmatprep.subr.mxu0 0.0
    %2025 = vmatpush1.msra.mxu0 %v455
    %2026 = vmatprep.subr.mxu0 0.0
    %2027 = vmatpush1.msra.mxu0 %v456
    %2028 = vmatprep.subr.mxu0 0.0
    %2029 = vmatpush1.msra.mxu0 %v457
    %2030 = vmatprep.subr.mxu0 0.0
    %2031 = vmatpush1.msra.mxu0 %v458
    %2032 = vmatprep.subr.mxu0 0.0
    %2033 = vmatpush1.msra.mxu0 %v459
    %2034 = vmatprep.subr.mxu0 0.0
    %2035 = vmatpush1.msra.mxu0 %v460
    %2036 = vmatprep.subr.mxu0 0.0
    %2037 = vmatpush1.msra.mxu0 %v461
    %2038 = vmatprep.subr.mxu0 0.0
    %2039 = vmatpush1.msra.mxu0 %v462
    %2040 = vmatprep.subr.mxu0 0.0
    %2041 = vmatpush1.msra.mxu0 %v463
    %2042 = vmatprep.subr.mxu0 0.0
    %2043 = vmatpush1.msra.mxu0 %v464
    %2044 = vmatprep.subr.mxu0 0.0
    %2045 = vmatpush1.msra.mxu0 %v465
    %2046 = vmatprep.subr.mxu0 0.0
    %2047 = vmatpush1.msra.mxu0 %v466
    %2048 = vmatprep.subr.mxu0 0.0
    %2049 = vmatpush1.msra.mxu0 %v467
    %2050 = vmatprep.subr.mxu0 0.0
    %2051 = vmatpush1.msra.mxu0 %v468
    %2052 = vmatprep.subr.mxu0 0.0
    %2053 = vmatpush1.msra.mxu0 %v469
    %2054 = vmatprep.subr.mxu0 0.0
    %2055 = vmatpush1.msra.mxu0 %v470
    %2056 = vmatprep.subr.mxu0 0.0
    %2057 = vmatpush1.msra.mxu0 %v471
    %2058 = vmatprep.subr.mxu0 0.0
    %2059 = vmatpush1.msra.mxu0 %v472
    %2060 = vmatprep.subr.mxu0 0.0
    %2061 = vmatpush1.msra.mxu0 %v473
    %2062 = vmatprep.subr.mxu0 0.0
    %2063 = vmatpush1.msra.mxu0 %v474
    %2064 = vmatprep.subr.mxu0 0.0
    %2065 = vmatpush1.msra.mxu0 %v475
    %2066 = vmatprep.mubr.f32.mxu0 %v950
    %2067 = vmatmul.mubr.f32.gmra.mrb[0].mxu0 %v948
    %v2068 = vpop.f32.mrb[0].mxu0
    %v2069 = vadd.f32 %v1999, %v2068
    %v2070 = vpop.f32.mrb[0].mxu0
    %2071 = vdwg.mxu0
    %2072 = vmatprep.subr.mxu0 0.0
    %2073 = vmatpush1.msra.mxu0 %v476
    %2074 = vmatprep.subr.mxu0 0.0
    %2075 = vmatpush1.msra.mxu0 %v477
    %2076 = vmatprep.subr.mxu0 0.0
    %2077 = vmatpush1.msra.mxu0 %v478
    %2078 = vmatprep.subr.mxu0 0.0
    %2079 = vmatpush1.msra.mxu0 %v479
    %2080 = vmatprep.subr.mxu0 0.0
    %2081 = vmatpush1.msra.mxu0 %v480
    %2082 = vmatprep.subr.mxu0 0.0
    %2083 = vmatpush1.msra.mxu0 %v481
    %2084 = vmatprep.subr.mxu0 0.0
    %2085 = vmatpush1.msra.mxu0 %v482
    %2086 = vmatprep.subr.mxu0 0.0
    %2087 = vmatpush1.msra.mxu0 %v483
    %2088 = vmatprep.subr.mxu0 0.0
    %2089 = vmatpush1.msra.mxu0 %v484
    %2090 = vmatprep.subr.mxu0 0.0
    %2091 = vmatpush1.msra.mxu0 %v485
    %2092 = vmatprep.subr.mxu0 0.0
    %2093 = vmatpush1.msra.mxu0 %v486
    %2094 = vmatprep.subr.mxu0 0.0
    %2095 = vmatpush1.msra.mxu0 %v487
    %2096 = vmatprep.subr.mxu0 0.0
    %2097 = vmatpush1.msra.mxu0 %v488
    %2098 = vmatprep.subr.mxu0 0.0
    %2099 = vmatpush1.msra.mxu0 %v489
    %2100 = vmatprep.subr.mxu0 0.0
    %2101 = vmatpush1.msra.mxu0 %v490
    %2102 = vmatprep.subr.mxu0 0.0
    %2103 = vmatpush1.msra.mxu0 %v491
    %2104 = vmatprep.subr.mxu0 0.0
    %2105 = vmatpush1.msra.mxu0 %v492
    %2106 = vmatprep.subr.mxu0 0.0
    %2107 = vmatpush1.msra.mxu0 %v493
    %2108 = vmatprep.subr.mxu0 0.0
    %2109 = vmatpush1.msra.mxu0 %v494
    %2110 = vmatprep.subr.mxu0 0.0
    %2111 = vmatpush1.msra.mxu0 %v495
    %2112 = vmatprep.subr.mxu0 0.0
    %2113 = vmatpush1.msra.mxu0 %v496
    %2114 = vmatprep.subr.mxu0 0.0
    %2115 = vmatpush1.msra.mxu0 %v497
    %2116 = vmatprep.subr.mxu0 0.0
    %2117 = vmatpush1.msra.mxu0 %v498
    %2118 = vmatprep.subr.mxu0 0.0
    %2119 = vmatpush1.msra.mxu0 %v499
    %2120 = vmatprep.subr.mxu0 0.0
    %2121 = vmatpush1.msra.mxu0 %v500
    %2122 = vmatprep.subr.mxu0 0.0
    %2123 = vmatpush1.msra.mxu0 %v501
    %2124 = vmatprep.subr.mxu0 0.0
    %2125 = vmatpush1.msra.mxu0 %v502
    %2126 = vmatprep.subr.mxu0 0.0
    %2127 = vmatpush1.msra.mxu0 %v503
    %2128 = vmatprep.subr.mxu0 0.0
    %2129 = vmatpush1.msra.mxu0 %v504
    %2130 = vmatprep.subr.mxu0 0.0
    %2131 = vmatpush1.msra.mxu0 %v505
    %2132 = vmatprep.subr.mxu0 0.0
    %2133 = vmatpush1.msra.mxu0 %v506
    %2134 = vmatprep.subr.mxu0 0.0
    %2135 = vmatpush1.msra.mxu0 %v507
    %2136 = vmatprep.mubr.f32.mxu0 %v966
    %2137 = vmatmul.mubr.f32.gmra.mrb[0].mxu0 %v958
    %v2138 = vpop.f32.mrb[0].mxu0
    %v2139 = vadd.f32 %v2069, %v2138
    %v2140 = vpop.f32.mrb[0].mxu0
    %2141 = vdwg.mxu0
    %2142 = vmatprep.subr.mxu0 0.0
    %2143 = vmatpush1.msra.mxu0 %v508
    %2144 = vmatprep.subr.mxu0 0.0
    %2145 = vmatpush1.msra.mxu0 %v509
    %2146 = vmatprep.subr.mxu0 0.0
    %2147 = vmatpush1.msra.mxu0 %v510
    %2148 = vmatprep.subr.mxu0 0.0
    %2149 = vmatpush1.msra.mxu0 %v511
    %2150 = vmatprep.subr.mxu0 0.0
    %2151 = vmatpush1.msra.mxu0 %v512
    %2152 = vmatprep.subr.mxu0 0.0
    %2153 = vmatpush1.msra.mxu0 %v513
    %2154 = vmatprep.subr.mxu0 0.0
    %2155 = vmatpush1.msra.mxu0 %v514
    %2156 = vmatprep.subr.mxu0 0.0
    %2157 = vmatpush1.msra.mxu0 %v515
    %2158 = vmatprep.subr.mxu0 0.0
    %2159 = vmatpush1.msra.mxu0 %v516
    %2160 = vmatprep.subr.mxu0 0.0
    %2161 = vmatpush1.msra.mxu0 %v517
    %2162 = vmatprep.subr.mxu0 0.0
    %2163 = vmatpush1.msra.mxu0 %v518
    %2164 = vmatprep.subr.mxu0 0.0
    %2165 = vmatpush1.msra.mxu0 %v519
    %2166 = vmatprep.subr.mxu0 0.0
    %2167 = vmatpush1.msra.mxu0 %v520
    %2168 = vmatprep.subr.mxu0 0.0
    %2169 = vmatpush1.msra.mxu0 %v521
    %2170 = vmatprep.subr.mxu0 0.0
    %2171 = vmatpush1.msra.mxu0 %v522
    %2172 = vmatprep.subr.mxu0 0.0
    %2173 = vmatpush1.msra.mxu0 %v523
    %2174 = vmatprep.subr.mxu0 0.0
    %2175 = vmatpush1.msra.mxu0 %v524
    %2176 = vmatprep.subr.mxu0 0.0
    %2177 = vmatpush1.msra.mxu0 %v525
    %2178 = vmatprep.subr.mxu0 0.0
    %2179 = vmatpush1.msra.mxu0 %v526
    %2180 = vmatprep.subr.mxu0 0.0
    %2181 = vmatpush1.msra.mxu0 %v527
    %2182 = vmatprep.subr.mxu0 0.0
    %2183 = vmatpush1.msra.mxu0 %v528
    %2184 = vmatprep.subr.mxu0 0.0
    %2185 = vmatpush1.msra.mxu0 %v529
    %2186 = vmatprep.subr.mxu0 0.0
    %2187 = vmatpush1.msra.mxu0 %v530
    %2188 = vmatprep.subr.mxu0 0.0
    %2189 = vmatpush1.msra.mxu0 %v531
    %2190 = vmatprep.subr.mxu0 0.0
    %2191 = vmatpush1.msra.mxu0 %v532
    %2192 = vmatprep.subr.mxu0 0.0
    %2193 = vmatpush1.msra.mxu0 %v533
    %2194 = vmatprep.subr.mxu0 0.0
    %2195 = vmatpush1.msra.mxu0 %v534
    %2196 = vmatprep.subr.mxu0 0.0
    %2197 = vmatpush1.msra.mxu0 %v535
    %2198 = vmatprep.subr.mxu0 0.0
    %2199 = vmatpush1.msra.mxu0 %v536
    %2200 = vmatprep.subr.mxu0 0.0
    %2201 = vmatpush1.msra.mxu0 %v537
    %2202 = vmatprep.subr.mxu0 0.0
    %2203 = vmatpush1.msra.mxu0 %v538
    %2204 = vmatprep.subr.mxu0 0.0
    %2205 = vmatpush1.msra.mxu0 %v539
    %2206 = vmatprep.mubr.f32.mxu0 %v967
    %2207 = vmatmul.mubr.f32.gmra.mrb[0].mxu0 %v965
    %v2208 = vpop.f32.mrb[0].mxu0
    %v2209 = vadd.f32 %v2139, %v2208
    %v2210 = vpop.f32.mrb[0].mxu0
    %2211 = vdwg.mxu0
    %2212 = vmatprep.subr.mxu0 0.0
    %2213 = vmatpush1.msra.mxu0 %v540
    %2214 = vmatprep.subr.mxu0 0.0
    %2215 = vmatpush1.msra.mxu0 %v541
    %2216 = vmatprep.subr.mxu0 0.0
    %2217 = vmatpush1.msra.mxu0 %v542
    %2218 = vmatprep.subr.mxu0 0.0
    %2219 = vmatpush1.msra.mxu0 %v543
    %2220 = vmatprep.subr.mxu0 0.0
    %2221 = vmatpush1.msra.mxu0 %v544
    %2222 = vmatprep.subr.mxu0 0.0
    %2223 = vmatpush1.msra.mxu0 %v545
    %2224 = vmatprep.subr.mxu0 0.0
    %2225 = vmatpush1.msra.mxu0 %v546
    %2226 = vmatprep.subr.mxu0 0.0
    %2227 = vmatpush1.msra.mxu0 %v547
    %2228 = vmatprep.subr.mxu0 0.0
    %2229 = vmatpush1.msra.mxu0 %v548
    %2230 = vmatprep.subr.mxu0 0.0
    %2231 = vmatpush1.msra.mxu0 %v549
    %2232 = vmatprep.subr.mxu0 0.0
    %2233 = vmatpush1.msra.mxu0 %v550
    %2234 = vmatprep.subr.mxu0 0.0
    %2235 = vmatpush1.msra.mxu0 %v551
    %2236 = vmatprep.subr.mxu0 0.0
    %2237 = vmatpush1.msra.mxu0 %v552
    %2238 = vmatprep.subr.mxu0 0.0
    %2239 = vmatpush1.msra.mxu0 %v553
    %2240 = vmatprep.subr.mxu0 0.0
    %2241 = vmatpush1.msra.mxu0 %v554
    %2242 = vmatprep.subr.mxu0 0.0
    %2243 = vmatpush1.msra.mxu0 %v555
    %2244 = vmatprep.subr.mxu0 0.0
    %2245 = vmatpush1.msra.mxu0 %v556
    %2246 = vmatprep.subr.mxu0 0.0
    %2247 = vmatpush1.msra.mxu0 %v557
    %2248 = vmatprep.subr.mxu0 0.0
    %2249 = vmatpush1.msra.mxu0 %v558
    %2250 = vmatprep.subr.mxu0 0.0
    %2251 = vmatpush1.msra.mxu0 %v559
    %2252 = vmatprep.subr.mxu0 0.0
    %2253 = vmatpush1.msra.mxu0 %v560
    %2254 = vmatprep.subr.mxu0 0.0
    %2255 = vmatpush1.msra.mxu0 %v561
    %2256 = vmatprep.subr.mxu0 0.0
    %2257 = vmatpush1.msra.mxu0 %v562
    %2258 = vmatprep.subr.mxu0 0.0
    %2259 = vmatpush1.msra.mxu0 %v563
    %2260 = vmatprep.subr.mxu0 0.0
    %2261 = vmatpush1.msra.mxu0 %v564
    %2262 = vmatprep.subr.mxu0 0.0
    %2263 = vmatpush1.msra.mxu0 %v565
    %2264 = vmatprep.subr.mxu0 0.0
    %2265 = vmatpush1.msra.mxu0 %v566
    %2266 = vmatprep.subr.mxu0 0.0
    %2267 = vmatpush1.msra.mxu0 %v567
    %2268 = vmatprep.subr.mxu0 0.0
    %2269 = vmatpush1.msra.mxu0 %v568
    %2270 = vmatprep.subr.mxu0 0.0
    %2271 = vmatpush1.msra.mxu0 %v569
    %2272 = vmatprep.subr.mxu0 0.0
    %2273 = vmatpush1.msra.mxu0 %v570
    %2274 = vmatprep.subr.mxu0 0.0
    %2275 = vmatpush1.msra.mxu0 %v571
    %2276 = vmatprep.mubr.f32.mxu0 %v983
    %2277 = vmatmul.mubr.f32.gmra.mrb[0].mxu0 %v975
    %v2278 = vpop.f32.mrb[0].mxu0
    %v2279 = vadd.f32 %v2209, %v2278
    %v2280 = vpop.f32.mrb[0].mxu0
    %2281 = vdwg.mxu0
    %2282 = vmatprep.subr.mxu0 0.0
    %2283 = vmatpush1.msra.mxu0 %v572
    %2284 = vmatprep.subr.mxu0 0.0
    %2285 = vmatpush1.msra.mxu0 %v573
    %2286 = vmatprep.subr.mxu0 0.0
    %2287 = vmatpush1.msra.mxu0 %v574
    %2288 = vmatprep.subr.mxu0 0.0
    %2289 = vmatpush1.msra.mxu0 %v575
    %2290 = vmatprep.subr.mxu0 0.0
    %2291 = vmatpush1.msra.mxu0 %v576
    %2292 = vmatprep.subr.mxu0 0.0
    %2293 = vmatpush1.msra.mxu0 %v577
    %2294 = vmatprep.subr.mxu0 0.0
    %2295 = vmatpush1.msra.mxu0 %v578
    %2296 = vmatprep.subr.mxu0 0.0
    %2297 = vmatpush1.msra.mxu0 %v579
    %2298 = vmatprep.subr.mxu0 0.0
    %2299 = vmatpush1.msra.mxu0 %v580
    %2300 = vmatprep.subr.mxu0 0.0
    %2301 = vmatpush1.msra.mxu0 %v581
    %2302 = vmatprep.subr.mxu0 0.0
    %2303 = vmatpush1.msra.mxu0 %v582
    %2304 = vmatprep.subr.mxu0 0.0
    %2305 = vmatpush1.msra.mxu0 %v583
    %2306 = vmatprep.subr.mxu0 0.0
    %2307 = vmatpush1.msra.mxu0 %v584
    %2308 = vmatprep.subr.mxu0 0.0
    %2309 = vmatpush1.msra.mxu0 %v585
    %2310 = vmatprep.subr.mxu0 0.0
    %2311 = vmatpush1.msra.mxu0 %v586
    %2312 = vmatprep.subr.mxu0 0.0
    %2313 = vmatpush1.msra.mxu0 %v587
    %2314 = vmatprep.subr.mxu0 0.0
    %2315 = vmatpush1.msra.mxu0 %v588
    %2316 = vmatprep.subr.mxu0 0.0
    %2317 = vmatpush1.msra.mxu0 %v589
    %2318 = vmatprep.subr.mxu0 0.0
    %2319 = vmatpush1.msra.mxu0 %v590
    %2320 = vmatprep.subr.mxu0 0.0
    %2321 = vmatpush1.msra.mxu0 %v591
    %2322 = vmatprep.subr.mxu0 0.0
    %2323 = vmatpush1.msra.mxu0 %v592
    %2324 = vmatprep.subr.mxu0 0.0
    %2325 = vmatpush1.msra.mxu0 %v593
    %2326 = vmatprep.subr.mxu0 0.0
    %2327 = vmatpush1.msra.mxu0 %v594
    %2328 = vmatprep.subr.mxu0 0.0
    %2329 = vmatpush1.msra.mxu0 %v595
    %2330 = vmatprep.subr.mxu0 0.0
    %2331 = vmatpush1.msra.mxu0 %v596
    %2332 = vmatprep.subr.mxu0 0.0
    %2333 = vmatpush1.msra.mxu0 %v597
    %2334 = vmatprep.subr.mxu0 0.0
    %2335 = vmatpush1.msra.mxu0 %v598
    %2336 = vmatprep.subr.mxu0 0.0
    %2337 = vmatpush1.msra.mxu0 %v599
    %2338 = vmatprep.subr.mxu0 0.0
    %2339 = vmatpush1.msra.mxu0 %v600
    %2340 = vmatprep.subr.mxu0 0.0
    %2341 = vmatpush1.msra.mxu0 %v601
    %2342 = vmatprep.subr.mxu0 0.0
    %2343 = vmatpush1.msra.mxu0 %v602
    %2344 = vmatprep.subr.mxu0 0.0
    %2345 = vmatpush1.msra.mxu0 %v603
    %2346 = vmatprep.mubr.f32.mxu0 %v984
    %2347 = vmatmul.mubr.f32.gmra.mrb[0].mxu0 %v982
    %v2348 = vpop.f32.mrb[0].mxu0
    %v2349 = vadd.f32 %v2279, %v2348
    %v2350 = vpop.f32.mrb[0].mxu0
    %2351 = vdwg.mxu0
    %2352 = vmatprep.subr.mxu0 0.0
    %2353 = vmatpush1.msra.mxu0 %v604
    %2354 = vmatprep.subr.mxu0 0.0
    %2355 = vmatpush1.msra.mxu0 %v605
    %2356 = vmatprep.subr.mxu0 0.0
    %2357 = vmatpush1.msra.mxu0 %v606
    %2358 = vmatprep.subr.mxu0 0.0
    %2359 = vmatpush1.msra.mxu0 %v607
    %2360 = vmatprep.subr.mxu0 0.0
    %2361 = vmatpush1.msra.mxu0 %v608
    %2362 = vmatprep.subr.mxu0 0.0
    %2363 = vmatpush1.msra.mxu0 %v609
    %2364 = vmatprep.subr.mxu0 0.0
    %2365 = vmatpush1.msra.mxu0 %v610
    %2366 = vmatprep.subr.mxu0 0.0
    %2367 = vmatpush1.msra.mxu0 %v611
    %2368 = vmatprep.subr.mxu0 0.0
    %2369 = vmatpush1.msra.mxu0 %v612
    %2370 = vmatprep.subr.mxu0 0.0
    %2371 = vmatpush1.msra.mxu0 %v613
    %2372 = vmatprep.subr.mxu0 0.0
    %2373 = vmatpush1.msra.mxu0 %v614
    %2374 = vmatprep.subr.mxu0 0.0
    %2375 = vmatpush1.msra.mxu0 %v615
    %2376 = vmatprep.subr.mxu0 0.0
    %2377 = vmatpush1.msra.mxu0 %v616
    %2378 = vmatprep.subr.mxu0 0.0
    %2379 = vmatpush1.msra.mxu0 %v617
    %2380 = vmatprep.subr.mxu0 0.0
    %2381 = vmatpush1.msra.mxu0 %v618
    %2382 = vmatprep.subr.mxu0 0.0
    %2383 = vmatpush1.msra.mxu0 %v619
    %2384 = vmatprep.subr.mxu0 0.0
    %2385 = vmatpush1.msra.mxu0 %v620
    %2386 = vmatprep.subr.mxu0 0.0
    %2387 = vmatpush1.msra.mxu0 %v621
    %2388 = vmatprep.subr.mxu0 0.0
    %2389 = vmatpush1.msra.mxu0 %v622
    %2390 = vmatprep.subr.mxu0 0.0
    %2391 = vmatpush1.msra.mxu0 %v623
    %2392 = vmatprep.subr.mxu0 0.0
    %2393 = vmatpush1.msra.mxu0 %v624
    %2394 = vmatprep.subr.mxu0 0.0
    %2395 = vmatpush1.msra.mxu0 %v625
    %2396 = vmatprep.subr.mxu0 0.0
    %2397 = vmatpush1.msra.mxu0 %v626
    %2398 = vmatprep.subr.mxu0 0.0
    %2399 = vmatpush1.msra.mxu0 %v627
    %2400 = vmatprep.subr.mxu0 0.0
    %2401 = vmatpush1.msra.mxu0 %v628
    %2402 = vmatprep.subr.mxu0 0.0
    %2403 = vmatpush1.msra.mxu0 %v629
    %2404 = vmatprep.subr.mxu0 0.0
    %2405 = vmatpush1.msra.mxu0 %v630
    %2406 = vmatprep.subr.mxu0 0.0
    %2407 = vmatpush1.msra.mxu0 %v631
    %2408 = vmatprep.subr.mxu0 0.0
    %2409 = vmatpush1.msra.mxu0 %v632
    %2410 = vmatprep.subr.mxu0 0.0
    %2411 = vmatpush1.msra.mxu0 %v633
    %2412 = vmatprep.subr.mxu0 0.0
    %2413 = vmatpush1.msra.mxu0 %v634
    %2414 = vmatprep.subr.mxu0 0.0
    %2415 = vmatpush1.msra.mxu0 %v635
    %2416 = vmatprep.mubr.f32.mxu0 %v1000
    %2417 = vmatmul.mubr.f32.gmra.mrb[0].mxu0 %v992
    %v2418 = vpop.f32.mrb[0].mxu0
    %v2419 = vadd.f32 %v2349, %v2418
    %v2420 = vpop.f32.mrb[0].mxu0
    %2421 = vdwg.mxu0
    %2422 = vmatprep.subr.mxu0 0.0
    %2423 = vmatpush1.msra.mxu0 %v636
    %2424 = vmatprep.subr.mxu0 0.0
    %2425 = vmatpush1.msra.mxu0 %v637
    %2426 = vmatprep.subr.mxu0 0.0
    %2427 = vmatpush1.msra.mxu0 %v638
    %2428 = vmatprep.subr.mxu0 0.0
    %2429 = vmatpush1.msra.mxu0 %v639
    %2430 = vmatprep.subr.mxu0 0.0
    %2431 = vmatpush1.msra.mxu0 %v640
    %2432 = vmatprep.subr.mxu0 0.0
    %2433 = vmatpush1.msra.mxu0 %v641
    %2434 = vmatprep.subr.mxu0 0.0
    %2435 = vmatpush1.msra.mxu0 %v642
    %2436 = vmatprep.subr.mxu0 0.0
    %2437 = vmatpush1.msra.mxu0 %v643
    %2438 = vmatprep.subr.mxu0 0.0
    %2439 = vmatpush1.msra.mxu0 %v644
    %2440 = vmatprep.subr.mxu0 0.0
    %2441 = vmatpush1.msra.mxu0 %v645
    %2442 = vmatprep.subr.mxu0 0.0
    %2443 = vmatpush1.msra.mxu0 %v646
    %2444 = vmatprep.subr.mxu0 0.0
    %2445 = vmatpush1.msra.mxu0 %v647
    %2446 = vmatprep.subr.mxu0 0.0
    %2447 = vmatpush1.msra.mxu0 %v648
    %2448 = vmatprep.subr.mxu0 0.0
    %2449 = vmatpush1.msra.mxu0 %v649
    %2450 = vmatprep.subr.mxu0 0.0
    %2451 = vmatpush1.msra.mxu0 %v650
    %2452 = vmatprep.subr.mxu0 0.0
    %2453 = vmatpush1.msra.mxu0 %v651
    %2454 = vmatprep.subr.mxu0 0.0
    %2455 = vmatpush1.msra.mxu0 %v652
    %2456 = vmatprep.subr.mxu0 0.0
    %2457 = vmatpush1.msra.mxu0 %v653
    %2458 = vmatprep.subr.mxu0 0.0
    %2459 = vmatpush1.msra.mxu0 %v654
    %2460 = vmatprep.subr.mxu0 0.0
    %2461 = vmatpush1.msra.mxu0 %v655
    %2462 = vmatprep.subr.mxu0 0.0
    %2463 = vmatpush1.msra.mxu0 %v656
    %2464 = vmatprep.subr.mxu0 0.0
    %2465 = vmatpush1.msra.mxu0 %v657
    %2466 = vmatprep.subr.mxu0 0.0
    %2467 = vmatpush1.msra.mxu0 %v658
    %2468 = vmatprep.subr.mxu0 0.0
    %2469 = vmatpush1.msra.mxu0 %v659
    %2470 = vmatprep.subr.mxu0 0.0
    %2471 = vmatpush1.msra.mxu0 %v660
    %2472 = vmatprep.subr.mxu0 0.0
    %2473 = vmatpush1.msra.mxu0 %v661
    %2474 = vmatprep.subr.mxu0 0.0
    %2475 = vmatpush1.msra.mxu0 %v662
    %2476 = vmatprep.subr.mxu0 0.0
    %2477 = vmatpush1.msra.mxu0 %v663
    %2478 = vmatprep.subr.mxu0 0.0
    %2479 = vmatpush1.msra.mxu0 %v664
    %2480 = vmatprep.subr.mxu0 0.0
    %2481 = vmatpush1.msra.mxu0 %v665
    %2482 = vmatprep.subr.mxu0 0.0
    %2483 = vmatpush1.msra.mxu0 %v666
    %2484 = vmatprep.subr.mxu0 0.0
    %2485 = vmatpush1.msra.mxu0 %v667
    %2486 = vmatprep.mubr.f32.mxu0 %v1001
    %2487 = vmatmul.mubr.f32.gmra.mrb[0].mxu0 %v999
    %v2488 = vpop.f32.mrb[0].mxu0
    %v2489 = vadd.f32 %v2419, %v2488
    %v2490 = vpop.f32.mrb[0].mxu0
    %2491 = vdwg.mxu0
    %2492 = vmatprep.subr.mxu0 0.0
    %2493 = vmatpush1.msra.mxu0 %v668
    %2494 = vmatprep.subr.mxu0 0.0
    %2495 = vmatpush1.msra.mxu0 %v669
    %2496 = vmatprep.subr.mxu0 0.0
    %2497 = vmatpush1.msra.mxu0 %v670
    %2498 = vmatprep.subr.mxu0 0.0
    %2499 = vmatpush1.msra.mxu0 %v671
    %2500 = vmatprep.subr.mxu0 0.0
    %2501 = vmatpush1.msra.mxu0 %v672
    %2502 = vmatprep.subr.mxu0 0.0
    %2503 = vmatpush1.msra.mxu0 %v673
    %2504 = vmatprep.subr.mxu0 0.0
    %2505 = vmatpush1.msra.mxu0 %v674
    %2506 = vmatprep.subr.mxu0 0.0
    %2507 = vmatpush1.msra.mxu0 %v675
    %2508 = vmatprep.subr.mxu0 0.0
    %2509 = vmatpush1.msra.mxu0 %v676
    %2510 = vmatprep.subr.mxu0 0.0
    %2511 = vmatpush1.msra.mxu0 %v677
    %2512 = vmatprep.subr.mxu0 0.0
    %2513 = vmatpush1.msra.mxu0 %v678
    %2514 = vmatprep.subr.mxu0 0.0
    %2515 = vmatpush1.msra.mxu0 %v679
    %2516 = vmatprep.subr.mxu0 0.0
    %2517 = vmatpush1.msra.mxu0 %v680
    %2518 = vmatprep.subr.mxu0 0.0
    %2519 = vmatpush1.msra.mxu0 %v681
    %2520 = vmatprep.subr.mxu0 0.0
    %2521 = vmatpush1.msra.mxu0 %v682
    %2522 = vmatprep.subr.mxu0 0.0
    %2523 = vmatpush1.msra.mxu0 %v683
    %2524 = vmatprep.subr.mxu0 0.0
    %2525 = vmatpush1.msra.mxu0 %v684
    %2526 = vmatprep.subr.mxu0 0.0
    %2527 = vmatpush1.msra.mxu0 %v685
    %2528 = vmatprep.subr.mxu0 0.0
    %2529 = vmatpush1.msra.mxu0 %v686
    %2530 = vmatprep.subr.mxu0 0.0
    %2531 = vmatpush1.msra.mxu0 %v687
    %2532 = vmatprep.subr.mxu0 0.0
    %2533 = vmatpush1.msra.mxu0 %v688
    %2534 = vmatprep.subr.mxu0 0.0
    %2535 = vmatpush1.msra.mxu0 %v689
    %2536 = vmatprep.subr.mxu0 0.0
    %2537 = vmatpush1.msra.mxu0 %v690
    %2538 = vmatprep.subr.mxu0 0.0
    %2539 = vmatpush1.msra.mxu0 %v691
    %2540 = vmatprep.subr.mxu0 0.0
    %2541 = vmatpush1.msra.mxu0 %v692
    %2542 = vmatprep.subr.mxu0 0.0
    %2543 = vmatpush1.msra.mxu0 %v693
    %2544 = vmatprep.subr.mxu0 0.0
    %2545 = vmatpush1.msra.mxu0 %v694
    %2546 = vmatprep.subr.mxu0 0.0
    %2547 = vmatpush1.msra.mxu0 %v695
    %2548 = vmatprep.subr.mxu0 0.0
    %2549 = vmatpush1.msra.mxu0 %v696
    %2550 = vmatprep.subr.mxu0 0.0
    %2551 = vmatpush1.msra.mxu0 %v697
    %2552 = vmatprep.subr.mxu0 0.0
    %2553 = vmatpush1.msra.mxu0 %v698
    %2554 = vmatprep.subr.mxu0 0.0
    %2555 = vmatpush1.msra.mxu0 %v699
    %2556 = vmatprep.mubr.f32.mxu0 %v1017
    %2557 = vmatmul.mubr.f32.gmra.mrb[0].mxu0 %v1009
    %v2558 = vpop.f32.mrb[0].mxu0
    %v2559 = vadd.f32 %v2489, %v2558
    %v2560 = vpop.f32.mrb[0].mxu0
    %2561 = vdwg.mxu0
    %2562 = vmatprep.subr.mxu0 0.0
    %2563 = vmatpush1.msra.mxu0 %v700
    %2564 = vmatprep.subr.mxu0 0.0
    %2565 = vmatpush1.msra.mxu0 %v701
    %2566 = vmatprep.subr.mxu0 0.0
    %2567 = vmatpush1.msra.mxu0 %v702
    %2568 = vmatprep.subr.mxu0 0.0
    %2569 = vmatpush1.msra.mxu0 %v703
    %2570 = vmatprep.subr.mxu0 0.0
    %2571 = vmatpush1.msra.mxu0 %v704
    %2572 = vmatprep.subr.mxu0 0.0
    %2573 = vmatpush1.msra.mxu0 %v705
    %2574 = vmatprep.subr.mxu0 0.0
    %2575 = vmatpush1.msra.mxu0 %v706
    %2576 = vmatprep.subr.mxu0 0.0
    %2577 = vmatpush1.msra.mxu0 %v707
    %2578 = vmatprep.subr.mxu0 0.0
    %2579 = vmatpush1.msra.mxu0 %v708
    %2580 = vmatprep.subr.mxu0 0.0
    %2581 = vmatpush1.msra.mxu0 %v709
    %2582 = vmatprep.subr.mxu0 0.0
    %2583 = vmatpush1.msra.mxu0 %v710
    %2584 = vmatprep.subr.mxu0 0.0
    %2585 = vmatpush1.msra.mxu0 %v711
    %2586 = vmatprep.subr.mxu0 0.0
    %2587 = vmatpush1.msra.mxu0 %v712
    %2588 = vmatprep.subr.mxu0 0.0
    %2589 = vmatpush1.msra.mxu0 %v713
    %2590 = vmatprep.subr.mxu0 0.0
    %2591 = vmatpush1.msra.mxu0 %v714
    %2592 = vmatprep.subr.mxu0 0.0
    %2593 = vmatpush1.msra.mxu0 %v715
    %2594 = vmatprep.subr.mxu0 0.0
    %2595 = vmatpush1.msra.mxu0 %v716
    %2596 = vmatprep.subr.mxu0 0.0
    %2597 = vmatpush1.msra.mxu0 %v717
    %2598 = vmatprep.subr.mxu0 0.0
    %2599 = vmatpush1.msra.mxu0 %v718
    %2600 = vmatprep.subr.mxu0 0.0
    %2601 = vmatpush1.msra.mxu0 %v719
    %2602 = vmatprep.subr.mxu0 0.0
    %2603 = vmatpush1.msra.mxu0 %v720
    %2604 = vmatprep.subr.mxu0 0.0
    %2605 = vmatpush1.msra.mxu0 %v721
    %2606 = vmatprep.subr.mxu0 0.0
    %2607 = vmatpush1.msra.mxu0 %v722
    %2608 = vmatprep.subr.mxu0 0.0
    %2609 = vmatpush1.msra.mxu0 %v723
    %2610 = vmatprep.subr.mxu0 0.0
    %2611 = vmatpush1.msra.mxu0 %v724
    %2612 = vmatprep.subr.mxu0 0.0
    %2613 = vmatpush1.msra.mxu0 %v725
    %2614 = vmatprep.subr.mxu0 0.0
    %2615 = vmatpush1.msra.mxu0 %v726
    %2616 = vmatprep.subr.mxu0 0.0
    %2617 = vmatpush1.msra.mxu0 %v727
    %2618 = vmatprep.subr.mxu0 0.0
    %2619 = vmatpush1.msra.mxu0 %v728
    %2620 = vmatprep.subr.mxu0 0.0
    %2621 = vmatpush1.msra.mxu0 %v729
    %2622 = vmatprep.subr.mxu0 0.0
    %2623 = vmatpush1.msra.mxu0 %v730
    %2624 = vmatprep.subr.mxu0 0.0
    %2625 = vmatpush1.msra.mxu0 %v731
    %2626 = vmatprep.mubr.f32.mxu0 %v1018
    %2627 = vmatmul.mubr.f32.gmra.mrb[0].mxu0 %v1016
    %v2628 = vpop.f32.mrb[0].mxu0
    %v2629 = vadd.f32 %v2559, %v2628
    %v2630 = vpop.f32.mrb[0].mxu0
    %2631 = vdwg.mxu0
    %2632 = vmatprep.subr.mxu0 0.0
    %2633 = vmatpush1.msra.mxu0 %v732
    %2634 = vmatprep.subr.mxu0 0.0
    %2635 = vmatpush1.msra.mxu0 %v733
    %2636 = vmatprep.subr.mxu0 0.0
    %2637 = vmatpush1.msra.mxu0 %v734
    %2638 = vmatprep.subr.mxu0 0.0
    %2639 = vmatpush1.msra.mxu0 %v735
    %2640 = vmatprep.subr.mxu0 0.0
    %2641 = vmatpush1.msra.mxu0 %v736
    %2642 = vmatprep.subr.mxu0 0.0
    %2643 = vmatpush1.msra.mxu0 %v737
    %2644 = vmatprep.subr.mxu0 0.0
    %2645 = vmatpush1.msra.mxu0 %v738
    %2646 = vmatprep.subr.mxu0 0.0
    %2647 = vmatpush1.msra.mxu0 %v739
    %2648 = vmatprep.subr.mxu0 0.0
    %2649 = vmatpush1.msra.mxu0 %v740
    %2650 = vmatprep.subr.mxu0 0.0
    %2651 = vmatpush1.msra.mxu0 %v741
    %2652 = vmatprep.subr.mxu0 0.0
    %2653 = vmatpush1.msra.mxu0 %v742
    %2654 = vmatprep.subr.mxu0 0.0
    %2655 = vmatpush1.msra.mxu0 %v743
    %2656 = vmatprep.subr.mxu0 0.0
    %2657 = vmatpush1.msra.mxu0 %v744
    %2658 = vmatprep.subr.mxu0 0.0
    %2659 = vmatpush1.msra.mxu0 %v745
    %2660 = vmatprep.subr.mxu0 0.0
    %2661 = vmatpush1.msra.mxu0 %v746
    %2662 = vmatprep.subr.mxu0 0.0
    %2663 = vmatpush1.msra.mxu0 %v747
    %2664 = vmatprep.subr.mxu0 0.0
    %2665 = vmatpush1.msra.mxu0 %v748
    %2666 = vmatprep.subr.mxu0 0.0
    %2667 = vmatpush1.msra.mxu0 %v749
    %2668 = vmatprep.subr.mxu0 0.0
    %2669 = vmatpush1.msra.mxu0 %v750
    %2670 = vmatprep.subr.mxu0 0.0
    %2671 = vmatpush1.msra.mxu0 %v751
    %2672 = vmatprep.subr.mxu0 0.0
    %2673 = vmatpush1.msra.mxu0 %v752
    %2674 = vmatprep.subr.mxu0 0.0
    %2675 = vmatpush1.msra.mxu0 %v753
    %2676 = vmatprep.subr.mxu0 0.0
    %2677 = vmatpush1.msra.mxu0 %v754
    %2678 = vmatprep.subr.mxu0 0.0
    %2679 = vmatpush1.msra.mxu0 %v755
    %2680 = vmatprep.subr.mxu0 0.0
    %2681 = vmatpush1.msra.mxu0 %v756
    %2682 = vmatprep.subr.mxu0 0.0
    %2683 = vmatpush1.msra.mxu0 %v757
    %2684 = vmatprep.subr.mxu0 0.0
    %2685 = vmatpush1.msra.mxu0 %v758
    %2686 = vmatprep.subr.mxu0 0.0
    %2687 = vmatpush1.msra.mxu0 %v759
    %2688 = vmatprep.subr.mxu0 0.0
    %2689 = vmatpush1.msra.mxu0 %v760
    %2690 = vmatprep.subr.mxu0 0.0
    %2691 = vmatpush1.msra.mxu0 %v761
    %2692 = vmatprep.subr.mxu0 0.0
    %2693 = vmatpush1.msra.mxu0 %v762
    %2694 = vmatprep.subr.mxu0 0.0
    %2695 = vmatpush1.msra.mxu0 %v763
    %2696 = vmatprep.mubr.f32.mxu0 %v1034
    %2697 = vmatmul.mubr.f32.gmra.mrb[0].mxu0 %v1026
    %v2698 = vpop.f32.mrb[0].mxu0
    %v2699 = vadd.f32 %v2629, %v2698
    %v2700 = vpop.f32.mrb[0].mxu0
    %2701 = vdwg.mxu0
    %2702 = vmatprep.subr.mxu0 0.0
    %2703 = vmatpush1.msra.mxu0 %v764
    %2704 = vmatprep.subr.mxu0 0.0
    %2705 = vmatpush1.msra.mxu0 %v765
    %2706 = vmatprep.subr.mxu0 0.0
    %2707 = vmatpush1.msra.mxu0 %v766
    %2708 = vmatprep.subr.mxu0 0.0
    %2709 = vmatpush1.msra.mxu0 %v767
    %2710 = vmatprep.subr.mxu0 0.0
    %2711 = vmatpush1.msra.mxu0 %v768
    %2712 = vmatprep.subr.mxu0 0.0
    %2713 = vmatpush1.msra.mxu0 %v769
    %2714 = vmatprep.subr.mxu0 0.0
    %2715 = vmatpush1.msra.mxu0 %v770
    %2716 = vmatprep.subr.mxu0 0.0
    %2717 = vmatpush1.msra.mxu0 %v771
    %2718 = vmatprep.subr.mxu0 0.0
    %2719 = vmatpush1.msra.mxu0 %v772
    %2720 = vmatprep.subr.mxu0 0.0
    %2721 = vmatpush1.msra.mxu0 %v773
    %2722 = vmatprep.subr.mxu0 0.0
    %2723 = vmatpush1.msra.mxu0 %v774
    %2724 = vmatprep.subr.mxu0 0.0
    %2725 = vmatpush1.msra.mxu0 %v775
    %2726 = vmatprep.subr.mxu0 0.0
    %2727 = vmatpush1.msra.mxu0 %v776
    %2728 = vmatprep.subr.mxu0 0.0
    %2729 = vmatpush1.msra.mxu0 %v777
    %2730 = vmatprep.subr.mxu0 0.0
    %2731 = vmatpush1.msra.mxu0 %v778
    %2732 = vmatprep.subr.mxu0 0.0
    %2733 = vmatpush1.msra.mxu0 %v779
    %2734 = vmatprep.subr.mxu0 0.0
    %2735 = vmatpush1.msra.mxu0 %v780
    %2736 = vmatprep.subr.mxu0 0.0
    %2737 = vmatpush1.msra.mxu0 %v781
    %2738 = vmatprep.subr.mxu0 0.0
    %2739 = vmatpush1.msra.mxu0 %v782
    %2740 = vmatprep.subr.mxu0 0.0
    %2741 = vmatpush1.msra.mxu0 %v783
    %2742 = vmatprep.subr.mxu0 0.0
    %2743 = vmatpush1.msra.mxu0 %v784
    %2744 = vmatprep.subr.mxu0 0.0
    %2745 = vmatpush1.msra.mxu0 %v785
    %2746 = vmatprep.subr.mxu0 0.0
    %2747 = vmatpush1.msra.mxu0 %v786
    %2748 = vmatprep.subr.mxu0 0.0
    %2749 = vmatpush1.msra.mxu0 %v787
    %2750 = vmatprep.subr.mxu0 0.0
    %2751 = vmatpush1.msra.mxu0 %v788
    %2752 = vmatprep.subr.mxu0 0.0
    %2753 = vmatpush1.msra.mxu0 %v789
    %2754 = vmatprep.subr.mxu0 0.0
    %2755 = vmatpush1.msra.mxu0 %v790
    %2756 = vmatprep.subr.mxu0 0.0
    %2757 = vmatpush1.msra.mxu0 %v791
    %2758 = vmatprep.subr.mxu0 0.0
    %2759 = vmatpush1.msra.mxu0 %v792
    %2760 = vmatprep.subr.mxu0 0.0
    %2761 = vmatpush1.msra.mxu0 %v793
    %2762 = vmatprep.subr.mxu0 0.0
    %2763 = vmatpush1.msra.mxu0 %v794
    %2764 = vmatprep.subr.mxu0 0.0
    %2765 = vmatpush1.msra.mxu0 %v795
    %2766 = vmatprep.mubr.f32.mxu0 %v1035
    %2767 = vmatmul.mubr.f32.gmra.mrb[0].mxu0 %v1033
    %v2768 = vpop.f32.mrb[0].mxu0
    %v2769 = vadd.f32 %v2699, %v2768
    %v2770 = vpop.f32.mrb[0].mxu0
    %2771 = vdwg.mxu0
    %2772 = vmatprep.subr.mxu0 0.0
    %2773 = vmatpush1.msra.mxu0 %v796
    %2774 = vmatprep.subr.mxu0 0.0
    %2775 = vmatpush1.msra.mxu0 %v797
    %2776 = vmatprep.subr.mxu0 0.0
    %2777 = vmatpush1.msra.mxu0 %v798
    %2778 = vmatprep.subr.mxu0 0.0
    %2779 = vmatpush1.msra.mxu0 %v799
    %2780 = vmatprep.subr.mxu0 0.0
    %2781 = vmatpush1.msra.mxu0 %v800
    %2782 = vmatprep.subr.mxu0 0.0
    %2783 = vmatpush1.msra.mxu0 %v801
    %2784 = vmatprep.subr.mxu0 0.0
    %2785 = vmatpush1.msra.mxu0 %v802
    %2786 = vmatprep.subr.mxu0 0.0
    %2787 = vmatpush1.msra.mxu0 %v803
    %2788 = vmatprep.subr.mxu0 0.0
    %2789 = vmatpush1.msra.mxu0 %v804
    %2790 = vmatprep.subr.mxu0 0.0
    %2791 = vmatpush1.msra.mxu0 %v805
    %2792 = vmatprep.subr.mxu0 0.0
    %2793 = vmatpush1.msra.mxu0 %v806
    %2794 = vmatprep.subr.mxu0 0.0
    %2795 = vmatpush1.msra.mxu0 %v807
    %2796 = vmatprep.subr.mxu0 0.0
    %2797 = vmatpush1.msra.mxu0 %v808
    %2798 = vmatprep.subr.mxu0 0.0
    %2799 = vmatpush1.msra.mxu0 %v809
    %2800 = vmatprep.subr.mxu0 0.0
    %2801 = vmatpush1.msra.mxu0 %v810
    %2802 = vmatprep.subr.mxu0 0.0
    %2803 = vmatpush1.msra.mxu0 %v811
    %2804 = vmatprep.subr.mxu0 0.0
    %2805 = vmatpush1.msra.mxu0 0.0
    %2806 = vmatprep.subr.mxu0 0.0
    %2807 = vmatpush1.msra.mxu0 0.0
    %2808 = vmatprep.subr.mxu0 0.0
    %2809 = vmatpush1.msra.mxu0 0.0
    %2810 = vmatprep.subr.mxu0 0.0
    %2811 = vmatpush1.msra.mxu0 0.0
    %2812 = vmatprep.subr.mxu0 0.0
    %2813 = vmatpush1.msra.mxu0 0.0
    %2814 = vmatprep.subr.mxu0 0.0
    %2815 = vmatpush1.msra.mxu0 0.0
    %2816 = vmatprep.subr.mxu0 0.0
    %2817 = vmatpush1.msra.mxu0 0.0
    %2818 = vmatprep.subr.mxu0 0.0
    %2819 = vmatpush1.msra.mxu0 0.0
    %2820 = vmatprep.subr.mxu0 0.0
    %2821 = vmatpush1.msra.mxu0 0.0
    %2822 = vmatprep.subr.mxu0 0.0
    %2823 = vmatpush1.msra.mxu0 0.0
    %2824 = vmatprep.subr.mxu0 0.0
    %2825 = vmatpush1.msra.mxu0 0.0
    %2826 = vmatprep.subr.mxu0 0.0
    %2827 = vmatpush1.msra.mxu0 0.0
    %2828 = vmatprep.subr.mxu0 0.0
    %2829 = vmatpush1.msra.mxu0 0.0
    %2830 = vmatprep.subr.mxu0 0.0
    %2831 = vmatpush1.msra.mxu0 0.0
    %2832 = vmatprep.subr.mxu0 0.0
    %2833 = vmatpush1.msra.mxu0 0.0
    %2834 = vmatprep.subr.mxu0 0.0
    %2835 = vmatpush1.msra.mxu0 0.0
    %2836 = vmatprep.mubr.f32.mxu0 0.0
    %2837 = vmatmul.mubr.f32.gmra.mrb[0].mxu0 %v1042
    %v2838 = vpop.f32.mrb[0].mxu0
    %v2839 = vadd.f32 %v2769, %v2838
    %v2840 = vpop.f32.mrb[0].mxu0
    %2841 = vdwg.mxu0
    %2842 = vst [vmem:[#allocation2] sm:$0x3] %v2839
    // Predicated region
    $region14: #{fashion_classifier_forward.5} parent=1 // pred_check
      _
    $region15: #{fashion_classifier_forward.5} parent=1 // pred_check_branch
      %2844 = sbr.rel (0) target = $region17
    $region16: #{fashion_classifier_forward.5} parent=1 // pred_region
      %s2846 = ssub.s32 32, 32
      %2847 = vsyncadd [#allocation3], %s2846
      %s2849 = sshll.u32 [#allocation2], 4
      %s2850 = int_to_ptr.vmem [resolvable:$true] %s2849
      %2852 = dma.vmem_to_hbm [thread:$0]  %s2850, 32, %s3, [#allocation3]
    $region17: #{fashion_classifier_forward.5} parent=1 // pred_fallthru
      _
    // Predicated region
    $region18: #{fashion_classifier_forward.5} parent=1 // pred_check
      _
    $region19: #{fashion_classifier_forward.5} parent=1 // pred_check_branch
      %2854 = sbr.rel (0) target = $region21
    $region20: #{fashion_classifier_forward.5} parent=1 // pred_region
      %2855 = dma.done [#allocation3], 32
    $region21: #{fashion_classifier_forward.5} parent=1 // pred_fallthru
      _
    %2856 = vsyncpa [#allocation3], 1

</llo_original>
